<compile_context>
chip_gen: v5e
topology: v5e:2x2
jax: 0.10.0
libtpu: 0.0.40
codegen_flags: <defaults>
</compile_context>

<pallas_src>
import functools

import jax
import jax.numpy as jnp
from jax.experimental import pallas as pl
from jax.experimental.pallas import tpu as pltpu


def _round_up(x, m):
    return ((x + m - 1) // m) * m


# --------------------------------------------------------------------------
# Pallas kernel 1: M-tiled matmul + bias (+ optional ReLU)
# --------------------------------------------------------------------------
def _mm_bias_kernel(a_ref, w_ref, b_ref, o_ref, *, relu):
    acc = jnp.dot(a_ref[...], w_ref[...], preferred_element_type=jnp.float32)
    acc = acc + b_ref[...]
    if relu:
        acc = jnp.maximum(acc, 0.0)
    o_ref[...] = acc.astype(o_ref.dtype)


def matmul_bias(a, w, b, *, relu=False, out_dtype=jnp.float32, tm_max=256):
    """out = relu?(a @ w + b); a:(M,K), w:(K,N), b:(N,) -> (M,N) out_dtype.

    MXU operands cast to bf16 (f32 accumulation / epilogue). M is tiled via the
    grid; K and N are zero-padded to multiples of 128 for aligned lane-dense
    access. tm_max=256 keeps two row tiles on M=512 layers (v7x megacore).
    """
    M, K = a.shape
    _, N = w.shape

    Kp = _round_up(K, 128)
    Np = _round_up(N, 128)
    Mp = _round_up(M, 8)
    tm = Mp if Mp <= tm_max else tm_max        # tm multiple of 8
    Mp = _round_up(Mp, tm)

    a_p = jnp.pad(a.astype(jnp.bfloat16), ((0, Mp - M), (0, Kp - K)))
    w_p = jnp.pad(w.astype(jnp.bfloat16), ((0, Kp - K), (0, Np - N)))
    b_p = jnp.pad(b.astype(jnp.float32), (0, Np - N)).reshape(1, Np)

    # Cost estimate from TRUE shapes (padded dims would inflate it 4-40x).
    flops = 2 * M * K * N
    bytes_accessed = (M * K * 2 + K * N * 2 + N * 4
                      + M * N * jnp.dtype(out_dtype).itemsize)

    out = pl.pallas_call(
        functools.partial(_mm_bias_kernel, relu=relu),
        out_shape=jax.ShapeDtypeStruct((Mp, Np), out_dtype),
        grid=(Mp // tm,),
        in_specs=[
            pl.BlockSpec((tm, Kp), lambda i: (i, 0)),
            pl.BlockSpec((Kp, Np), lambda i: (0, 0)),
            pl.BlockSpec((1, Np), lambda i: (0, 0)),
        ],
        out_specs=pl.BlockSpec((tm, Np), lambda i: (i, 0)),
        compiler_params=pltpu.CompilerParams(
            dimension_semantics=("parallel",),
            vmem_limit_bytes=32 * 1024 * 1024,      # well under v7x's 64 MiB
        ),
        cost_estimate=pl.CostEstimate(
            flops=int(flops), transcendentals=0,
            bytes_accessed=int(bytes_accessed)),
    )(a_p, w_p, b_p)
    return out[:M, :N]


# --------------------------------------------------------------------------
# Pallas kernel 2: fused latent tail
#   1x1 encoder head -> z = mu + exp(log_sigma) * eps -> 1x1 decoder stem + ReLU
# --------------------------------------------------------------------------
def _latent_kernel(h_ref, we_ref, be_ref, eps_ref, wd_ref, bd_ref,
                   muls_ref, d_ref, *, latent_dim):
    L = latent_dim
    h = h_ref[...]                                               # (B, Din) bf16
    enc = jnp.dot(h, we_ref[...],
                  preferred_element_type=jnp.float32) + be_ref[...]   # (B, 2L)
    mu, ls = enc[:, :L], enc[:, L:]
    z = mu + jnp.exp(ls) * eps_ref[...]
    d = jnp.dot(z.astype(wd_ref.dtype), wd_ref[...],
                preferred_element_type=jnp.float32) + bd_ref[...]
    muls_ref[...] = enc                                          # mu | log_sigma packed
    d_ref[...] = jnp.maximum(d, 0.0).astype(d_ref.dtype)


def latent_fused(h, w_enc, b_enc, eps, w_dec, b_dec, latent_dim):
    """h:(B,Din); w_enc:(Din,2L); b_enc:(2L,); eps:(B,L); w_dec:(L,Dd); b_dec:(Dd,)."""
    B, Din = h.shape
    L = latent_dim
    Dd = w_dec.shape[1]

    muls, d = pl.pallas_call(
        functools.partial(_latent_kernel, latent_dim=L),
        out_shape=(jax.ShapeDtypeStruct((B, 2 * L), jnp.float32),
                   jax.ShapeDtypeStruct((B, Dd), jnp.bfloat16)),
        grid=(1,),
        in_specs=[
            pl.BlockSpec((B, Din), lambda i: (0, 0)),
            pl.BlockSpec((Din, 2 * L), lambda i: (0, 0)),
            pl.BlockSpec((1, 2 * L), lambda i: (0, 0)),
            pl.BlockSpec((B, L), lambda i: (0, 0)),
            pl.BlockSpec((L, Dd), lambda i: (0, 0)),
            pl.BlockSpec((1, Dd), lambda i: (0, 0)),
        ],
        out_specs=(
            pl.BlockSpec((B, 2 * L), lambda i: (0, 0)),
            pl.BlockSpec((B, Dd), lambda i: (0, 0)),
        ),
    )(h.astype(jnp.bfloat16), w_enc.astype(jnp.bfloat16),
      b_enc.reshape(1, 2 * L).astype(jnp.float32), eps,
      w_dec.astype(jnp.bfloat16), b_dec.reshape(1, Dd).astype(jnp.float32))
    return muls[:, :L], muls[:, L:], d


# --------------------------------------------------------------------------
# Conv glue (im2col / phase folding are layout work; the matmuls are Pallas)
# --------------------------------------------------------------------------
def im2col(x_nhwc, kh, kw, stride, pad_h, pad_w):
    """pad_h / pad_w are (lo, hi) tuples."""
    B, H, W, C = x_nhwc.shape
    xp = jnp.pad(x_nhwc, ((0, 0), pad_h, pad_w, (0, 0)))
    Ho = (H + pad_h[0] + pad_h[1] - kh) // stride + 1
    Wo = (W + pad_w[0] + pad_w[1] - kw) // stride + 1
    cols = []
    for ki in range(kh):
        for kj in range(kw):
            cols.append(
                xp[:, ki:ki + stride * Ho:stride, kj:kj + stride * Wo:stride, :])
    patches = jnp.stack(cols, axis=3)                  # (B, Ho, Wo, kh*kw, C)
    return patches.reshape(B * Ho * Wo, kh * kw * C), Ho, Wo


def conv2d(x_nhwc, w, b, stride, pad, relu, out_dtype=jnp.bfloat16):
    """w has PyTorch Conv2d layout (C_out, C_in, kh, kw)."""
    C_out, C_in, kh, kw = w.shape
    B = x_nhwc.shape[0]
    a, Ho, Wo = im2col(x_nhwc, kh, kw, stride, (pad, pad), (pad, pad))
    w_mat = jnp.transpose(w, (2, 3, 1, 0)).reshape(kh * kw * C_in, C_out)
    out = matmul_bias(a, w_mat, b, relu=relu, out_dtype=out_dtype)
    return out.reshape(B, Ho, Wo, C_out)


# phase p (output parity) -> {3x3 window offset d : kernel tap index}
_TAPS = ({0: 3, 1: 1}, {1: 2, 2: 0})


def conv_transpose2d(x_nhwc, w, b, relu, out_dtype=jnp.bfloat16):
    """ConvTranspose2d(k=4, s=2, p=1) with the 4 output-parity phases folded
    into the output-channel (N) dimension of ONE matmul.

    out[2u+py, 2v+px, co] = sum_{dy,dx,ci} x[u-1+dy, v-1+dx, ci] * W[py,px][dy,dx,ci,co]
    where W[py,px][dy,dx] = w[:, :, TAPS[py][dy], TAPS[px][dx]] if the tap exists,
    else 0.  One 3x3/stride-1 im2col (K=9*C_in) feeds a combined (9*C_in, 4*C_out)
    weight, so there is no zero-inserted input and no G=4 micro-matmul axis.
    """
    C_in, C_out, kh, kw = w.shape
    assert kh == 4 and kw == 4
    B, H, W, _ = x_nhwc.shape

    a, _, _ = im2col(x_nhwc, 3, 3, 1, (1, 1), (1, 1))    # (B*H*W, 9*C_in)

    blocks = []
    for py in range(2):
        for px in range(2):
            blk = jnp.zeros((3, 3, C_in, C_out), w.dtype)
            for dy, ky in _TAPS[py].items():
                for dx, kx in _TAPS[px].items():
                    blk = blk.at[dy, dx].set(w[:, :, ky, kx])
            blocks.append(blk)
    w_comb = jnp.concatenate(blocks, axis=-1)            # (3, 3, C_in, 4*C_out)
    w_mat = w_comb.reshape(9 * C_in, 4 * C_out)
    b_comb = jnp.tile(b, 4)                              # (4*C_out,)

    out = matmul_bias(a, w_mat, b_comb, relu=relu, out_dtype=out_dtype)
    out = out.reshape(B, H, W, 2, 2, C_out)              # (b, u, v, py, px, c)
    out = jnp.transpose(out, (0, 1, 3, 2, 4, 5))         # (b, u, py, v, px, c)
    return out.reshape(B, 2 * H, 2 * W, C_out)


# --------------------------------------------------------------------------
# Parameters (deterministic synthetic init, PyTorch-style uniform bounds)
# --------------------------------------------------------------------------
def init_params(key, latent_dim):
    params = {"enc": [], "dec": []}

    enc_specs = [  # (C_in, C_out, k)
        (3, 32, 3), (32, 64, 3), (64, 128, 3), (128, 128, 3), (128, 128, 3),
        (128, 2 * latent_dim, 1),
    ]
    for (cin, cout, k) in enc_specs:
        key, kw_, kb_ = jax.random.split(key, 3)
        bound = 1.0 / float(cin * k * k) ** 0.5
        w = jax.random.uniform(kw_, (cout, cin, k, k), jnp.float32, -bound, bound)
        b = jax.random.uniform(kb_, (cout,), jnp.float32, -bound, bound)
        params["enc"].append((w, b))

    # decoder stem: Conv2d(latent, 128, 1, 1, 0)
    key, kw_, kb_ = jax.random.split(key, 3)
    bound = 1.0 / float(latent_dim) ** 0.5
    w = jax.random.uniform(kw_, (128, latent_dim, 1, 1), jnp.float32, -bound, bound)
    b = jax.random.uniform(kb_, (128,), jnp.float32, -bound, bound)
    params["dec"].append((w, b))

    dect_specs = [  # ConvTranspose2d (C_in, C_out, k)
        (128, 128, 4), (128, 128, 4), (128, 64, 4), (64, 32, 4), (32, 3, 4),
    ]
    for (cin, cout, k) in dect_specs:
        key, kw_, kb_ = jax.random.split(key, 3)
        bound = 1.0 / float(cin * k * k) ** 0.5
        w = jax.random.uniform(kw_, (cin, cout, k, k), jnp.float32, -bound, bound)
        b = jax.random.uniform(kb_, (cout,), jnp.float32, -bound, bound)
        params["dec"].append((w, b))

    return params


# --------------------------------------------------------------------------
# VAE forward
# --------------------------------------------------------------------------
def vae_forward(params, x_nchw, noise_key, latent_dim):
    B = x_nchw.shape[0]
    h = jnp.transpose(x_nchw, (0, 2, 3, 1)).astype(jnp.bfloat16)   # NCHW -> NHWC

    # ---- Encoder (5 stride-2 convs + ReLU), bf16 intermediates ----
    for (w, b) in params["enc"][:-1]:
        h = conv2d(h, w, b, stride=2, pad=1, relu=True,
                   out_dtype=jnp.bfloat16)                         # 32->16->8->4->2->1

    # ---- Fused latent tail: 1x1 head -> reparameterize -> 1x1 stem + ReLU ----
    w_head, b_head = params["enc"][-1]                   # (2L, 128, 1, 1)
    w_enc = jnp.transpose(w_head, (2, 3, 1, 0)).reshape(128, 2 * latent_dim)
    w_stem, b_stem = params["dec"][0]                    # (128, L, 1, 1)
    w_dec = jnp.transpose(w_stem, (2, 3, 1, 0)).reshape(latent_dim, 128)
    eps = jax.random.normal(noise_key, (B, latent_dim), jnp.float32)

    mu, log_sigma, d = latent_fused(
        h.reshape(B, 128), w_enc, b_head, eps, w_dec, b_stem, latent_dim)

    # ---- Decoder (5 transpose convs, last without ReLU, f32 output) ----
    d = d.reshape(B, 1, 1, 128)
    n_dec = len(params["dec"])
    for idx in range(1, n_dec):
        w, b = params["dec"][idx]
        last = idx == n_dec - 1
        d = conv_transpose2d(d, w, b, relu=not last,
                             out_dtype=jnp.float32 if last else jnp.bfloat16)

    recon = jnp.transpose(d, (0, 3, 1, 2))               # NHWC -> NCHW
    return (recon,
            mu.reshape(B, latent_dim, 1, 1),
            log_sigma.reshape(B, latent_dim, 1, 1))


# --------------------------------------------------------------------------
# Main
# --------------------------------------------------------------------------
if __name__ == "__main__":
    latent_dim = 16
    batch = 2

    root = jax.random.PRNGKey(0)
    k_x, k_noise, k_params = jax.random.split(root, 3)

    # Encoder downsamples 32 -> 16 -> 8 -> 4 -> 2 -> 1, so input is 3x32x32.
    x = jax.random.normal(k_x, (batch, 3, 32, 32), jnp.float32)
    params = init_params(k_params, latent_dim)

    fwd = jax.jit(functools.partial(vae_forward, latent_dim=latent_dim))
    recon, mu, log_sigma = fwd(params, x, k_noise)
    jax.block_until_ready((recon, mu, log_sigma))

    assert recon.shape == (batch, 3, 32, 32)
    assert recon.dtype == jnp.float32
    assert mu.shape == (batch, latent_dim, 1, 1)
    assert log_sigma.shape == (batch, latent_dim, 1, 1)
    assert bool(jnp.all(jnp.isfinite(recon)))
    assert bool(jnp.all(jnp.isfinite(mu)))
    assert bool(jnp.all(jnp.isfinite(log_sigma)))

    print("KERNEL_OK")
</pallas_src>

<mosaic_0001>
module attributes {stable_mosaic.version = 11 : i64} {
  func.func @_mm_bias_kernel(%arg0: i32, %arg1: memref<256x128xbf16, #tpu.memory_space<vmem>>, %arg2: memref<128x128xbf16, #tpu.memory_space<vmem>>, %arg3: memref<1x128xf32, #tpu.memory_space<vmem>>, %arg4: memref<256x128xbf16, #tpu.memory_space<vmem>>) attributes {dimension_semantics = [#tpu.dimension_semantics<parallel>], iteration_bounds = array<i64: 2>, scalar_prefetch = 0 : i64, scratch_operands = 0 : i64, tpu.core_type = #tpu.core_type<tc>, window_params = [{transform_indices = @transform_0, window_bounds = array<i64: 256, 128>}, {pipeline_mode = #tpu.pipeline_mode<synchronous>, transform_indices = @transform_1, window_bounds = array<i64: 128, 128>}, {pipeline_mode = #tpu.pipeline_mode<synchronous>, transform_indices = @transform_2, window_bounds = array<i64: 1, 128>}, {transform_indices = @transform_3, window_bounds = array<i64: 256, 128>}]} {
    %c0 = arith.constant 0 : index
    %c0_0 = arith.constant 0 : index
    %0 = vector.load %arg1[%c0, %c0_0] : memref<256x128xbf16, #tpu.memory_space<vmem>>, vector<256x128xbf16>
    %c0_1 = arith.constant 0 : index
    %c0_2 = arith.constant 0 : index
    %1 = vector.load %arg2[%c0_1, %c0_2] : memref<128x128xbf16, #tpu.memory_space<vmem>>, vector<128x128xbf16>
    %cst = arith.constant dense<0.000000e+00> : vector<256x128xf32>
    %2 = tpu.matmul %0, %1, %cst {dimension_numbers = #tpu.dot_dimension_numbers<[1], [0], [0], [1], [0, 0, 1, 1], [], []>} : vector<256x128xbf16>, vector<128x128xbf16>, vector<256x128xf32> -> vector<256x128xf32>
    %c0_3 = arith.constant 0 : index
    %c0_4 = arith.constant 0 : index
    %3 = vector.load %arg3[%c0_3, %c0_4] : memref<1x128xf32, #tpu.memory_space<vmem>>, vector<1x128xf32>
    %4 = vector.broadcast %3 : vector<1x128xf32> to vector<256x128xf32>
    %5 = arith.addf %2, %4 : vector<256x128xf32>
    %cst_5 = arith.constant 0.000000e+00 : f32
    %6 = vector.broadcast %cst_5 : f32 to vector<256x128xf32>
    %7 = arith.maximumf %5, %6 : vector<256x128xf32>
    %8 = arith.truncf %7 : vector<256x128xf32> to vector<256x128xbf16>
    %c0_6 = arith.constant 0 : index
    %c0_7 = arith.constant 0 : index
    %9 = vector.load %arg4[%c0_6, %c0_7] : memref<256x128xbf16, #tpu.memory_space<vmem>>, vector<256x128xbf16>
    tpu.vector_store %arg4[%c0_6, %c0_7], %8 {strides = array<i32>} : memref<256x128xbf16, #tpu.memory_space<vmem>>, vector<256x128xbf16>,
    return
  }
  func.func @transform_0(%arg0: i32) -> (i32, i32) {
    %c0_i32 = arith.constant 0 : i32
    %c0_i32_0 = arith.constant 0 : i32
    return %arg0, %c0_i32 : i32, i32
  }
  func.func @transform_1(%arg0: i32) -> (i32, i32) {
    %c0_i32 = arith.constant 0 : i32
    %c0_i32_0 = arith.constant 0 : i32
    %c0_i32_1 = arith.constant 0 : i32
    return %c0_i32, %c0_i32_0 : i32, i32
  }
  func.func @transform_2(%arg0: i32) -> (i32, i32) {
    %c0_i32 = arith.constant 0 : i32
    %c0_i32_0 = arith.constant 0 : i32
    %c0_i32_1 = arith.constant 0 : i32
    return %c0_i32, %c0_i32_0 : i32, i32
  }
  func.func @transform_3(%arg0: i32) -> (i32, i32) {
    %c0_i32 = arith.constant 0 : i32
    %c0_i32_0 = arith.constant 0 : i32
    return %arg0, %c0_i32 : i32, i32
  }
}

module attributes {stable_mosaic.version = 11 : i64} {
  func.func @_mm_bias_kernel(%arg0: i32, %arg1: memref<128x384xbf16, #tpu.memory_space<vmem>>, %arg2: memref<384x128xbf16, #tpu.memory_space<vmem>>, %arg3: memref<1x128xf32, #tpu.memory_space<vmem>>, %arg4: memref<128x128xbf16, #tpu.memory_space<vmem>>) attributes {dimension_semantics = [#tpu.dimension_semantics<parallel>], iteration_bounds = array<i64: 1>, scalar_prefetch = 0 : i64, scratch_operands = 0 : i64, tpu.core_type = #tpu.core_type<tc>, window_params = [{transform_indices = @transform_0, window_bounds = array<i64: 128, 384>}, {pipeline_mode = #tpu.pipeline_mode<synchronous>, transform_indices = @transform_1, window_bounds = array<i64: 384, 128>}, {pipeline_mode = #tpu.pipeline_mode<synchronous>, transform_indices = @transform_2, window_bounds = array<i64: 1, 128>}, {transform_indices = @transform_3, window_bounds = array<i64: 128, 128>}]} {
    %c0 = arith.constant 0 : index
    %c0_0 = arith.constant 0 : index
    %0 = vector.load %arg1[%c0, %c0_0] : memref<128x384xbf16, #tpu.memory_space<vmem>>, vector<128x384xbf16>
    %c0_1 = arith.constant 0 : index
    %c0_2 = arith.constant 0 : index
    %1 = vector.load %arg2[%c0_1, %c0_2] : memref<384x128xbf16, #tpu.memory_space<vmem>>, vector<384x128xbf16>
    %cst = arith.constant dense<0.000000e+00> : vector<128x128xf32>
    %2 = tpu.matmul %0, %1, %cst {dimension_numbers = #tpu.dot_dimension_numbers<[1], [0], [0], [1], [0, 0, 1, 1], [], []>} : vector<128x384xbf16>, vector<384x128xbf16>, vector<128x128xf32> -> vector<128x128xf32>
    %c0_3 = arith.constant 0 : index
    %c0_4 = arith.constant 0 : index
    %3 = vector.load %arg3[%c0_3, %c0_4] : memref<1x128xf32, #tpu.memory_space<vmem>>, vector<1x128xf32>
    %4 = vector.broadcast %3 : vector<1x128xf32> to vector<128x128xf32>
    %5 = arith.addf %2, %4 : vector<128x128xf32>
    %cst_5 = arith.constant 0.000000e+00 : f32
    %6 = vector.broadcast %cst_5 : f32 to vector<128x128xf32>
    %7 = arith.maximumf %5, %6 : vector<128x128xf32>
    %8 = arith.truncf %7 : vector<128x128xf32> to vector<128x128xbf16>
    %c0_6 = arith.constant 0 : index
    %c0_7 = arith.constant 0 : index
    %9 = vector.load %arg4[%c0_6, %c0_7] : memref<128x128xbf16, #tpu.memory_space<vmem>>, vector<128x128xbf16>
    tpu.vector_store %arg4[%c0_6, %c0_7], %8 {strides = array<i32>} : memref<128x128xbf16, #tpu.memory_space<vmem>>, vector<128x128xbf16>,
    return
  }
  func.func @transform_0(%arg0: i32) -> (i32, i32) {
    %c0_i32 = arith.constant 0 : i32
    %c0_i32_0 = arith.constant 0 : i32
    return %arg0, %c0_i32 : i32, i32
  }
  func.func @transform_1(%arg0: i32) -> (i32, i32) {
    %c0_i32 = arith.constant 0 : i32
    %c0_i32_0 = arith.constant 0 : i32
    %c0_i32_1 = arith.constant 0 : i32
    return %c0_i32, %c0_i32_0 : i32, i32
  }
  func.func @transform_2(%arg0: i32) -> (i32, i32) {
    %c0_i32 = arith.constant 0 : i32
    %c0_i32_0 = arith.constant 0 : i32
    %c0_i32_1 = arith.constant 0 : i32
    return %c0_i32, %c0_i32_0 : i32, i32
  }
  func.func @transform_3(%arg0: i32) -> (i32, i32) {
    %c0_i32 = arith.constant 0 : i32
    %c0_i32_0 = arith.constant 0 : i32
    return %arg0, %c0_i32 : i32, i32
  }
}

module attributes {stable_mosaic.version = 11 : i64} {
  func.func @_mm_bias_kernel(%arg0: i32, %arg1: memref<32x640xbf16, #tpu.memory_space<vmem>>, %arg2: memref<640x128xbf16, #tpu.memory_space<vmem>>, %arg3: memref<1x128xf32, #tpu.memory_space<vmem>>, %arg4: memref<32x128xbf16, #tpu.memory_space<vmem>>) attributes {dimension_semantics = [#tpu.dimension_semantics<parallel>], iteration_bounds = array<i64: 1>, scalar_prefetch = 0 : i64, scratch_operands = 0 : i64, tpu.core_type = #tpu.core_type<tc>, window_params = [{transform_indices = @transform_0, window_bounds = array<i64: 32, 640>}, {pipeline_mode = #tpu.pipeline_mode<synchronous>, transform_indices = @transform_1, window_bounds = array<i64: 640, 128>}, {pipeline_mode = #tpu.pipeline_mode<synchronous>, transform_indices = @transform_2, window_bounds = array<i64: 1, 128>}, {transform_indices = @transform_3, window_bounds = array<i64: 32, 128>}]} {
    %c0 = arith.constant 0 : index
    %c0_0 = arith.constant 0 : index
    %0 = vector.load %arg1[%c0, %c0_0] : memref<32x640xbf16, #tpu.memory_space<vmem>>, vector<32x640xbf16>
    %c0_1 = arith.constant 0 : index
    %c0_2 = arith.constant 0 : index
    %1 = vector.load %arg2[%c0_1, %c0_2] : memref<640x128xbf16, #tpu.memory_space<vmem>>, vector<640x128xbf16>
    %cst = arith.constant dense<0.000000e+00> : vector<32x128xf32>
    %2 = tpu.matmul %0, %1, %cst {dimension_numbers = #tpu.dot_dimension_numbers<[1], [0], [0], [1], [0, 0, 1, 1], [], []>} : vector<32x640xbf16>, vector<640x128xbf16>, vector<32x128xf32> -> vector<32x128xf32>
    %c0_3 = arith.constant 0 : index
    %c0_4 = arith.constant 0 : index
    %3 = vector.load %arg3[%c0_3, %c0_4] : memref<1x128xf32, #tpu.memory_space<vmem>>, vector<1x128xf32>
    %4 = vector.broadcast %3 : vector<1x128xf32> to vector<32x128xf32>
    %5 = arith.addf %2, %4 : vector<32x128xf32>
    %cst_5 = arith.constant 0.000000e+00 : f32
    %6 = vector.broadcast %cst_5 : f32 to vector<32x128xf32>
    %7 = arith.maximumf %5, %6 : vector<32x128xf32>
    %8 = arith.truncf %7 : vector<32x128xf32> to vector<32x128xbf16>
    %c0_6 = arith.constant 0 : index
    %c0_7 = arith.constant 0 : index
    %9 = vector.load %arg4[%c0_6, %c0_7] : memref<32x128xbf16, #tpu.memory_space<vmem>>, vector<32x128xbf16>
    tpu.vector_store %arg4[%c0_6, %c0_7], %8 {strides = array<i32>} : memref<32x128xbf16, #tpu.memory_space<vmem>>, vector<32x128xbf16>,
    return
  }
  func.func @transform_0(%arg0: i32) -> (i32, i32) {
    %c0_i32 = arith.constant 0 : i32
    %c0_i32_0 = arith.constant 0 : i32
    return %arg0, %c0_i32 : i32, i32
  }
  func.func @transform_1(%arg0: i32) -> (i32, i32) {
    %c0_i32 = arith.constant 0 : i32
    %c0_i32_0 = arith.constant 0 : i32
    %c0_i32_1 = arith.constant 0 : i32
    return %c0_i32, %c0_i32_0 : i32, i32
  }
  func.func @transform_2(%arg0: i32) -> (i32, i32) {
    %c0_i32 = arith.constant 0 : i32
    %c0_i32_0 = arith.constant 0 : i32
    %c0_i32_1 = arith.constant 0 : i32
    return %c0_i32, %c0_i32_0 : i32, i32
  }
  func.func @transform_3(%arg0: i32) -> (i32, i32) {
    %c0_i32 = arith.constant 0 : i32
    %c0_i32_0 = arith.constant 0 : i32
    return %arg0, %c0_i32 : i32, i32
  }
}

module attributes {stable_mosaic.version = 11 : i64} {
  func.func @_mm_bias_kernel(%arg0: i32, %arg1: memref<8x1152xbf16, #tpu.memory_space<vmem>>, %arg2: memref<1152x128xbf16, #tpu.memory_space<vmem>>, %arg3: memref<1x128xf32, #tpu.memory_space<vmem>>, %arg4: memref<8x128xbf16, #tpu.memory_space<vmem>>) attributes {dimension_semantics = [#tpu.dimension_semantics<parallel>], iteration_bounds = array<i64: 1>, scalar_prefetch = 0 : i64, scratch_operands = 0 : i64, tpu.core_type = #tpu.core_type<tc>, window_params = [{transform_indices = @transform_0, window_bounds = array<i64: 8, 1152>}, {pipeline_mode = #tpu.pipeline_mode<synchronous>, transform_indices = @transform_1, window_bounds = array<i64: 1152, 128>}, {pipeline_mode = #tpu.pipeline_mode<synchronous>, transform_indices = @transform_2, window_bounds = array<i64: 1, 128>}, {transform_indices = @transform_3, window_bounds = array<i64: 8, 128>}]} {
    %c0 = arith.constant 0 : index
    %c0_0 = arith.constant 0 : index
    %0 = vector.load %arg1[%c0, %c0_0] : memref<8x1152xbf16, #tpu.memory_space<vmem>>, vector<8x1152xbf16>
    %c0_1 = arith.constant 0 : index
    %c0_2 = arith.constant 0 : index
    %1 = vector.load %arg2[%c0_1, %c0_2] : memref<1152x128xbf16, #tpu.memory_space<vmem>>, vector<1152x128xbf16>
    %cst = arith.constant dense<0.000000e+00> : vector<8x128xf32>
    %2 = tpu.matmul %0, %1, %cst {dimension_numbers = #tpu.dot_dimension_numbers<[1], [0], [0], [1], [0, 0, 1, 1], [], []>} : vector<8x1152xbf16>, vector<1152x128xbf16>, vector<8x128xf32> -> vector<8x128xf32>
    %c0_3 = arith.constant 0 : index
    %c0_4 = arith.constant 0 : index
    %3 = vector.load %arg3[%c0_3, %c0_4] : memref<1x128xf32, #tpu.memory_space<vmem>>, vector<1x128xf32>
    %4 = vector.broadcast %3 : vector<1x128xf32> to vector<8x128xf32>
    %5 = arith.addf %2, %4 : vector<8x128xf32>
    %cst_5 = arith.constant 0.000000e+00 : f32
    %6 = vector.broadcast %cst_5 : f32 to vector<8x128xf32>
    %7 = arith.maximumf %5, %6 : vector<8x128xf32>
    %8 = arith.truncf %7 : vector<8x128xf32> to vector<8x128xbf16>
    %c0_6 = arith.constant 0 : index
    %c0_7 = arith.constant 0 : index
    %9 = vector.load %arg4[%c0_6, %c0_7] : memref<8x128xbf16, #tpu.memory_space<vmem>>, vector<8x128xbf16>
    tpu.vector_store %arg4[%c0_6, %c0_7], %8 {strides = array<i32>} : memref<8x128xbf16, #tpu.memory_space<vmem>>, vector<8x128xbf16>,
    return
  }
  func.func @transform_0(%arg0: i32) -> (i32, i32) {
    %c0_i32 = arith.constant 0 : i32
    %c0_i32_0 = arith.constant 0 : i32
    return %arg0, %c0_i32 : i32, i32
  }
  func.func @transform_1(%arg0: i32) -> (i32, i32) {
    %c0_i32 = arith.constant 0 : i32
    %c0_i32_0 = arith.constant 0 : i32
    %c0_i32_1 = arith.constant 0 : i32
    return %c0_i32, %c0_i32_0 : i32, i32
  }
  func.func @transform_2(%arg0: i32) -> (i32, i32) {
    %c0_i32 = arith.constant 0 : i32
    %c0_i32_0 = arith.constant 0 : i32
    %c0_i32_1 = arith.constant 0 : i32
    return %c0_i32, %c0_i32_0 : i32, i32
  }
  func.func @transform_3(%arg0: i32) -> (i32, i32) {
    %c0_i32 = arith.constant 0 : i32
    %c0_i32_0 = arith.constant 0 : i32
    return %arg0, %c0_i32 : i32, i32
  }
}

module attributes {stable_mosaic.version = 11 : i64} {
  func.func @_mm_bias_kernel(%arg0: i32, %arg1: memref<8x1152xbf16, #tpu.memory_space<vmem>>, %arg2: memref<1152x128xbf16, #tpu.memory_space<vmem>>, %arg3: memref<1x128xf32, #tpu.memory_space<vmem>>, %arg4: memref<8x128xbf16, #tpu.memory_space<vmem>>) attributes {dimension_semantics = [#tpu.dimension_semantics<parallel>], iteration_bounds = array<i64: 1>, scalar_prefetch = 0 : i64, scratch_operands = 0 : i64, tpu.core_type = #tpu.core_type<tc>, window_params = [{transform_indices = @transform_0, window_bounds = array<i64: 8, 1152>}, {pipeline_mode = #tpu.pipeline_mode<synchronous>, transform_indices = @transform_1, window_bounds = array<i64: 1152, 128>}, {pipeline_mode = #tpu.pipeline_mode<synchronous>, transform_indices = @transform_2, window_bounds = array<i64: 1, 128>}, {transform_indices = @transform_3, window_bounds = array<i64: 8, 128>}]} {
    %c0 = arith.constant 0 : index
    %c0_0 = arith.constant 0 : index
    %0 = vector.load %arg1[%c0, %c0_0] : memref<8x1152xbf16, #tpu.memory_space<vmem>>, vector<8x1152xbf16>
    %c0_1 = arith.constant 0 : index
    %c0_2 = arith.constant 0 : index
    %1 = vector.load %arg2[%c0_1, %c0_2] : memref<1152x128xbf16, #tpu.memory_space<vmem>>, vector<1152x128xbf16>
    %cst = arith.constant dense<0.000000e+00> : vector<8x128xf32>
    %2 = tpu.matmul %0, %1, %cst {dimension_numbers = #tpu.dot_dimension_numbers<[1], [0], [0], [1], [0, 0, 1, 1], [], []>} : vector<8x1152xbf16>, vector<1152x128xbf16>, vector<8x128xf32> -> vector<8x128xf32>
    %c0_3 = arith.constant 0 : index
    %c0_4 = arith.constant 0 : index
    %3 = vector.load %arg3[%c0_3, %c0_4] : memref<1x128xf32, #tpu.memory_space<vmem>>, vector<1x128xf32>
    %4 = vector.broadcast %3 : vector<1x128xf32> to vector<8x128xf32>
    %5 = arith.addf %2, %4 : vector<8x128xf32>
    %cst_5 = arith.constant 0.000000e+00 : f32
    %6 = vector.broadcast %cst_5 : f32 to vector<8x128xf32>
    %7 = arith.maximumf %5, %6 : vector<8x128xf32>
    %8 = arith.truncf %7 : vector<8x128xf32> to vector<8x128xbf16>
    %c0_6 = arith.constant 0 : index
    %c0_7 = arith.constant 0 : index
    %9 = vector.load %arg4[%c0_6, %c0_7] : memref<8x128xbf16, #tpu.memory_space<vmem>>, vector<8x128xbf16>
    tpu.vector_store %arg4[%c0_6, %c0_7], %8 {strides = array<i32>} : memref<8x128xbf16, #tpu.memory_space<vmem>>, vector<8x128xbf16>,
    return
  }
  func.func @transform_0(%arg0: i32) -> (i32, i32) {
    %c0_i32 = arith.constant 0 : i32
    %c0_i32_0 = arith.constant 0 : i32
    return %arg0, %c0_i32 : i32, i32
  }
  func.func @transform_1(%arg0: i32) -> (i32, i32) {
    %c0_i32 = arith.constant 0 : i32
    %c0_i32_0 = arith.constant 0 : i32
    %c0_i32_1 = arith.constant 0 : i32
    return %c0_i32, %c0_i32_0 : i32, i32
  }
  func.func @transform_2(%arg0: i32) -> (i32, i32) {
    %c0_i32 = arith.constant 0 : i32
    %c0_i32_0 = arith.constant 0 : i32
    %c0_i32_1 = arith.constant 0 : i32
    return %c0_i32, %c0_i32_0 : i32, i32
  }
  func.func @transform_3(%arg0: i32) -> (i32, i32) {
    %c0_i32 = arith.constant 0 : i32
    %c0_i32_0 = arith.constant 0 : i32
    return %arg0, %c0_i32 : i32, i32
  }
}

module attributes {stable_mosaic.version = 11 : i64} {
  func.func @_latent_kernel(%arg0: i32, %arg1: memref<2x128xbf16, #tpu.memory_space<vmem>>, %arg2: memref<128x32xbf16, #tpu.memory_space<vmem>>, %arg3: memref<1x32xf32, #tpu.memory_space<vmem>>, %arg4: memref<2x16xf32, #tpu.memory_space<vmem>>, %arg5: memref<16x128xbf16, #tpu.memory_space<vmem>>, %arg6: memref<1x128xf32, #tpu.memory_space<vmem>>, %arg7: memref<2x32xf32, #tpu.memory_space<vmem>>, %arg8: memref<2x128xbf16, #tpu.memory_space<vmem>>) attributes {dimension_semantics = [#tpu.dimension_semantics<arbitrary>], iteration_bounds = array<i64: 1>, scalar_prefetch = 0 : i64, scratch_operands = 0 : i64, tpu.core_type = #tpu.core_type<tc>, window_params = [{pipeline_mode = #tpu.pipeline_mode<synchronous>, transform_indices = @transform_0, window_bounds = array<i64: 2, 128>}, {pipeline_mode = #tpu.pipeline_mode<synchronous>, transform_indices = @transform_1, window_bounds = array<i64: 128, 32>}, {pipeline_mode = #tpu.pipeline_mode<synchronous>, transform_indices = @transform_2, window_bounds = array<i64: 1, 32>}, {pipeline_mode = #tpu.pipeline_mode<synchronous>, transform_indices = @transform_3, window_bounds = array<i64: 2, 16>}, {pipeline_mode = #tpu.pipeline_mode<synchronous>, transform_indices = @transform_4, window_bounds = array<i64: 16, 128>}, {pipeline_mode = #tpu.pipeline_mode<synchronous>, transform_indices = @transform_5, window_bounds = array<i64: 1, 128>}, {pipeline_mode = #tpu.pipeline_mode<synchronous>, transform_indices = @transform_6, window_bounds = array<i64: 2, 32>}, {pipeline_mode = #tpu.pipeline_mode<synchronous>, transform_indices = @transform_7, window_bounds = array<i64: 2, 128>}]} {
    %c0 = arith.constant 0 : index
    %c0_0 = arith.constant 0 : index
    %0 = vector.load %arg1[%c0, %c0_0] : memref<2x128xbf16, #tpu.memory_space<vmem>>, vector<2x128xbf16>
    %c0_1 = arith.constant 0 : index
    %c0_2 = arith.constant 0 : index
    %1 = vector.load %arg2[%c0_1, %c0_2] : memref<128x32xbf16, #tpu.memory_space<vmem>>, vector<128x32xbf16>
    %cst = arith.constant dense<0.000000e+00> : vector<2x32xf32>
    %2 = tpu.matmul %0, %1, %cst {dimension_numbers = #tpu.dot_dimension_numbers<[1], [0], [0], [1], [0, 0, 1, 1], [], []>} : vector<2x128xbf16>, vector<128x32xbf16>, vector<2x32xf32> -> vector<2x32xf32>
    %c0_3 = arith.constant 0 : index
    %c0_4 = arith.constant 0 : index
    %3 = vector.load %arg3[%c0_3, %c0_4] : memref<1x32xf32, #tpu.memory_space<vmem>>, vector<1x32xf32>
    %4 = vector.broadcast %3 : vector<1x32xf32> to vector<2x32xf32>
    %5 = arith.addf %2, %4 : vector<2x32xf32>
    %6 = vector.extract_strided_slice %5 {offsets = [0, 0], sizes = [2, 16], strides = [1, 1]} : vector<2x32xf32> to vector<2x16xf32>
    %7 = vector.extract_strided_slice %5 {offsets = [0, 16], sizes = [2, 16], strides = [1, 1]} : vector<2x32xf32> to vector<2x16xf32>
    %8 = math.exp %7 : vector<2x16xf32>
    %c0_5 = arith.constant 0 : index
    %c0_6 = arith.constant 0 : index
    %9 = vector.load %arg4[%c0_5, %c0_6] : memref<2x16xf32, #tpu.memory_space<vmem>>, vector<2x16xf32>
    %10 = arith.mulf %8, %9 : vector<2x16xf32>
    %11 = arith.addf %6, %10 : vector<2x16xf32>
    %12 = arith.truncf %11 : vector<2x16xf32> to vector<2x16xbf16>
    %c0_7 = arith.constant 0 : index
    %c0_8 = arith.constant 0 : index
    %13 = vector.load %arg5[%c0_7, %c0_8] : memref<16x128xbf16, #tpu.memory_space<vmem>>, vector<16x128xbf16>
    %cst_9 = arith.constant dense<0.000000e+00> : vector<2x128xf32>
    %14 = tpu.matmul %12, %13, %cst_9 {dimension_numbers = #tpu.dot_dimension_numbers<[1], [0], [0], [1], [0, 0, 1, 1], [], []>} : vector<2x16xbf16>, vector<16x128xbf16>, vector<2x128xf32> -> vector<2x128xf32>
    %c0_10 = arith.constant 0 : index
    %c0_11 = arith.constant 0 : index
    %15 = vector.load %arg6[%c0_10, %c0_11] : memref<1x128xf32, #tpu.memory_space<vmem>>, vector<1x128xf32>
    %16 = vector.broadcast %15 : vector<1x128xf32> to vector<2x128xf32>
    %17 = arith.addf %14, %16 : vector<2x128xf32>
    %c0_12 = arith.constant 0 : index
    %c0_13 = arith.constant 0 : index
    %18 = vector.load %arg7[%c0_12, %c0_13] : memref<2x32xf32, #tpu.memory_space<vmem>>, vector<2x32xf32>
    tpu.vector_store %arg7[%c0_12, %c0_13], %5 {strides = array<i32>} : memref<2x32xf32, #tpu.memory_space<vmem>>, vector<2x32xf32>,
    %cst_14 = arith.constant 0.000000e+00 : f32
    %19 = vector.broadcast %cst_14 : f32 to vector<2x128xf32>
    %20 = arith.maximumf %17, %19 : vector<2x128xf32>
    %21 = arith.truncf %20 : vector<2x128xf32> to vector<2x128xbf16>
    %c0_15 = arith.constant 0 : index
    %c0_16 = arith.constant 0 : index
    %22 = vector.load %arg8[%c0_15, %c0_16] : memref<2x128xbf16, #tpu.memory_space<vmem>>, vector<2x128xbf16>
    tpu.vector_store %arg8[%c0_15, %c0_16], %21 {strides = array<i32>} : memref<2x128xbf16, #tpu.memory_space<vmem>>, vector<2x128xbf16>,
    return
  }
  func.func @transform_0(%arg0: i32) -> (i32, i32) {
    %c0_i32 = arith.constant 0 : i32
    %c0_i32_0 = arith.constant 0 : i32
    %c0_i32_1 = arith.constant 0 : i32
    return %c0_i32, %c0_i32_0 : i32, i32
  }
  func.func @transform_1(%arg0: i32) -> (i32, i32) {
    %c0_i32 = arith.constant 0 : i32
    %c0_i32_0 = arith.constant 0 : i32
    %c0_i32_1 = arith.constant 0 : i32
    return %c0_i32, %c0_i32_0 : i32, i32
  }
  func.func @transform_2(%arg0: i32) -> (i32, i32) {
    %c0_i32 = arith.constant 0 : i32
    %c0_i32_0 = arith.constant 0 : i32
    %c0_i32_1 = arith.constant 0 : i32
    return %c0_i32, %c0_i32_0 : i32, i32
  }
  func.func @transform_3(%arg0: i32) -> (i32, i32) {
    %c0_i32 = arith.constant 0 : i32
    %c0_i32_0 = arith.constant 0 : i32
    %c0_i32_1 = arith.constant 0 : i32
    return %c0_i32, %c0_i32_0 : i32, i32
  }
  func.func @transform_4(%arg0: i32) -> (i32, i32) {
    %c0_i32 = arith.constant 0 : i32
    %c0_i32_0 = arith.constant 0 : i32
    %c0_i32_1 = arith.constant 0 : i32
    return %c0_i32, %c0_i32_0 : i32, i32
  }
  func.func @transform_5(%arg0: i32) -> (i32, i32) {
    %c0_i32 = arith.constant 0 : i32
    %c0_i32_0 = arith.constant 0 : i32
    %c0_i32_1 = arith.constant 0 : i32
    return %c0_i32, %c0_i32_0 : i32, i32
  }
  func.func @transform_6(%arg0: i32) -> (i32, i32) {
    %c0_i32 = arith.constant 0 : i32
    %c0_i32_0 = arith.constant 0 : i32
    %c0_i32_1 = arith.constant 0 : i32
    return %c0_i32, %c0_i32_0 : i32, i32
  }
  func.func @transform_7(%arg0: i32) -> (i32, i32) {
    %c0_i32 = arith.constant 0 : i32
    %c0_i32_0 = arith.constant 0 : i32
    %c0_i32_1 = arith.constant 0 : i32
    return %c0_i32, %c0_i32_0 : i32, i32
  }
}

module attributes {stable_mosaic.version = 11 : i64} {
  func.func @_mm_bias_kernel(%arg0: i32, %arg1: memref<8x1152xbf16, #tpu.memory_space<vmem>>, %arg2: memref<1152x512xbf16, #tpu.memory_space<vmem>>, %arg3: memref<1x512xf32, #tpu.memory_space<vmem>>, %arg4: memref<8x512xbf16, #tpu.memory_space<vmem>>) attributes {dimension_semantics = [#tpu.dimension_semantics<parallel>], iteration_bounds = array<i64: 1>, scalar_prefetch = 0 : i64, scratch_operands = 0 : i64, tpu.core_type = #tpu.core_type<tc>, window_params = [{transform_indices = @transform_0, window_bounds = array<i64: 8, 1152>}, {pipeline_mode = #tpu.pipeline_mode<synchronous>, transform_indices = @transform_1, window_bounds = array<i64: 1152, 512>}, {pipeline_mode = #tpu.pipeline_mode<synchronous>, transform_indices = @transform_2, window_bounds = array<i64: 1, 512>}, {transform_indices = @transform_3, window_bounds = array<i64: 8, 512>}]} {
    %c0 = arith.constant 0 : index
    %c0_0 = arith.constant 0 : index
    %0 = vector.load %arg1[%c0, %c0_0] : memref<8x1152xbf16, #tpu.memory_space<vmem>>, vector<8x1152xbf16>
    %c0_1 = arith.constant 0 : index
    %c0_2 = arith.constant 0 : index
    %1 = vector.load %arg2[%c0_1, %c0_2] : memref<1152x512xbf16, #tpu.memory_space<vmem>>, vector<1152x512xbf16>
    %cst = arith.constant dense<0.000000e+00> : vector<8x512xf32>
    %2 = tpu.matmul %0, %1, %cst {dimension_numbers = #tpu.dot_dimension_numbers<[1], [0], [0], [1], [0, 0, 1, 1], [], []>} : vector<8x1152xbf16>, vector<1152x512xbf16>, vector<8x512xf32> -> vector<8x512xf32>
    %c0_3 = arith.constant 0 : index
    %c0_4 = arith.constant 0 : index
    %3 = vector.load %arg3[%c0_3, %c0_4] : memref<1x512xf32, #tpu.memory_space<vmem>>, vector<1x512xf32>
    %4 = vector.broadcast %3 : vector<1x512xf32> to vector<8x512xf32>
    %5 = arith.addf %2, %4 : vector<8x512xf32>
    %cst_5 = arith.constant 0.000000e+00 : f32
    %6 = vector.broadcast %cst_5 : f32 to vector<8x512xf32>
    %7 = arith.maximumf %5, %6 : vector<8x512xf32>
    %8 = arith.truncf %7 : vector<8x512xf32> to vector<8x512xbf16>
    %c0_6 = arith.constant 0 : index
    %c0_7 = arith.constant 0 : index
    %9 = vector.load %arg4[%c0_6, %c0_7] : memref<8x512xbf16, #tpu.memory_space<vmem>>, vector<8x512xbf16>
    tpu.vector_store %arg4[%c0_6, %c0_7], %8 {strides = array<i32>} : memref<8x512xbf16, #tpu.memory_space<vmem>>, vector<8x512xbf16>,
    return
  }
  func.func @transform_0(%arg0: i32) -> (i32, i32) {
    %c0_i32 = arith.constant 0 : i32
    %c0_i32_0 = arith.constant 0 : i32
    return %arg0, %c0_i32 : i32, i32
  }
  func.func @transform_1(%arg0: i32) -> (i32, i32) {
    %c0_i32 = arith.constant 0 : i32
    %c0_i32_0 = arith.constant 0 : i32
    %c0_i32_1 = arith.constant 0 : i32
    return %c0_i32, %c0_i32_0 : i32, i32
  }
  func.func @transform_2(%arg0: i32) -> (i32, i32) {
    %c0_i32 = arith.constant 0 : i32
    %c0_i32_0 = arith.constant 0 : i32
    %c0_i32_1 = arith.constant 0 : i32
    return %c0_i32, %c0_i32_0 : i32, i32
  }
  func.func @transform_3(%arg0: i32) -> (i32, i32) {
    %c0_i32 = arith.constant 0 : i32
    %c0_i32_0 = arith.constant 0 : i32
    return %arg0, %c0_i32 : i32, i32
  }
}

module attributes {stable_mosaic.version = 11 : i64} {
  func.func @_mm_bias_kernel(%arg0: i32, %arg1: memref<8x1152xbf16, #tpu.memory_space<vmem>>, %arg2: memref<1152x512xbf16, #tpu.memory_space<vmem>>, %arg3: memref<1x512xf32, #tpu.memory_space<vmem>>, %arg4: memref<8x512xbf16, #tpu.memory_space<vmem>>) attributes {dimension_semantics = [#tpu.dimension_semantics<parallel>], iteration_bounds = array<i64: 1>, scalar_prefetch = 0 : i64, scratch_operands = 0 : i64, tpu.core_type = #tpu.core_type<tc>, window_params = [{transform_indices = @transform_0, window_bounds = array<i64: 8, 1152>}, {pipeline_mode = #tpu.pipeline_mode<synchronous>, transform_indices = @transform_1, window_bounds = array<i64: 1152, 512>}, {pipeline_mode = #tpu.pipeline_mode<synchronous>, transform_indices = @transform_2, window_bounds = array<i64: 1, 512>}, {transform_indices = @transform_3, window_bounds = array<i64: 8, 512>}]} {
    %c0 = arith.constant 0 : index
    %c0_0 = arith.constant 0 : index
    %0 = vector.load %arg1[%c0, %c0_0] : memref<8x1152xbf16, #tpu.memory_space<vmem>>, vector<8x1152xbf16>
    %c0_1 = arith.constant 0 : index
    %c0_2 = arith.constant 0 : index
    %1 = vector.load %arg2[%c0_1, %c0_2] : memref<1152x512xbf16, #tpu.memory_space<vmem>>, vector<1152x512xbf16>
    %cst = arith.constant dense<0.000000e+00> : vector<8x512xf32>
    %2 = tpu.matmul %0, %1, %cst {dimension_numbers = #tpu.dot_dimension_numbers<[1], [0], [0], [1], [0, 0, 1, 1], [], []>} : vector<8x1152xbf16>, vector<1152x512xbf16>, vector<8x512xf32> -> vector<8x512xf32>
    %c0_3 = arith.constant 0 : index
    %c0_4 = arith.constant 0 : index
    %3 = vector.load %arg3[%c0_3, %c0_4] : memref<1x512xf32, #tpu.memory_space<vmem>>, vector<1x512xf32>
    %4 = vector.broadcast %3 : vector<1x512xf32> to vector<8x512xf32>
    %5 = arith.addf %2, %4 : vector<8x512xf32>
    %cst_5 = arith.constant 0.000000e+00 : f32
    %6 = vector.broadcast %cst_5 : f32 to vector<8x512xf32>
    %7 = arith.maximumf %5, %6 : vector<8x512xf32>
    %8 = arith.truncf %7 : vector<8x512xf32> to vector<8x512xbf16>
    %c0_6 = arith.constant 0 : index
    %c0_7 = arith.constant 0 : index
    %9 = vector.load %arg4[%c0_6, %c0_7] : memref<8x512xbf16, #tpu.memory_space<vmem>>, vector<8x512xbf16>
    tpu.vector_store %arg4[%c0_6, %c0_7], %8 {strides = array<i32>} : memref<8x512xbf16, #tpu.memory_space<vmem>>, vector<8x512xbf16>,
    return
  }
  func.func @transform_0(%arg0: i32) -> (i32, i32) {
    %c0_i32 = arith.constant 0 : i32
    %c0_i32_0 = arith.constant 0 : i32
    return %arg0, %c0_i32 : i32, i32
  }
  func.func @transform_1(%arg0: i32) -> (i32, i32) {
    %c0_i32 = arith.constant 0 : i32
    %c0_i32_0 = arith.constant 0 : i32
    %c0_i32_1 = arith.constant 0 : i32
    return %c0_i32, %c0_i32_0 : i32, i32
  }
  func.func @transform_2(%arg0: i32) -> (i32, i32) {
    %c0_i32 = arith.constant 0 : i32
    %c0_i32_0 = arith.constant 0 : i32
    %c0_i32_1 = arith.constant 0 : i32
    return %c0_i32, %c0_i32_0 : i32, i32
  }
  func.func @transform_3(%arg0: i32) -> (i32, i32) {
    %c0_i32 = arith.constant 0 : i32
    %c0_i32_0 = arith.constant 0 : i32
    return %arg0, %c0_i32 : i32, i32
  }
}

module attributes {stable_mosaic.version = 11 : i64} {
  func.func @_mm_bias_kernel(%arg0: i32, %arg1: memref<32x1152xbf16, #tpu.memory_space<vmem>>, %arg2: memref<1152x256xbf16, #tpu.memory_space<vmem>>, %arg3: memref<1x256xf32, #tpu.memory_space<vmem>>, %arg4: memref<32x256xbf16, #tpu.memory_space<vmem>>) attributes {dimension_semantics = [#tpu.dimension_semantics<parallel>], iteration_bounds = array<i64: 1>, scalar_prefetch = 0 : i64, scratch_operands = 0 : i64, tpu.core_type = #tpu.core_type<tc>, window_params = [{transform_indices = @transform_0, window_bounds = array<i64: 32, 1152>}, {pipeline_mode = #tpu.pipeline_mode<synchronous>, transform_indices = @transform_1, window_bounds = array<i64: 1152, 256>}, {pipeline_mode = #tpu.pipeline_mode<synchronous>, transform_indices = @transform_2, window_bounds = array<i64: 1, 256>}, {transform_indices = @transform_3, window_bounds = array<i64: 32, 256>}]} {
    %c0 = arith.constant 0 : index
    %c0_0 = arith.constant 0 : index
    %0 = vector.load %arg1[%c0, %c0_0] : memref<32x1152xbf16, #tpu.memory_space<vmem>>, vector<32x1152xbf16>
    %c0_1 = arith.constant 0 : index
    %c0_2 = arith.constant 0 : index
    %1 = vector.load %arg2[%c0_1, %c0_2] : memref<1152x256xbf16, #tpu.memory_space<vmem>>, vector<1152x256xbf16>
    %cst = arith.constant dense<0.000000e+00> : vector<32x256xf32>
    %2 = tpu.matmul %0, %1, %cst {dimension_numbers = #tpu.dot_dimension_numbers<[1], [0], [0], [1], [0, 0, 1, 1], [], []>} : vector<32x1152xbf16>, vector<1152x256xbf16>, vector<32x256xf32> -> vector<32x256xf32>
    %c0_3 = arith.constant 0 : index
    %c0_4 = arith.constant 0 : index
    %3 = vector.load %arg3[%c0_3, %c0_4] : memref<1x256xf32, #tpu.memory_space<vmem>>, vector<1x256xf32>
    %4 = vector.broadcast %3 : vector<1x256xf32> to vector<32x256xf32>
    %5 = arith.addf %2, %4 : vector<32x256xf32>
    %cst_5 = arith.constant 0.000000e+00 : f32
    %6 = vector.broadcast %cst_5 : f32 to vector<32x256xf32>
    %7 = arith.maximumf %5, %6 : vector<32x256xf32>
    %8 = arith.truncf %7 : vector<32x256xf32> to vector<32x256xbf16>
    %c0_6 = arith.constant 0 : index
    %c0_7 = arith.constant 0 : index
    %9 = vector.load %arg4[%c0_6, %c0_7] : memref<32x256xbf16, #tpu.memory_space<vmem>>, vector<32x256xbf16>
    tpu.vector_store %arg4[%c0_6, %c0_7], %8 {strides = array<i32>} : memref<32x256xbf16, #tpu.memory_space<vmem>>, vector<32x256xbf16>,
    return
  }
  func.func @transform_0(%arg0: i32) -> (i32, i32) {
    %c0_i32 = arith.constant 0 : i32
    %c0_i32_0 = arith.constant 0 : i32
    return %arg0, %c0_i32 : i32, i32
  }
  func.func @transform_1(%arg0: i32) -> (i32, i32) {
    %c0_i32 = arith.constant 0 : i32
    %c0_i32_0 = arith.constant 0 : i32
    %c0_i32_1 = arith.constant 0 : i32
    return %c0_i32, %c0_i32_0 : i32, i32
  }
  func.func @transform_2(%arg0: i32) -> (i32, i32) {
    %c0_i32 = arith.constant 0 : i32
    %c0_i32_0 = arith.constant 0 : i32
    %c0_i32_1 = arith.constant 0 : i32
    return %c0_i32, %c0_i32_0 : i32, i32
  }
  func.func @transform_3(%arg0: i32) -> (i32, i32) {
    %c0_i32 = arith.constant 0 : i32
    %c0_i32_0 = arith.constant 0 : i32
    return %arg0, %c0_i32 : i32, i32
  }
}

module attributes {stable_mosaic.version = 11 : i64} {
  func.func @_mm_bias_kernel(%arg0: i32, %arg1: memref<128x640xbf16, #tpu.memory_space<vmem>>, %arg2: memref<640x128xbf16, #tpu.memory_space<vmem>>, %arg3: memref<1x128xf32, #tpu.memory_space<vmem>>, %arg4: memref<128x128xbf16, #tpu.memory_space<vmem>>) attributes {dimension_semantics = [#tpu.dimension_semantics<parallel>], iteration_bounds = array<i64: 1>, scalar_prefetch = 0 : i64, scratch_operands = 0 : i64, tpu.core_type = #tpu.core_type<tc>, window_params = [{transform_indices = @transform_0, window_bounds = array<i64: 128, 640>}, {pipeline_mode = #tpu.pipeline_mode<synchronous>, transform_indices = @transform_1, window_bounds = array<i64: 640, 128>}, {pipeline_mode = #tpu.pipeline_mode<synchronous>, transform_indices = @transform_2, window_bounds = array<i64: 1, 128>}, {transform_indices = @transform_3, window_bounds = array<i64: 128, 128>}]} {
    %c0 = arith.constant 0 : index
    %c0_0 = arith.constant 0 : index
    %0 = vector.load %arg1[%c0, %c0_0] : memref<128x640xbf16, #tpu.memory_space<vmem>>, vector<128x640xbf16>
    %c0_1 = arith.constant 0 : index
    %c0_2 = arith.constant 0 : index
    %1 = vector.load %arg2[%c0_1, %c0_2] : memref<640x128xbf16, #tpu.memory_space<vmem>>, vector<640x128xbf16>
    %cst = arith.constant dense<0.000000e+00> : vector<128x128xf32>
    %2 = tpu.matmul %0, %1, %cst {dimension_numbers = #tpu.dot_dimension_numbers<[1], [0], [0], [1], [0, 0, 1, 1], [], []>} : vector<128x640xbf16>, vector<640x128xbf16>, vector<128x128xf32> -> vector<128x128xf32>
    %c0_3 = arith.constant 0 : index
    %c0_4 = arith.constant 0 : index
    %3 = vector.load %arg3[%c0_3, %c0_4] : memref<1x128xf32, #tpu.memory_space<vmem>>, vector<1x128xf32>
    %4 = vector.broadcast %3 : vector<1x128xf32> to vector<128x128xf32>
    %5 = arith.addf %2, %4 : vector<128x128xf32>
    %cst_5 = arith.constant 0.000000e+00 : f32
    %6 = vector.broadcast %cst_5 : f32 to vector<128x128xf32>
    %7 = arith.maximumf %5, %6 : vector<128x128xf32>
    %8 = arith.truncf %7 : vector<128x128xf32> to vector<128x128xbf16>
    %c0_6 = arith.constant 0 : index
    %c0_7 = arith.constant 0 : index
    %9 = vector.load %arg4[%c0_6, %c0_7] : memref<128x128xbf16, #tpu.memory_space<vmem>>, vector<128x128xbf16>
    tpu.vector_store %arg4[%c0_6, %c0_7], %8 {strides = array<i32>} : memref<128x128xbf16, #tpu.memory_space<vmem>>, vector<128x128xbf16>,
    return
  }
  func.func @transform_0(%arg0: i32) -> (i32, i32) {
    %c0_i32 = arith.constant 0 : i32
    %c0_i32_0 = arith.constant 0 : i32
    return %arg0, %c0_i32 : i32, i32
  }
  func.func @transform_1(%arg0: i32) -> (i32, i32) {
    %c0_i32 = arith.constant 0 : i32
    %c0_i32_0 = arith.constant 0 : i32
    %c0_i32_1 = arith.constant 0 : i32
    return %c0_i32, %c0_i32_0 : i32, i32
  }
  func.func @transform_2(%arg0: i32) -> (i32, i32) {
    %c0_i32 = arith.constant 0 : i32
    %c0_i32_0 = arith.constant 0 : i32
    %c0_i32_1 = arith.constant 0 : i32
    return %c0_i32, %c0_i32_0 : i32, i32
  }
  func.func @transform_3(%arg0: i32) -> (i32, i32) {
    %c0_i32 = arith.constant 0 : i32
    %c0_i32_0 = arith.constant 0 : i32
    return %arg0, %c0_i32 : i32, i32
  }
}

module attributes {stable_mosaic.version = 11 : i64} {
  func.func @_mm_bias_kernel(%arg0: i32, %arg1: memref<256x384xbf16, #tpu.memory_space<vmem>>, %arg2: memref<384x128xbf16, #tpu.memory_space<vmem>>, %arg3: memref<1x128xf32, #tpu.memory_space<vmem>>, %arg4: memref<256x128xf32, #tpu.memory_space<vmem>>) attributes {dimension_semantics = [#tpu.dimension_semantics<parallel>], iteration_bounds = array<i64: 2>, scalar_prefetch = 0 : i64, scratch_operands = 0 : i64, tpu.core_type = #tpu.core_type<tc>, window_params = [{transform_indices = @transform_0, window_bounds = array<i64: 256, 384>}, {pipeline_mode = #tpu.pipeline_mode<synchronous>, transform_indices = @transform_1, window_bounds = array<i64: 384, 128>}, {pipeline_mode = #tpu.pipeline_mode<synchronous>, transform_indices = @transform_2, window_bounds = array<i64: 1, 128>}, {transform_indices = @transform_3, window_bounds = array<i64: 256, 128>}]} {
    %c0 = arith.constant 0 : index
    %c0_0 = arith.constant 0 : index
    %0 = vector.load %arg1[%c0, %c0_0] : memref<256x384xbf16, #tpu.memory_space<vmem>>, vector<256x384xbf16>
    %c0_1 = arith.constant 0 : index
    %c0_2 = arith.constant 0 : index
    %1 = vector.load %arg2[%c0_1, %c0_2] : memref<384x128xbf16, #tpu.memory_space<vmem>>, vector<384x128xbf16>
    %cst = arith.constant dense<0.000000e+00> : vector<256x128xf32>
    %2 = tpu.matmul %0, %1, %cst {dimension_numbers = #tpu.dot_dimension_numbers<[1], [0], [0], [1], [0, 0, 1, 1], [], []>} : vector<256x384xbf16>, vector<384x128xbf16>, vector<256x128xf32> -> vector<256x128xf32>
    %c0_3 = arith.constant 0 : index
    %c0_4 = arith.constant 0 : index
    %3 = vector.load %arg3[%c0_3, %c0_4] : memref<1x128xf32, #tpu.memory_space<vmem>>, vector<1x128xf32>
    %4 = vector.broadcast %3 : vector<1x128xf32> to vector<256x128xf32>
    %5 = arith.addf %2, %4 : vector<256x128xf32>
    %c0_5 = arith.constant 0 : index
    %c0_6 = arith.constant 0 : index
    %6 = vector.load %arg4[%c0_5, %c0_6] : memref<256x128xf32, #tpu.memory_space<vmem>>, vector<256x128xf32>
    tpu.vector_store %arg4[%c0_5, %c0_6], %5 {strides = array<i32>} : memref<256x128xf32, #tpu.memory_space<vmem>>, vector<256x128xf32>,
    return
  }
  func.func @transform_0(%arg0: i32) -> (i32, i32) {
    %c0_i32 = arith.constant 0 : i32
    %c0_i32_0 = arith.constant 0 : i32
    return %arg0, %c0_i32 : i32, i32
  }
  func.func @transform_1(%arg0: i32) -> (i32, i32) {
    %c0_i32 = arith.constant 0 : i32
    %c0_i32_0 = arith.constant 0 : i32
    %c0_i32_1 = arith.constant 0 : i32
    return %c0_i32, %c0_i32_0 : i32, i32
  }
  func.func @transform_2(%arg0: i32) -> (i32, i32) {
    %c0_i32 = arith.constant 0 : i32
    %c0_i32_0 = arith.constant 0 : i32
    %c0_i32_1 = arith.constant 0 : i32
    return %c0_i32, %c0_i32_0 : i32, i32
  }
  func.func @transform_3(%arg0: i32) -> (i32, i32) {
    %c0_i32 = arith.constant 0 : i32
    %c0_i32_0 = arith.constant 0 : i32
    return %arg0, %c0_i32 : i32, i32
  }
}

</mosaic_0001>

<llo_original>
// kernel: vae_forward.12
$region0: #{vae_forward.12}
  #allocation0 [shape = 'u32[]', space=smem, size = 0x4, offset = 0x4, fixed_abs, tag = 'smem constant byte address 0x4 - core index']
  #allocation1 [shape = 'u32[72,128]{1,0:T(1,128)}', space=vmem, size = 0x9000, scoped, tag = 'internal scratch']
  %s0 = inlined_call_operand.vmem [shape: bf16[512,128], index: 0, kind: input, shape index: {}]
  %s1 = inlined_call_operand.vmem [shape: bf16[128,128], index: 1, kind: input, shape index: {}]
  %s2 = inlined_call_operand.vmem [shape: f32[1,128], index: 2, kind: input, shape index: {}]
  %s3 = inlined_call_operand.vmem [shape: bf16[512,128], index: 3, kind: output, shape index: {}]
  %s4 = sld [smem:[#allocation0]]
  $region45: #{vae_forward.12} parent=0
    _
  %s6 = ssub.s32 1, %s4
  %s7 = scalar_select 0, %s6, %s4
  loop: start=0, step=1, limit=4
  $region2: #{vae_forward.12} parent=0 // loop_pre_header
    _
  $region3: #{vae_forward.12} parent=0 // loop_header
    %s9 = sphi 0, %s13
    %p10 = scmp.ge.s32.totalorder %s9, 4
    %s19 = sphi 0, %s21
    %s22 = sphi 0, %s19
    %s23 = sphi 0, %s22
    %s39 = sphi 0, %s23
    %s43 = sphi 0, %s43
    %s45 = sphi 0, %s43
    %s46 = sphi 0, %s45
    %s60 = sphi 0, %s46
    %s64 = sphi 0, %s64
    %s66 = sphi 0, %s64
    %s67 = sphi 0, %s66
    %s81 = sphi 0, %s67
    %s87 = sphi 0, %s89
    %s90 = sphi 0, %s87
    %s91 = sphi 0, %s90
    %s107 = sphi 0, %s91
  $region4: #{vae_forward.12} parent=0 // loop_header_branch
    %12 = sbr.rel (%p10) target = $region8
  $region5: #{vae_forward.12} parent=0 // loop_body
    %s14 = ssub.s32 %s9, 1
    %s15 = ssub.s32 %s9, 2
    %s16 = sadd.s32 %s9, 1
    %s17 = ssub.s32 %s9, %s16
    %p18 = scmp.eq.s32.totalorder %s17, 0
    %s20 = sadd.s32 %s19, 1
    %s21 = scalar_select %p18, %s19, %s20
    %p24 = pneg %p18
    %p25 = scmp.eq.s32.totalorder %s9, 1
    %p26 = por %p24, %p25
    %p27 = scmp.ne.s32.totalorder %s19, %s22
    %p28 = scmp.eq.s32.totalorder %s9, 0
    %p29 = por %p27, %p28
    %p30 = scmp.ne.s32.totalorder %s19, %s22
    %p31 = scmp.eq.s32.totalorder %s14, 1
    %p32 = por %p30, %p31
    %p33 = scmp.ne.s32.totalorder %s22, %s23
    %p34 = scmp.eq.s32.totalorder %s14, 0
    %p35 = por %p33, %p34
    %p36 = scmp.ne.s32.totalorder %s22, %s23
    %p37 = scmp.eq.s32.totalorder %s15, 1
    %p38 = por %p36, %p37
    %p40 = scmp.ne.s32.totalorder %s23, %s39
    %p41 = scmp.eq.s32.totalorder %s15, 0
    %p42 = por %p40, %p41
    %s44 = sadd.s32 %s43, 1
    %p47 = scmp.eq.s32.totalorder %s9, 1
    %p48 = scmp.ne.s32.totalorder %s43, %s45
    %p49 = scmp.eq.s32.totalorder %s9, 0
    %p50 = por %p48, %p49
    %p51 = scmp.ne.s32.totalorder %s43, %s45
    %p52 = scmp.eq.s32.totalorder %s14, 1
    %p53 = por %p51, %p52
    %p54 = scmp.ne.s32.totalorder %s45, %s46
    %p55 = scmp.eq.s32.totalorder %s14, 0
    %p56 = por %p54, %p55
    %p57 = scmp.ne.s32.totalorder %s45, %s46
    %p58 = scmp.eq.s32.totalorder %s15, 1
    %p59 = por %p57, %p58
    %p61 = scmp.ne.s32.totalorder %s46, %s60
    %p62 = scmp.eq.s32.totalorder %s15, 0
    %p63 = por %p61, %p62
    %s65 = sadd.s32 %s64, 1
    %p68 = scmp.eq.s32.totalorder %s9, 1
    %p69 = scmp.ne.s32.totalorder %s64, %s66
    %p70 = scmp.eq.s32.totalorder %s9, 0
    %p71 = por %p69, %p70
    %p72 = scmp.ne.s32.totalorder %s64, %s66
    %p73 = scmp.eq.s32.totalorder %s14, 1
    %p74 = por %p72, %p73
    %p75 = scmp.ne.s32.totalorder %s66, %s67
    %p76 = scmp.eq.s32.totalorder %s14, 0
    %p77 = por %p75, %p76
    %p78 = scmp.ne.s32.totalorder %s66, %s67
    %p79 = scmp.eq.s32.totalorder %s15, 1
    %p80 = por %p78, %p79
    %p82 = scmp.ne.s32.totalorder %s67, %s81
    %p83 = scmp.eq.s32.totalorder %s15, 0
    %p84 = por %p82, %p83
    %s85 = ssub.s32 %s9, %s16
    %p86 = scmp.eq.s32.totalorder %s85, 0
    %s88 = sadd.s32 %s87, 1
    %s89 = scalar_select %p86, %s87, %s88
    %p92 = pneg %p86
    %p93 = scmp.eq.s32.totalorder %s9, 1
    %p94 = por %p92, %p93
    %p95 = scmp.ne.s32.totalorder %s87, %s90
    %p96 = scmp.eq.s32.totalorder %s9, 0
    %p97 = por %p95, %p96
    %p98 = scmp.ne.s32.totalorder %s87, %s90
    %p99 = scmp.eq.s32.totalorder %s14, 1
    %p100 = por %p98, %p99
    %p101 = scmp.ne.s32.totalorder %s90, %s91
    %p102 = scmp.eq.s32.totalorder %s14, 0
    %p103 = por %p101, %p102
    %p104 = scmp.ne.s32.totalorder %s90, %s91
    %p105 = scmp.eq.s32.totalorder %s15, 1
    %p106 = por %p104, %p105
    %p108 = scmp.ne.s32.totalorder %s91, %s107
    %p109 = scmp.eq.s32.totalorder %s15, 0
    %p110 = por %p108, %p109
    %p111 = scmp.le.s32.totalorder 1, %s9
    %p112 = scmp.lt.s32.totalorder %s9, 3
    %p113 = pnand %p111, %p112
    %p114 = pneg %p113
    // Predicated region
    $region9: #{vae_forward.12} parent=5 // pred_check
      _
    $region10: #{vae_forward.12} parent=5 // pred_check_branch
      %116 = sbr.rel (%p113) target = $region12
    $region11: #{vae_forward.12} parent=5 // pred_region
      %s117 = ssub.s32 %s9, 1
      // Predicated region
      $region13: #{vae_forward.12} parent=11 // pred_check
        %p118 = pneg %p56
      $region14: #{vae_forward.12} parent=11 // pred_check_branch
        %120 = sbr.rel (%p118) target = $region16
      $region15: #{vae_forward.12} parent=11 // pred_region
        _
      $region16: #{vae_forward.12} parent=11 // pred_fallthru
        _
      // Predicated region
      $region17: #{vae_forward.12} parent=11 // pred_check
        %p121 = pneg %p77
      $region18: #{vae_forward.12} parent=11 // pred_check_branch
        %123 = sbr.rel (%p121) target = $region20
      $region19: #{vae_forward.12} parent=11 // pred_region
        _
      $region20: #{vae_forward.12} parent=11 // pred_fallthru
        _
    $region12: #{vae_forward.12} parent=5 // pred_fallthru
      _
    %p124 = scmp.lt.s32.totalorder %s9, 2
    // Predicated region
    $region21: #{vae_forward.12} parent=5 // pred_check
      %p125 = pneg %p124
    $region22: #{vae_forward.12} parent=5 // pred_check_branch
      %127 = sbr.rel (%p125) target = $region24
    $region23: #{vae_forward.12} parent=5 // pred_region
      // Predicated region
      $region25: #{vae_forward.12} parent=23 // pred_check
        %p128 = pneg %p29
      $region26: #{vae_forward.12} parent=23 // pred_check_branch
        %130 = sbr.rel (%p128) target = $region28
      $region27: #{vae_forward.12} parent=23 // pred_region
        %s131 = smul.u32 32, %s9
        %p132 = scmp.lt.s32.totalorder %s131, 63
        %s133 = scalar_select %p132, %s131, 63
        %s134 = smul.addr %s133, 4
        %s135 = scalar_lea.vmem %s0, %s134
        %s136 = smul.u32 32, %s9
      $region28: #{vae_forward.12} parent=23 // pred_fallthru
        _
    $region24: #{vae_forward.12} parent=5 // pred_fallthru
      _
    %p137 = scmp.le.s32.totalorder 1, %s9
    %p138 = scmp.lt.s32.totalorder %s9, 3
    %p139 = pnand %p137, %p138
    %p140 = pneg %p139
    // Predicated region
    $region29: #{vae_forward.12} parent=5 // pred_check
      _
    $region30: #{vae_forward.12} parent=5 // pred_check_branch
      %142 = sbr.rel (%p139) target = $region32
    $region31: #{vae_forward.12} parent=5 // pred_region
      %s143 = ssub.s32 %s9, 1
      %s144 = smul.u32 32, %s14
      %p145 = scmp.lt.s32.totalorder %s144, 63
      %s146 = scalar_select %p145, %s144, 63
      %s147 = smul.addr %s146, 4
      %s148 = scalar_lea.vmem %s0, %s147
      %p149 = pneg %p35
      %p150 = pneg %p32
      %p151 = pneg %p56
      %p152 = pneg %p53
      %p153 = pneg %p77
      %p154 = pneg %p74
      %p155 = pneg %p103
      %p156 = pneg %p100
      %s157 = smul.u32 32, %s14
      %p158 = scmp.lt.s32.totalorder %s157, 63
      %s159 = scalar_select %p158, %s157, 63
      %s160 = smul.addr %s159, 4
      %s161 = scalar_lea.vmem %s3, %s160
      %s162 = smul.u32 32, %s14
      %p163 = scmp.lt.s32.totalorder %s162, 63
      %s164 = scalar_select %p163, %s162, 63
      %s165 = smul.addr %s164, 4
      %s166 = scalar_lea.vmem %s0, %s165
      %s167 = smul.u32 32, %s14
      %s168 = smul.u32 32, %s14
      %p169 = scmp.lt.s32.totalorder %s168, 63
      %s170 = scalar_select %p169, %s168, 63
      %s171 = smul.addr %s170, 4
      %s172 = scalar_lea.vmem %s3, %s171
      %s173 = smul.u32 32, %s14
      %v174 = vld [vmem:[%s166] sm:$0xf]
      %v175 = vld [vmem:[%s166 + $0x4] sm:$0xf]
      %v176 = vld [vmem:[%s166 + $0x8] sm:$0xf]
      %v177 = vld [vmem:[%s166 + $0xc] sm:$0xf]
      %v178 = vld [vmem:[%s166 + $0x10] sm:$0xf]
      %v179 = vld [vmem:[%s166 + $0x14] sm:$0xf]
      %v180 = vld [vmem:[%s166 + $0x18] sm:$0xf]
      %v181 = vld [vmem:[%s166 + $0x1c] sm:$0xf]
      %v182 = vld [vmem:[%s166 + $0x20] sm:$0xf]
      %v183 = vld [vmem:[%s166 + $0x24] sm:$0xf]
      %v184 = vld [vmem:[%s166 + $0x28] sm:$0xf]
      %v185 = vld [vmem:[%s166 + $0x2c] sm:$0xf]
      %v186 = vld [vmem:[%s166 + $0x30] sm:$0xf]
      %v187 = vld [vmem:[%s166 + $0x34] sm:$0xf]
      %v188 = vld [vmem:[%s166 + $0x38] sm:$0xf]
      %v189 = vld [vmem:[%s166 + $0x3c] sm:$0xf]
      %v190 = vld [vmem:[%s166 + $0x40] sm:$0xf]
      %v191 = vld [vmem:[%s166 + $0x44] sm:$0xf]
      %v192 = vld [vmem:[%s166 + $0x48] sm:$0xf]
      %v193 = vld [vmem:[%s166 + $0x4c] sm:$0xf]
      %v194 = vld [vmem:[%s166 + $0x50] sm:$0xf]
      %v195 = vld [vmem:[%s166 + $0x54] sm:$0xf]
      %v196 = vld [vmem:[%s166 + $0x58] sm:$0xf]
      %v197 = vld [vmem:[%s166 + $0x5c] sm:$0xf]
      %v198 = vld [vmem:[%s166 + $0x60] sm:$0xf]
      %v199 = vld [vmem:[%s166 + $0x64] sm:$0xf]
      %v200 = vld [vmem:[%s166 + $0x68] sm:$0xf]
      %v201 = vld [vmem:[%s166 + $0x6c] sm:$0xf]
      %v202 = vld [vmem:[%s166 + $0x70] sm:$0xf]
      %v203 = vld [vmem:[%s166 + $0x74] sm:$0xf]
      %v204 = vld [vmem:[%s166 + $0x78] sm:$0xf]
      %v205 = vld [vmem:[%s166 + $0x7c] sm:$0xf]
      %v206 = vld [vmem:[%s1] sm:$0xf]
      %v207 = vld [vmem:[%s1 + $0x4] sm:$0xf]
      %v208 = vld [vmem:[%s1 + $0x8] sm:$0xf]
      %v209 = vld [vmem:[%s1 + $0xc] sm:$0xf]
      %v210 = vld [vmem:[%s1 + $0x10] sm:$0xf]
      %v211 = vld [vmem:[%s1 + $0x14] sm:$0xf]
      %v212 = vld [vmem:[%s1 + $0x18] sm:$0xf]
      %v213 = vld [vmem:[%s1 + $0x1c] sm:$0xf]
      %v214 = vld [vmem:[%s1 + $0x20] sm:$0xf]
      %v215 = vld [vmem:[%s1 + $0x24] sm:$0xf]
      %v216 = vld [vmem:[%s1 + $0x28] sm:$0xf]
      %v217 = vld [vmem:[%s1 + $0x2c] sm:$0xf]
      %v218 = vld [vmem:[%s1 + $0x30] sm:$0xf]
      %v219 = vld [vmem:[%s1 + $0x34] sm:$0xf]
      %v220 = vld [vmem:[%s1 + $0x38] sm:$0xf]
      %v221 = vld [vmem:[%s1 + $0x3c] sm:$0xf]
      %v222 = vld [vmem:[%s2] sm:$0x1]
      %v224 = vperm.slane %v222, 0
      %v258 = vunpack.c.l.b16 %v174
      %v259 = vunpack.c.l.b16 %v175
      %v260 = vunpack.c.l.b16 %v176
      %v261 = vunpack.c.l.b16 %v177
      %v262 = vunpack.c.l.b16 %v178
      %v263 = vunpack.c.l.b16 %v179
      %v264 = vunpack.c.l.b16 %v180
      %v265 = vunpack.c.l.b16 %v181
      %v266 = vunpack.c.l.b16 %v182
      %v267 = vunpack.c.l.b16 %v183
      %v268 = vunpack.c.l.b16 %v184
      %v269 = vunpack.c.l.b16 %v185
      %v270 = vunpack.c.l.b16 %v186
      %v271 = vunpack.c.l.b16 %v187
      %v272 = vunpack.c.l.b16 %v188
      %v273 = vunpack.c.l.b16 %v189
      %v274 = vunpack.c.l.b16 %v190
      %v275 = vunpack.c.l.b16 %v191
      %v276 = vunpack.c.l.b16 %v192
      %v277 = vunpack.c.l.b16 %v193
      %v278 = vunpack.c.l.b16 %v194
      %v279 = vunpack.c.l.b16 %v195
      %v280 = vunpack.c.l.b16 %v196
      %v281 = vunpack.c.l.b16 %v197
      %v282 = vunpack.c.l.b16 %v198
      %v283 = vunpack.c.l.b16 %v199
      %v284 = vunpack.c.l.b16 %v200
      %v285 = vunpack.c.l.b16 %v201
      %v286 = vunpack.c.l.b16 %v202
      %v287 = vunpack.c.l.b16 %v203
      %v288 = vunpack.c.l.b16 %v204
      %v289 = vunpack.c.l.b16 %v205
      %v290 = vpack.c.b16 %v259, %v258
      %v291 = vpack.c.b16 %v261, %v260
      %v292 = vpack.c.b16 %v263, %v262
      %v293 = vpack.c.b16 %v265, %v264
      %v294 = vpack.c.b16 %v267, %v266
      %v295 = vpack.c.b16 %v269, %v268
      %v296 = vpack.c.b16 %v271, %v270
      %v297 = vpack.c.b16 %v273, %v272
      %v298 = vpack.c.b16 %v275, %v274
      %v299 = vpack.c.b16 %v277, %v276
      %v300 = vpack.c.b16 %v279, %v278
      %v301 = vpack.c.b16 %v281, %v280
      %v302 = vpack.c.b16 %v283, %v282
      %v303 = vpack.c.b16 %v285, %v284
      %v304 = vpack.c.b16 %v287, %v286
      %v305 = vpack.c.b16 %v289, %v288
      %v338 = vunpack.c.l.b16 %v206
      %v339 = vunpack.c.l.b16 %v207
      %v340 = vunpack.c.l.b16 %v208
      %v341 = vunpack.c.l.b16 %v209
      %v342 = vunpack.c.l.b16 %v210
      %v343 = vunpack.c.l.b16 %v211
      %v344 = vunpack.c.l.b16 %v212
      %v345 = vunpack.c.l.b16 %v213
      %v346 = vunpack.c.l.b16 %v214
      %v347 = vunpack.c.l.b16 %v215
      %v348 = vunpack.c.l.b16 %v216
      %v349 = vunpack.c.l.b16 %v217
      %v350 = vunpack.c.l.b16 %v218
      %v351 = vunpack.c.l.b16 %v219
      %v352 = vunpack.c.l.b16 %v220
      %v353 = vunpack.c.l.b16 %v221
      %v354 = vpack.c.b16 %v339, %v338
      %v355 = vpack.c.b16 %v341, %v340
      %v356 = vpack.c.b16 %v343, %v342
      %v357 = vpack.c.b16 %v345, %v344
      %v358 = vpack.c.b16 %v347, %v346
      %v359 = vpack.c.b16 %v349, %v348
      %v360 = vpack.c.b16 %v351, %v350
      %v361 = vpack.c.b16 %v353, %v352
      %370 = vmatpush.bf16.msra.mxu0 %v361
      %371 = vmatpush.bf16.msra.mxu0 %v360
      %372 = vmatpush.bf16.msra.mxu0 %v359
      %373 = vmatpush.bf16.msra.mxu0 %v358
      %374 = vmatpush.bf16.msra.mxu0 %v357
      %375 = vmatpush.bf16.msra.mxu0 %v356
      %376 = vmatpush.bf16.msra.mxu0 %v355
      %377 = vmatpush.bf16.msra.mxu0 %v354
      %378 = vmatmul.bf16.gmra.mxu0 %v290
      %v379 = vpop.f32.mrf.mxu0
      %v380 = vadd.f32 %v224, %v379
      %v381 = vpop.f32.mrf.mxu0
      %v382 = vadd.f32 %v224, %v381
      %383 = vmatmul.bf16.gmra.mxu0 %v291
      %v384 = vpop.f32.mrf.mxu0
      %v385 = vadd.f32 %v224, %v384
      %v386 = vpop.f32.mrf.mxu0
      %v387 = vadd.f32 %v224, %v386
      %388 = vmatmul.bf16.gmra.mxu0 %v292
      %v389 = vpop.f32.mrf.mxu0
      %v390 = vadd.f32 %v224, %v389
      %v391 = vpop.f32.mrf.mxu0
      %v392 = vadd.f32 %v224, %v391
      %393 = vmatmul.bf16.gmra.mxu0 %v293
      %v394 = vpop.f32.mrf.mxu0
      %v395 = vadd.f32 %v224, %v394
      %v396 = vpop.f32.mrf.mxu0
      %v397 = vadd.f32 %v224, %v396
      %398 = vmatmul.bf16.gmra.mxu0 %v294
      %v399 = vpop.f32.mrf.mxu0
      %v400 = vadd.f32 %v224, %v399
      %v401 = vpop.f32.mrf.mxu0
      %v402 = vadd.f32 %v224, %v401
      %403 = vmatmul.bf16.gmra.mxu0 %v295
      %v404 = vpop.f32.mrf.mxu0
      %v405 = vadd.f32 %v224, %v404
      %v406 = vpop.f32.mrf.mxu0
      %v407 = vadd.f32 %v224, %v406
      %408 = vmatmul.bf16.gmra.mxu0 %v296
      %v409 = vpop.f32.mrf.mxu0
      %v410 = vadd.f32 %v224, %v409
      %v411 = vpop.f32.mrf.mxu0
      %v412 = vadd.f32 %v224, %v411
      %413 = vmatmul.bf16.gmra.mxu0 %v297
      %v414 = vpop.f32.mrf.mxu0
      %v415 = vadd.f32 %v224, %v414
      %v416 = vpop.f32.mrf.mxu0
      %v417 = vadd.f32 %v224, %v416
      %418 = vmatmul.bf16.gmra.mxu0 %v298
      %v419 = vpop.f32.mrf.mxu0
      %v420 = vadd.f32 %v224, %v419
      %v421 = vpop.f32.mrf.mxu0
      %v422 = vadd.f32 %v224, %v421
      %423 = vmatmul.bf16.gmra.mxu0 %v299
      %v424 = vpop.f32.mrf.mxu0
      %v425 = vadd.f32 %v224, %v424
      %v426 = vpop.f32.mrf.mxu0
      %v427 = vadd.f32 %v224, %v426
      %428 = vmatmul.bf16.gmra.mxu0 %v300
      %v429 = vpop.f32.mrf.mxu0
      %v430 = vadd.f32 %v224, %v429
      %v431 = vpop.f32.mrf.mxu0
      %v432 = vadd.f32 %v224, %v431
      %433 = vmatmul.bf16.gmra.mxu0 %v301
      %v434 = vpop.f32.mrf.mxu0
      %v435 = vadd.f32 %v224, %v434
      %v436 = vpop.f32.mrf.mxu0
      %v437 = vadd.f32 %v224, %v436
      %438 = vmatmul.bf16.gmra.mxu0 %v302
      %v439 = vpop.f32.mrf.mxu0
      %v440 = vadd.f32 %v224, %v439
      %v441 = vpop.f32.mrf.mxu0
      %v442 = vadd.f32 %v224, %v441
      %443 = vmatmul.bf16.gmra.mxu0 %v303
      %v444 = vpop.f32.mrf.mxu0
      %v445 = vadd.f32 %v224, %v444
      %v446 = vpop.f32.mrf.mxu0
      %v447 = vadd.f32 %v224, %v446
      %448 = vmatmul.bf16.gmra.mxu0 %v304
      %v449 = vpop.f32.mrf.mxu0
      %v450 = vadd.f32 %v224, %v449
      %v451 = vpop.f32.mrf.mxu0
      %v452 = vadd.f32 %v224, %v451
      %453 = vmatmul.bf16.gmra.mxu0 %v305
      %v454 = vpop.f32.mrf.mxu0
      %v455 = vadd.f32 %v224, %v454
      %v456 = vpop.f32.mrf.mxu0
      %v457 = vadd.f32 %v224, %v456
      %458 = vdwg.mxu0
      %v459 = vmax.f32 %v380, 0.0
      %v460 = vmax.f32 %v382, 0.0
      %v461 = vmax.f32 %v385, 0.0
      %v462 = vmax.f32 %v387, 0.0
      %v463 = vmax.f32 %v390, 0.0
      %v464 = vmax.f32 %v392, 0.0
      %v465 = vmax.f32 %v395, 0.0
      %v466 = vmax.f32 %v397, 0.0
      %v467 = vmax.f32 %v400, 0.0
      %v468 = vmax.f32 %v402, 0.0
      %v469 = vmax.f32 %v405, 0.0
      %v470 = vmax.f32 %v407, 0.0
      %v471 = vmax.f32 %v410, 0.0
      %v472 = vmax.f32 %v412, 0.0
      %v473 = vmax.f32 %v415, 0.0
      %v474 = vmax.f32 %v417, 0.0
      %v475 = vmax.f32 %v420, 0.0
      %v476 = vmax.f32 %v422, 0.0
      %v477 = vmax.f32 %v425, 0.0
      %v478 = vmax.f32 %v427, 0.0
      %v479 = vmax.f32 %v430, 0.0
      %v480 = vmax.f32 %v432, 0.0
      %v481 = vmax.f32 %v435, 0.0
      %v482 = vmax.f32 %v437, 0.0
      %v483 = vmax.f32 %v440, 0.0
      %v484 = vmax.f32 %v442, 0.0
      %v485 = vmax.f32 %v445, 0.0
      %v486 = vmax.f32 %v447, 0.0
      %v487 = vmax.f32 %v450, 0.0
      %v488 = vmax.f32 %v452, 0.0
      %v489 = vmax.f32 %v455, 0.0
      %v490 = vmax.f32 %v457, 0.0
      %v491 = vpack.c.bf16 %v459, %v459
      %v492 = vpack.c.bf16 %v460, %v460
      %v493 = vpack.c.bf16 %v461, %v461
      %v494 = vpack.c.bf16 %v462, %v462
      %v495 = vpack.c.bf16 %v463, %v463
      %v496 = vpack.c.bf16 %v464, %v464
      %v497 = vpack.c.bf16 %v465, %v465
      %v498 = vpack.c.bf16 %v466, %v466
      %v499 = vpack.c.bf16 %v467, %v467
      %v500 = vpack.c.bf16 %v468, %v468
      %v501 = vpack.c.bf16 %v469, %v469
      %v502 = vpack.c.bf16 %v470, %v470
      %v503 = vpack.c.bf16 %v471, %v471
      %v504 = vpack.c.bf16 %v472, %v472
      %v505 = vpack.c.bf16 %v473, %v473
      %v506 = vpack.c.bf16 %v474, %v474
      %v507 = vpack.c.bf16 %v475, %v475
      %v508 = vpack.c.bf16 %v476, %v476
      %v509 = vpack.c.bf16 %v477, %v477
      %v510 = vpack.c.bf16 %v478, %v478
      %v511 = vpack.c.bf16 %v479, %v479
      %v512 = vpack.c.bf16 %v480, %v480
      %v513 = vpack.c.bf16 %v481, %v481
      %v514 = vpack.c.bf16 %v482, %v482
      %v515 = vpack.c.bf16 %v483, %v483
      %v516 = vpack.c.bf16 %v484, %v484
      %v517 = vpack.c.bf16 %v485, %v485
      %v518 = vpack.c.bf16 %v486, %v486
      %v519 = vpack.c.bf16 %v487, %v487
      %v520 = vpack.c.bf16 %v488, %v488
      %v521 = vpack.c.bf16 %v489, %v489
      %v522 = vpack.c.bf16 %v490, %v490
      %523 = vst [vmem:[%s172] sm:$0xf] %v491
      %524 = vst [vmem:[%s172 + $0x4] sm:$0xf] %v492
      %525 = vst [vmem:[%s172 + $0x8] sm:$0xf] %v493
      %526 = vst [vmem:[%s172 + $0xc] sm:$0xf] %v494
      %527 = vst [vmem:[%s172 + $0x10] sm:$0xf] %v495
      %528 = vst [vmem:[%s172 + $0x14] sm:$0xf] %v496
      %529 = vst [vmem:[%s172 + $0x18] sm:$0xf] %v497
      %530 = vst [vmem:[%s172 + $0x1c] sm:$0xf] %v498
      %531 = vst [vmem:[%s172 + $0x20] sm:$0xf] %v499
      %532 = vst [vmem:[%s172 + $0x24] sm:$0xf] %v500
      %533 = vst [vmem:[%s172 + $0x28] sm:$0xf] %v501
      %534 = vst [vmem:[%s172 + $0x2c] sm:$0xf] %v502
      %535 = vst [vmem:[%s172 + $0x30] sm:$0xf] %v503
      %536 = vst [vmem:[%s172 + $0x34] sm:$0xf] %v504
      %537 = vst [vmem:[%s172 + $0x38] sm:$0xf] %v505
      %538 = vst [vmem:[%s172 + $0x3c] sm:$0xf] %v506
      %539 = vst [vmem:[%s172 + $0x40] sm:$0xf] %v507
      %540 = vst [vmem:[%s172 + $0x44] sm:$0xf] %v508
      %541 = vst [vmem:[%s172 + $0x48] sm:$0xf] %v509
      %542 = vst [vmem:[%s172 + $0x4c] sm:$0xf] %v510
      %543 = vst [vmem:[%s172 + $0x50] sm:$0xf] %v511
      %544 = vst [vmem:[%s172 + $0x54] sm:$0xf] %v512
      %545 = vst [vmem:[%s172 + $0x58] sm:$0xf] %v513
      %546 = vst [vmem:[%s172 + $0x5c] sm:$0xf] %v514
      %547 = vst [vmem:[%s172 + $0x60] sm:$0xf] %v515
      %548 = vst [vmem:[%s172 + $0x64] sm:$0xf] %v516
      %549 = vst [vmem:[%s172 + $0x68] sm:$0xf] %v517
      %550 = vst [vmem:[%s172 + $0x6c] sm:$0xf] %v518
      %551 = vst [vmem:[%s172 + $0x70] sm:$0xf] %v519
      %552 = vst [vmem:[%s172 + $0x74] sm:$0xf] %v520
      %553 = vst [vmem:[%s172 + $0x78] sm:$0xf] %v521
      %554 = vst [vmem:[%s172 + $0x7c] sm:$0xf] %v522
      %s555 = smul.u32 32, %s14
      %p556 = scmp.lt.s32.totalorder %s555, 63
      %s557 = scalar_select %p556, %s555, 63
      %s558 = smul.addr %s557, 4
      %s559 = scalar_lea.vmem %s3, %s558
      // Predicated region
      $region33: #{vae_forward.12} parent=31 // pred_check
        %p560 = pneg %p100
      $region34: #{vae_forward.12} parent=31 // pred_check_branch
        %562 = sbr.rel (%p560) target = $region36
      $region35: #{vae_forward.12} parent=31 // pred_region
        %s563 = smul.u32 32, %s14
      $region36: #{vae_forward.12} parent=31 // pred_fallthru
        _
    $region32: #{vae_forward.12} parent=5 // pred_fallthru
      _
    %p564 = scmp.le.s32.totalorder 2, %s9
    // Predicated region
    $region37: #{vae_forward.12} parent=5 // pred_check
      %p565 = pneg %p564
    $region38: #{vae_forward.12} parent=5 // pred_check_branch
      %567 = sbr.rel (%p565) target = $region40
    $region39: #{vae_forward.12} parent=5 // pred_region
      %s568 = ssub.s32 %s9, 2
      // Predicated region
      $region41: #{vae_forward.12} parent=39 // pred_check
        %p569 = pneg %p106
      $region42: #{vae_forward.12} parent=39 // pred_check_branch
        %571 = sbr.rel (%p569) target = $region44
      $region43: #{vae_forward.12} parent=39 // pred_region
        %s572 = smul.u32 32, %s15
        %p573 = scmp.lt.s32.totalorder %s572, 63
        %s574 = scalar_select %p573, %s572, 63
        %s575 = smul.addr %s574, 4
        %s576 = scalar_lea.vmem %s3, %s575
      $region44: #{vae_forward.12} parent=39 // pred_fallthru
        _
    $region40: #{vae_forward.12} parent=5 // pred_fallthru
      _
  $region6: #{vae_forward.12} parent=0 // loop_footer
    %s13 = sadd.s32 1, %s9
  $region7: #{vae_forward.12} parent=0 // loop_footer_branch
    %8 = sbr.rel target = $region3
  $region8: #{vae_forward.12} parent=0 // loop_exit
    _

// kernel: vae_forward.13
$region0: #{vae_forward.13}
  #allocation0 [shape = 'u32[]', space=smem, size = 0x4, offset = 0x4, fixed_abs, tag = 'smem constant byte address 0x4 - core index']
  #allocation1 [shape = 'u32[72,128]{1,0:T(1,128)}', space=vmem, size = 0x9000, scoped, tag = 'internal scratch']
  %s0 = inlined_call_operand.vmem [shape: bf16[128,384], index: 0, kind: input, shape index: {}]
  %s1 = inlined_call_operand.vmem [shape: bf16[384,128], index: 1, kind: input, shape index: {}]
  %s2 = inlined_call_operand.vmem [shape: f32[1,128], index: 2, kind: input, shape index: {}]
  %s3 = inlined_call_operand.vmem [shape: bf16[128,128], index: 3, kind: output, shape index: {}]
  %s4 = sld [smem:[#allocation0]]
  $region22: #{vae_forward.13} parent=0
    _
  %s6 = ssub.s32 1, %s4
  %s7 = scalar_select 0, %s6, %s4
  // Predicated region
  $region2: #{vae_forward.13} parent=0 // pred_check
    _
  $region3: #{vae_forward.13} parent=0 // pred_check_branch
    %9 = sbr.rel (0) target = $region5
  $region4: #{vae_forward.13} parent=0 // pred_region
    _
  $region5: #{vae_forward.13} parent=0 // pred_fallthru
    _
  // Predicated region
  $region6: #{vae_forward.13} parent=0 // pred_check
    _
  $region7: #{vae_forward.13} parent=0 // pred_check_branch
    %11 = sbr.rel (0) target = $region9
  $region8: #{vae_forward.13} parent=0 // pred_region
    _
  $region9: #{vae_forward.13} parent=0 // pred_fallthru
    _
  // Predicated region
  $region10: #{vae_forward.13} parent=0 // pred_check
    _
  $region11: #{vae_forward.13} parent=0 // pred_check_branch
    %13 = sbr.rel (0) target = $region13
  $region12: #{vae_forward.13} parent=0 // pred_region
    _
  $region13: #{vae_forward.13} parent=0 // pred_fallthru
    _
  %v14 = vld [vmem:[%s0] sm:$0xff]
  %v15 = vld [vmem:[%s0 + $0x8] sm:$0xf]
  %v16 = vld [vmem:[%s0 + $0xc] sm:$0xff]
  %v17 = vld [vmem:[%s0 + $0x14] sm:$0xf]
  %v18 = vld [vmem:[%s0 + $0x18] sm:$0xff]
  %v19 = vld [vmem:[%s0 + $0x20] sm:$0xf]
  %v20 = vld [vmem:[%s0 + $0x24] sm:$0xff]
  %v21 = vld [vmem:[%s0 + $0x2c] sm:$0xf]
  %v22 = vld [vmem:[%s0 + $0x30] sm:$0xff]
  %v23 = vld [vmem:[%s0 + $0x38] sm:$0xf]
  %v24 = vld [vmem:[%s0 + $0x3c] sm:$0xff]
  %v25 = vld [vmem:[%s0 + $0x44] sm:$0xf]
  %v26 = vld [vmem:[%s0 + $0x48] sm:$0xff]
  %v27 = vld [vmem:[%s0 + $0x50] sm:$0xf]
  %v28 = vld [vmem:[%s0 + $0x54] sm:$0xff]
  %v29 = vld [vmem:[%s0 + $0x5c] sm:$0xf]
  %v30 = vld [vmem:[%s0 + $0x60] sm:$0xff]
  %v31 = vld [vmem:[%s0 + $0x68] sm:$0xf]
  %v32 = vld [vmem:[%s0 + $0x6c] sm:$0xff]
  %v33 = vld [vmem:[%s0 + $0x74] sm:$0xf]
  %v34 = vld [vmem:[%s0 + $0x78] sm:$0xff]
  %v35 = vld [vmem:[%s0 + $0x80] sm:$0xf]
  %v36 = vld [vmem:[%s0 + $0x84] sm:$0xff]
  %v37 = vld [vmem:[%s0 + $0x8c] sm:$0xf]
  %v38 = vld [vmem:[%s0 + $0x90] sm:$0xff]
  %v39 = vld [vmem:[%s0 + $0x98] sm:$0xf]
  %v40 = vld [vmem:[%s0 + $0x9c] sm:$0xff]
  %v41 = vld [vmem:[%s0 + $0xa4] sm:$0xf]
  %v42 = vld [vmem:[%s0 + $0xa8] sm:$0xff]
  %v43 = vld [vmem:[%s0 + $0xb0] sm:$0xf]
  %v44 = vld [vmem:[%s0 + $0xb4] sm:$0xff]
  %v45 = vld [vmem:[%s0 + $0xbc] sm:$0xf]
  %v46 = vld [vmem:[%s1] sm:$0xf]
  %v47 = vld [vmem:[%s1 + $0x4] sm:$0xf]
  %v48 = vld [vmem:[%s1 + $0x8] sm:$0xf]
  %v49 = vld [vmem:[%s1 + $0xc] sm:$0xf]
  %v50 = vld [vmem:[%s1 + $0x10] sm:$0xf]
  %v51 = vld [vmem:[%s1 + $0x14] sm:$0xf]
  %v52 = vld [vmem:[%s1 + $0x18] sm:$0xf]
  %v53 = vld [vmem:[%s1 + $0x1c] sm:$0xf]
  %v54 = vld [vmem:[%s1 + $0x20] sm:$0xf]
  %v55 = vld [vmem:[%s1 + $0x24] sm:$0xf]
  %v56 = vld [vmem:[%s1 + $0x28] sm:$0xf]
  %v57 = vld [vmem:[%s1 + $0x2c] sm:$0xf]
  %v58 = vld [vmem:[%s1 + $0x30] sm:$0xf]
  %v59 = vld [vmem:[%s1 + $0x34] sm:$0xf]
  %v60 = vld [vmem:[%s1 + $0x38] sm:$0xf]
  %v61 = vld [vmem:[%s1 + $0x3c] sm:$0xf]
  %v62 = vld [vmem:[%s1 + $0x40] sm:$0xf]
  %v63 = vld [vmem:[%s1 + $0x44] sm:$0xf]
  %v64 = vld [vmem:[%s1 + $0x48] sm:$0xf]
  %v65 = vld [vmem:[%s1 + $0x4c] sm:$0xf]
  %v66 = vld [vmem:[%s1 + $0x50] sm:$0xf]
  %v67 = vld [vmem:[%s1 + $0x54] sm:$0xf]
  %v68 = vld [vmem:[%s1 + $0x58] sm:$0xf]
  %v69 = vld [vmem:[%s1 + $0x5c] sm:$0xf]
  %v70 = vld [vmem:[%s1 + $0x60] sm:$0xf]
  %v71 = vld [vmem:[%s1 + $0x64] sm:$0xf]
  %v72 = vld [vmem:[%s1 + $0x68] sm:$0xf]
  %v73 = vld [vmem:[%s1 + $0x6c] sm:$0xf]
  %v74 = vld [vmem:[%s1 + $0x70] sm:$0xf]
  %v75 = vld [vmem:[%s1 + $0x74] sm:$0xf]
  %v76 = vld [vmem:[%s1 + $0x78] sm:$0xf]
  %v77 = vld [vmem:[%s1 + $0x7c] sm:$0xf]
  %v78 = vld [vmem:[%s1 + $0x80] sm:$0xf]
  %v79 = vld [vmem:[%s1 + $0x84] sm:$0xf]
  %v80 = vld [vmem:[%s1 + $0x88] sm:$0xf]
  %v81 = vld [vmem:[%s1 + $0x8c] sm:$0xf]
  %v82 = vld [vmem:[%s1 + $0x90] sm:$0xf]
  %v83 = vld [vmem:[%s1 + $0x94] sm:$0xf]
  %v84 = vld [vmem:[%s1 + $0x98] sm:$0xf]
  %v85 = vld [vmem:[%s1 + $0x9c] sm:$0xf]
  %v86 = vld [vmem:[%s1 + $0xa0] sm:$0xf]
  %v87 = vld [vmem:[%s1 + $0xa4] sm:$0xf]
  %v88 = vld [vmem:[%s1 + $0xa8] sm:$0xf]
  %v89 = vld [vmem:[%s1 + $0xac] sm:$0xf]
  %v90 = vld [vmem:[%s1 + $0xb0] sm:$0xf]
  %v91 = vld [vmem:[%s1 + $0xb4] sm:$0xf]
  %v92 = vld [vmem:[%s1 + $0xb8] sm:$0xf]
  %v93 = vld [vmem:[%s1 + $0xbc] sm:$0xf]
  %v94 = vld [vmem:[%s2] sm:$0x1]
  %v96 = vperm.slane %v94, 0
  %v130 = vunpack.c.l.b16 %v14
  %v131 = vunpack.c.h.b16 %v14
  %v132 = vunpack.c.l.b16 %v15
  %v133 = vunpack.c.l.b16 %v16
  %v134 = vunpack.c.h.b16 %v16
  %v135 = vunpack.c.l.b16 %v17
  %v136 = vunpack.c.l.b16 %v18
  %v137 = vunpack.c.h.b16 %v18
  %v138 = vunpack.c.l.b16 %v19
  %v139 = vunpack.c.l.b16 %v20
  %v140 = vunpack.c.h.b16 %v20
  %v141 = vunpack.c.l.b16 %v21
  %v142 = vunpack.c.l.b16 %v22
  %v143 = vunpack.c.h.b16 %v22
  %v144 = vunpack.c.l.b16 %v23
  %v145 = vunpack.c.l.b16 %v24
  %v146 = vunpack.c.h.b16 %v24
  %v147 = vunpack.c.l.b16 %v25
  %v148 = vunpack.c.l.b16 %v26
  %v149 = vunpack.c.h.b16 %v26
  %v150 = vunpack.c.l.b16 %v27
  %v151 = vunpack.c.l.b16 %v28
  %v152 = vunpack.c.h.b16 %v28
  %v153 = vunpack.c.l.b16 %v29
  %v154 = vunpack.c.l.b16 %v30
  %v155 = vunpack.c.h.b16 %v30
  %v156 = vunpack.c.l.b16 %v31
  %v157 = vunpack.c.l.b16 %v32
  %v158 = vunpack.c.h.b16 %v32
  %v159 = vunpack.c.l.b16 %v33
  %v160 = vunpack.c.l.b16 %v34
  %v161 = vunpack.c.h.b16 %v34
  %v162 = vunpack.c.l.b16 %v35
  %v163 = vunpack.c.l.b16 %v36
  %v164 = vunpack.c.h.b16 %v36
  %v165 = vunpack.c.l.b16 %v37
  %v166 = vunpack.c.l.b16 %v38
  %v167 = vunpack.c.h.b16 %v38
  %v168 = vunpack.c.l.b16 %v39
  %v169 = vunpack.c.l.b16 %v40
  %v170 = vunpack.c.h.b16 %v40
  %v171 = vunpack.c.l.b16 %v41
  %v172 = vunpack.c.l.b16 %v42
  %v173 = vunpack.c.h.b16 %v42
  %v174 = vunpack.c.l.b16 %v43
  %v175 = vunpack.c.l.b16 %v44
  %v176 = vunpack.c.h.b16 %v44
  %v177 = vunpack.c.l.b16 %v45
  %v178 = vpack.c.b16 %v133, %v130
  %v179 = vpack.c.b16 %v134, %v131
  %v180 = vpack.c.b16 %v135, %v132
  %v181 = vpack.c.b16 %v139, %v136
  %v182 = vpack.c.b16 %v140, %v137
  %v183 = vpack.c.b16 %v141, %v138
  %v184 = vpack.c.b16 %v145, %v142
  %v185 = vpack.c.b16 %v146, %v143
  %v186 = vpack.c.b16 %v147, %v144
  %v187 = vpack.c.b16 %v151, %v148
  %v188 = vpack.c.b16 %v152, %v149
  %v189 = vpack.c.b16 %v153, %v150
  %v190 = vpack.c.b16 %v157, %v154
  %v191 = vpack.c.b16 %v158, %v155
  %v192 = vpack.c.b16 %v159, %v156
  %v193 = vpack.c.b16 %v163, %v160
  %v194 = vpack.c.b16 %v164, %v161
  %v195 = vpack.c.b16 %v165, %v162
  %v196 = vpack.c.b16 %v169, %v166
  %v197 = vpack.c.b16 %v170, %v167
  %v198 = vpack.c.b16 %v171, %v168
  %v199 = vpack.c.b16 %v175, %v172
  %v200 = vpack.c.b16 %v176, %v173
  %v201 = vpack.c.b16 %v177, %v174
  %v274 = vunpack.c.l.b16 %v46
  %v275 = vunpack.c.l.b16 %v47
  %v276 = vunpack.c.l.b16 %v48
  %v277 = vunpack.c.l.b16 %v49
  %v278 = vunpack.c.l.b16 %v50
  %v279 = vunpack.c.l.b16 %v51
  %v280 = vunpack.c.l.b16 %v52
  %v281 = vunpack.c.l.b16 %v53
  %v282 = vunpack.c.l.b16 %v54
  %v283 = vunpack.c.l.b16 %v55
  %v284 = vunpack.c.l.b16 %v56
  %v285 = vunpack.c.l.b16 %v57
  %v286 = vunpack.c.l.b16 %v58
  %v287 = vunpack.c.l.b16 %v59
  %v288 = vunpack.c.l.b16 %v60
  %v289 = vunpack.c.l.b16 %v61
  %v290 = vunpack.c.l.b16 %v62
  %v291 = vunpack.c.l.b16 %v63
  %v292 = vunpack.c.l.b16 %v64
  %v293 = vunpack.c.l.b16 %v65
  %v294 = vunpack.c.l.b16 %v66
  %v295 = vunpack.c.l.b16 %v67
  %v296 = vunpack.c.l.b16 %v68
  %v297 = vunpack.c.l.b16 %v69
  %v298 = vunpack.c.l.b16 %v70
  %v299 = vunpack.c.l.b16 %v71
  %v300 = vunpack.c.l.b16 %v72
  %v301 = vunpack.c.l.b16 %v73
  %v302 = vunpack.c.l.b16 %v74
  %v303 = vunpack.c.l.b16 %v75
  %v304 = vunpack.c.l.b16 %v76
  %v305 = vunpack.c.l.b16 %v77
  %v306 = vunpack.c.l.b16 %v78
  %v307 = vunpack.c.l.b16 %v79
  %v308 = vunpack.c.l.b16 %v80
  %v309 = vunpack.c.l.b16 %v81
  %v310 = vunpack.c.l.b16 %v82
  %v311 = vunpack.c.l.b16 %v83
  %v312 = vunpack.c.l.b16 %v84
  %v313 = vunpack.c.l.b16 %v85
  %v314 = vunpack.c.l.b16 %v86
  %v315 = vunpack.c.l.b16 %v87
  %v316 = vunpack.c.l.b16 %v88
  %v317 = vunpack.c.l.b16 %v89
  %v318 = vunpack.c.l.b16 %v90
  %v319 = vunpack.c.l.b16 %v91
  %v320 = vunpack.c.l.b16 %v92
  %v321 = vunpack.c.l.b16 %v93
  %v322 = vpack.c.b16 %v275, %v274
  %v323 = vpack.c.b16 %v277, %v276
  %v324 = vpack.c.b16 %v279, %v278
  %v325 = vpack.c.b16 %v281, %v280
  %v326 = vpack.c.b16 %v283, %v282
  %v327 = vpack.c.b16 %v285, %v284
  %v328 = vpack.c.b16 %v287, %v286
  %v329 = vpack.c.b16 %v289, %v288
  %v330 = vpack.c.b16 %v291, %v290
  %v331 = vpack.c.b16 %v293, %v292
  %v332 = vpack.c.b16 %v295, %v294
  %v333 = vpack.c.b16 %v297, %v296
  %v334 = vpack.c.b16 %v299, %v298
  %v335 = vpack.c.b16 %v301, %v300
  %v336 = vpack.c.b16 %v303, %v302
  %v337 = vpack.c.b16 %v305, %v304
  %v338 = vpack.c.b16 %v307, %v306
  %v339 = vpack.c.b16 %v309, %v308
  %v340 = vpack.c.b16 %v311, %v310
  %v341 = vpack.c.b16 %v313, %v312
  %v342 = vpack.c.b16 %v315, %v314
  %v343 = vpack.c.b16 %v317, %v316
  %v344 = vpack.c.b16 %v319, %v318
  %v345 = vpack.c.b16 %v321, %v320
  %370 = vmatpush.bf16.msra.mxu0 %v329
  %371 = vmatpush.bf16.msra.mxu0 %v328
  %372 = vmatpush.bf16.msra.mxu0 %v327
  %373 = vmatpush.bf16.msra.mxu0 %v326
  %374 = vmatpush.bf16.msra.mxu0 %v325
  %375 = vmatpush.bf16.msra.mxu0 %v324
  %376 = vmatpush.bf16.msra.mxu0 %v323
  %377 = vmatpush.bf16.msra.mxu0 %v322
  %378 = vmatmul.bf16.gmra.mxu0 %v178
  %v379 = vpop.f32.mrf.mxu0
  %v380 = vadd.f32 %v96, %v379
  %v381 = vpop.f32.mrf.mxu0
  %v382 = vadd.f32 %v96, %v381
  %383 = vmatmul.bf16.gmra.mxu0 %v181
  %v384 = vpop.f32.mrf.mxu0
  %v385 = vadd.f32 %v96, %v384
  %v386 = vpop.f32.mrf.mxu0
  %v387 = vadd.f32 %v96, %v386
  %388 = vmatmul.bf16.gmra.mxu0 %v184
  %v389 = vpop.f32.mrf.mxu0
  %v390 = vadd.f32 %v96, %v389
  %v391 = vpop.f32.mrf.mxu0
  %v392 = vadd.f32 %v96, %v391
  %393 = vmatmul.bf16.gmra.mxu0 %v187
  %v394 = vpop.f32.mrf.mxu0
  %v395 = vadd.f32 %v96, %v394
  %v396 = vpop.f32.mrf.mxu0
  %v397 = vadd.f32 %v96, %v396
  %398 = vmatmul.bf16.gmra.mxu0 %v190
  %v399 = vpop.f32.mrf.mxu0
  %v400 = vadd.f32 %v96, %v399
  %v401 = vpop.f32.mrf.mxu0
  %v402 = vadd.f32 %v96, %v401
  %403 = vmatmul.bf16.gmra.mxu0 %v193
  %v404 = vpop.f32.mrf.mxu0
  %v405 = vadd.f32 %v96, %v404
  %v406 = vpop.f32.mrf.mxu0
  %v407 = vadd.f32 %v96, %v406
  %408 = vmatmul.bf16.gmra.mxu0 %v196
  %v409 = vpop.f32.mrf.mxu0
  %v410 = vadd.f32 %v96, %v409
  %v411 = vpop.f32.mrf.mxu0
  %v412 = vadd.f32 %v96, %v411
  %413 = vmatmul.bf16.gmra.mxu0 %v199
  %v414 = vpop.f32.mrf.mxu0
  %v415 = vadd.f32 %v96, %v414
  %v416 = vpop.f32.mrf.mxu0
  %v417 = vadd.f32 %v96, %v416
  %418 = vdwg.mxu0
  %419 = vmatpush.bf16.msra.mxu0 %v337
  %420 = vmatpush.bf16.msra.mxu0 %v336
  %421 = vmatpush.bf16.msra.mxu0 %v335
  %422 = vmatpush.bf16.msra.mxu0 %v334
  %423 = vmatpush.bf16.msra.mxu0 %v333
  %424 = vmatpush.bf16.msra.mxu0 %v332
  %425 = vmatpush.bf16.msra.mxu0 %v331
  %426 = vmatpush.bf16.msra.mxu0 %v330
  %427 = vmatmul.bf16.gmra.mxu0 %v179
  %v428 = vpop.f32.mrf.mxu0
  %v429 = vadd.f32 %v380, %v428
  %v430 = vpop.f32.mrf.mxu0
  %v431 = vadd.f32 %v382, %v430
  %432 = vmatmul.bf16.gmra.mxu0 %v182
  %v433 = vpop.f32.mrf.mxu0
  %v434 = vadd.f32 %v385, %v433
  %v435 = vpop.f32.mrf.mxu0
  %v436 = vadd.f32 %v387, %v435
  %437 = vmatmul.bf16.gmra.mxu0 %v185
  %v438 = vpop.f32.mrf.mxu0
  %v439 = vadd.f32 %v390, %v438
  %v440 = vpop.f32.mrf.mxu0
  %v441 = vadd.f32 %v392, %v440
  %442 = vmatmul.bf16.gmra.mxu0 %v188
  %v443 = vpop.f32.mrf.mxu0
  %v444 = vadd.f32 %v395, %v443
  %v445 = vpop.f32.mrf.mxu0
  %v446 = vadd.f32 %v397, %v445
  %447 = vmatmul.bf16.gmra.mxu0 %v191
  %v448 = vpop.f32.mrf.mxu0
  %v449 = vadd.f32 %v400, %v448
  %v450 = vpop.f32.mrf.mxu0
  %v451 = vadd.f32 %v402, %v450
  %452 = vmatmul.bf16.gmra.mxu0 %v194
  %v453 = vpop.f32.mrf.mxu0
  %v454 = vadd.f32 %v405, %v453
  %v455 = vpop.f32.mrf.mxu0
  %v456 = vadd.f32 %v407, %v455
  %457 = vmatmul.bf16.gmra.mxu0 %v197
  %v458 = vpop.f32.mrf.mxu0
  %v459 = vadd.f32 %v410, %v458
  %v460 = vpop.f32.mrf.mxu0
  %v461 = vadd.f32 %v412, %v460
  %462 = vmatmul.bf16.gmra.mxu0 %v200
  %v463 = vpop.f32.mrf.mxu0
  %v464 = vadd.f32 %v415, %v463
  %v465 = vpop.f32.mrf.mxu0
  %v466 = vadd.f32 %v417, %v465
  %467 = vdwg.mxu0
  %468 = vmatpush.bf16.msra.mxu0 %v345
  %469 = vmatpush.bf16.msra.mxu0 %v344
  %470 = vmatpush.bf16.msra.mxu0 %v343
  %471 = vmatpush.bf16.msra.mxu0 %v342
  %472 = vmatpush.bf16.msra.mxu0 %v341
  %473 = vmatpush.bf16.msra.mxu0 %v340
  %474 = vmatpush.bf16.msra.mxu0 %v339
  %475 = vmatpush.bf16.msra.mxu0 %v338
  %476 = vmatmul.bf16.gmra.mxu0 %v180
  %v477 = vpop.f32.mrf.mxu0
  %v478 = vadd.f32 %v429, %v477
  %v479 = vpop.f32.mrf.mxu0
  %v480 = vadd.f32 %v431, %v479
  %481 = vmatmul.bf16.gmra.mxu0 %v183
  %v482 = vpop.f32.mrf.mxu0
  %v483 = vadd.f32 %v434, %v482
  %v484 = vpop.f32.mrf.mxu0
  %v485 = vadd.f32 %v436, %v484
  %486 = vmatmul.bf16.gmra.mxu0 %v186
  %v487 = vpop.f32.mrf.mxu0
  %v488 = vadd.f32 %v439, %v487
  %v489 = vpop.f32.mrf.mxu0
  %v490 = vadd.f32 %v441, %v489
  %491 = vmatmul.bf16.gmra.mxu0 %v189
  %v492 = vpop.f32.mrf.mxu0
  %v493 = vadd.f32 %v444, %v492
  %v494 = vpop.f32.mrf.mxu0
  %v495 = vadd.f32 %v446, %v494
  %496 = vmatmul.bf16.gmra.mxu0 %v192
  %v497 = vpop.f32.mrf.mxu0
  %v498 = vadd.f32 %v449, %v497
  %v499 = vpop.f32.mrf.mxu0
  %v500 = vadd.f32 %v451, %v499
  %501 = vmatmul.bf16.gmra.mxu0 %v195
  %v502 = vpop.f32.mrf.mxu0
  %v503 = vadd.f32 %v454, %v502
  %v504 = vpop.f32.mrf.mxu0
  %v505 = vadd.f32 %v456, %v504
  %506 = vmatmul.bf16.gmra.mxu0 %v198
  %v507 = vpop.f32.mrf.mxu0
  %v508 = vadd.f32 %v459, %v507
  %v509 = vpop.f32.mrf.mxu0
  %v510 = vadd.f32 %v461, %v509
  %511 = vmatmul.bf16.gmra.mxu0 %v201
  %v512 = vpop.f32.mrf.mxu0
  %v513 = vadd.f32 %v464, %v512
  %v514 = vpop.f32.mrf.mxu0
  %v515 = vadd.f32 %v466, %v514
  %516 = vdwg.mxu0
  %v517 = vmax.f32 %v478, 0.0
  %v518 = vmax.f32 %v480, 0.0
  %v519 = vmax.f32 %v483, 0.0
  %v520 = vmax.f32 %v485, 0.0
  %v521 = vmax.f32 %v488, 0.0
  %v522 = vmax.f32 %v490, 0.0
  %v523 = vmax.f32 %v493, 0.0
  %v524 = vmax.f32 %v495, 0.0
  %v525 = vmax.f32 %v498, 0.0
  %v526 = vmax.f32 %v500, 0.0
  %v527 = vmax.f32 %v503, 0.0
  %v528 = vmax.f32 %v505, 0.0
  %v529 = vmax.f32 %v508, 0.0
  %v530 = vmax.f32 %v510, 0.0
  %v531 = vmax.f32 %v513, 0.0
  %v532 = vmax.f32 %v515, 0.0
  %v533 = vpack.c.bf16 %v517, %v517
  %v534 = vpack.c.bf16 %v518, %v518
  %v535 = vpack.c.bf16 %v519, %v519
  %v536 = vpack.c.bf16 %v520, %v520
  %v537 = vpack.c.bf16 %v521, %v521
  %v538 = vpack.c.bf16 %v522, %v522
  %v539 = vpack.c.bf16 %v523, %v523
  %v540 = vpack.c.bf16 %v524, %v524
  %v541 = vpack.c.bf16 %v525, %v525
  %v542 = vpack.c.bf16 %v526, %v526
  %v543 = vpack.c.bf16 %v527, %v527
  %v544 = vpack.c.bf16 %v528, %v528
  %v545 = vpack.c.bf16 %v529, %v529
  %v546 = vpack.c.bf16 %v530, %v530
  %v547 = vpack.c.bf16 %v531, %v531
  %v548 = vpack.c.bf16 %v532, %v532
  %549 = vst [vmem:[%s3] sm:$0xf] %v533
  %550 = vst [vmem:[%s3 + $0x4] sm:$0xf] %v534
  %551 = vst [vmem:[%s3 + $0x8] sm:$0xf] %v535
  %552 = vst [vmem:[%s3 + $0xc] sm:$0xf] %v536
  %553 = vst [vmem:[%s3 + $0x10] sm:$0xf] %v537
  %554 = vst [vmem:[%s3 + $0x14] sm:$0xf] %v538
  %555 = vst [vmem:[%s3 + $0x18] sm:$0xf] %v539
  %556 = vst [vmem:[%s3 + $0x1c] sm:$0xf] %v540
  %557 = vst [vmem:[%s3 + $0x20] sm:$0xf] %v541
  %558 = vst [vmem:[%s3 + $0x24] sm:$0xf] %v542
  %559 = vst [vmem:[%s3 + $0x28] sm:$0xf] %v543
  %560 = vst [vmem:[%s3 + $0x2c] sm:$0xf] %v544
  %561 = vst [vmem:[%s3 + $0x30] sm:$0xf] %v545
  %562 = vst [vmem:[%s3 + $0x34] sm:$0xf] %v546
  %563 = vst [vmem:[%s3 + $0x38] sm:$0xf] %v547
  %564 = vst [vmem:[%s3 + $0x3c] sm:$0xf] %v548
  // Predicated region
  $region14: #{vae_forward.13} parent=0 // pred_check
    _
  $region15: #{vae_forward.13} parent=0 // pred_check_branch
    %566 = sbr.rel (0) target = $region17
  $region16: #{vae_forward.13} parent=0 // pred_region
    _
  $region17: #{vae_forward.13} parent=0 // pred_fallthru
    _
  // Predicated region
  $region18: #{vae_forward.13} parent=0 // pred_check
    _
  $region19: #{vae_forward.13} parent=0 // pred_check_branch
    %568 = sbr.rel (0) target = $region21
  $region20: #{vae_forward.13} parent=0 // pred_region
    _
  $region21: #{vae_forward.13} parent=0 // pred_fallthru
    _

// kernel: vae_forward.14
$region0: #{vae_forward.14}
  #allocation0 [shape = 'u32[]', space=smem, size = 0x4, offset = 0x4, fixed_abs, tag = 'smem constant byte address 0x4 - core index']
  #allocation1 [shape = 'u32[72,128]{1,0:T(1,128)}', space=vmem, size = 0x9000, scoped, tag = 'internal scratch']
  %s0 = inlined_call_operand.vmem [shape: bf16[32,640], index: 0, kind: input, shape index: {}]
  %s1 = inlined_call_operand.vmem [shape: bf16[640,128], index: 1, kind: input, shape index: {}]
  %s2 = inlined_call_operand.vmem [shape: f32[1,128], index: 2, kind: input, shape index: {}]
  %s3 = inlined_call_operand.vmem [shape: bf16[32,128], index: 3, kind: output, shape index: {}]
  %s4 = sld [smem:[#allocation0]]
  $region22: #{vae_forward.14} parent=0
    _
  %s6 = ssub.s32 1, %s4
  %s7 = scalar_select 0, %s6, %s4
  // Predicated region
  $region2: #{vae_forward.14} parent=0 // pred_check
    _
  $region3: #{vae_forward.14} parent=0 // pred_check_branch
    %9 = sbr.rel (0) target = $region5
  $region4: #{vae_forward.14} parent=0 // pred_region
    _
  $region5: #{vae_forward.14} parent=0 // pred_fallthru
    _
  // Predicated region
  $region6: #{vae_forward.14} parent=0 // pred_check
    _
  $region7: #{vae_forward.14} parent=0 // pred_check_branch
    %11 = sbr.rel (0) target = $region9
  $region8: #{vae_forward.14} parent=0 // pred_region
    _
  $region9: #{vae_forward.14} parent=0 // pred_fallthru
    _
  // Predicated region
  $region10: #{vae_forward.14} parent=0 // pred_check
    _
  $region11: #{vae_forward.14} parent=0 // pred_check_branch
    %13 = sbr.rel (0) target = $region13
  $region12: #{vae_forward.14} parent=0 // pred_region
    _
  $region13: #{vae_forward.14} parent=0 // pred_fallthru
    _
  %v14 = vld [vmem:[%s0] sm:$0xff]
  %v15 = vld [vmem:[%s0 + $0x8] sm:$0xff]
  %v16 = vld [vmem:[%s0 + $0x10] sm:$0xf]
  %v17 = vld [vmem:[%s0 + $0x14] sm:$0xff]
  %v18 = vld [vmem:[%s0 + $0x1c] sm:$0xff]
  %v19 = vld [vmem:[%s0 + $0x24] sm:$0xf]
  %v20 = vld [vmem:[%s0 + $0x28] sm:$0xff]
  %v21 = vld [vmem:[%s0 + $0x30] sm:$0xff]
  %v22 = vld [vmem:[%s0 + $0x38] sm:$0xf]
  %v23 = vld [vmem:[%s0 + $0x3c] sm:$0xff]
  %v24 = vld [vmem:[%s0 + $0x44] sm:$0xff]
  %v25 = vld [vmem:[%s0 + $0x4c] sm:$0xf]
  %v26 = vld [vmem:[%s1] sm:$0xf]
  %v27 = vld [vmem:[%s1 + $0x4] sm:$0xf]
  %v28 = vld [vmem:[%s1 + $0x8] sm:$0xf]
  %v29 = vld [vmem:[%s1 + $0xc] sm:$0xf]
  %v30 = vld [vmem:[%s1 + $0x10] sm:$0xf]
  %v31 = vld [vmem:[%s1 + $0x14] sm:$0xf]
  %v32 = vld [vmem:[%s1 + $0x18] sm:$0xf]
  %v33 = vld [vmem:[%s1 + $0x1c] sm:$0xf]
  %v34 = vld [vmem:[%s1 + $0x20] sm:$0xf]
  %v35 = vld [vmem:[%s1 + $0x24] sm:$0xf]
  %v36 = vld [vmem:[%s1 + $0x28] sm:$0xf]
  %v37 = vld [vmem:[%s1 + $0x2c] sm:$0xf]
  %v38 = vld [vmem:[%s1 + $0x30] sm:$0xf]
  %v39 = vld [vmem:[%s1 + $0x34] sm:$0xf]
  %v40 = vld [vmem:[%s1 + $0x38] sm:$0xf]
  %v41 = vld [vmem:[%s1 + $0x3c] sm:$0xf]
  %v42 = vld [vmem:[%s1 + $0x40] sm:$0xf]
  %v43 = vld [vmem:[%s1 + $0x44] sm:$0xf]
  %v44 = vld [vmem:[%s1 + $0x48] sm:$0xf]
  %v45 = vld [vmem:[%s1 + $0x4c] sm:$0xf]
  %v46 = vld [vmem:[%s1 + $0x50] sm:$0xf]
  %v47 = vld [vmem:[%s1 + $0x54] sm:$0xf]
  %v48 = vld [vmem:[%s1 + $0x58] sm:$0xf]
  %v49 = vld [vmem:[%s1 + $0x5c] sm:$0xf]
  %v50 = vld [vmem:[%s1 + $0x60] sm:$0xf]
  %v51 = vld [vmem:[%s1 + $0x64] sm:$0xf]
  %v52 = vld [vmem:[%s1 + $0x68] sm:$0xf]
  %v53 = vld [vmem:[%s1 + $0x6c] sm:$0xf]
  %v54 = vld [vmem:[%s1 + $0x70] sm:$0xf]
  %v55 = vld [vmem:[%s1 + $0x74] sm:$0xf]
  %v56 = vld [vmem:[%s1 + $0x78] sm:$0xf]
  %v57 = vld [vmem:[%s1 + $0x7c] sm:$0xf]
  %v58 = vld [vmem:[%s1 + $0x80] sm:$0xf]
  %v59 = vld [vmem:[%s1 + $0x84] sm:$0xf]
  %v60 = vld [vmem:[%s1 + $0x88] sm:$0xf]
  %v61 = vld [vmem:[%s1 + $0x8c] sm:$0xf]
  %v62 = vld [vmem:[%s1 + $0x90] sm:$0xf]
  %v63 = vld [vmem:[%s1 + $0x94] sm:$0xf]
  %v64 = vld [vmem:[%s1 + $0x98] sm:$0xf]
  %v65 = vld [vmem:[%s1 + $0x9c] sm:$0xf]
  %v66 = vld [vmem:[%s1 + $0xa0] sm:$0xf]
  %v67 = vld [vmem:[%s1 + $0xa4] sm:$0xf]
  %v68 = vld [vmem:[%s1 + $0xa8] sm:$0xf]
  %v69 = vld [vmem:[%s1 + $0xac] sm:$0xf]
  %v70 = vld [vmem:[%s1 + $0xb0] sm:$0xf]
  %v71 = vld [vmem:[%s1 + $0xb4] sm:$0xf]
  %v72 = vld [vmem:[%s1 + $0xb8] sm:$0xf]
  %v73 = vld [vmem:[%s1 + $0xbc] sm:$0xf]
  %v74 = vld [vmem:[%s1 + $0xc0] sm:$0xf]
  %v75 = vld [vmem:[%s1 + $0xc4] sm:$0xf]
  %v76 = vld [vmem:[%s1 + $0xc8] sm:$0xf]
  %v77 = vld [vmem:[%s1 + $0xcc] sm:$0xf]
  %v78 = vld [vmem:[%s1 + $0xd0] sm:$0xf]
  %v79 = vld [vmem:[%s1 + $0xd4] sm:$0xf]
  %v80 = vld [vmem:[%s1 + $0xd8] sm:$0xf]
  %v81 = vld [vmem:[%s1 + $0xdc] sm:$0xf]
  %v82 = vld [vmem:[%s1 + $0xe0] sm:$0xf]
  %v83 = vld [vmem:[%s1 + $0xe4] sm:$0xf]
  %v84 = vld [vmem:[%s1 + $0xe8] sm:$0xf]
  %v85 = vld [vmem:[%s1 + $0xec] sm:$0xf]
  %v86 = vld [vmem:[%s1 + $0xf0] sm:$0xf]
  %v87 = vld [vmem:[%s1 + $0xf4] sm:$0xf]
  %v88 = vld [vmem:[%s1 + $0xf8] sm:$0xf]
  %v89 = vld [vmem:[%s1 + $0xfc] sm:$0xf]
  %v90 = vld [vmem:[%s1 + $0x100] sm:$0xf]
  %v91 = vld [vmem:[%s1 + $0x104] sm:$0xf]
  %v92 = vld [vmem:[%s1 + $0x108] sm:$0xf]
  %v93 = vld [vmem:[%s1 + $0x10c] sm:$0xf]
  %v94 = vld [vmem:[%s1 + $0x110] sm:$0xf]
  %v95 = vld [vmem:[%s1 + $0x114] sm:$0xf]
  %v96 = vld [vmem:[%s1 + $0x118] sm:$0xf]
  %v97 = vld [vmem:[%s1 + $0x11c] sm:$0xf]
  %v98 = vld [vmem:[%s1 + $0x120] sm:$0xf]
  %v99 = vld [vmem:[%s1 + $0x124] sm:$0xf]
  %v100 = vld [vmem:[%s1 + $0x128] sm:$0xf]
  %v101 = vld [vmem:[%s1 + $0x12c] sm:$0xf]
  %v102 = vld [vmem:[%s1 + $0x130] sm:$0xf]
  %v103 = vld [vmem:[%s1 + $0x134] sm:$0xf]
  %v104 = vld [vmem:[%s1 + $0x138] sm:$0xf]
  %v105 = vld [vmem:[%s1 + $0x13c] sm:$0xf]
  %v106 = vld [vmem:[%s2] sm:$0x1]
  %v108 = vperm.slane %v106, 0
  %v122 = vunpack.c.l.b16 %v14
  %v123 = vunpack.c.h.b16 %v14
  %v124 = vunpack.c.l.b16 %v15
  %v125 = vunpack.c.h.b16 %v15
  %v126 = vunpack.c.l.b16 %v16
  %v127 = vunpack.c.l.b16 %v17
  %v128 = vunpack.c.h.b16 %v17
  %v129 = vunpack.c.l.b16 %v18
  %v130 = vunpack.c.h.b16 %v18
  %v131 = vunpack.c.l.b16 %v19
  %v132 = vunpack.c.l.b16 %v20
  %v133 = vunpack.c.h.b16 %v20
  %v134 = vunpack.c.l.b16 %v21
  %v135 = vunpack.c.h.b16 %v21
  %v136 = vunpack.c.l.b16 %v22
  %v137 = vunpack.c.l.b16 %v23
  %v138 = vunpack.c.h.b16 %v23
  %v139 = vunpack.c.l.b16 %v24
  %v140 = vunpack.c.h.b16 %v24
  %v141 = vunpack.c.l.b16 %v25
  %v142 = vpack.c.b16 %v127, %v122
  %v143 = vpack.c.b16 %v128, %v123
  %v144 = vpack.c.b16 %v129, %v124
  %v145 = vpack.c.b16 %v130, %v125
  %v146 = vpack.c.b16 %v131, %v126
  %v147 = vpack.c.b16 %v137, %v132
  %v148 = vpack.c.b16 %v138, %v133
  %v149 = vpack.c.b16 %v139, %v134
  %v150 = vpack.c.b16 %v140, %v135
  %v151 = vpack.c.b16 %v141, %v136
  %v242 = vunpack.c.l.b16 %v26
  %v243 = vunpack.c.l.b16 %v27
  %v244 = vunpack.c.l.b16 %v28
  %v245 = vunpack.c.l.b16 %v29
  %v246 = vunpack.c.l.b16 %v30
  %v247 = vunpack.c.l.b16 %v31
  %v248 = vunpack.c.l.b16 %v32
  %v249 = vunpack.c.l.b16 %v33
  %v250 = vunpack.c.l.b16 %v34
  %v251 = vunpack.c.l.b16 %v35
  %v252 = vunpack.c.l.b16 %v36
  %v253 = vunpack.c.l.b16 %v37
  %v254 = vunpack.c.l.b16 %v38
  %v255 = vunpack.c.l.b16 %v39
  %v256 = vunpack.c.l.b16 %v40
  %v257 = vunpack.c.l.b16 %v41
  %v258 = vunpack.c.l.b16 %v42
  %v259 = vunpack.c.l.b16 %v43
  %v260 = vunpack.c.l.b16 %v44
  %v261 = vunpack.c.l.b16 %v45
  %v262 = vunpack.c.l.b16 %v46
  %v263 = vunpack.c.l.b16 %v47
  %v264 = vunpack.c.l.b16 %v48
  %v265 = vunpack.c.l.b16 %v49
  %v266 = vunpack.c.l.b16 %v50
  %v267 = vunpack.c.l.b16 %v51
  %v268 = vunpack.c.l.b16 %v52
  %v269 = vunpack.c.l.b16 %v53
  %v270 = vunpack.c.l.b16 %v54
  %v271 = vunpack.c.l.b16 %v55
  %v272 = vunpack.c.l.b16 %v56
  %v273 = vunpack.c.l.b16 %v57
  %v274 = vunpack.c.l.b16 %v58
  %v275 = vunpack.c.l.b16 %v59
  %v276 = vunpack.c.l.b16 %v60
  %v277 = vunpack.c.l.b16 %v61
  %v278 = vunpack.c.l.b16 %v62
  %v279 = vunpack.c.l.b16 %v63
  %v280 = vunpack.c.l.b16 %v64
  %v281 = vunpack.c.l.b16 %v65
  %v282 = vunpack.c.l.b16 %v66
  %v283 = vunpack.c.l.b16 %v67
  %v284 = vunpack.c.l.b16 %v68
  %v285 = vunpack.c.l.b16 %v69
  %v286 = vunpack.c.l.b16 %v70
  %v287 = vunpack.c.l.b16 %v71
  %v288 = vunpack.c.l.b16 %v72
  %v289 = vunpack.c.l.b16 %v73
  %v290 = vunpack.c.l.b16 %v74
  %v291 = vunpack.c.l.b16 %v75
  %v292 = vunpack.c.l.b16 %v76
  %v293 = vunpack.c.l.b16 %v77
  %v294 = vunpack.c.l.b16 %v78
  %v295 = vunpack.c.l.b16 %v79
  %v296 = vunpack.c.l.b16 %v80
  %v297 = vunpack.c.l.b16 %v81
  %v298 = vunpack.c.l.b16 %v82
  %v299 = vunpack.c.l.b16 %v83
  %v300 = vunpack.c.l.b16 %v84
  %v301 = vunpack.c.l.b16 %v85
  %v302 = vunpack.c.l.b16 %v86
  %v303 = vunpack.c.l.b16 %v87
  %v304 = vunpack.c.l.b16 %v88
  %v305 = vunpack.c.l.b16 %v89
  %v306 = vunpack.c.l.b16 %v90
  %v307 = vunpack.c.l.b16 %v91
  %v308 = vunpack.c.l.b16 %v92
  %v309 = vunpack.c.l.b16 %v93
  %v310 = vunpack.c.l.b16 %v94
  %v311 = vunpack.c.l.b16 %v95
  %v312 = vunpack.c.l.b16 %v96
  %v313 = vunpack.c.l.b16 %v97
  %v314 = vunpack.c.l.b16 %v98
  %v315 = vunpack.c.l.b16 %v99
  %v316 = vunpack.c.l.b16 %v100
  %v317 = vunpack.c.l.b16 %v101
  %v318 = vunpack.c.l.b16 %v102
  %v319 = vunpack.c.l.b16 %v103
  %v320 = vunpack.c.l.b16 %v104
  %v321 = vunpack.c.l.b16 %v105
  %v322 = vpack.c.b16 %v243, %v242
  %v323 = vpack.c.b16 %v245, %v244
  %v324 = vpack.c.b16 %v247, %v246
  %v325 = vpack.c.b16 %v249, %v248
  %v326 = vpack.c.b16 %v251, %v250
  %v327 = vpack.c.b16 %v253, %v252
  %v328 = vpack.c.b16 %v255, %v254
  %v329 = vpack.c.b16 %v257, %v256
  %v330 = vpack.c.b16 %v259, %v258
  %v331 = vpack.c.b16 %v261, %v260
  %v332 = vpack.c.b16 %v263, %v262
  %v333 = vpack.c.b16 %v265, %v264
  %v334 = vpack.c.b16 %v267, %v266
  %v335 = vpack.c.b16 %v269, %v268
  %v336 = vpack.c.b16 %v271, %v270
  %v337 = vpack.c.b16 %v273, %v272
  %v338 = vpack.c.b16 %v275, %v274
  %v339 = vpack.c.b16 %v277, %v276
  %v340 = vpack.c.b16 %v279, %v278
  %v341 = vpack.c.b16 %v281, %v280
  %v342 = vpack.c.b16 %v283, %v282
  %v343 = vpack.c.b16 %v285, %v284
  %v344 = vpack.c.b16 %v287, %v286
  %v345 = vpack.c.b16 %v289, %v288
  %v346 = vpack.c.b16 %v291, %v290
  %v347 = vpack.c.b16 %v293, %v292
  %v348 = vpack.c.b16 %v295, %v294
  %v349 = vpack.c.b16 %v297, %v296
  %v350 = vpack.c.b16 %v299, %v298
  %v351 = vpack.c.b16 %v301, %v300
  %v352 = vpack.c.b16 %v303, %v302
  %v353 = vpack.c.b16 %v305, %v304
  %v354 = vpack.c.b16 %v307, %v306
  %v355 = vpack.c.b16 %v309, %v308
  %v356 = vpack.c.b16 %v311, %v310
  %v357 = vpack.c.b16 %v313, %v312
  %v358 = vpack.c.b16 %v315, %v314
  %v359 = vpack.c.b16 %v317, %v316
  %v360 = vpack.c.b16 %v319, %v318
  %v361 = vpack.c.b16 %v321, %v320
  %402 = vmatpush.bf16.msra.mxu0 %v329
  %403 = vmatpush.bf16.msra.mxu0 %v328
  %404 = vmatpush.bf16.msra.mxu0 %v327
  %405 = vmatpush.bf16.msra.mxu0 %v326
  %406 = vmatpush.bf16.msra.mxu0 %v325
  %407 = vmatpush.bf16.msra.mxu0 %v324
  %408 = vmatpush.bf16.msra.mxu0 %v323
  %409 = vmatpush.bf16.msra.mxu0 %v322
  %410 = vmatmul.bf16.gmra.mxu0 %v142
  %v411 = vpop.f32.mrf.mxu0
  %v412 = vadd.f32 %v108, %v411
  %v413 = vpop.f32.mrf.mxu0
  %v414 = vadd.f32 %v108, %v413
  %415 = vmatmul.bf16.gmra.mxu0 %v147
  %v416 = vpop.f32.mrf.mxu0
  %v417 = vadd.f32 %v108, %v416
  %v418 = vpop.f32.mrf.mxu0
  %v419 = vadd.f32 %v108, %v418
  %420 = vdwg.mxu0
  %421 = vmatpush.bf16.msra.mxu0 %v337
  %422 = vmatpush.bf16.msra.mxu0 %v336
  %423 = vmatpush.bf16.msra.mxu0 %v335
  %424 = vmatpush.bf16.msra.mxu0 %v334
  %425 = vmatpush.bf16.msra.mxu0 %v333
  %426 = vmatpush.bf16.msra.mxu0 %v332
  %427 = vmatpush.bf16.msra.mxu0 %v331
  %428 = vmatpush.bf16.msra.mxu0 %v330
  %429 = vmatmul.bf16.gmra.mxu0 %v143
  %v430 = vpop.f32.mrf.mxu0
  %v431 = vadd.f32 %v412, %v430
  %v432 = vpop.f32.mrf.mxu0
  %v433 = vadd.f32 %v414, %v432
  %434 = vmatmul.bf16.gmra.mxu0 %v148
  %v435 = vpop.f32.mrf.mxu0
  %v436 = vadd.f32 %v417, %v435
  %v437 = vpop.f32.mrf.mxu0
  %v438 = vadd.f32 %v419, %v437
  %439 = vdwg.mxu0
  %440 = vmatpush.bf16.msra.mxu0 %v345
  %441 = vmatpush.bf16.msra.mxu0 %v344
  %442 = vmatpush.bf16.msra.mxu0 %v343
  %443 = vmatpush.bf16.msra.mxu0 %v342
  %444 = vmatpush.bf16.msra.mxu0 %v341
  %445 = vmatpush.bf16.msra.mxu0 %v340
  %446 = vmatpush.bf16.msra.mxu0 %v339
  %447 = vmatpush.bf16.msra.mxu0 %v338
  %448 = vmatmul.bf16.gmra.mxu0 %v144
  %v449 = vpop.f32.mrf.mxu0
  %v450 = vadd.f32 %v431, %v449
  %v451 = vpop.f32.mrf.mxu0
  %v452 = vadd.f32 %v433, %v451
  %453 = vmatmul.bf16.gmra.mxu0 %v149
  %v454 = vpop.f32.mrf.mxu0
  %v455 = vadd.f32 %v436, %v454
  %v456 = vpop.f32.mrf.mxu0
  %v457 = vadd.f32 %v438, %v456
  %458 = vdwg.mxu0
  %459 = vmatpush.bf16.msra.mxu0 %v353
  %460 = vmatpush.bf16.msra.mxu0 %v352
  %461 = vmatpush.bf16.msra.mxu0 %v351
  %462 = vmatpush.bf16.msra.mxu0 %v350
  %463 = vmatpush.bf16.msra.mxu0 %v349
  %464 = vmatpush.bf16.msra.mxu0 %v348
  %465 = vmatpush.bf16.msra.mxu0 %v347
  %466 = vmatpush.bf16.msra.mxu0 %v346
  %467 = vmatmul.bf16.gmra.mxu0 %v145
  %v468 = vpop.f32.mrf.mxu0
  %v469 = vadd.f32 %v450, %v468
  %v470 = vpop.f32.mrf.mxu0
  %v471 = vadd.f32 %v452, %v470
  %472 = vmatmul.bf16.gmra.mxu0 %v150
  %v473 = vpop.f32.mrf.mxu0
  %v474 = vadd.f32 %v455, %v473
  %v475 = vpop.f32.mrf.mxu0
  %v476 = vadd.f32 %v457, %v475
  %477 = vdwg.mxu0
  %478 = vmatpush.bf16.msra.mxu0 %v361
  %479 = vmatpush.bf16.msra.mxu0 %v360
  %480 = vmatpush.bf16.msra.mxu0 %v359
  %481 = vmatpush.bf16.msra.mxu0 %v358
  %482 = vmatpush.bf16.msra.mxu0 %v357
  %483 = vmatpush.bf16.msra.mxu0 %v356
  %484 = vmatpush.bf16.msra.mxu0 %v355
  %485 = vmatpush.bf16.msra.mxu0 %v354
  %486 = vmatmul.bf16.gmra.mxu0 %v146
  %v487 = vpop.f32.mrf.mxu0
  %v488 = vadd.f32 %v469, %v487
  %v489 = vpop.f32.mrf.mxu0
  %v490 = vadd.f32 %v471, %v489
  %491 = vmatmul.bf16.gmra.mxu0 %v151
  %v492 = vpop.f32.mrf.mxu0
  %v493 = vadd.f32 %v474, %v492
  %v494 = vpop.f32.mrf.mxu0
  %v495 = vadd.f32 %v476, %v494
  %496 = vdwg.mxu0
  %v497 = vmax.f32 %v488, 0.0
  %v498 = vmax.f32 %v490, 0.0
  %v499 = vmax.f32 %v493, 0.0
  %v500 = vmax.f32 %v495, 0.0
  %v501 = vpack.c.bf16 %v497, %v497
  %v502 = vpack.c.bf16 %v498, %v498
  %v503 = vpack.c.bf16 %v499, %v499
  %v504 = vpack.c.bf16 %v500, %v500
  %505 = vst [vmem:[%s3] sm:$0xf] %v501
  %506 = vst [vmem:[%s3 + $0x4] sm:$0xf] %v502
  %507 = vst [vmem:[%s3 + $0x8] sm:$0xf] %v503
  %508 = vst [vmem:[%s3 + $0xc] sm:$0xf] %v504
  // Predicated region
  $region14: #{vae_forward.14} parent=0 // pred_check
    _
  $region15: #{vae_forward.14} parent=0 // pred_check_branch
    %510 = sbr.rel (0) target = $region17
  $region16: #{vae_forward.14} parent=0 // pred_region
    _
  $region17: #{vae_forward.14} parent=0 // pred_fallthru
    _
  // Predicated region
  $region18: #{vae_forward.14} parent=0 // pred_check
    _
  $region19: #{vae_forward.14} parent=0 // pred_check_branch
    %512 = sbr.rel (0) target = $region21
  $region20: #{vae_forward.14} parent=0 // pred_region
    _
  $region21: #{vae_forward.14} parent=0 // pred_fallthru
    _

// kernel: vae_forward.15
$region0: #{vae_forward.15}
  #allocation0 [shape = 'u32[]', space=smem, size = 0x4, offset = 0x4, fixed_abs, tag = 'smem constant byte address 0x4 - core index']
  #allocation1 [shape = 'u32[72,128]{1,0:T(1,128)}', space=vmem, size = 0x9000, scoped, tag = 'internal scratch']
  %s0 = inlined_call_operand.vmem [shape: bf16[8,1152], index: 0, kind: input, shape index: {}]
  %s1 = inlined_call_operand.vmem [shape: bf16[1152,128], index: 1, kind: input, shape index: {}]
  %s2 = inlined_call_operand.vmem [shape: f32[1,128], index: 2, kind: input, shape index: {}]
  %s3 = inlined_call_operand.vmem [shape: bf16[8,128], index: 3, kind: output, shape index: {}]
  %s4 = sld [smem:[#allocation0]]
  $region22: #{vae_forward.15} parent=0
    _
  %s6 = ssub.s32 1, %s4
  %s7 = scalar_select 0, %s6, %s4
  // Predicated region
  $region2: #{vae_forward.15} parent=0 // pred_check
    _
  $region3: #{vae_forward.15} parent=0 // pred_check_branch
    %9 = sbr.rel (0) target = $region5
  $region4: #{vae_forward.15} parent=0 // pred_region
    _
  $region5: #{vae_forward.15} parent=0 // pred_fallthru
    _
  // Predicated region
  $region6: #{vae_forward.15} parent=0 // pred_check
    _
  $region7: #{vae_forward.15} parent=0 // pred_check_branch
    %11 = sbr.rel (0) target = $region9
  $region8: #{vae_forward.15} parent=0 // pred_region
    _
  $region9: #{vae_forward.15} parent=0 // pred_fallthru
    _
  // Predicated region
  $region10: #{vae_forward.15} parent=0 // pred_check
    _
  $region11: #{vae_forward.15} parent=0 // pred_check_branch
    %13 = sbr.rel (0) target = $region13
  $region12: #{vae_forward.15} parent=0 // pred_region
    _
  $region13: #{vae_forward.15} parent=0 // pred_fallthru
    _
  %v14 = vld [vmem:[%s0] sm:$0xff]
  %v15 = vld [vmem:[%s0 + $0x8] sm:$0xff]
  %v16 = vld [vmem:[%s0 + $0x10] sm:$0xff]
  %v17 = vld [vmem:[%s0 + $0x18] sm:$0xff]
  %v18 = vld [vmem:[%s0 + $0x20] sm:$0xf]
  %v19 = vld [vmem:[%s1] sm:$0xf]
  %v20 = vld [vmem:[%s1 + $0x4] sm:$0xf]
  %v21 = vld [vmem:[%s1 + $0x8] sm:$0xf]
  %v22 = vld [vmem:[%s1 + $0xc] sm:$0xf]
  %v23 = vld [vmem:[%s1 + $0x10] sm:$0xf]
  %v24 = vld [vmem:[%s1 + $0x14] sm:$0xf]
  %v25 = vld [vmem:[%s1 + $0x18] sm:$0xf]
  %v26 = vld [vmem:[%s1 + $0x1c] sm:$0xf]
  %v27 = vld [vmem:[%s1 + $0x20] sm:$0xf]
  %v28 = vld [vmem:[%s1 + $0x24] sm:$0xf]
  %v29 = vld [vmem:[%s1 + $0x28] sm:$0xf]
  %v30 = vld [vmem:[%s1 + $0x2c] sm:$0xf]
  %v31 = vld [vmem:[%s1 + $0x30] sm:$0xf]
  %v32 = vld [vmem:[%s1 + $0x34] sm:$0xf]
  %v33 = vld [vmem:[%s1 + $0x38] sm:$0xf]
  %v34 = vld [vmem:[%s1 + $0x3c] sm:$0xf]
  %v35 = vld [vmem:[%s1 + $0x40] sm:$0xf]
  %v36 = vld [vmem:[%s1 + $0x44] sm:$0xf]
  %v37 = vld [vmem:[%s1 + $0x48] sm:$0xf]
  %v38 = vld [vmem:[%s1 + $0x4c] sm:$0xf]
  %v39 = vld [vmem:[%s1 + $0x50] sm:$0xf]
  %v40 = vld [vmem:[%s1 + $0x54] sm:$0xf]
  %v41 = vld [vmem:[%s1 + $0x58] sm:$0xf]
  %v42 = vld [vmem:[%s1 + $0x5c] sm:$0xf]
  %v43 = vld [vmem:[%s1 + $0x60] sm:$0xf]
  %v44 = vld [vmem:[%s1 + $0x64] sm:$0xf]
  %v45 = vld [vmem:[%s1 + $0x68] sm:$0xf]
  %v46 = vld [vmem:[%s1 + $0x6c] sm:$0xf]
  %v47 = vld [vmem:[%s1 + $0x70] sm:$0xf]
  %v48 = vld [vmem:[%s1 + $0x74] sm:$0xf]
  %v49 = vld [vmem:[%s1 + $0x78] sm:$0xf]
  %v50 = vld [vmem:[%s1 + $0x7c] sm:$0xf]
  %v51 = vld [vmem:[%s1 + $0x80] sm:$0xf]
  %v52 = vld [vmem:[%s1 + $0x84] sm:$0xf]
  %v53 = vld [vmem:[%s1 + $0x88] sm:$0xf]
  %v54 = vld [vmem:[%s1 + $0x8c] sm:$0xf]
  %v55 = vld [vmem:[%s1 + $0x90] sm:$0xf]
  %v56 = vld [vmem:[%s1 + $0x94] sm:$0xf]
  %v57 = vld [vmem:[%s1 + $0x98] sm:$0xf]
  %v58 = vld [vmem:[%s1 + $0x9c] sm:$0xf]
  %v59 = vld [vmem:[%s1 + $0xa0] sm:$0xf]
  %v60 = vld [vmem:[%s1 + $0xa4] sm:$0xf]
  %v61 = vld [vmem:[%s1 + $0xa8] sm:$0xf]
  %v62 = vld [vmem:[%s1 + $0xac] sm:$0xf]
  %v63 = vld [vmem:[%s1 + $0xb0] sm:$0xf]
  %v64 = vld [vmem:[%s1 + $0xb4] sm:$0xf]
  %v65 = vld [vmem:[%s1 + $0xb8] sm:$0xf]
  %v66 = vld [vmem:[%s1 + $0xbc] sm:$0xf]
  %v67 = vld [vmem:[%s1 + $0xc0] sm:$0xf]
  %v68 = vld [vmem:[%s1 + $0xc4] sm:$0xf]
  %v69 = vld [vmem:[%s1 + $0xc8] sm:$0xf]
  %v70 = vld [vmem:[%s1 + $0xcc] sm:$0xf]
  %v71 = vld [vmem:[%s1 + $0xd0] sm:$0xf]
  %v72 = vld [vmem:[%s1 + $0xd4] sm:$0xf]
  %v73 = vld [vmem:[%s1 + $0xd8] sm:$0xf]
  %v74 = vld [vmem:[%s1 + $0xdc] sm:$0xf]
  %v75 = vld [vmem:[%s1 + $0xe0] sm:$0xf]
  %v76 = vld [vmem:[%s1 + $0xe4] sm:$0xf]
  %v77 = vld [vmem:[%s1 + $0xe8] sm:$0xf]
  %v78 = vld [vmem:[%s1 + $0xec] sm:$0xf]
  %v79 = vld [vmem:[%s1 + $0xf0] sm:$0xf]
  %v80 = vld [vmem:[%s1 + $0xf4] sm:$0xf]
  %v81 = vld [vmem:[%s1 + $0xf8] sm:$0xf]
  %v82 = vld [vmem:[%s1 + $0xfc] sm:$0xf]
  %v83 = vld [vmem:[%s1 + $0x100] sm:$0xf]
  %v84 = vld [vmem:[%s1 + $0x104] sm:$0xf]
  %v85 = vld [vmem:[%s1 + $0x108] sm:$0xf]
  %v86 = vld [vmem:[%s1 + $0x10c] sm:$0xf]
  %v87 = vld [vmem:[%s1 + $0x110] sm:$0xf]
  %v88 = vld [vmem:[%s1 + $0x114] sm:$0xf]
  %v89 = vld [vmem:[%s1 + $0x118] sm:$0xf]
  %v90 = vld [vmem:[%s1 + $0x11c] sm:$0xf]
  %v91 = vld [vmem:[%s1 + $0x120] sm:$0xf]
  %v92 = vld [vmem:[%s1 + $0x124] sm:$0xf]
  %v93 = vld [vmem:[%s1 + $0x128] sm:$0xf]
  %v94 = vld [vmem:[%s1 + $0x12c] sm:$0xf]
  %v95 = vld [vmem:[%s1 + $0x130] sm:$0xf]
  %v96 = vld [vmem:[%s1 + $0x134] sm:$0xf]
  %v97 = vld [vmem:[%s1 + $0x138] sm:$0xf]
  %v98 = vld [vmem:[%s1 + $0x13c] sm:$0xf]
  %v99 = vld [vmem:[%s1 + $0x140] sm:$0xf]
  %v100 = vld [vmem:[%s1 + $0x144] sm:$0xf]
  %v101 = vld [vmem:[%s1 + $0x148] sm:$0xf]
  %v102 = vld [vmem:[%s1 + $0x14c] sm:$0xf]
  %v103 = vld [vmem:[%s1 + $0x150] sm:$0xf]
  %v104 = vld [vmem:[%s1 + $0x154] sm:$0xf]
  %v105 = vld [vmem:[%s1 + $0x158] sm:$0xf]
  %v106 = vld [vmem:[%s1 + $0x15c] sm:$0xf]
  %v107 = vld [vmem:[%s1 + $0x160] sm:$0xf]
  %v108 = vld [vmem:[%s1 + $0x164] sm:$0xf]
  %v109 = vld [vmem:[%s1 + $0x168] sm:$0xf]
  %v110 = vld [vmem:[%s1 + $0x16c] sm:$0xf]
  %v111 = vld [vmem:[%s1 + $0x170] sm:$0xf]
  %v112 = vld [vmem:[%s1 + $0x174] sm:$0xf]
  %v113 = vld [vmem:[%s1 + $0x178] sm:$0xf]
  %v114 = vld [vmem:[%s1 + $0x17c] sm:$0xf]
  %v115 = vld [vmem:[%s1 + $0x180] sm:$0xf]
  %v116 = vld [vmem:[%s1 + $0x184] sm:$0xf]
  %v117 = vld [vmem:[%s1 + $0x188] sm:$0xf]
  %v118 = vld [vmem:[%s1 + $0x18c] sm:$0xf]
  %v119 = vld [vmem:[%s1 + $0x190] sm:$0xf]
  %v120 = vld [vmem:[%s1 + $0x194] sm:$0xf]
  %v121 = vld [vmem:[%s1 + $0x198] sm:$0xf]
  %v122 = vld [vmem:[%s1 + $0x19c] sm:$0xf]
  %v123 = vld [vmem:[%s1 + $0x1a0] sm:$0xf]
  %v124 = vld [vmem:[%s1 + $0x1a4] sm:$0xf]
  %v125 = vld [vmem:[%s1 + $0x1a8] sm:$0xf]
  %v126 = vld [vmem:[%s1 + $0x1ac] sm:$0xf]
  %v127 = vld [vmem:[%s1 + $0x1b0] sm:$0xf]
  %v128 = vld [vmem:[%s1 + $0x1b4] sm:$0xf]
  %v129 = vld [vmem:[%s1 + $0x1b8] sm:$0xf]
  %v130 = vld [vmem:[%s1 + $0x1bc] sm:$0xf]
  %v131 = vld [vmem:[%s1 + $0x1c0] sm:$0xf]
  %v132 = vld [vmem:[%s1 + $0x1c4] sm:$0xf]
  %v133 = vld [vmem:[%s1 + $0x1c8] sm:$0xf]
  %v134 = vld [vmem:[%s1 + $0x1cc] sm:$0xf]
  %v135 = vld [vmem:[%s1 + $0x1d0] sm:$0xf]
  %v136 = vld [vmem:[%s1 + $0x1d4] sm:$0xf]
  %v137 = vld [vmem:[%s1 + $0x1d8] sm:$0xf]
  %v138 = vld [vmem:[%s1 + $0x1dc] sm:$0xf]
  %v139 = vld [vmem:[%s1 + $0x1e0] sm:$0xf]
  %v140 = vld [vmem:[%s1 + $0x1e4] sm:$0xf]
  %v141 = vld [vmem:[%s1 + $0x1e8] sm:$0xf]
  %v142 = vld [vmem:[%s1 + $0x1ec] sm:$0xf]
  %v143 = vld [vmem:[%s1 + $0x1f0] sm:$0xf]
  %v144 = vld [vmem:[%s1 + $0x1f4] sm:$0xf]
  %v145 = vld [vmem:[%s1 + $0x1f8] sm:$0xf]
  %v146 = vld [vmem:[%s1 + $0x1fc] sm:$0xf]
  %v147 = vld [vmem:[%s1 + $0x200] sm:$0xf]
  %v148 = vld [vmem:[%s1 + $0x204] sm:$0xf]
  %v149 = vld [vmem:[%s1 + $0x208] sm:$0xf]
  %v150 = vld [vmem:[%s1 + $0x20c] sm:$0xf]
  %v151 = vld [vmem:[%s1 + $0x210] sm:$0xf]
  %v152 = vld [vmem:[%s1 + $0x214] sm:$0xf]
  %v153 = vld [vmem:[%s1 + $0x218] sm:$0xf]
  %v154 = vld [vmem:[%s1 + $0x21c] sm:$0xf]
  %v155 = vld [vmem:[%s1 + $0x220] sm:$0xf]
  %v156 = vld [vmem:[%s1 + $0x224] sm:$0xf]
  %v157 = vld [vmem:[%s1 + $0x228] sm:$0xf]
  %v158 = vld [vmem:[%s1 + $0x22c] sm:$0xf]
  %v159 = vld [vmem:[%s1 + $0x230] sm:$0xf]
  %v160 = vld [vmem:[%s1 + $0x234] sm:$0xf]
  %v161 = vld [vmem:[%s1 + $0x238] sm:$0xf]
  %v162 = vld [vmem:[%s1 + $0x23c] sm:$0xf]
  %v163 = vld [vmem:[%s2] sm:$0x1]
  %v165 = vperm.slane %v163, 0
  %v172 = vunpack.c.l.b16 %v14
  %v173 = vunpack.c.h.b16 %v14
  %v174 = vunpack.c.l.b16 %v15
  %v175 = vunpack.c.h.b16 %v15
  %v176 = vunpack.c.l.b16 %v16
  %v177 = vunpack.c.h.b16 %v16
  %v178 = vunpack.c.l.b16 %v17
  %v179 = vunpack.c.h.b16 %v17
  %v180 = vunpack.c.l.b16 %v18
  %v181 = vpack.c.b16 %v172, %v172
  %v182 = vpack.c.b16 %v173, %v173
  %v183 = vpack.c.b16 %v174, %v174
  %v184 = vpack.c.b16 %v175, %v175
  %v185 = vpack.c.b16 %v176, %v176
  %v186 = vpack.c.b16 %v177, %v177
  %v187 = vpack.c.b16 %v178, %v178
  %v188 = vpack.c.b16 %v179, %v179
  %v189 = vpack.c.b16 %v180, %v180
  %v343 = vunpack.c.l.b16 %v19
  %v344 = vunpack.c.l.b16 %v20
  %v345 = vunpack.c.l.b16 %v21
  %v346 = vunpack.c.l.b16 %v22
  %v347 = vunpack.c.l.b16 %v23
  %v348 = vunpack.c.l.b16 %v24
  %v349 = vunpack.c.l.b16 %v25
  %v350 = vunpack.c.l.b16 %v26
  %v351 = vunpack.c.l.b16 %v27
  %v352 = vunpack.c.l.b16 %v28
  %v353 = vunpack.c.l.b16 %v29
  %v354 = vunpack.c.l.b16 %v30
  %v355 = vunpack.c.l.b16 %v31
  %v356 = vunpack.c.l.b16 %v32
  %v357 = vunpack.c.l.b16 %v33
  %v358 = vunpack.c.l.b16 %v34
  %v359 = vunpack.c.l.b16 %v35
  %v360 = vunpack.c.l.b16 %v36
  %v361 = vunpack.c.l.b16 %v37
  %v362 = vunpack.c.l.b16 %v38
  %v363 = vunpack.c.l.b16 %v39
  %v364 = vunpack.c.l.b16 %v40
  %v365 = vunpack.c.l.b16 %v41
  %v366 = vunpack.c.l.b16 %v42
  %v367 = vunpack.c.l.b16 %v43
  %v368 = vunpack.c.l.b16 %v44
  %v369 = vunpack.c.l.b16 %v45
  %v370 = vunpack.c.l.b16 %v46
  %v371 = vunpack.c.l.b16 %v47
  %v372 = vunpack.c.l.b16 %v48
  %v373 = vunpack.c.l.b16 %v49
  %v374 = vunpack.c.l.b16 %v50
  %v375 = vunpack.c.l.b16 %v51
  %v376 = vunpack.c.l.b16 %v52
  %v377 = vunpack.c.l.b16 %v53
  %v378 = vunpack.c.l.b16 %v54
  %v379 = vunpack.c.l.b16 %v55
  %v380 = vunpack.c.l.b16 %v56
  %v381 = vunpack.c.l.b16 %v57
  %v382 = vunpack.c.l.b16 %v58
  %v383 = vunpack.c.l.b16 %v59
  %v384 = vunpack.c.l.b16 %v60
  %v385 = vunpack.c.l.b16 %v61
  %v386 = vunpack.c.l.b16 %v62
  %v387 = vunpack.c.l.b16 %v63
  %v388 = vunpack.c.l.b16 %v64
  %v389 = vunpack.c.l.b16 %v65
  %v390 = vunpack.c.l.b16 %v66
  %v391 = vunpack.c.l.b16 %v67
  %v392 = vunpack.c.l.b16 %v68
  %v393 = vunpack.c.l.b16 %v69
  %v394 = vunpack.c.l.b16 %v70
  %v395 = vunpack.c.l.b16 %v71
  %v396 = vunpack.c.l.b16 %v72
  %v397 = vunpack.c.l.b16 %v73
  %v398 = vunpack.c.l.b16 %v74
  %v399 = vunpack.c.l.b16 %v75
  %v400 = vunpack.c.l.b16 %v76
  %v401 = vunpack.c.l.b16 %v77
  %v402 = vunpack.c.l.b16 %v78
  %v403 = vunpack.c.l.b16 %v79
  %v404 = vunpack.c.l.b16 %v80
  %v405 = vunpack.c.l.b16 %v81
  %v406 = vunpack.c.l.b16 %v82
  %v407 = vunpack.c.l.b16 %v83
  %v408 = vunpack.c.l.b16 %v84
  %v409 = vunpack.c.l.b16 %v85
  %v410 = vunpack.c.l.b16 %v86
  %v411 = vunpack.c.l.b16 %v87
  %v412 = vunpack.c.l.b16 %v88
  %v413 = vunpack.c.l.b16 %v89
  %v414 = vunpack.c.l.b16 %v90
  %v415 = vunpack.c.l.b16 %v91
  %v416 = vunpack.c.l.b16 %v92
  %v417 = vunpack.c.l.b16 %v93
  %v418 = vunpack.c.l.b16 %v94
  %v419 = vunpack.c.l.b16 %v95
  %v420 = vunpack.c.l.b16 %v96
  %v421 = vunpack.c.l.b16 %v97
  %v422 = vunpack.c.l.b16 %v98
  %v423 = vunpack.c.l.b16 %v99
  %v424 = vunpack.c.l.b16 %v100
  %v425 = vunpack.c.l.b16 %v101
  %v426 = vunpack.c.l.b16 %v102
  %v427 = vunpack.c.l.b16 %v103
  %v428 = vunpack.c.l.b16 %v104
  %v429 = vunpack.c.l.b16 %v105
  %v430 = vunpack.c.l.b16 %v106
  %v431 = vunpack.c.l.b16 %v107
  %v432 = vunpack.c.l.b16 %v108
  %v433 = vunpack.c.l.b16 %v109
  %v434 = vunpack.c.l.b16 %v110
  %v435 = vunpack.c.l.b16 %v111
  %v436 = vunpack.c.l.b16 %v112
  %v437 = vunpack.c.l.b16 %v113
  %v438 = vunpack.c.l.b16 %v114
  %v439 = vunpack.c.l.b16 %v115
  %v440 = vunpack.c.l.b16 %v116
  %v441 = vunpack.c.l.b16 %v117
  %v442 = vunpack.c.l.b16 %v118
  %v443 = vunpack.c.l.b16 %v119
  %v444 = vunpack.c.l.b16 %v120
  %v445 = vunpack.c.l.b16 %v121
  %v446 = vunpack.c.l.b16 %v122
  %v447 = vunpack.c.l.b16 %v123
  %v448 = vunpack.c.l.b16 %v124
  %v449 = vunpack.c.l.b16 %v125
  %v450 = vunpack.c.l.b16 %v126
  %v451 = vunpack.c.l.b16 %v127
  %v452 = vunpack.c.l.b16 %v128
  %v453 = vunpack.c.l.b16 %v129
  %v454 = vunpack.c.l.b16 %v130
  %v455 = vunpack.c.l.b16 %v131
  %v456 = vunpack.c.l.b16 %v132
  %v457 = vunpack.c.l.b16 %v133
  %v458 = vunpack.c.l.b16 %v134
  %v459 = vunpack.c.l.b16 %v135
  %v460 = vunpack.c.l.b16 %v136
  %v461 = vunpack.c.l.b16 %v137
  %v462 = vunpack.c.l.b16 %v138
  %v463 = vunpack.c.l.b16 %v139
  %v464 = vunpack.c.l.b16 %v140
  %v465 = vunpack.c.l.b16 %v141
  %v466 = vunpack.c.l.b16 %v142
  %v467 = vunpack.c.l.b16 %v143
  %v468 = vunpack.c.l.b16 %v144
  %v469 = vunpack.c.l.b16 %v145
  %v470 = vunpack.c.l.b16 %v146
  %v471 = vunpack.c.l.b16 %v147
  %v472 = vunpack.c.l.b16 %v148
  %v473 = vunpack.c.l.b16 %v149
  %v474 = vunpack.c.l.b16 %v150
  %v475 = vunpack.c.l.b16 %v151
  %v476 = vunpack.c.l.b16 %v152
  %v477 = vunpack.c.l.b16 %v153
  %v478 = vunpack.c.l.b16 %v154
  %v479 = vunpack.c.l.b16 %v155
  %v480 = vunpack.c.l.b16 %v156
  %v481 = vunpack.c.l.b16 %v157
  %v482 = vunpack.c.l.b16 %v158
  %v483 = vunpack.c.l.b16 %v159
  %v484 = vunpack.c.l.b16 %v160
  %v485 = vunpack.c.l.b16 %v161
  %v486 = vunpack.c.l.b16 %v162
  %v487 = vpack.c.b16 %v344, %v343
  %v488 = vpack.c.b16 %v346, %v345
  %v489 = vpack.c.b16 %v348, %v347
  %v490 = vpack.c.b16 %v350, %v349
  %v491 = vpack.c.b16 %v352, %v351
  %v492 = vpack.c.b16 %v354, %v353
  %v493 = vpack.c.b16 %v356, %v355
  %v494 = vpack.c.b16 %v358, %v357
  %v495 = vpack.c.b16 %v360, %v359
  %v496 = vpack.c.b16 %v362, %v361
  %v497 = vpack.c.b16 %v364, %v363
  %v498 = vpack.c.b16 %v366, %v365
  %v499 = vpack.c.b16 %v368, %v367
  %v500 = vpack.c.b16 %v370, %v369
  %v501 = vpack.c.b16 %v372, %v371
  %v502 = vpack.c.b16 %v374, %v373
  %v503 = vpack.c.b16 %v376, %v375
  %v504 = vpack.c.b16 %v378, %v377
  %v505 = vpack.c.b16 %v380, %v379
  %v506 = vpack.c.b16 %v382, %v381
  %v507 = vpack.c.b16 %v384, %v383
  %v508 = vpack.c.b16 %v386, %v385
  %v509 = vpack.c.b16 %v388, %v387
  %v510 = vpack.c.b16 %v390, %v389
  %v511 = vpack.c.b16 %v392, %v391
  %v512 = vpack.c.b16 %v394, %v393
  %v513 = vpack.c.b16 %v396, %v395
  %v514 = vpack.c.b16 %v398, %v397
  %v515 = vpack.c.b16 %v400, %v399
  %v516 = vpack.c.b16 %v402, %v401
  %v517 = vpack.c.b16 %v404, %v403
  %v518 = vpack.c.b16 %v406, %v405
  %v519 = vpack.c.b16 %v408, %v407
  %v520 = vpack.c.b16 %v410, %v409
  %v521 = vpack.c.b16 %v412, %v411
  %v522 = vpack.c.b16 %v414, %v413
  %v523 = vpack.c.b16 %v416, %v415
  %v524 = vpack.c.b16 %v418, %v417
  %v525 = vpack.c.b16 %v420, %v419
  %v526 = vpack.c.b16 %v422, %v421
  %v527 = vpack.c.b16 %v424, %v423
  %v528 = vpack.c.b16 %v426, %v425
  %v529 = vpack.c.b16 %v428, %v427
  %v530 = vpack.c.b16 %v430, %v429
  %v531 = vpack.c.b16 %v432, %v431
  %v532 = vpack.c.b16 %v434, %v433
  %v533 = vpack.c.b16 %v436, %v435
  %v534 = vpack.c.b16 %v438, %v437
  %v535 = vpack.c.b16 %v440, %v439
  %v536 = vpack.c.b16 %v442, %v441
  %v537 = vpack.c.b16 %v444, %v443
  %v538 = vpack.c.b16 %v446, %v445
  %v539 = vpack.c.b16 %v448, %v447
  %v540 = vpack.c.b16 %v450, %v449
  %v541 = vpack.c.b16 %v452, %v451
  %v542 = vpack.c.b16 %v454, %v453
  %v543 = vpack.c.b16 %v456, %v455
  %v544 = vpack.c.b16 %v458, %v457
  %v545 = vpack.c.b16 %v460, %v459
  %v546 = vpack.c.b16 %v462, %v461
  %v547 = vpack.c.b16 %v464, %v463
  %v548 = vpack.c.b16 %v466, %v465
  %v549 = vpack.c.b16 %v468, %v467
  %v550 = vpack.c.b16 %v470, %v469
  %v551 = vpack.c.b16 %v472, %v471
  %v552 = vpack.c.b16 %v474, %v473
  %v553 = vpack.c.b16 %v476, %v475
  %v554 = vpack.c.b16 %v478, %v477
  %v555 = vpack.c.b16 %v480, %v479
  %v556 = vpack.c.b16 %v482, %v481
  %v557 = vpack.c.b16 %v484, %v483
  %v558 = vpack.c.b16 %v486, %v485
  %631 = vmatpush.bf16.msra.mxu0 %v494
  %632 = vmatpush.bf16.msra.mxu0 %v493
  %633 = vmatpush.bf16.msra.mxu0 %v492
  %634 = vmatpush.bf16.msra.mxu0 %v491
  %635 = vmatpush.bf16.msra.mxu0 %v490
  %636 = vmatpush.bf16.msra.mxu0 %v489
  %637 = vmatpush.bf16.msra.mxu0 %v488
  %638 = vmatpush.bf16.msra.mxu0 %v487
  %639 = vmatmul.bf16.gmra.mxu0 %v181
  %v640 = vpop.f32.mrf.mxu0
  %v641 = vadd.f32 %v165, %v640
  %v642 = vpop.f32.mrf.mxu0
  %643 = vdwg.mxu0
  %644 = vmatpush.bf16.msra.mxu0 %v502
  %645 = vmatpush.bf16.msra.mxu0 %v501
  %646 = vmatpush.bf16.msra.mxu0 %v500
  %647 = vmatpush.bf16.msra.mxu0 %v499
  %648 = vmatpush.bf16.msra.mxu0 %v498
  %649 = vmatpush.bf16.msra.mxu0 %v497
  %650 = vmatpush.bf16.msra.mxu0 %v496
  %651 = vmatpush.bf16.msra.mxu0 %v495
  %652 = vmatmul.bf16.gmra.mxu0 %v182
  %v653 = vpop.f32.mrf.mxu0
  %v654 = vadd.f32 %v641, %v653
  %v655 = vpop.f32.mrf.mxu0
  %656 = vdwg.mxu0
  %657 = vmatpush.bf16.msra.mxu0 %v510
  %658 = vmatpush.bf16.msra.mxu0 %v509
  %659 = vmatpush.bf16.msra.mxu0 %v508
  %660 = vmatpush.bf16.msra.mxu0 %v507
  %661 = vmatpush.bf16.msra.mxu0 %v506
  %662 = vmatpush.bf16.msra.mxu0 %v505
  %663 = vmatpush.bf16.msra.mxu0 %v504
  %664 = vmatpush.bf16.msra.mxu0 %v503
  %665 = vmatmul.bf16.gmra.mxu0 %v183
  %v666 = vpop.f32.mrf.mxu0
  %v667 = vadd.f32 %v654, %v666
  %v668 = vpop.f32.mrf.mxu0
  %669 = vdwg.mxu0
  %670 = vmatpush.bf16.msra.mxu0 %v518
  %671 = vmatpush.bf16.msra.mxu0 %v517
  %672 = vmatpush.bf16.msra.mxu0 %v516
  %673 = vmatpush.bf16.msra.mxu0 %v515
  %674 = vmatpush.bf16.msra.mxu0 %v514
  %675 = vmatpush.bf16.msra.mxu0 %v513
  %676 = vmatpush.bf16.msra.mxu0 %v512
  %677 = vmatpush.bf16.msra.mxu0 %v511
  %678 = vmatmul.bf16.gmra.mxu0 %v184
  %v679 = vpop.f32.mrf.mxu0
  %v680 = vadd.f32 %v667, %v679
  %v681 = vpop.f32.mrf.mxu0
  %682 = vdwg.mxu0
  %683 = vmatpush.bf16.msra.mxu0 %v526
  %684 = vmatpush.bf16.msra.mxu0 %v525
  %685 = vmatpush.bf16.msra.mxu0 %v524
  %686 = vmatpush.bf16.msra.mxu0 %v523
  %687 = vmatpush.bf16.msra.mxu0 %v522
  %688 = vmatpush.bf16.msra.mxu0 %v521
  %689 = vmatpush.bf16.msra.mxu0 %v520
  %690 = vmatpush.bf16.msra.mxu0 %v519
  %691 = vmatmul.bf16.gmra.mxu0 %v185
  %v692 = vpop.f32.mrf.mxu0
  %v693 = vadd.f32 %v680, %v692
  %v694 = vpop.f32.mrf.mxu0
  %695 = vdwg.mxu0
  %696 = vmatpush.bf16.msra.mxu0 %v534
  %697 = vmatpush.bf16.msra.mxu0 %v533
  %698 = vmatpush.bf16.msra.mxu0 %v532
  %699 = vmatpush.bf16.msra.mxu0 %v531
  %700 = vmatpush.bf16.msra.mxu0 %v530
  %701 = vmatpush.bf16.msra.mxu0 %v529
  %702 = vmatpush.bf16.msra.mxu0 %v528
  %703 = vmatpush.bf16.msra.mxu0 %v527
  %704 = vmatmul.bf16.gmra.mxu0 %v186
  %v705 = vpop.f32.mrf.mxu0
  %v706 = vadd.f32 %v693, %v705
  %v707 = vpop.f32.mrf.mxu0
  %708 = vdwg.mxu0
  %709 = vmatpush.bf16.msra.mxu0 %v542
  %710 = vmatpush.bf16.msra.mxu0 %v541
  %711 = vmatpush.bf16.msra.mxu0 %v540
  %712 = vmatpush.bf16.msra.mxu0 %v539
  %713 = vmatpush.bf16.msra.mxu0 %v538
  %714 = vmatpush.bf16.msra.mxu0 %v537
  %715 = vmatpush.bf16.msra.mxu0 %v536
  %716 = vmatpush.bf16.msra.mxu0 %v535
  %717 = vmatmul.bf16.gmra.mxu0 %v187
  %v718 = vpop.f32.mrf.mxu0
  %v719 = vadd.f32 %v706, %v718
  %v720 = vpop.f32.mrf.mxu0
  %721 = vdwg.mxu0
  %722 = vmatpush.bf16.msra.mxu0 %v550
  %723 = vmatpush.bf16.msra.mxu0 %v549
  %724 = vmatpush.bf16.msra.mxu0 %v548
  %725 = vmatpush.bf16.msra.mxu0 %v547
  %726 = vmatpush.bf16.msra.mxu0 %v546
  %727 = vmatpush.bf16.msra.mxu0 %v545
  %728 = vmatpush.bf16.msra.mxu0 %v544
  %729 = vmatpush.bf16.msra.mxu0 %v543
  %730 = vmatmul.bf16.gmra.mxu0 %v188
  %v731 = vpop.f32.mrf.mxu0
  %v732 = vadd.f32 %v719, %v731
  %v733 = vpop.f32.mrf.mxu0
  %734 = vdwg.mxu0
  %735 = vmatpush.bf16.msra.mxu0 %v558
  %736 = vmatpush.bf16.msra.mxu0 %v557
  %737 = vmatpush.bf16.msra.mxu0 %v556
  %738 = vmatpush.bf16.msra.mxu0 %v555
  %739 = vmatpush.bf16.msra.mxu0 %v554
  %740 = vmatpush.bf16.msra.mxu0 %v553
  %741 = vmatpush.bf16.msra.mxu0 %v552
  %742 = vmatpush.bf16.msra.mxu0 %v551
  %743 = vmatmul.bf16.gmra.mxu0 %v189
  %v744 = vpop.f32.mrf.mxu0
  %v745 = vadd.f32 %v732, %v744
  %v746 = vpop.f32.mrf.mxu0
  %747 = vdwg.mxu0
  %v748 = vmax.f32 %v745, 0.0
  %v749 = vpack.c.bf16 %v748, %v748
  %750 = vst [vmem:[%s3] sm:$0xf] %v749
  // Predicated region
  $region14: #{vae_forward.15} parent=0 // pred_check
    _
  $region15: #{vae_forward.15} parent=0 // pred_check_branch
    %752 = sbr.rel (0) target = $region17
  $region16: #{vae_forward.15} parent=0 // pred_region
    _
  $region17: #{vae_forward.15} parent=0 // pred_fallthru
    _
  // Predicated region
  $region18: #{vae_forward.15} parent=0 // pred_check
    _
  $region19: #{vae_forward.15} parent=0 // pred_check_branch
    %754 = sbr.rel (0) target = $region21
  $region20: #{vae_forward.15} parent=0 // pred_region
    _
  $region21: #{vae_forward.15} parent=0 // pred_fallthru
    _

// kernel: vae_forward.16
$region0: #{vae_forward.16}
  #allocation0 [shape = 'u32[]', space=smem, size = 0x4, offset = 0x4, fixed_abs, tag = 'smem constant byte address 0x4 - core index']
  #allocation1 [shape = 'u32[72,128]{1,0:T(1,128)}', space=vmem, size = 0x9000, scoped, tag = 'internal scratch']
  %s0 = inlined_call_operand.vmem [shape: bf16[8,1152], index: 0, kind: input, shape index: {}]
  %s1 = inlined_call_operand.vmem [shape: bf16[1152,128], index: 1, kind: input, shape index: {}]
  %s2 = inlined_call_operand.vmem [shape: f32[1,128], index: 2, kind: input, shape index: {}]
  %s3 = inlined_call_operand.vmem [shape: bf16[8,128], index: 3, kind: output, shape index: {}]
  %s4 = sld [smem:[#allocation0]]
  $region22: #{vae_forward.16} parent=0
    _
  %s6 = ssub.s32 1, %s4
  %s7 = scalar_select 0, %s6, %s4
  // Predicated region
  $region2: #{vae_forward.16} parent=0 // pred_check
    _
  $region3: #{vae_forward.16} parent=0 // pred_check_branch
    %9 = sbr.rel (0) target = $region5
  $region4: #{vae_forward.16} parent=0 // pred_region
    _
  $region5: #{vae_forward.16} parent=0 // pred_fallthru
    _
  // Predicated region
  $region6: #{vae_forward.16} parent=0 // pred_check
    _
  $region7: #{vae_forward.16} parent=0 // pred_check_branch
    %11 = sbr.rel (0) target = $region9
  $region8: #{vae_forward.16} parent=0 // pred_region
    _
  $region9: #{vae_forward.16} parent=0 // pred_fallthru
    _
  // Predicated region
  $region10: #{vae_forward.16} parent=0 // pred_check
    _
  $region11: #{vae_forward.16} parent=0 // pred_check_branch
    %13 = sbr.rel (0) target = $region13
  $region12: #{vae_forward.16} parent=0 // pred_region
    _
  $region13: #{vae_forward.16} parent=0 // pred_fallthru
    _
  %v14 = vld [vmem:[%s0] sm:$0xff]
  %v15 = vld [vmem:[%s0 + $0x8] sm:$0xff]
  %v16 = vld [vmem:[%s0 + $0x10] sm:$0xff]
  %v17 = vld [vmem:[%s0 + $0x18] sm:$0xff]
  %v18 = vld [vmem:[%s0 + $0x20] sm:$0xf]
  %v19 = vld [vmem:[%s1] sm:$0xf]
  %v20 = vld [vmem:[%s1 + $0x4] sm:$0xf]
  %v21 = vld [vmem:[%s1 + $0x8] sm:$0xf]
  %v22 = vld [vmem:[%s1 + $0xc] sm:$0xf]
  %v23 = vld [vmem:[%s1 + $0x10] sm:$0xf]
  %v24 = vld [vmem:[%s1 + $0x14] sm:$0xf]
  %v25 = vld [vmem:[%s1 + $0x18] sm:$0xf]
  %v26 = vld [vmem:[%s1 + $0x1c] sm:$0xf]
  %v27 = vld [vmem:[%s1 + $0x20] sm:$0xf]
  %v28 = vld [vmem:[%s1 + $0x24] sm:$0xf]
  %v29 = vld [vmem:[%s1 + $0x28] sm:$0xf]
  %v30 = vld [vmem:[%s1 + $0x2c] sm:$0xf]
  %v31 = vld [vmem:[%s1 + $0x30] sm:$0xf]
  %v32 = vld [vmem:[%s1 + $0x34] sm:$0xf]
  %v33 = vld [vmem:[%s1 + $0x38] sm:$0xf]
  %v34 = vld [vmem:[%s1 + $0x3c] sm:$0xf]
  %v35 = vld [vmem:[%s1 + $0x40] sm:$0xf]
  %v36 = vld [vmem:[%s1 + $0x44] sm:$0xf]
  %v37 = vld [vmem:[%s1 + $0x48] sm:$0xf]
  %v38 = vld [vmem:[%s1 + $0x4c] sm:$0xf]
  %v39 = vld [vmem:[%s1 + $0x50] sm:$0xf]
  %v40 = vld [vmem:[%s1 + $0x54] sm:$0xf]
  %v41 = vld [vmem:[%s1 + $0x58] sm:$0xf]
  %v42 = vld [vmem:[%s1 + $0x5c] sm:$0xf]
  %v43 = vld [vmem:[%s1 + $0x60] sm:$0xf]
  %v44 = vld [vmem:[%s1 + $0x64] sm:$0xf]
  %v45 = vld [vmem:[%s1 + $0x68] sm:$0xf]
  %v46 = vld [vmem:[%s1 + $0x6c] sm:$0xf]
  %v47 = vld [vmem:[%s1 + $0x70] sm:$0xf]
  %v48 = vld [vmem:[%s1 + $0x74] sm:$0xf]
  %v49 = vld [vmem:[%s1 + $0x78] sm:$0xf]
  %v50 = vld [vmem:[%s1 + $0x7c] sm:$0xf]
  %v51 = vld [vmem:[%s1 + $0x80] sm:$0xf]
  %v52 = vld [vmem:[%s1 + $0x84] sm:$0xf]
  %v53 = vld [vmem:[%s1 + $0x88] sm:$0xf]
  %v54 = vld [vmem:[%s1 + $0x8c] sm:$0xf]
  %v55 = vld [vmem:[%s1 + $0x90] sm:$0xf]
  %v56 = vld [vmem:[%s1 + $0x94] sm:$0xf]
  %v57 = vld [vmem:[%s1 + $0x98] sm:$0xf]
  %v58 = vld [vmem:[%s1 + $0x9c] sm:$0xf]
  %v59 = vld [vmem:[%s1 + $0xa0] sm:$0xf]
  %v60 = vld [vmem:[%s1 + $0xa4] sm:$0xf]
  %v61 = vld [vmem:[%s1 + $0xa8] sm:$0xf]
  %v62 = vld [vmem:[%s1 + $0xac] sm:$0xf]
  %v63 = vld [vmem:[%s1 + $0xb0] sm:$0xf]
  %v64 = vld [vmem:[%s1 + $0xb4] sm:$0xf]
  %v65 = vld [vmem:[%s1 + $0xb8] sm:$0xf]
  %v66 = vld [vmem:[%s1 + $0xbc] sm:$0xf]
  %v67 = vld [vmem:[%s1 + $0xc0] sm:$0xf]
  %v68 = vld [vmem:[%s1 + $0xc4] sm:$0xf]
  %v69 = vld [vmem:[%s1 + $0xc8] sm:$0xf]
  %v70 = vld [vmem:[%s1 + $0xcc] sm:$0xf]
  %v71 = vld [vmem:[%s1 + $0xd0] sm:$0xf]
  %v72 = vld [vmem:[%s1 + $0xd4] sm:$0xf]
  %v73 = vld [vmem:[%s1 + $0xd8] sm:$0xf]
  %v74 = vld [vmem:[%s1 + $0xdc] sm:$0xf]
  %v75 = vld [vmem:[%s1 + $0xe0] sm:$0xf]
  %v76 = vld [vmem:[%s1 + $0xe4] sm:$0xf]
  %v77 = vld [vmem:[%s1 + $0xe8] sm:$0xf]
  %v78 = vld [vmem:[%s1 + $0xec] sm:$0xf]
  %v79 = vld [vmem:[%s1 + $0xf0] sm:$0xf]
  %v80 = vld [vmem:[%s1 + $0xf4] sm:$0xf]
  %v81 = vld [vmem:[%s1 + $0xf8] sm:$0xf]
  %v82 = vld [vmem:[%s1 + $0xfc] sm:$0xf]
  %v83 = vld [vmem:[%s1 + $0x100] sm:$0xf]
  %v84 = vld [vmem:[%s1 + $0x104] sm:$0xf]
  %v85 = vld [vmem:[%s1 + $0x108] sm:$0xf]
  %v86 = vld [vmem:[%s1 + $0x10c] sm:$0xf]
  %v87 = vld [vmem:[%s1 + $0x110] sm:$0xf]
  %v88 = vld [vmem:[%s1 + $0x114] sm:$0xf]
  %v89 = vld [vmem:[%s1 + $0x118] sm:$0xf]
  %v90 = vld [vmem:[%s1 + $0x11c] sm:$0xf]
  %v91 = vld [vmem:[%s1 + $0x120] sm:$0xf]
  %v92 = vld [vmem:[%s1 + $0x124] sm:$0xf]
  %v93 = vld [vmem:[%s1 + $0x128] sm:$0xf]
  %v94 = vld [vmem:[%s1 + $0x12c] sm:$0xf]
  %v95 = vld [vmem:[%s1 + $0x130] sm:$0xf]
  %v96 = vld [vmem:[%s1 + $0x134] sm:$0xf]
  %v97 = vld [vmem:[%s1 + $0x138] sm:$0xf]
  %v98 = vld [vmem:[%s1 + $0x13c] sm:$0xf]
  %v99 = vld [vmem:[%s1 + $0x140] sm:$0xf]
  %v100 = vld [vmem:[%s1 + $0x144] sm:$0xf]
  %v101 = vld [vmem:[%s1 + $0x148] sm:$0xf]
  %v102 = vld [vmem:[%s1 + $0x14c] sm:$0xf]
  %v103 = vld [vmem:[%s1 + $0x150] sm:$0xf]
  %v104 = vld [vmem:[%s1 + $0x154] sm:$0xf]
  %v105 = vld [vmem:[%s1 + $0x158] sm:$0xf]
  %v106 = vld [vmem:[%s1 + $0x15c] sm:$0xf]
  %v107 = vld [vmem:[%s1 + $0x160] sm:$0xf]
  %v108 = vld [vmem:[%s1 + $0x164] sm:$0xf]
  %v109 = vld [vmem:[%s1 + $0x168] sm:$0xf]
  %v110 = vld [vmem:[%s1 + $0x16c] sm:$0xf]
  %v111 = vld [vmem:[%s1 + $0x170] sm:$0xf]
  %v112 = vld [vmem:[%s1 + $0x174] sm:$0xf]
  %v113 = vld [vmem:[%s1 + $0x178] sm:$0xf]
  %v114 = vld [vmem:[%s1 + $0x17c] sm:$0xf]
  %v115 = vld [vmem:[%s1 + $0x180] sm:$0xf]
  %v116 = vld [vmem:[%s1 + $0x184] sm:$0xf]
  %v117 = vld [vmem:[%s1 + $0x188] sm:$0xf]
  %v118 = vld [vmem:[%s1 + $0x18c] sm:$0xf]
  %v119 = vld [vmem:[%s1 + $0x190] sm:$0xf]
  %v120 = vld [vmem:[%s1 + $0x194] sm:$0xf]
  %v121 = vld [vmem:[%s1 + $0x198] sm:$0xf]
  %v122 = vld [vmem:[%s1 + $0x19c] sm:$0xf]
  %v123 = vld [vmem:[%s1 + $0x1a0] sm:$0xf]
  %v124 = vld [vmem:[%s1 + $0x1a4] sm:$0xf]
  %v125 = vld [vmem:[%s1 + $0x1a8] sm:$0xf]
  %v126 = vld [vmem:[%s1 + $0x1ac] sm:$0xf]
  %v127 = vld [vmem:[%s1 + $0x1b0] sm:$0xf]
  %v128 = vld [vmem:[%s1 + $0x1b4] sm:$0xf]
  %v129 = vld [vmem:[%s1 + $0x1b8] sm:$0xf]
  %v130 = vld [vmem:[%s1 + $0x1bc] sm:$0xf]
  %v131 = vld [vmem:[%s1 + $0x1c0] sm:$0xf]
  %v132 = vld [vmem:[%s1 + $0x1c4] sm:$0xf]
  %v133 = vld [vmem:[%s1 + $0x1c8] sm:$0xf]
  %v134 = vld [vmem:[%s1 + $0x1cc] sm:$0xf]
  %v135 = vld [vmem:[%s1 + $0x1d0] sm:$0xf]
  %v136 = vld [vmem:[%s1 + $0x1d4] sm:$0xf]
  %v137 = vld [vmem:[%s1 + $0x1d8] sm:$0xf]
  %v138 = vld [vmem:[%s1 + $0x1dc] sm:$0xf]
  %v139 = vld [vmem:[%s1 + $0x1e0] sm:$0xf]
  %v140 = vld [vmem:[%s1 + $0x1e4] sm:$0xf]
  %v141 = vld [vmem:[%s1 + $0x1e8] sm:$0xf]
  %v142 = vld [vmem:[%s1 + $0x1ec] sm:$0xf]
  %v143 = vld [vmem:[%s1 + $0x1f0] sm:$0xf]
  %v144 = vld [vmem:[%s1 + $0x1f4] sm:$0xf]
  %v145 = vld [vmem:[%s1 + $0x1f8] sm:$0xf]
  %v146 = vld [vmem:[%s1 + $0x1fc] sm:$0xf]
  %v147 = vld [vmem:[%s1 + $0x200] sm:$0xf]
  %v148 = vld [vmem:[%s1 + $0x204] sm:$0xf]
  %v149 = vld [vmem:[%s1 + $0x208] sm:$0xf]
  %v150 = vld [vmem:[%s1 + $0x20c] sm:$0xf]
  %v151 = vld [vmem:[%s1 + $0x210] sm:$0xf]
  %v152 = vld [vmem:[%s1 + $0x214] sm:$0xf]
  %v153 = vld [vmem:[%s1 + $0x218] sm:$0xf]
  %v154 = vld [vmem:[%s1 + $0x21c] sm:$0xf]
  %v155 = vld [vmem:[%s1 + $0x220] sm:$0xf]
  %v156 = vld [vmem:[%s1 + $0x224] sm:$0xf]
  %v157 = vld [vmem:[%s1 + $0x228] sm:$0xf]
  %v158 = vld [vmem:[%s1 + $0x22c] sm:$0xf]
  %v159 = vld [vmem:[%s1 + $0x230] sm:$0xf]
  %v160 = vld [vmem:[%s1 + $0x234] sm:$0xf]
  %v161 = vld [vmem:[%s1 + $0x238] sm:$0xf]
  %v162 = vld [vmem:[%s1 + $0x23c] sm:$0xf]
  %v163 = vld [vmem:[%s2] sm:$0x1]
  %v165 = vperm.slane %v163, 0
  %v172 = vunpack.c.l.b16 %v14
  %v173 = vunpack.c.h.b16 %v14
  %v174 = vunpack.c.l.b16 %v15
  %v175 = vunpack.c.h.b16 %v15
  %v176 = vunpack.c.l.b16 %v16
  %v177 = vunpack.c.h.b16 %v16
  %v178 = vunpack.c.l.b16 %v17
  %v179 = vunpack.c.h.b16 %v17
  %v180 = vunpack.c.l.b16 %v18
  %v181 = vpack.c.b16 %v172, %v172
  %v182 = vpack.c.b16 %v173, %v173
  %v183 = vpack.c.b16 %v174, %v174
  %v184 = vpack.c.b16 %v175, %v175
  %v185 = vpack.c.b16 %v176, %v176
  %v186 = vpack.c.b16 %v177, %v177
  %v187 = vpack.c.b16 %v178, %v178
  %v188 = vpack.c.b16 %v179, %v179
  %v189 = vpack.c.b16 %v180, %v180
  %v343 = vunpack.c.l.b16 %v19
  %v344 = vunpack.c.l.b16 %v20
  %v345 = vunpack.c.l.b16 %v21
  %v346 = vunpack.c.l.b16 %v22
  %v347 = vunpack.c.l.b16 %v23
  %v348 = vunpack.c.l.b16 %v24
  %v349 = vunpack.c.l.b16 %v25
  %v350 = vunpack.c.l.b16 %v26
  %v351 = vunpack.c.l.b16 %v27
  %v352 = vunpack.c.l.b16 %v28
  %v353 = vunpack.c.l.b16 %v29
  %v354 = vunpack.c.l.b16 %v30
  %v355 = vunpack.c.l.b16 %v31
  %v356 = vunpack.c.l.b16 %v32
  %v357 = vunpack.c.l.b16 %v33
  %v358 = vunpack.c.l.b16 %v34
  %v359 = vunpack.c.l.b16 %v35
  %v360 = vunpack.c.l.b16 %v36
  %v361 = vunpack.c.l.b16 %v37
  %v362 = vunpack.c.l.b16 %v38
  %v363 = vunpack.c.l.b16 %v39
  %v364 = vunpack.c.l.b16 %v40
  %v365 = vunpack.c.l.b16 %v41
  %v366 = vunpack.c.l.b16 %v42
  %v367 = vunpack.c.l.b16 %v43
  %v368 = vunpack.c.l.b16 %v44
  %v369 = vunpack.c.l.b16 %v45
  %v370 = vunpack.c.l.b16 %v46
  %v371 = vunpack.c.l.b16 %v47
  %v372 = vunpack.c.l.b16 %v48
  %v373 = vunpack.c.l.b16 %v49
  %v374 = vunpack.c.l.b16 %v50
  %v375 = vunpack.c.l.b16 %v51
  %v376 = vunpack.c.l.b16 %v52
  %v377 = vunpack.c.l.b16 %v53
  %v378 = vunpack.c.l.b16 %v54
  %v379 = vunpack.c.l.b16 %v55
  %v380 = vunpack.c.l.b16 %v56
  %v381 = vunpack.c.l.b16 %v57
  %v382 = vunpack.c.l.b16 %v58
  %v383 = vunpack.c.l.b16 %v59
  %v384 = vunpack.c.l.b16 %v60
  %v385 = vunpack.c.l.b16 %v61
  %v386 = vunpack.c.l.b16 %v62
  %v387 = vunpack.c.l.b16 %v63
  %v388 = vunpack.c.l.b16 %v64
  %v389 = vunpack.c.l.b16 %v65
  %v390 = vunpack.c.l.b16 %v66
  %v391 = vunpack.c.l.b16 %v67
  %v392 = vunpack.c.l.b16 %v68
  %v393 = vunpack.c.l.b16 %v69
  %v394 = vunpack.c.l.b16 %v70
  %v395 = vunpack.c.l.b16 %v71
  %v396 = vunpack.c.l.b16 %v72
  %v397 = vunpack.c.l.b16 %v73
  %v398 = vunpack.c.l.b16 %v74
  %v399 = vunpack.c.l.b16 %v75
  %v400 = vunpack.c.l.b16 %v76
  %v401 = vunpack.c.l.b16 %v77
  %v402 = vunpack.c.l.b16 %v78
  %v403 = vunpack.c.l.b16 %v79
  %v404 = vunpack.c.l.b16 %v80
  %v405 = vunpack.c.l.b16 %v81
  %v406 = vunpack.c.l.b16 %v82
  %v407 = vunpack.c.l.b16 %v83
  %v408 = vunpack.c.l.b16 %v84
  %v409 = vunpack.c.l.b16 %v85
  %v410 = vunpack.c.l.b16 %v86
  %v411 = vunpack.c.l.b16 %v87
  %v412 = vunpack.c.l.b16 %v88
  %v413 = vunpack.c.l.b16 %v89
  %v414 = vunpack.c.l.b16 %v90
  %v415 = vunpack.c.l.b16 %v91
  %v416 = vunpack.c.l.b16 %v92
  %v417 = vunpack.c.l.b16 %v93
  %v418 = vunpack.c.l.b16 %v94
  %v419 = vunpack.c.l.b16 %v95
  %v420 = vunpack.c.l.b16 %v96
  %v421 = vunpack.c.l.b16 %v97
  %v422 = vunpack.c.l.b16 %v98
  %v423 = vunpack.c.l.b16 %v99
  %v424 = vunpack.c.l.b16 %v100
  %v425 = vunpack.c.l.b16 %v101
  %v426 = vunpack.c.l.b16 %v102
  %v427 = vunpack.c.l.b16 %v103
  %v428 = vunpack.c.l.b16 %v104
  %v429 = vunpack.c.l.b16 %v105
  %v430 = vunpack.c.l.b16 %v106
  %v431 = vunpack.c.l.b16 %v107
  %v432 = vunpack.c.l.b16 %v108
  %v433 = vunpack.c.l.b16 %v109
  %v434 = vunpack.c.l.b16 %v110
  %v435 = vunpack.c.l.b16 %v111
  %v436 = vunpack.c.l.b16 %v112
  %v437 = vunpack.c.l.b16 %v113
  %v438 = vunpack.c.l.b16 %v114
  %v439 = vunpack.c.l.b16 %v115
  %v440 = vunpack.c.l.b16 %v116
  %v441 = vunpack.c.l.b16 %v117
  %v442 = vunpack.c.l.b16 %v118
  %v443 = vunpack.c.l.b16 %v119
  %v444 = vunpack.c.l.b16 %v120
  %v445 = vunpack.c.l.b16 %v121
  %v446 = vunpack.c.l.b16 %v122
  %v447 = vunpack.c.l.b16 %v123
  %v448 = vunpack.c.l.b16 %v124
  %v449 = vunpack.c.l.b16 %v125
  %v450 = vunpack.c.l.b16 %v126
  %v451 = vunpack.c.l.b16 %v127
  %v452 = vunpack.c.l.b16 %v128
  %v453 = vunpack.c.l.b16 %v129
  %v454 = vunpack.c.l.b16 %v130
  %v455 = vunpack.c.l.b16 %v131
  %v456 = vunpack.c.l.b16 %v132
  %v457 = vunpack.c.l.b16 %v133
  %v458 = vunpack.c.l.b16 %v134
  %v459 = vunpack.c.l.b16 %v135
  %v460 = vunpack.c.l.b16 %v136
  %v461 = vunpack.c.l.b16 %v137
  %v462 = vunpack.c.l.b16 %v138
  %v463 = vunpack.c.l.b16 %v139
  %v464 = vunpack.c.l.b16 %v140
  %v465 = vunpack.c.l.b16 %v141
  %v466 = vunpack.c.l.b16 %v142
  %v467 = vunpack.c.l.b16 %v143
  %v468 = vunpack.c.l.b16 %v144
  %v469 = vunpack.c.l.b16 %v145
  %v470 = vunpack.c.l.b16 %v146
  %v471 = vunpack.c.l.b16 %v147
  %v472 = vunpack.c.l.b16 %v148
  %v473 = vunpack.c.l.b16 %v149
  %v474 = vunpack.c.l.b16 %v150
  %v475 = vunpack.c.l.b16 %v151
  %v476 = vunpack.c.l.b16 %v152
  %v477 = vunpack.c.l.b16 %v153
  %v478 = vunpack.c.l.b16 %v154
  %v479 = vunpack.c.l.b16 %v155
  %v480 = vunpack.c.l.b16 %v156
  %v481 = vunpack.c.l.b16 %v157
  %v482 = vunpack.c.l.b16 %v158
  %v483 = vunpack.c.l.b16 %v159
  %v484 = vunpack.c.l.b16 %v160
  %v485 = vunpack.c.l.b16 %v161
  %v486 = vunpack.c.l.b16 %v162
  %v487 = vpack.c.b16 %v344, %v343
  %v488 = vpack.c.b16 %v346, %v345
  %v489 = vpack.c.b16 %v348, %v347
  %v490 = vpack.c.b16 %v350, %v349
  %v491 = vpack.c.b16 %v352, %v351
  %v492 = vpack.c.b16 %v354, %v353
  %v493 = vpack.c.b16 %v356, %v355
  %v494 = vpack.c.b16 %v358, %v357
  %v495 = vpack.c.b16 %v360, %v359
  %v496 = vpack.c.b16 %v362, %v361
  %v497 = vpack.c.b16 %v364, %v363
  %v498 = vpack.c.b16 %v366, %v365
  %v499 = vpack.c.b16 %v368, %v367
  %v500 = vpack.c.b16 %v370, %v369
  %v501 = vpack.c.b16 %v372, %v371
  %v502 = vpack.c.b16 %v374, %v373
  %v503 = vpack.c.b16 %v376, %v375
  %v504 = vpack.c.b16 %v378, %v377
  %v505 = vpack.c.b16 %v380, %v379
  %v506 = vpack.c.b16 %v382, %v381
  %v507 = vpack.c.b16 %v384, %v383
  %v508 = vpack.c.b16 %v386, %v385
  %v509 = vpack.c.b16 %v388, %v387
  %v510 = vpack.c.b16 %v390, %v389
  %v511 = vpack.c.b16 %v392, %v391
  %v512 = vpack.c.b16 %v394, %v393
  %v513 = vpack.c.b16 %v396, %v395
  %v514 = vpack.c.b16 %v398, %v397
  %v515 = vpack.c.b16 %v400, %v399
  %v516 = vpack.c.b16 %v402, %v401
  %v517 = vpack.c.b16 %v404, %v403
  %v518 = vpack.c.b16 %v406, %v405
  %v519 = vpack.c.b16 %v408, %v407
  %v520 = vpack.c.b16 %v410, %v409
  %v521 = vpack.c.b16 %v412, %v411
  %v522 = vpack.c.b16 %v414, %v413
  %v523 = vpack.c.b16 %v416, %v415
  %v524 = vpack.c.b16 %v418, %v417
  %v525 = vpack.c.b16 %v420, %v419
  %v526 = vpack.c.b16 %v422, %v421
  %v527 = vpack.c.b16 %v424, %v423
  %v528 = vpack.c.b16 %v426, %v425
  %v529 = vpack.c.b16 %v428, %v427
  %v530 = vpack.c.b16 %v430, %v429
  %v531 = vpack.c.b16 %v432, %v431
  %v532 = vpack.c.b16 %v434, %v433
  %v533 = vpack.c.b16 %v436, %v435
  %v534 = vpack.c.b16 %v438, %v437
  %v535 = vpack.c.b16 %v440, %v439
  %v536 = vpack.c.b16 %v442, %v441
  %v537 = vpack.c.b16 %v444, %v443
  %v538 = vpack.c.b16 %v446, %v445
  %v539 = vpack.c.b16 %v448, %v447
  %v540 = vpack.c.b16 %v450, %v449
  %v541 = vpack.c.b16 %v452, %v451
  %v542 = vpack.c.b16 %v454, %v453
  %v543 = vpack.c.b16 %v456, %v455
  %v544 = vpack.c.b16 %v458, %v457
  %v545 = vpack.c.b16 %v460, %v459
  %v546 = vpack.c.b16 %v462, %v461
  %v547 = vpack.c.b16 %v464, %v463
  %v548 = vpack.c.b16 %v466, %v465
  %v549 = vpack.c.b16 %v468, %v467
  %v550 = vpack.c.b16 %v470, %v469
  %v551 = vpack.c.b16 %v472, %v471
  %v552 = vpack.c.b16 %v474, %v473
  %v553 = vpack.c.b16 %v476, %v475
  %v554 = vpack.c.b16 %v478, %v477
  %v555 = vpack.c.b16 %v480, %v479
  %v556 = vpack.c.b16 %v482, %v481
  %v557 = vpack.c.b16 %v484, %v483
  %v558 = vpack.c.b16 %v486, %v485
  %631 = vmatpush.bf16.msra.mxu0 %v494
  %632 = vmatpush.bf16.msra.mxu0 %v493
  %633 = vmatpush.bf16.msra.mxu0 %v492
  %634 = vmatpush.bf16.msra.mxu0 %v491
  %635 = vmatpush.bf16.msra.mxu0 %v490
  %636 = vmatpush.bf16.msra.mxu0 %v489
  %637 = vmatpush.bf16.msra.mxu0 %v488
  %638 = vmatpush.bf16.msra.mxu0 %v487
  %639 = vmatmul.bf16.gmra.mxu0 %v181
  %v640 = vpop.f32.mrf.mxu0
  %v641 = vadd.f32 %v165, %v640
  %v642 = vpop.f32.mrf.mxu0
  %643 = vdwg.mxu0
  %644 = vmatpush.bf16.msra.mxu0 %v502
  %645 = vmatpush.bf16.msra.mxu0 %v501
  %646 = vmatpush.bf16.msra.mxu0 %v500
  %647 = vmatpush.bf16.msra.mxu0 %v499
  %648 = vmatpush.bf16.msra.mxu0 %v498
  %649 = vmatpush.bf16.msra.mxu0 %v497
  %650 = vmatpush.bf16.msra.mxu0 %v496
  %651 = vmatpush.bf16.msra.mxu0 %v495
  %652 = vmatmul.bf16.gmra.mxu0 %v182
  %v653 = vpop.f32.mrf.mxu0
  %v654 = vadd.f32 %v641, %v653
  %v655 = vpop.f32.mrf.mxu0
  %656 = vdwg.mxu0
  %657 = vmatpush.bf16.msra.mxu0 %v510
  %658 = vmatpush.bf16.msra.mxu0 %v509
  %659 = vmatpush.bf16.msra.mxu0 %v508
  %660 = vmatpush.bf16.msra.mxu0 %v507
  %661 = vmatpush.bf16.msra.mxu0 %v506
  %662 = vmatpush.bf16.msra.mxu0 %v505
  %663 = vmatpush.bf16.msra.mxu0 %v504
  %664 = vmatpush.bf16.msra.mxu0 %v503
  %665 = vmatmul.bf16.gmra.mxu0 %v183
  %v666 = vpop.f32.mrf.mxu0
  %v667 = vadd.f32 %v654, %v666
  %v668 = vpop.f32.mrf.mxu0
  %669 = vdwg.mxu0
  %670 = vmatpush.bf16.msra.mxu0 %v518
  %671 = vmatpush.bf16.msra.mxu0 %v517
  %672 = vmatpush.bf16.msra.mxu0 %v516
  %673 = vmatpush.bf16.msra.mxu0 %v515
  %674 = vmatpush.bf16.msra.mxu0 %v514
  %675 = vmatpush.bf16.msra.mxu0 %v513
  %676 = vmatpush.bf16.msra.mxu0 %v512
  %677 = vmatpush.bf16.msra.mxu0 %v511
  %678 = vmatmul.bf16.gmra.mxu0 %v184
  %v679 = vpop.f32.mrf.mxu0
  %v680 = vadd.f32 %v667, %v679
  %v681 = vpop.f32.mrf.mxu0
  %682 = vdwg.mxu0
  %683 = vmatpush.bf16.msra.mxu0 %v526
  %684 = vmatpush.bf16.msra.mxu0 %v525
  %685 = vmatpush.bf16.msra.mxu0 %v524
  %686 = vmatpush.bf16.msra.mxu0 %v523
  %687 = vmatpush.bf16.msra.mxu0 %v522
  %688 = vmatpush.bf16.msra.mxu0 %v521
  %689 = vmatpush.bf16.msra.mxu0 %v520
  %690 = vmatpush.bf16.msra.mxu0 %v519
  %691 = vmatmul.bf16.gmra.mxu0 %v185
  %v692 = vpop.f32.mrf.mxu0
  %v693 = vadd.f32 %v680, %v692
  %v694 = vpop.f32.mrf.mxu0
  %695 = vdwg.mxu0
  %696 = vmatpush.bf16.msra.mxu0 %v534
  %697 = vmatpush.bf16.msra.mxu0 %v533
  %698 = vmatpush.bf16.msra.mxu0 %v532
  %699 = vmatpush.bf16.msra.mxu0 %v531
  %700 = vmatpush.bf16.msra.mxu0 %v530
  %701 = vmatpush.bf16.msra.mxu0 %v529
  %702 = vmatpush.bf16.msra.mxu0 %v528
  %703 = vmatpush.bf16.msra.mxu0 %v527
  %704 = vmatmul.bf16.gmra.mxu0 %v186
  %v705 = vpop.f32.mrf.mxu0
  %v706 = vadd.f32 %v693, %v705
  %v707 = vpop.f32.mrf.mxu0
  %708 = vdwg.mxu0
  %709 = vmatpush.bf16.msra.mxu0 %v542
  %710 = vmatpush.bf16.msra.mxu0 %v541
  %711 = vmatpush.bf16.msra.mxu0 %v540
  %712 = vmatpush.bf16.msra.mxu0 %v539
  %713 = vmatpush.bf16.msra.mxu0 %v538
  %714 = vmatpush.bf16.msra.mxu0 %v537
  %715 = vmatpush.bf16.msra.mxu0 %v536
  %716 = vmatpush.bf16.msra.mxu0 %v535
  %717 = vmatmul.bf16.gmra.mxu0 %v187
  %v718 = vpop.f32.mrf.mxu0
  %v719 = vadd.f32 %v706, %v718
  %v720 = vpop.f32.mrf.mxu0
  %721 = vdwg.mxu0
  %722 = vmatpush.bf16.msra.mxu0 %v550
  %723 = vmatpush.bf16.msra.mxu0 %v549
  %724 = vmatpush.bf16.msra.mxu0 %v548
  %725 = vmatpush.bf16.msra.mxu0 %v547
  %726 = vmatpush.bf16.msra.mxu0 %v546
  %727 = vmatpush.bf16.msra.mxu0 %v545
  %728 = vmatpush.bf16.msra.mxu0 %v544
  %729 = vmatpush.bf16.msra.mxu0 %v543
  %730 = vmatmul.bf16.gmra.mxu0 %v188
  %v731 = vpop.f32.mrf.mxu0
  %v732 = vadd.f32 %v719, %v731
  %v733 = vpop.f32.mrf.mxu0
  %734 = vdwg.mxu0
  %735 = vmatpush.bf16.msra.mxu0 %v558
  %736 = vmatpush.bf16.msra.mxu0 %v557
  %737 = vmatpush.bf16.msra.mxu0 %v556
  %738 = vmatpush.bf16.msra.mxu0 %v555
  %739 = vmatpush.bf16.msra.mxu0 %v554
  %740 = vmatpush.bf16.msra.mxu0 %v553
  %741 = vmatpush.bf16.msra.mxu0 %v552
  %742 = vmatpush.bf16.msra.mxu0 %v551
  %743 = vmatmul.bf16.gmra.mxu0 %v189
  %v744 = vpop.f32.mrf.mxu0
  %v745 = vadd.f32 %v732, %v744
  %v746 = vpop.f32.mrf.mxu0
  %747 = vdwg.mxu0
  %v748 = vmax.f32 %v745, 0.0
  %v749 = vpack.c.bf16 %v748, %v748
  %750 = vst [vmem:[%s3] sm:$0xf] %v749
  // Predicated region
  $region14: #{vae_forward.16} parent=0 // pred_check
    _
  $region15: #{vae_forward.16} parent=0 // pred_check_branch
    %752 = sbr.rel (0) target = $region17
  $region16: #{vae_forward.16} parent=0 // pred_region
    _
  $region17: #{vae_forward.16} parent=0 // pred_fallthru
    _
  // Predicated region
  $region18: #{vae_forward.16} parent=0 // pred_check
    _
  $region19: #{vae_forward.16} parent=0 // pred_check_branch
    %754 = sbr.rel (0) target = $region21
  $region20: #{vae_forward.16} parent=0 // pred_region
    _
  $region21: #{vae_forward.16} parent=0 // pred_fallthru
    _

// kernel: vae_forward.22
$region0: #{vae_forward.22}
  #allocation0 [shape = 'u32[]', space=smem, size = 0x4, offset = 0x4, fixed_abs, tag = 'smem constant byte address 0x4 - core index']
  #allocation1 [shape = 'u32[72,128]{1,0:T(1,128)}', space=vmem, size = 0x9000, scoped, tag = 'internal scratch']
  %s0 = inlined_call_operand.vmem [shape: bf16[2,1,1,9,128], index: 0, kind: input, shape index: {}, may-alias: {0,7}]
  %s1 = inlined_call_operand.vmem [shape: bf16[2,128], index: 1, kind: input, shape index: {}]
  %s2 = inlined_call_operand.vmem [shape: bf16[128,32], index: 2, kind: input, shape index: {}]
  %s3 = inlined_call_operand.vmem [shape: f32[1,32], index: 3, kind: input, shape index: {}]
  %s4 = inlined_call_operand.vmem [shape: f32[2,16], index: 4, kind: input, shape index: {}]
  %s5 = inlined_call_operand.vmem [shape: bf16[16,128], index: 5, kind: input, shape index: {}]
  %s6 = inlined_call_operand.vmem [shape: f32[1,128], index: 6, kind: input, shape index: {}]
  %s7 = inlined_call_operand.vmem [shape: bf16[2,1,1,9,128], index: 7, kind: output, shape index: {0}, may-alias: {0,7}]
  %s8 = inlined_call_operand.vmem [shape: f32[2,32], index: 8, kind: output, shape index: {1}]
  %9 = xla_tuple %s7, %s8
  %s10 = scalar_lea.vmem %s7, 4
  %s11 = sld [smem:[#allocation0]]
  $region72: #{vae_forward.22} parent=0
    _
  %s13 = ssub.s32 1, %s11
  %s14 = scalar_select 0, %s13, %s11
  $region1: #{vae_forward.22} parent=0
    #allocation2 [shape = 'u8[512]{0}', space=vmem, size = 0x400, scoped, tag = 'output window, operand 1, single buffered']
    // Predicated region
    $region2: #{vae_forward.22} parent=1 // pred_check
      _
    $region3: #{vae_forward.22} parent=1 // pred_check_branch
      %16 = sbr.rel (0) target = $region5
    $region4: #{vae_forward.22} parent=1 // pred_region
      _
    $region5: #{vae_forward.22} parent=1 // pred_fallthru
      _
    // Predicated region
    $region6: #{vae_forward.22} parent=1 // pred_check
      _
    $region7: #{vae_forward.22} parent=1 // pred_check_branch
      %18 = sbr.rel (0) target = $region9
    $region8: #{vae_forward.22} parent=1 // pred_region
      _
    $region9: #{vae_forward.22} parent=1 // pred_fallthru
      _
    // Predicated region
    $region10: #{vae_forward.22} parent=1 // pred_check
      _
    $region11: #{vae_forward.22} parent=1 // pred_check_branch
      %20 = sbr.rel (0) target = $region13
    $region12: #{vae_forward.22} parent=1 // pred_region
      _
    $region13: #{vae_forward.22} parent=1 // pred_fallthru
      _
    // Predicated region
    $region14: #{vae_forward.22} parent=1 // pred_check
      _
    $region15: #{vae_forward.22} parent=1 // pred_check_branch
      %22 = sbr.rel (0) target = $region17
    $region16: #{vae_forward.22} parent=1 // pred_region
      _
    $region17: #{vae_forward.22} parent=1 // pred_fallthru
      _
    // Predicated region
    $region18: #{vae_forward.22} parent=1 // pred_check
      _
    $region19: #{vae_forward.22} parent=1 // pred_check_branch
      %24 = sbr.rel (0) target = $region21
    $region20: #{vae_forward.22} parent=1 // pred_region
      _
    $region21: #{vae_forward.22} parent=1 // pred_fallthru
      _
    // Predicated region
    $region22: #{vae_forward.22} parent=1 // pred_check
      _
    $region23: #{vae_forward.22} parent=1 // pred_check_branch
      %26 = sbr.rel (0) target = $region25
    $region24: #{vae_forward.22} parent=1 // pred_region
      _
    $region25: #{vae_forward.22} parent=1 // pred_fallthru
      _
    %v28 = vld [vmem:[%s1] sm:$0x1]
    %v29 = vld [vmem:[%s2] sm:$0xf]
    %v30 = vld [vmem:[%s2 + $0x4] sm:$0xf]
    %v31 = vld [vmem:[%s2 + $0x8] sm:$0xf]
    %v32 = vld [vmem:[%s2 + $0xc] sm:$0xf]
    %v33 = vld [vmem:[%s2 + $0x10] sm:$0xf]
    %v34 = vld [vmem:[%s2 + $0x14] sm:$0xf]
    %v35 = vld [vmem:[%s2 + $0x18] sm:$0xf]
    %v36 = vld [vmem:[%s2 + $0x1c] sm:$0xf]
    %v37 = vld [vmem:[%s2 + $0x20] sm:$0xf]
    %v38 = vld [vmem:[%s2 + $0x24] sm:$0xf]
    %v39 = vld [vmem:[%s2 + $0x28] sm:$0xf]
    %v40 = vld [vmem:[%s2 + $0x2c] sm:$0xf]
    %v41 = vld [vmem:[%s2 + $0x30] sm:$0xf]
    %v42 = vld [vmem:[%s2 + $0x34] sm:$0xf]
    %v43 = vld [vmem:[%s2 + $0x38] sm:$0xf]
    %v44 = vld [vmem:[%s2 + $0x3c] sm:$0xf]
    %v45 = vld [vmem:[%s3] sm:$0x1]
    %v47 = vperm.slane %v45, 0
    %v65 = vunpack.c.l.b16 %v29
    %v66 = vunpack.c.l.b16 %v30
    %v67 = vunpack.c.l.b16 %v31
    %v68 = vunpack.c.l.b16 %v32
    %v69 = vunpack.c.l.b16 %v33
    %v70 = vunpack.c.l.b16 %v34
    %v71 = vunpack.c.l.b16 %v35
    %v72 = vunpack.c.l.b16 %v36
    %v73 = vunpack.c.l.b16 %v37
    %v74 = vunpack.c.l.b16 %v38
    %v75 = vunpack.c.l.b16 %v39
    %v76 = vunpack.c.l.b16 %v40
    %v77 = vunpack.c.l.b16 %v41
    %v78 = vunpack.c.l.b16 %v42
    %v79 = vunpack.c.l.b16 %v43
    %v80 = vunpack.c.l.b16 %v44
    %v81 = vpack.c.b16 %v66, %v65
    %v82 = vpack.c.b16 %v68, %v67
    %v83 = vpack.c.b16 %v70, %v69
    %v84 = vpack.c.b16 %v72, %v71
    %v85 = vpack.c.b16 %v74, %v73
    %v86 = vpack.c.b16 %v76, %v75
    %v87 = vpack.c.b16 %v78, %v77
    %v88 = vpack.c.b16 %v80, %v79
    %97 = vmatpush.bf16.msra.mxu0 %v88
    %98 = vmatpush.bf16.msra.mxu0 %v87
    %99 = vmatpush.bf16.msra.mxu0 %v86
    %100 = vmatpush.bf16.msra.mxu0 %v85
    %101 = vmatpush.bf16.msra.mxu0 %v84
    %102 = vmatpush.bf16.msra.mxu0 %v83
    %103 = vmatpush.bf16.msra.mxu0 %v82
    %104 = vmatpush.bf16.msra.mxu0 %v81
    %105 = vmatmul.bf16.gmra.mxu0 %v28
    %v106 = vpop.f32.mrf.mxu0
    %v107 = vadd.f32 %v47, %v106
    %v108 = vpop.f32.mrf.mxu0
    %109 = vdwg.mxu0
    %v110 = vmul.f32 %v107, 1.442695
    %v111 = vpow.pop %v110
    %v112 = vld [vmem:[%s4] sm:$0x3]
    %114 = vrot.lane.b32.xlu0 %v112, 16
    %v115 = vpop.permute.xlu0 %114
    %v117 = vmul.f32 %v111, %v115
    %119 = vrot.lane.b32.xlu0 %v117, 112
    %v120 = vpop.permute.xlu0 %119
    %v122 = vadd.f32 %v107, %v120
    %v123 = vpack.c.bf16 %v122, %v122
    %v124 = vld [vmem:[%s5] sm:$0xf]
    %v125 = vld [vmem:[%s5 + $0x4] sm:$0xf]
    %v126 = vld [vmem:[%s6] sm:$0x1]
    %v128 = vperm.slane %v126, 0
    %v132 = vunpack.c.l.b16 %v124
    %v133 = vunpack.c.l.b16 %v125
    %v134 = vpack.c.b16 %v133, %v132
    %vm136 = vcmask 130048
    %v138 = vsel %vm136, %v123, 0
    %140 = vmatpush.bf16.msra.mxu0 0
    %141 = vmatpush.bf16.msra.mxu0 0
    %142 = vmatpush.bf16.msra.mxu0 0
    %143 = vmatpush.bf16.msra.mxu0 0
    %144 = vmatpush.bf16.msra.mxu0 0
    %145 = vmatpush.bf16.msra.mxu0 0
    %146 = vmatpush.bf16.msra.mxu0 0
    %147 = vmatpush.bf16.msra.mxu0 %v134
    %148 = vmatmul.bf16.gmra.mxu0 %v138
    %v149 = vpop.f32.mrf.mxu0
    %v150 = vadd.f32 %v128, %v149
    %v151 = vpop.f32.mrf.mxu0
    %152 = vdwg.mxu0
    %vm153 = vcmask 254976
    %154 = vst.msk [vmem:[%s8] sm:$0x3] %vm153, %v107
    %v155 = vmax.f32 %v150, 0.0
    %v156 = vpack.c.bf16 %v155, %v155
    %157 = vst [vmem:[#allocation2] sm:$0x1] %v156
    // Predicated region
    $region26: #{vae_forward.22} parent=1 // pred_check
      _
    $region27: #{vae_forward.22} parent=1 // pred_check_branch
      %159 = sbr.rel (0) target = $region29
    $region28: #{vae_forward.22} parent=1 // pred_region
      _
    $region29: #{vae_forward.22} parent=1 // pred_fallthru
      _
    // Predicated region
    $region30: #{vae_forward.22} parent=1 // pred_check
      _
    $region31: #{vae_forward.22} parent=1 // pred_check_branch
      %161 = sbr.rel (0) target = $region33
    $region32: #{vae_forward.22} parent=1 // pred_region
      // Predicated region
      $region34: #{vae_forward.22} parent=32 // pred_check
        _
      $region35: #{vae_forward.22} parent=32 // pred_check_branch
        %163 = sbr.rel (0) target = $region37
      $region36: #{vae_forward.22} parent=32 // pred_region
        // Predicated region
        $region38: #{vae_forward.22} parent=36 // pred_check
          _
        $region39: #{vae_forward.22} parent=36 // pred_check_branch
          %165 = sbr.rel target = $region41
        $region40: #{vae_forward.22} parent=36 // pred_region
          // Predicated region
          $region53: #{vae_forward.22} parent=40 // pred_check
            _
          $region54: #{vae_forward.22} parent=40 // pred_check_branch
            %181 = sbr.rel (0) target = $region56
          $region55: #{vae_forward.22} parent=40 // pred_region
            %s183 = ssub.s32 2, 1
            loop: start=0, step=1, limit=1
            $region57: #{vae_forward.22} parent=55 // loop_pre_header
              _
            $region58: #{vae_forward.22} parent=55 // loop_header
              %s185 = sphi 0, %s189
              %p186 = scmp.ge.s32.totalorder %s185, 1
              %s190 = sphi [#allocation2], [#allocation2]
              %s191 = sphi %s10, %s10
            $region59: #{vae_forward.22} parent=55 // loop_header_branch
              %188 = sbr.rel (%p186) target = $region63
            $region60: #{vae_forward.22} parent=55 // loop_body
              %v192 = vld [vmem:[%s190] sm:%s183]
              %193 = vst [vmem:[%s191] sm:%s183] %v192
            $region61: #{vae_forward.22} parent=55 // loop_footer
              %s189 = sadd.s32 1, %s185
            $region62: #{vae_forward.22} parent=55 // loop_footer_branch
              %184 = sbr.rel target = $region58
            $region63: #{vae_forward.22} parent=55 // loop_exit
              _
          $region56: #{vae_forward.22} parent=40 // pred_fallthru
            _
        $region41: #{vae_forward.22} parent=36 // pred_fallthru
          _
        // Predicated region
        $region42: #{vae_forward.22} parent=36 // pred_check
          _
        $region43: #{vae_forward.22} parent=36 // pred_check_branch
          %167 = sbr.rel (0) target = $region45
        $region44: #{vae_forward.22} parent=36 // pred_region
          %s169 = ssub.s32 2, 1
          loop: start=0, step=1, limit=1
          $region46: #{vae_forward.22} parent=44 // loop_pre_header
            _
          $region47: #{vae_forward.22} parent=44 // loop_header
            %s171 = sphi 0, %s175
            %p172 = scmp.ge.s32.totalorder %s171, 1
            %s176 = sphi [#allocation2], [#allocation2]
            %s177 = sphi %s10, %s10
          $region48: #{vae_forward.22} parent=44 // loop_header_branch
            %174 = sbr.rel (%p172) target = $region52
          $region49: #{vae_forward.22} parent=44 // loop_body
            %v178 = vld [vmem:[%s176] sm:%s169]
            %179 = vst [vmem:[%s177] sm:%s169] %v178
          $region50: #{vae_forward.22} parent=44 // loop_footer
            %s175 = sadd.s32 1, %s171
          $region51: #{vae_forward.22} parent=44 // loop_footer_branch
            %170 = sbr.rel target = $region47
          $region52: #{vae_forward.22} parent=44 // loop_exit
            _
        $region45: #{vae_forward.22} parent=36 // pred_fallthru
          _
      $region37: #{vae_forward.22} parent=32 // pred_fallthru
        _
      %194 = vnop
    $region33: #{vae_forward.22} parent=1 // pred_fallthru
      _
    // Predicated region
    $region64: #{vae_forward.22} parent=1 // pred_check
      _
    $region65: #{vae_forward.22} parent=1 // pred_check_branch
      %196 = sbr.rel (0) target = $region67
    $region66: #{vae_forward.22} parent=1 // pred_region
      _
    $region67: #{vae_forward.22} parent=1 // pred_fallthru
      _
    // Predicated region
    $region68: #{vae_forward.22} parent=1 // pred_check
      _
    $region69: #{vae_forward.22} parent=1 // pred_check_branch
      %198 = sbr.rel (0) target = $region71
    $region70: #{vae_forward.22} parent=1 // pred_region
      _
    $region71: #{vae_forward.22} parent=1 // pred_fallthru
      _

// kernel: tile.28
$region0: #{tile.28}
  #allocation0 [shape = 's32[1]{0}', space=sflag, size = 0x4, scoped, tag = 'scoped memory for tile.28']
  %s0 = inlined_call_operand.vmem [shape: f32[128], index: 0, kind: input, shape index: {}]
  %s1 = inlined_call_operand.vmem [shape: f32[4,128], index: 1, kind: output, shape index: {}]
  // Predicated region
  $region2: #{tile.28} parent=0 // pred_check
    _
  $region3: #{tile.28} parent=0 // pred_check_branch
    %3 = sbr.rel (0) target = $region5
  $region4: #{tile.28} parent=0 // pred_region
    _
  $region5: #{tile.28} parent=0 // pred_fallthru
    _
  %v4 = vld [vmem:[%s0] ss:$0 sm:$0xff]
  %5 = vst [vmem:[%s1] sm:$0xf] %v4

// kernel: vae_forward.17
$region0: #{vae_forward.17}
  #allocation0 [shape = 'u32[]', space=smem, size = 0x4, offset = 0x4, fixed_abs, tag = 'smem constant byte address 0x4 - core index']
  #allocation1 [shape = 'u32[72,128]{1,0:T(1,128)}', space=vmem, size = 0x9000, scoped, tag = 'internal scratch']
  %s0 = inlined_call_operand.vmem [shape: bf16[8,1152], index: 0, kind: input, shape index: {}]
  %s1 = inlined_call_operand.vmem [shape: bf16[1152,512], index: 1, kind: input, shape index: {}]
  %s2 = inlined_call_operand.vmem [shape: f32[1,512], index: 2, kind: input, shape index: {}]
  %s3 = inlined_call_operand.vmem [shape: bf16[8,512], index: 3, kind: output, shape index: {}]
  %s4 = sld [smem:[#allocation0]]
  $region22: #{vae_forward.17} parent=0
    _
  %s6 = ssub.s32 1, %s4
  %s7 = scalar_select 0, %s6, %s4
  // Predicated region
  $region2: #{vae_forward.17} parent=0 // pred_check
    _
  $region3: #{vae_forward.17} parent=0 // pred_check_branch
    %9 = sbr.rel (0) target = $region5
  $region4: #{vae_forward.17} parent=0 // pred_region
    _
  $region5: #{vae_forward.17} parent=0 // pred_fallthru
    _
  // Predicated region
  $region6: #{vae_forward.17} parent=0 // pred_check
    _
  $region7: #{vae_forward.17} parent=0 // pred_check_branch
    %11 = sbr.rel (0) target = $region9
  $region8: #{vae_forward.17} parent=0 // pred_region
    _
  $region9: #{vae_forward.17} parent=0 // pred_fallthru
    _
  // Predicated region
  $region10: #{vae_forward.17} parent=0 // pred_check
    _
  $region11: #{vae_forward.17} parent=0 // pred_check_branch
    %13 = sbr.rel (0) target = $region13
  $region12: #{vae_forward.17} parent=0 // pred_region
    _
  $region13: #{vae_forward.17} parent=0 // pred_fallthru
    _
  %v14 = vld [vmem:[%s0] sm:$0xff]
  %v15 = vld [vmem:[%s0 + $0x8] sm:$0xff]
  %v16 = vld [vmem:[%s0 + $0x10] sm:$0xff]
  %v17 = vld [vmem:[%s0 + $0x18] sm:$0xff]
  %v18 = vld [vmem:[%s0 + $0x20] sm:$0xf]
  %v19 = vld [vmem:[%s1] sm:$0xff]
  %v20 = vld [vmem:[%s1 + $0x8] sm:$0xff]
  %v21 = vld [vmem:[%s1 + $0x10] sm:$0xff]
  %v22 = vld [vmem:[%s1 + $0x18] sm:$0xff]
  %v23 = vld [vmem:[%s1 + $0x20] sm:$0xff]
  %v24 = vld [vmem:[%s1 + $0x28] sm:$0xff]
  %v25 = vld [vmem:[%s1 + $0x30] sm:$0xff]
  %v26 = vld [vmem:[%s1 + $0x38] sm:$0xff]
  %v27 = vld [vmem:[%s1 + $0x40] sm:$0xff]
  %v28 = vld [vmem:[%s1 + $0x48] sm:$0xff]
  %v29 = vld [vmem:[%s1 + $0x50] sm:$0xff]
  %v30 = vld [vmem:[%s1 + $0x58] sm:$0xff]
  %v31 = vld [vmem:[%s1 + $0x60] sm:$0xff]
  %v32 = vld [vmem:[%s1 + $0x68] sm:$0xff]
  %v33 = vld [vmem:[%s1 + $0x70] sm:$0xff]
  %v34 = vld [vmem:[%s1 + $0x78] sm:$0xff]
  %v35 = vld [vmem:[%s1 + $0x80] sm:$0xff]
  %v36 = vld [vmem:[%s1 + $0x88] sm:$0xff]
  %v37 = vld [vmem:[%s1 + $0x90] sm:$0xff]
  %v38 = vld [vmem:[%s1 + $0x98] sm:$0xff]
  %v39 = vld [vmem:[%s1 + $0xa0] sm:$0xff]
  %v40 = vld [vmem:[%s1 + $0xa8] sm:$0xff]
  %v41 = vld [vmem:[%s1 + $0xb0] sm:$0xff]
  %v42 = vld [vmem:[%s1 + $0xb8] sm:$0xff]
  %v43 = vld [vmem:[%s1 + $0xc0] sm:$0xff]
  %v44 = vld [vmem:[%s1 + $0xc8] sm:$0xff]
  %v45 = vld [vmem:[%s1 + $0xd0] sm:$0xff]
  %v46 = vld [vmem:[%s1 + $0xd8] sm:$0xff]
  %v47 = vld [vmem:[%s1 + $0xe0] sm:$0xff]
  %v48 = vld [vmem:[%s1 + $0xe8] sm:$0xff]
  %v49 = vld [vmem:[%s1 + $0xf0] sm:$0xff]
  %v50 = vld [vmem:[%s1 + $0xf8] sm:$0xff]
  %v51 = vld [vmem:[%s1 + $0x100] sm:$0xff]
  %v52 = vld [vmem:[%s1 + $0x108] sm:$0xff]
  %v53 = vld [vmem:[%s1 + $0x110] sm:$0xff]
  %v54 = vld [vmem:[%s1 + $0x118] sm:$0xff]
  %v55 = vld [vmem:[%s1 + $0x120] sm:$0xff]
  %v56 = vld [vmem:[%s1 + $0x128] sm:$0xff]
  %v57 = vld [vmem:[%s1 + $0x130] sm:$0xff]
  %v58 = vld [vmem:[%s1 + $0x138] sm:$0xff]
  %v59 = vld [vmem:[%s1 + $0x140] sm:$0xff]
  %v60 = vld [vmem:[%s1 + $0x148] sm:$0xff]
  %v61 = vld [vmem:[%s1 + $0x150] sm:$0xff]
  %v62 = vld [vmem:[%s1 + $0x158] sm:$0xff]
  %v63 = vld [vmem:[%s1 + $0x160] sm:$0xff]
  %v64 = vld [vmem:[%s1 + $0x168] sm:$0xff]
  %v65 = vld [vmem:[%s1 + $0x170] sm:$0xff]
  %v66 = vld [vmem:[%s1 + $0x178] sm:$0xff]
  %v67 = vld [vmem:[%s1 + $0x180] sm:$0xff]
  %v68 = vld [vmem:[%s1 + $0x188] sm:$0xff]
  %v69 = vld [vmem:[%s1 + $0x190] sm:$0xff]
  %v70 = vld [vmem:[%s1 + $0x198] sm:$0xff]
  %v71 = vld [vmem:[%s1 + $0x1a0] sm:$0xff]
  %v72 = vld [vmem:[%s1 + $0x1a8] sm:$0xff]
  %v73 = vld [vmem:[%s1 + $0x1b0] sm:$0xff]
  %v74 = vld [vmem:[%s1 + $0x1b8] sm:$0xff]
  %v75 = vld [vmem:[%s1 + $0x1c0] sm:$0xff]
  %v76 = vld [vmem:[%s1 + $0x1c8] sm:$0xff]
  %v77 = vld [vmem:[%s1 + $0x1d0] sm:$0xff]
  %v78 = vld [vmem:[%s1 + $0x1d8] sm:$0xff]
  %v79 = vld [vmem:[%s1 + $0x1e0] sm:$0xff]
  %v80 = vld [vmem:[%s1 + $0x1e8] sm:$0xff]
  %v81 = vld [vmem:[%s1 + $0x1f0] sm:$0xff]
  %v82 = vld [vmem:[%s1 + $0x1f8] sm:$0xff]
  %v83 = vld [vmem:[%s1 + $0x200] sm:$0xff]
  %v84 = vld [vmem:[%s1 + $0x208] sm:$0xff]
  %v85 = vld [vmem:[%s1 + $0x210] sm:$0xff]
  %v86 = vld [vmem:[%s1 + $0x218] sm:$0xff]
  %v87 = vld [vmem:[%s1 + $0x220] sm:$0xff]
  %v88 = vld [vmem:[%s1 + $0x228] sm:$0xff]
  %v89 = vld [vmem:[%s1 + $0x230] sm:$0xff]
  %v90 = vld [vmem:[%s1 + $0x238] sm:$0xff]
  %v91 = vld [vmem:[%s1 + $0x240] sm:$0xff]
  %v92 = vld [vmem:[%s1 + $0x248] sm:$0xff]
  %v93 = vld [vmem:[%s1 + $0x250] sm:$0xff]
  %v94 = vld [vmem:[%s1 + $0x258] sm:$0xff]
  %v95 = vld [vmem:[%s1 + $0x260] sm:$0xff]
  %v96 = vld [vmem:[%s1 + $0x268] sm:$0xff]
  %v97 = vld [vmem:[%s1 + $0x270] sm:$0xff]
  %v98 = vld [vmem:[%s1 + $0x278] sm:$0xff]
  %v99 = vld [vmem:[%s1 + $0x280] sm:$0xff]
  %v100 = vld [vmem:[%s1 + $0x288] sm:$0xff]
  %v101 = vld [vmem:[%s1 + $0x290] sm:$0xff]
  %v102 = vld [vmem:[%s1 + $0x298] sm:$0xff]
  %v103 = vld [vmem:[%s1 + $0x2a0] sm:$0xff]
  %v104 = vld [vmem:[%s1 + $0x2a8] sm:$0xff]
  %v105 = vld [vmem:[%s1 + $0x2b0] sm:$0xff]
  %v106 = vld [vmem:[%s1 + $0x2b8] sm:$0xff]
  %v107 = vld [vmem:[%s1 + $0x2c0] sm:$0xff]
  %v108 = vld [vmem:[%s1 + $0x2c8] sm:$0xff]
  %v109 = vld [vmem:[%s1 + $0x2d0] sm:$0xff]
  %v110 = vld [vmem:[%s1 + $0x2d8] sm:$0xff]
  %v111 = vld [vmem:[%s1 + $0x2e0] sm:$0xff]
  %v112 = vld [vmem:[%s1 + $0x2e8] sm:$0xff]
  %v113 = vld [vmem:[%s1 + $0x2f0] sm:$0xff]
  %v114 = vld [vmem:[%s1 + $0x2f8] sm:$0xff]
  %v115 = vld [vmem:[%s1 + $0x300] sm:$0xff]
  %v116 = vld [vmem:[%s1 + $0x308] sm:$0xff]
  %v117 = vld [vmem:[%s1 + $0x310] sm:$0xff]
  %v118 = vld [vmem:[%s1 + $0x318] sm:$0xff]
  %v119 = vld [vmem:[%s1 + $0x320] sm:$0xff]
  %v120 = vld [vmem:[%s1 + $0x328] sm:$0xff]
  %v121 = vld [vmem:[%s1 + $0x330] sm:$0xff]
  %v122 = vld [vmem:[%s1 + $0x338] sm:$0xff]
  %v123 = vld [vmem:[%s1 + $0x340] sm:$0xff]
  %v124 = vld [vmem:[%s1 + $0x348] sm:$0xff]
  %v125 = vld [vmem:[%s1 + $0x350] sm:$0xff]
  %v126 = vld [vmem:[%s1 + $0x358] sm:$0xff]
  %v127 = vld [vmem:[%s1 + $0x360] sm:$0xff]
  %v128 = vld [vmem:[%s1 + $0x368] sm:$0xff]
  %v129 = vld [vmem:[%s1 + $0x370] sm:$0xff]
  %v130 = vld [vmem:[%s1 + $0x378] sm:$0xff]
  %v131 = vld [vmem:[%s1 + $0x380] sm:$0xff]
  %v132 = vld [vmem:[%s1 + $0x388] sm:$0xff]
  %v133 = vld [vmem:[%s1 + $0x390] sm:$0xff]
  %v134 = vld [vmem:[%s1 + $0x398] sm:$0xff]
  %v135 = vld [vmem:[%s1 + $0x3a0] sm:$0xff]
  %v136 = vld [vmem:[%s1 + $0x3a8] sm:$0xff]
  %v137 = vld [vmem:[%s1 + $0x3b0] sm:$0xff]
  %v138 = vld [vmem:[%s1 + $0x3b8] sm:$0xff]
  %v139 = vld [vmem:[%s1 + $0x3c0] sm:$0xff]
  %v140 = vld [vmem:[%s1 + $0x3c8] sm:$0xff]
  %v141 = vld [vmem:[%s1 + $0x3d0] sm:$0xff]
  %v142 = vld [vmem:[%s1 + $0x3d8] sm:$0xff]
  %v143 = vld [vmem:[%s1 + $0x3e0] sm:$0xff]
  %v144 = vld [vmem:[%s1 + $0x3e8] sm:$0xff]
  %v145 = vld [vmem:[%s1 + $0x3f0] sm:$0xff]
  %v146 = vld [vmem:[%s1 + $0x3f8] sm:$0xff]
  %v147 = vld [vmem:[%s1 + $0x400] sm:$0xff]
  %v148 = vld [vmem:[%s1 + $0x408] sm:$0xff]
  %v149 = vld [vmem:[%s1 + $0x410] sm:$0xff]
  %v150 = vld [vmem:[%s1 + $0x418] sm:$0xff]
  %v151 = vld [vmem:[%s1 + $0x420] sm:$0xff]
  %v152 = vld [vmem:[%s1 + $0x428] sm:$0xff]
  %v153 = vld [vmem:[%s1 + $0x430] sm:$0xff]
  %v154 = vld [vmem:[%s1 + $0x438] sm:$0xff]
  %v155 = vld [vmem:[%s1 + $0x440] sm:$0xff]
  %v156 = vld [vmem:[%s1 + $0x448] sm:$0xff]
  %v157 = vld [vmem:[%s1 + $0x450] sm:$0xff]
  %v158 = vld [vmem:[%s1 + $0x458] sm:$0xff]
  %v159 = vld [vmem:[%s1 + $0x460] sm:$0xff]
  %v160 = vld [vmem:[%s1 + $0x468] sm:$0xff]
  %v161 = vld [vmem:[%s1 + $0x470] sm:$0xff]
  %v162 = vld [vmem:[%s1 + $0x478] sm:$0xff]
  %v163 = vld [vmem:[%s1 + $0x480] sm:$0xff]
  %v164 = vld [vmem:[%s1 + $0x488] sm:$0xff]
  %v165 = vld [vmem:[%s1 + $0x490] sm:$0xff]
  %v166 = vld [vmem:[%s1 + $0x498] sm:$0xff]
  %v167 = vld [vmem:[%s1 + $0x4a0] sm:$0xff]
  %v168 = vld [vmem:[%s1 + $0x4a8] sm:$0xff]
  %v169 = vld [vmem:[%s1 + $0x4b0] sm:$0xff]
  %v170 = vld [vmem:[%s1 + $0x4b8] sm:$0xff]
  %v171 = vld [vmem:[%s1 + $0x4c0] sm:$0xff]
  %v172 = vld [vmem:[%s1 + $0x4c8] sm:$0xff]
  %v173 = vld [vmem:[%s1 + $0x4d0] sm:$0xff]
  %v174 = vld [vmem:[%s1 + $0x4d8] sm:$0xff]
  %v175 = vld [vmem:[%s1 + $0x4e0] sm:$0xff]
  %v176 = vld [vmem:[%s1 + $0x4e8] sm:$0xff]
  %v177 = vld [vmem:[%s1 + $0x4f0] sm:$0xff]
  %v178 = vld [vmem:[%s1 + $0x4f8] sm:$0xff]
  %v179 = vld [vmem:[%s1 + $0x500] sm:$0xff]
  %v180 = vld [vmem:[%s1 + $0x508] sm:$0xff]
  %v181 = vld [vmem:[%s1 + $0x510] sm:$0xff]
  %v182 = vld [vmem:[%s1 + $0x518] sm:$0xff]
  %v183 = vld [vmem:[%s1 + $0x520] sm:$0xff]
  %v184 = vld [vmem:[%s1 + $0x528] sm:$0xff]
  %v185 = vld [vmem:[%s1 + $0x530] sm:$0xff]
  %v186 = vld [vmem:[%s1 + $0x538] sm:$0xff]
  %v187 = vld [vmem:[%s1 + $0x540] sm:$0xff]
  %v188 = vld [vmem:[%s1 + $0x548] sm:$0xff]
  %v189 = vld [vmem:[%s1 + $0x550] sm:$0xff]
  %v190 = vld [vmem:[%s1 + $0x558] sm:$0xff]
  %v191 = vld [vmem:[%s1 + $0x560] sm:$0xff]
  %v192 = vld [vmem:[%s1 + $0x568] sm:$0xff]
  %v193 = vld [vmem:[%s1 + $0x570] sm:$0xff]
  %v194 = vld [vmem:[%s1 + $0x578] sm:$0xff]
  %v195 = vld [vmem:[%s1 + $0x580] sm:$0xff]
  %v196 = vld [vmem:[%s1 + $0x588] sm:$0xff]
  %v197 = vld [vmem:[%s1 + $0x590] sm:$0xff]
  %v198 = vld [vmem:[%s1 + $0x598] sm:$0xff]
  %v199 = vld [vmem:[%s1 + $0x5a0] sm:$0xff]
  %v200 = vld [vmem:[%s1 + $0x5a8] sm:$0xff]
  %v201 = vld [vmem:[%s1 + $0x5b0] sm:$0xff]
  %v202 = vld [vmem:[%s1 + $0x5b8] sm:$0xff]
  %v203 = vld [vmem:[%s1 + $0x5c0] sm:$0xff]
  %v204 = vld [vmem:[%s1 + $0x5c8] sm:$0xff]
  %v205 = vld [vmem:[%s1 + $0x5d0] sm:$0xff]
  %v206 = vld [vmem:[%s1 + $0x5d8] sm:$0xff]
  %v207 = vld [vmem:[%s1 + $0x5e0] sm:$0xff]
  %v208 = vld [vmem:[%s1 + $0x5e8] sm:$0xff]
  %v209 = vld [vmem:[%s1 + $0x5f0] sm:$0xff]
  %v210 = vld [vmem:[%s1 + $0x5f8] sm:$0xff]
  %v211 = vld [vmem:[%s1 + $0x600] sm:$0xff]
  %v212 = vld [vmem:[%s1 + $0x608] sm:$0xff]
  %v213 = vld [vmem:[%s1 + $0x610] sm:$0xff]
  %v214 = vld [vmem:[%s1 + $0x618] sm:$0xff]
  %v215 = vld [vmem:[%s1 + $0x620] sm:$0xff]
  %v216 = vld [vmem:[%s1 + $0x628] sm:$0xff]
  %v217 = vld [vmem:[%s1 + $0x630] sm:$0xff]
  %v218 = vld [vmem:[%s1 + $0x638] sm:$0xff]
  %v219 = vld [vmem:[%s1 + $0x640] sm:$0xff]
  %v220 = vld [vmem:[%s1 + $0x648] sm:$0xff]
  %v221 = vld [vmem:[%s1 + $0x650] sm:$0xff]
  %v222 = vld [vmem:[%s1 + $0x658] sm:$0xff]
  %v223 = vld [vmem:[%s1 + $0x660] sm:$0xff]
  %v224 = vld [vmem:[%s1 + $0x668] sm:$0xff]
  %v225 = vld [vmem:[%s1 + $0x670] sm:$0xff]
  %v226 = vld [vmem:[%s1 + $0x678] sm:$0xff]
  %v227 = vld [vmem:[%s1 + $0x680] sm:$0xff]
  %v228 = vld [vmem:[%s1 + $0x688] sm:$0xff]
  %v229 = vld [vmem:[%s1 + $0x690] sm:$0xff]
  %v230 = vld [vmem:[%s1 + $0x698] sm:$0xff]
  %v231 = vld [vmem:[%s1 + $0x6a0] sm:$0xff]
  %v232 = vld [vmem:[%s1 + $0x6a8] sm:$0xff]
  %v233 = vld [vmem:[%s1 + $0x6b0] sm:$0xff]
  %v234 = vld [vmem:[%s1 + $0x6b8] sm:$0xff]
  %v235 = vld [vmem:[%s1 + $0x6c0] sm:$0xff]
  %v236 = vld [vmem:[%s1 + $0x6c8] sm:$0xff]
  %v237 = vld [vmem:[%s1 + $0x6d0] sm:$0xff]
  %v238 = vld [vmem:[%s1 + $0x6d8] sm:$0xff]
  %v239 = vld [vmem:[%s1 + $0x6e0] sm:$0xff]
  %v240 = vld [vmem:[%s1 + $0x6e8] sm:$0xff]
  %v241 = vld [vmem:[%s1 + $0x6f0] sm:$0xff]
  %v242 = vld [vmem:[%s1 + $0x6f8] sm:$0xff]
  %v243 = vld [vmem:[%s1 + $0x700] sm:$0xff]
  %v244 = vld [vmem:[%s1 + $0x708] sm:$0xff]
  %v245 = vld [vmem:[%s1 + $0x710] sm:$0xff]
  %v246 = vld [vmem:[%s1 + $0x718] sm:$0xff]
  %v247 = vld [vmem:[%s1 + $0x720] sm:$0xff]
  %v248 = vld [vmem:[%s1 + $0x728] sm:$0xff]
  %v249 = vld [vmem:[%s1 + $0x730] sm:$0xff]
  %v250 = vld [vmem:[%s1 + $0x738] sm:$0xff]
  %v251 = vld [vmem:[%s1 + $0x740] sm:$0xff]
  %v252 = vld [vmem:[%s1 + $0x748] sm:$0xff]
  %v253 = vld [vmem:[%s1 + $0x750] sm:$0xff]
  %v254 = vld [vmem:[%s1 + $0x758] sm:$0xff]
  %v255 = vld [vmem:[%s1 + $0x760] sm:$0xff]
  %v256 = vld [vmem:[%s1 + $0x768] sm:$0xff]
  %v257 = vld [vmem:[%s1 + $0x770] sm:$0xff]
  %v258 = vld [vmem:[%s1 + $0x778] sm:$0xff]
  %v259 = vld [vmem:[%s1 + $0x780] sm:$0xff]
  %v260 = vld [vmem:[%s1 + $0x788] sm:$0xff]
  %v261 = vld [vmem:[%s1 + $0x790] sm:$0xff]
  %v262 = vld [vmem:[%s1 + $0x798] sm:$0xff]
  %v263 = vld [vmem:[%s1 + $0x7a0] sm:$0xff]
  %v264 = vld [vmem:[%s1 + $0x7a8] sm:$0xff]
  %v265 = vld [vmem:[%s1 + $0x7b0] sm:$0xff]
  %v266 = vld [vmem:[%s1 + $0x7b8] sm:$0xff]
  %v267 = vld [vmem:[%s1 + $0x7c0] sm:$0xff]
  %v268 = vld [vmem:[%s1 + $0x7c8] sm:$0xff]
  %v269 = vld [vmem:[%s1 + $0x7d0] sm:$0xff]
  %v270 = vld [vmem:[%s1 + $0x7d8] sm:$0xff]
  %v271 = vld [vmem:[%s1 + $0x7e0] sm:$0xff]
  %v272 = vld [vmem:[%s1 + $0x7e8] sm:$0xff]
  %v273 = vld [vmem:[%s1 + $0x7f0] sm:$0xff]
  %v274 = vld [vmem:[%s1 + $0x7f8] sm:$0xff]
  %v275 = vld [vmem:[%s1 + $0x800] sm:$0xff]
  %v276 = vld [vmem:[%s1 + $0x808] sm:$0xff]
  %v277 = vld [vmem:[%s1 + $0x810] sm:$0xff]
  %v278 = vld [vmem:[%s1 + $0x818] sm:$0xff]
  %v279 = vld [vmem:[%s1 + $0x820] sm:$0xff]
  %v280 = vld [vmem:[%s1 + $0x828] sm:$0xff]
  %v281 = vld [vmem:[%s1 + $0x830] sm:$0xff]
  %v282 = vld [vmem:[%s1 + $0x838] sm:$0xff]
  %v283 = vld [vmem:[%s1 + $0x840] sm:$0xff]
  %v284 = vld [vmem:[%s1 + $0x848] sm:$0xff]
  %v285 = vld [vmem:[%s1 + $0x850] sm:$0xff]
  %v286 = vld [vmem:[%s1 + $0x858] sm:$0xff]
  %v287 = vld [vmem:[%s1 + $0x860] sm:$0xff]
  %v288 = vld [vmem:[%s1 + $0x868] sm:$0xff]
  %v289 = vld [vmem:[%s1 + $0x870] sm:$0xff]
  %v290 = vld [vmem:[%s1 + $0x878] sm:$0xff]
  %v291 = vld [vmem:[%s1 + $0x880] sm:$0xff]
  %v292 = vld [vmem:[%s1 + $0x888] sm:$0xff]
  %v293 = vld [vmem:[%s1 + $0x890] sm:$0xff]
  %v294 = vld [vmem:[%s1 + $0x898] sm:$0xff]
  %v295 = vld [vmem:[%s1 + $0x8a0] sm:$0xff]
  %v296 = vld [vmem:[%s1 + $0x8a8] sm:$0xff]
  %v297 = vld [vmem:[%s1 + $0x8b0] sm:$0xff]
  %v298 = vld [vmem:[%s1 + $0x8b8] sm:$0xff]
  %v299 = vld [vmem:[%s1 + $0x8c0] sm:$0xff]
  %v300 = vld [vmem:[%s1 + $0x8c8] sm:$0xff]
  %v301 = vld [vmem:[%s1 + $0x8d0] sm:$0xff]
  %v302 = vld [vmem:[%s1 + $0x8d8] sm:$0xff]
  %v303 = vld [vmem:[%s1 + $0x8e0] sm:$0xff]
  %v304 = vld [vmem:[%s1 + $0x8e8] sm:$0xff]
  %v305 = vld [vmem:[%s1 + $0x8f0] sm:$0xff]
  %v306 = vld [vmem:[%s1 + $0x8f8] sm:$0xff]
  %v307 = vld [vmem:[%s2] sm:$0xf]
  %v309 = vperm.slane %v307, 0
  %v310 = vperm.slane %v307, 1
  %v311 = vperm.slane %v307, 2
  %v312 = vperm.slane %v307, 3
  %v322 = vunpack.c.l.b16 %v14
  %v323 = vunpack.c.h.b16 %v14
  %v324 = vunpack.c.l.b16 %v15
  %v325 = vunpack.c.h.b16 %v15
  %v326 = vunpack.c.l.b16 %v16
  %v327 = vunpack.c.h.b16 %v16
  %v328 = vunpack.c.l.b16 %v17
  %v329 = vunpack.c.h.b16 %v17
  %v330 = vunpack.c.l.b16 %v18
  %v331 = vpack.c.b16 %v322, %v322
  %v332 = vpack.c.b16 %v323, %v323
  %v333 = vpack.c.b16 %v324, %v324
  %v334 = vpack.c.b16 %v325, %v325
  %v335 = vpack.c.b16 %v326, %v326
  %v336 = vpack.c.b16 %v327, %v327
  %v337 = vpack.c.b16 %v328, %v328
  %v338 = vpack.c.b16 %v329, %v329
  %v339 = vpack.c.b16 %v330, %v330
  %v637 = vunpack.c.l.b16 %v19
  %v638 = vunpack.c.h.b16 %v19
  %v639 = vunpack.c.l.b16 %v20
  %v640 = vunpack.c.h.b16 %v20
  %v641 = vunpack.c.l.b16 %v21
  %v642 = vunpack.c.h.b16 %v21
  %v643 = vunpack.c.l.b16 %v22
  %v644 = vunpack.c.h.b16 %v22
  %v645 = vunpack.c.l.b16 %v23
  %v646 = vunpack.c.h.b16 %v23
  %v647 = vunpack.c.l.b16 %v24
  %v648 = vunpack.c.h.b16 %v24
  %v649 = vunpack.c.l.b16 %v25
  %v650 = vunpack.c.h.b16 %v25
  %v651 = vunpack.c.l.b16 %v26
  %v652 = vunpack.c.h.b16 %v26
  %v653 = vunpack.c.l.b16 %v27
  %v654 = vunpack.c.h.b16 %v27
  %v655 = vunpack.c.l.b16 %v28
  %v656 = vunpack.c.h.b16 %v28
  %v657 = vunpack.c.l.b16 %v29
  %v658 = vunpack.c.h.b16 %v29
  %v659 = vunpack.c.l.b16 %v30
  %v660 = vunpack.c.h.b16 %v30
  %v661 = vunpack.c.l.b16 %v31
  %v662 = vunpack.c.h.b16 %v31
  %v663 = vunpack.c.l.b16 %v32
  %v664 = vunpack.c.h.b16 %v32
  %v665 = vunpack.c.l.b16 %v33
  %v666 = vunpack.c.h.b16 %v33
  %v667 = vunpack.c.l.b16 %v34
  %v668 = vunpack.c.h.b16 %v34
  %v669 = vunpack.c.l.b16 %v35
  %v670 = vunpack.c.h.b16 %v35
  %v671 = vunpack.c.l.b16 %v36
  %v672 = vunpack.c.h.b16 %v36
  %v673 = vunpack.c.l.b16 %v37
  %v674 = vunpack.c.h.b16 %v37
  %v675 = vunpack.c.l.b16 %v38
  %v676 = vunpack.c.h.b16 %v38
  %v677 = vunpack.c.l.b16 %v39
  %v678 = vunpack.c.h.b16 %v39
  %v679 = vunpack.c.l.b16 %v40
  %v680 = vunpack.c.h.b16 %v40
  %v681 = vunpack.c.l.b16 %v41
  %v682 = vunpack.c.h.b16 %v41
  %v683 = vunpack.c.l.b16 %v42
  %v684 = vunpack.c.h.b16 %v42
  %v685 = vunpack.c.l.b16 %v43
  %v686 = vunpack.c.h.b16 %v43
  %v687 = vunpack.c.l.b16 %v44
  %v688 = vunpack.c.h.b16 %v44
  %v689 = vunpack.c.l.b16 %v45
  %v690 = vunpack.c.h.b16 %v45
  %v691 = vunpack.c.l.b16 %v46
  %v692 = vunpack.c.h.b16 %v46
  %v693 = vunpack.c.l.b16 %v47
  %v694 = vunpack.c.h.b16 %v47
  %v695 = vunpack.c.l.b16 %v48
  %v696 = vunpack.c.h.b16 %v48
  %v697 = vunpack.c.l.b16 %v49
  %v698 = vunpack.c.h.b16 %v49
  %v699 = vunpack.c.l.b16 %v50
  %v700 = vunpack.c.h.b16 %v50
  %v701 = vunpack.c.l.b16 %v51
  %v702 = vunpack.c.h.b16 %v51
  %v703 = vunpack.c.l.b16 %v52
  %v704 = vunpack.c.h.b16 %v52
  %v705 = vunpack.c.l.b16 %v53
  %v706 = vunpack.c.h.b16 %v53
  %v707 = vunpack.c.l.b16 %v54
  %v708 = vunpack.c.h.b16 %v54
  %v709 = vunpack.c.l.b16 %v55
  %v710 = vunpack.c.h.b16 %v55
  %v711 = vunpack.c.l.b16 %v56
  %v712 = vunpack.c.h.b16 %v56
  %v713 = vunpack.c.l.b16 %v57
  %v714 = vunpack.c.h.b16 %v57
  %v715 = vunpack.c.l.b16 %v58
  %v716 = vunpack.c.h.b16 %v58
  %v717 = vunpack.c.l.b16 %v59
  %v718 = vunpack.c.h.b16 %v59
  %v719 = vunpack.c.l.b16 %v60
  %v720 = vunpack.c.h.b16 %v60
  %v721 = vunpack.c.l.b16 %v61
  %v722 = vunpack.c.h.b16 %v61
  %v723 = vunpack.c.l.b16 %v62
  %v724 = vunpack.c.h.b16 %v62
  %v725 = vunpack.c.l.b16 %v63
  %v726 = vunpack.c.h.b16 %v63
  %v727 = vunpack.c.l.b16 %v64
  %v728 = vunpack.c.h.b16 %v64
  %v729 = vunpack.c.l.b16 %v65
  %v730 = vunpack.c.h.b16 %v65
  %v731 = vunpack.c.l.b16 %v66
  %v732 = vunpack.c.h.b16 %v66
  %v733 = vunpack.c.l.b16 %v67
  %v734 = vunpack.c.h.b16 %v67
  %v735 = vunpack.c.l.b16 %v68
  %v736 = vunpack.c.h.b16 %v68
  %v737 = vunpack.c.l.b16 %v69
  %v738 = vunpack.c.h.b16 %v69
  %v739 = vunpack.c.l.b16 %v70
  %v740 = vunpack.c.h.b16 %v70
  %v741 = vunpack.c.l.b16 %v71
  %v742 = vunpack.c.h.b16 %v71
  %v743 = vunpack.c.l.b16 %v72
  %v744 = vunpack.c.h.b16 %v72
  %v745 = vunpack.c.l.b16 %v73
  %v746 = vunpack.c.h.b16 %v73
  %v747 = vunpack.c.l.b16 %v74
  %v748 = vunpack.c.h.b16 %v74
  %v749 = vunpack.c.l.b16 %v75
  %v750 = vunpack.c.h.b16 %v75
  %v751 = vunpack.c.l.b16 %v76
  %v752 = vunpack.c.h.b16 %v76
  %v753 = vunpack.c.l.b16 %v77
  %v754 = vunpack.c.h.b16 %v77
  %v755 = vunpack.c.l.b16 %v78
  %v756 = vunpack.c.h.b16 %v78
  %v757 = vunpack.c.l.b16 %v79
  %v758 = vunpack.c.h.b16 %v79
  %v759 = vunpack.c.l.b16 %v80
  %v760 = vunpack.c.h.b16 %v80
  %v761 = vunpack.c.l.b16 %v81
  %v762 = vunpack.c.h.b16 %v81
  %v763 = vunpack.c.l.b16 %v82
  %v764 = vunpack.c.h.b16 %v82
  %v765 = vunpack.c.l.b16 %v83
  %v766 = vunpack.c.h.b16 %v83
  %v767 = vunpack.c.l.b16 %v84
  %v768 = vunpack.c.h.b16 %v84
  %v769 = vunpack.c.l.b16 %v85
  %v770 = vunpack.c.h.b16 %v85
  %v771 = vunpack.c.l.b16 %v86
  %v772 = vunpack.c.h.b16 %v86
  %v773 = vunpack.c.l.b16 %v87
  %v774 = vunpack.c.h.b16 %v87
  %v775 = vunpack.c.l.b16 %v88
  %v776 = vunpack.c.h.b16 %v88
  %v777 = vunpack.c.l.b16 %v89
  %v778 = vunpack.c.h.b16 %v89
  %v779 = vunpack.c.l.b16 %v90
  %v780 = vunpack.c.h.b16 %v90
  %v781 = vunpack.c.l.b16 %v91
  %v782 = vunpack.c.h.b16 %v91
  %v783 = vunpack.c.l.b16 %v92
  %v784 = vunpack.c.h.b16 %v92
  %v785 = vunpack.c.l.b16 %v93
  %v786 = vunpack.c.h.b16 %v93
  %v787 = vunpack.c.l.b16 %v94
  %v788 = vunpack.c.h.b16 %v94
  %v789 = vunpack.c.l.b16 %v95
  %v790 = vunpack.c.h.b16 %v95
  %v791 = vunpack.c.l.b16 %v96
  %v792 = vunpack.c.h.b16 %v96
  %v793 = vunpack.c.l.b16 %v97
  %v794 = vunpack.c.h.b16 %v97
  %v795 = vunpack.c.l.b16 %v98
  %v796 = vunpack.c.h.b16 %v98
  %v797 = vunpack.c.l.b16 %v99
  %v798 = vunpack.c.h.b16 %v99
  %v799 = vunpack.c.l.b16 %v100
  %v800 = vunpack.c.h.b16 %v100
  %v801 = vunpack.c.l.b16 %v101
  %v802 = vunpack.c.h.b16 %v101
  %v803 = vunpack.c.l.b16 %v102
  %v804 = vunpack.c.h.b16 %v102
  %v805 = vunpack.c.l.b16 %v103
  %v806 = vunpack.c.h.b16 %v103
  %v807 = vunpack.c.l.b16 %v104
  %v808 = vunpack.c.h.b16 %v104
  %v809 = vunpack.c.l.b16 %v105
  %v810 = vunpack.c.h.b16 %v105
  %v811 = vunpack.c.l.b16 %v106
  %v812 = vunpack.c.h.b16 %v106
  %v813 = vunpack.c.l.b16 %v107
  %v814 = vunpack.c.h.b16 %v107
  %v815 = vunpack.c.l.b16 %v108
  %v816 = vunpack.c.h.b16 %v108
  %v817 = vunpack.c.l.b16 %v109
  %v818 = vunpack.c.h.b16 %v109
  %v819 = vunpack.c.l.b16 %v110
  %v820 = vunpack.c.h.b16 %v110
  %v821 = vunpack.c.l.b16 %v111
  %v822 = vunpack.c.h.b16 %v111
  %v823 = vunpack.c.l.b16 %v112
  %v824 = vunpack.c.h.b16 %v112
  %v825 = vunpack.c.l.b16 %v113
  %v826 = vunpack.c.h.b16 %v113
  %v827 = vunpack.c.l.b16 %v114
  %v828 = vunpack.c.h.b16 %v114
  %v829 = vunpack.c.l.b16 %v115
  %v830 = vunpack.c.h.b16 %v115
  %v831 = vunpack.c.l.b16 %v116
  %v832 = vunpack.c.h.b16 %v116
  %v833 = vunpack.c.l.b16 %v117
  %v834 = vunpack.c.h.b16 %v117
  %v835 = vunpack.c.l.b16 %v118
  %v836 = vunpack.c.h.b16 %v118
  %v837 = vunpack.c.l.b16 %v119
  %v838 = vunpack.c.h.b16 %v119
  %v839 = vunpack.c.l.b16 %v120
  %v840 = vunpack.c.h.b16 %v120
  %v841 = vunpack.c.l.b16 %v121
  %v842 = vunpack.c.h.b16 %v121
  %v843 = vunpack.c.l.b16 %v122
  %v844 = vunpack.c.h.b16 %v122
  %v845 = vunpack.c.l.b16 %v123
  %v846 = vunpack.c.h.b16 %v123
  %v847 = vunpack.c.l.b16 %v124
  %v848 = vunpack.c.h.b16 %v124
  %v849 = vunpack.c.l.b16 %v125
  %v850 = vunpack.c.h.b16 %v125
  %v851 = vunpack.c.l.b16 %v126
  %v852 = vunpack.c.h.b16 %v126
  %v853 = vunpack.c.l.b16 %v127
  %v854 = vunpack.c.h.b16 %v127
  %v855 = vunpack.c.l.b16 %v128
  %v856 = vunpack.c.h.b16 %v128
  %v857 = vunpack.c.l.b16 %v129
  %v858 = vunpack.c.h.b16 %v129
  %v859 = vunpack.c.l.b16 %v130
  %v860 = vunpack.c.h.b16 %v130
  %v861 = vunpack.c.l.b16 %v131
  %v862 = vunpack.c.h.b16 %v131
  %v863 = vunpack.c.l.b16 %v132
  %v864 = vunpack.c.h.b16 %v132
  %v865 = vunpack.c.l.b16 %v133
  %v866 = vunpack.c.h.b16 %v133
  %v867 = vunpack.c.l.b16 %v134
  %v868 = vunpack.c.h.b16 %v134
  %v869 = vunpack.c.l.b16 %v135
  %v870 = vunpack.c.h.b16 %v135
  %v871 = vunpack.c.l.b16 %v136
  %v872 = vunpack.c.h.b16 %v136
  %v873 = vunpack.c.l.b16 %v137
  %v874 = vunpack.c.h.b16 %v137
  %v875 = vunpack.c.l.b16 %v138
  %v876 = vunpack.c.h.b16 %v138
  %v877 = vunpack.c.l.b16 %v139
  %v878 = vunpack.c.h.b16 %v139
  %v879 = vunpack.c.l.b16 %v140
  %v880 = vunpack.c.h.b16 %v140
  %v881 = vunpack.c.l.b16 %v141
  %v882 = vunpack.c.h.b16 %v141
  %v883 = vunpack.c.l.b16 %v142
  %v884 = vunpack.c.h.b16 %v142
  %v885 = vunpack.c.l.b16 %v143
  %v886 = vunpack.c.h.b16 %v143
  %v887 = vunpack.c.l.b16 %v144
  %v888 = vunpack.c.h.b16 %v144
  %v889 = vunpack.c.l.b16 %v145
  %v890 = vunpack.c.h.b16 %v145
  %v891 = vunpack.c.l.b16 %v146
  %v892 = vunpack.c.h.b16 %v146
  %v893 = vunpack.c.l.b16 %v147
  %v894 = vunpack.c.h.b16 %v147
  %v895 = vunpack.c.l.b16 %v148
  %v896 = vunpack.c.h.b16 %v148
  %v897 = vunpack.c.l.b16 %v149
  %v898 = vunpack.c.h.b16 %v149
  %v899 = vunpack.c.l.b16 %v150
  %v900 = vunpack.c.h.b16 %v150
  %v901 = vunpack.c.l.b16 %v151
  %v902 = vunpack.c.h.b16 %v151
  %v903 = vunpack.c.l.b16 %v152
  %v904 = vunpack.c.h.b16 %v152
  %v905 = vunpack.c.l.b16 %v153
  %v906 = vunpack.c.h.b16 %v153
  %v907 = vunpack.c.l.b16 %v154
  %v908 = vunpack.c.h.b16 %v154
  %v909 = vunpack.c.l.b16 %v155
  %v910 = vunpack.c.h.b16 %v155
  %v911 = vunpack.c.l.b16 %v156
  %v912 = vunpack.c.h.b16 %v156
  %v913 = vunpack.c.l.b16 %v157
  %v914 = vunpack.c.h.b16 %v157
  %v915 = vunpack.c.l.b16 %v158
  %v916 = vunpack.c.h.b16 %v158
  %v917 = vunpack.c.l.b16 %v159
  %v918 = vunpack.c.h.b16 %v159
  %v919 = vunpack.c.l.b16 %v160
  %v920 = vunpack.c.h.b16 %v160
  %v921 = vunpack.c.l.b16 %v161
  %v922 = vunpack.c.h.b16 %v161
  %v923 = vunpack.c.l.b16 %v162
  %v924 = vunpack.c.h.b16 %v162
  %v925 = vunpack.c.l.b16 %v163
  %v926 = vunpack.c.h.b16 %v163
  %v927 = vunpack.c.l.b16 %v164
  %v928 = vunpack.c.h.b16 %v164
  %v929 = vunpack.c.l.b16 %v165
  %v930 = vunpack.c.h.b16 %v165
  %v931 = vunpack.c.l.b16 %v166
  %v932 = vunpack.c.h.b16 %v166
  %v933 = vunpack.c.l.b16 %v167
  %v934 = vunpack.c.h.b16 %v167
  %v935 = vunpack.c.l.b16 %v168
  %v936 = vunpack.c.h.b16 %v168
  %v937 = vunpack.c.l.b16 %v169
  %v938 = vunpack.c.h.b16 %v169
  %v939 = vunpack.c.l.b16 %v170
  %v940 = vunpack.c.h.b16 %v170
  %v941 = vunpack.c.l.b16 %v171
  %v942 = vunpack.c.h.b16 %v171
  %v943 = vunpack.c.l.b16 %v172
  %v944 = vunpack.c.h.b16 %v172
  %v945 = vunpack.c.l.b16 %v173
  %v946 = vunpack.c.h.b16 %v173
  %v947 = vunpack.c.l.b16 %v174
  %v948 = vunpack.c.h.b16 %v174
  %v949 = vunpack.c.l.b16 %v175
  %v950 = vunpack.c.h.b16 %v175
  %v951 = vunpack.c.l.b16 %v176
  %v952 = vunpack.c.h.b16 %v176
  %v953 = vunpack.c.l.b16 %v177
  %v954 = vunpack.c.h.b16 %v177
  %v955 = vunpack.c.l.b16 %v178
  %v956 = vunpack.c.h.b16 %v178
  %v957 = vunpack.c.l.b16 %v179
  %v958 = vunpack.c.h.b16 %v179
  %v959 = vunpack.c.l.b16 %v180
  %v960 = vunpack.c.h.b16 %v180
  %v961 = vunpack.c.l.b16 %v181
  %v962 = vunpack.c.h.b16 %v181
  %v963 = vunpack.c.l.b16 %v182
  %v964 = vunpack.c.h.b16 %v182
  %v965 = vunpack.c.l.b16 %v183
  %v966 = vunpack.c.h.b16 %v183
  %v967 = vunpack.c.l.b16 %v184
  %v968 = vunpack.c.h.b16 %v184
  %v969 = vunpack.c.l.b16 %v185
  %v970 = vunpack.c.h.b16 %v185
  %v971 = vunpack.c.l.b16 %v186
  %v972 = vunpack.c.h.b16 %v186
  %v973 = vunpack.c.l.b16 %v187
  %v974 = vunpack.c.h.b16 %v187
  %v975 = vunpack.c.l.b16 %v188
  %v976 = vunpack.c.h.b16 %v188
  %v977 = vunpack.c.l.b16 %v189
  %v978 = vunpack.c.h.b16 %v189
  %v979 = vunpack.c.l.b16 %v190
  %v980 = vunpack.c.h.b16 %v190
  %v981 = vunpack.c.l.b16 %v191
  %v982 = vunpack.c.h.b16 %v191
  %v983 = vunpack.c.l.b16 %v192
  %v984 = vunpack.c.h.b16 %v192
  %v985 = vunpack.c.l.b16 %v193
  %v986 = vunpack.c.h.b16 %v193
  %v987 = vunpack.c.l.b16 %v194
  %v988 = vunpack.c.h.b16 %v194
  %v989 = vunpack.c.l.b16 %v195
  %v990 = vunpack.c.h.b16 %v195
  %v991 = vunpack.c.l.b16 %v196
  %v992 = vunpack.c.h.b16 %v196
  %v993 = vunpack.c.l.b16 %v197
  %v994 = vunpack.c.h.b16 %v197
  %v995 = vunpack.c.l.b16 %v198
  %v996 = vunpack.c.h.b16 %v198
  %v997 = vunpack.c.l.b16 %v199
  %v998 = vunpack.c.h.b16 %v199
  %v999 = vunpack.c.l.b16 %v200
  %v1000 = vunpack.c.h.b16 %v200
  %v1001 = vunpack.c.l.b16 %v201
  %v1002 = vunpack.c.h.b16 %v201
  %v1003 = vunpack.c.l.b16 %v202
  %v1004 = vunpack.c.h.b16 %v202
  %v1005 = vunpack.c.l.b16 %v203
  %v1006 = vunpack.c.h.b16 %v203
  %v1007 = vunpack.c.l.b16 %v204
  %v1008 = vunpack.c.h.b16 %v204
  %v1009 = vunpack.c.l.b16 %v205
  %v1010 = vunpack.c.h.b16 %v205
  %v1011 = vunpack.c.l.b16 %v206
  %v1012 = vunpack.c.h.b16 %v206
  %v1013 = vunpack.c.l.b16 %v207
  %v1014 = vunpack.c.h.b16 %v207
  %v1015 = vunpack.c.l.b16 %v208
  %v1016 = vunpack.c.h.b16 %v208
  %v1017 = vunpack.c.l.b16 %v209
  %v1018 = vunpack.c.h.b16 %v209
  %v1019 = vunpack.c.l.b16 %v210
  %v1020 = vunpack.c.h.b16 %v210
  %v1021 = vunpack.c.l.b16 %v211
  %v1022 = vunpack.c.h.b16 %v211
  %v1023 = vunpack.c.l.b16 %v212
  %v1024 = vunpack.c.h.b16 %v212
  %v1025 = vunpack.c.l.b16 %v213
  %v1026 = vunpack.c.h.b16 %v213
  %v1027 = vunpack.c.l.b16 %v214
  %v1028 = vunpack.c.h.b16 %v214
  %v1029 = vunpack.c.l.b16 %v215
  %v1030 = vunpack.c.h.b16 %v215
  %v1031 = vunpack.c.l.b16 %v216
  %v1032 = vunpack.c.h.b16 %v216
  %v1033 = vunpack.c.l.b16 %v217
  %v1034 = vunpack.c.h.b16 %v217
  %v1035 = vunpack.c.l.b16 %v218
  %v1036 = vunpack.c.h.b16 %v218
  %v1037 = vunpack.c.l.b16 %v219
  %v1038 = vunpack.c.h.b16 %v219
  %v1039 = vunpack.c.l.b16 %v220
  %v1040 = vunpack.c.h.b16 %v220
  %v1041 = vunpack.c.l.b16 %v221
  %v1042 = vunpack.c.h.b16 %v221
  %v1043 = vunpack.c.l.b16 %v222
  %v1044 = vunpack.c.h.b16 %v222
  %v1045 = vunpack.c.l.b16 %v223
  %v1046 = vunpack.c.h.b16 %v223
  %v1047 = vunpack.c.l.b16 %v224
  %v1048 = vunpack.c.h.b16 %v224
  %v1049 = vunpack.c.l.b16 %v225
  %v1050 = vunpack.c.h.b16 %v225
  %v1051 = vunpack.c.l.b16 %v226
  %v1052 = vunpack.c.h.b16 %v226
  %v1053 = vunpack.c.l.b16 %v227
  %v1054 = vunpack.c.h.b16 %v227
  %v1055 = vunpack.c.l.b16 %v228
  %v1056 = vunpack.c.h.b16 %v228
  %v1057 = vunpack.c.l.b16 %v229
  %v1058 = vunpack.c.h.b16 %v229
  %v1059 = vunpack.c.l.b16 %v230
  %v1060 = vunpack.c.h.b16 %v230
  %v1061 = vunpack.c.l.b16 %v231
  %v1062 = vunpack.c.h.b16 %v231
  %v1063 = vunpack.c.l.b16 %v232
  %v1064 = vunpack.c.h.b16 %v232
  %v1065 = vunpack.c.l.b16 %v233
  %v1066 = vunpack.c.h.b16 %v233
  %v1067 = vunpack.c.l.b16 %v234
  %v1068 = vunpack.c.h.b16 %v234
  %v1069 = vunpack.c.l.b16 %v235
  %v1070 = vunpack.c.h.b16 %v235
  %v1071 = vunpack.c.l.b16 %v236
  %v1072 = vunpack.c.h.b16 %v236
  %v1073 = vunpack.c.l.b16 %v237
  %v1074 = vunpack.c.h.b16 %v237
  %v1075 = vunpack.c.l.b16 %v238
  %v1076 = vunpack.c.h.b16 %v238
  %v1077 = vunpack.c.l.b16 %v239
  %v1078 = vunpack.c.h.b16 %v239
  %v1079 = vunpack.c.l.b16 %v240
  %v1080 = vunpack.c.h.b16 %v240
  %v1081 = vunpack.c.l.b16 %v241
  %v1082 = vunpack.c.h.b16 %v241
  %v1083 = vunpack.c.l.b16 %v242
  %v1084 = vunpack.c.h.b16 %v242
  %v1085 = vunpack.c.l.b16 %v243
  %v1086 = vunpack.c.h.b16 %v243
  %v1087 = vunpack.c.l.b16 %v244
  %v1088 = vunpack.c.h.b16 %v244
  %v1089 = vunpack.c.l.b16 %v245
  %v1090 = vunpack.c.h.b16 %v245
  %v1091 = vunpack.c.l.b16 %v246
  %v1092 = vunpack.c.h.b16 %v246
  %v1093 = vunpack.c.l.b16 %v247
  %v1094 = vunpack.c.h.b16 %v247
  %v1095 = vunpack.c.l.b16 %v248
  %v1096 = vunpack.c.h.b16 %v248
  %v1097 = vunpack.c.l.b16 %v249
  %v1098 = vunpack.c.h.b16 %v249
  %v1099 = vunpack.c.l.b16 %v250
  %v1100 = vunpack.c.h.b16 %v250
  %v1101 = vunpack.c.l.b16 %v251
  %v1102 = vunpack.c.h.b16 %v251
  %v1103 = vunpack.c.l.b16 %v252
  %v1104 = vunpack.c.h.b16 %v252
  %v1105 = vunpack.c.l.b16 %v253
  %v1106 = vunpack.c.h.b16 %v253
  %v1107 = vunpack.c.l.b16 %v254
  %v1108 = vunpack.c.h.b16 %v254
  %v1109 = vunpack.c.l.b16 %v255
  %v1110 = vunpack.c.h.b16 %v255
  %v1111 = vunpack.c.l.b16 %v256
  %v1112 = vunpack.c.h.b16 %v256
  %v1113 = vunpack.c.l.b16 %v257
  %v1114 = vunpack.c.h.b16 %v257
  %v1115 = vunpack.c.l.b16 %v258
  %v1116 = vunpack.c.h.b16 %v258
  %v1117 = vunpack.c.l.b16 %v259
  %v1118 = vunpack.c.h.b16 %v259
  %v1119 = vunpack.c.l.b16 %v260
  %v1120 = vunpack.c.h.b16 %v260
  %v1121 = vunpack.c.l.b16 %v261
  %v1122 = vunpack.c.h.b16 %v261
  %v1123 = vunpack.c.l.b16 %v262
  %v1124 = vunpack.c.h.b16 %v262
  %v1125 = vunpack.c.l.b16 %v263
  %v1126 = vunpack.c.h.b16 %v263
  %v1127 = vunpack.c.l.b16 %v264
  %v1128 = vunpack.c.h.b16 %v264
  %v1129 = vunpack.c.l.b16 %v265
  %v1130 = vunpack.c.h.b16 %v265
  %v1131 = vunpack.c.l.b16 %v266
  %v1132 = vunpack.c.h.b16 %v266
  %v1133 = vunpack.c.l.b16 %v267
  %v1134 = vunpack.c.h.b16 %v267
  %v1135 = vunpack.c.l.b16 %v268
  %v1136 = vunpack.c.h.b16 %v268
  %v1137 = vunpack.c.l.b16 %v269
  %v1138 = vunpack.c.h.b16 %v269
  %v1139 = vunpack.c.l.b16 %v270
  %v1140 = vunpack.c.h.b16 %v270
  %v1141 = vunpack.c.l.b16 %v271
  %v1142 = vunpack.c.h.b16 %v271
  %v1143 = vunpack.c.l.b16 %v272
  %v1144 = vunpack.c.h.b16 %v272
  %v1145 = vunpack.c.l.b16 %v273
  %v1146 = vunpack.c.h.b16 %v273
  %v1147 = vunpack.c.l.b16 %v274
  %v1148 = vunpack.c.h.b16 %v274
  %v1149 = vunpack.c.l.b16 %v275
  %v1150 = vunpack.c.h.b16 %v275
  %v1151 = vunpack.c.l.b16 %v276
  %v1152 = vunpack.c.h.b16 %v276
  %v1153 = vunpack.c.l.b16 %v277
  %v1154 = vunpack.c.h.b16 %v277
  %v1155 = vunpack.c.l.b16 %v278
  %v1156 = vunpack.c.h.b16 %v278
  %v1157 = vunpack.c.l.b16 %v279
  %v1158 = vunpack.c.h.b16 %v279
  %v1159 = vunpack.c.l.b16 %v280
  %v1160 = vunpack.c.h.b16 %v280
  %v1161 = vunpack.c.l.b16 %v281
  %v1162 = vunpack.c.h.b16 %v281
  %v1163 = vunpack.c.l.b16 %v282
  %v1164 = vunpack.c.h.b16 %v282
  %v1165 = vunpack.c.l.b16 %v283
  %v1166 = vunpack.c.h.b16 %v283
  %v1167 = vunpack.c.l.b16 %v284
  %v1168 = vunpack.c.h.b16 %v284
  %v1169 = vunpack.c.l.b16 %v285
  %v1170 = vunpack.c.h.b16 %v285
  %v1171 = vunpack.c.l.b16 %v286
  %v1172 = vunpack.c.h.b16 %v286
  %v1173 = vunpack.c.l.b16 %v287
  %v1174 = vunpack.c.h.b16 %v287
  %v1175 = vunpack.c.l.b16 %v288
  %v1176 = vunpack.c.h.b16 %v288
  %v1177 = vunpack.c.l.b16 %v289
  %v1178 = vunpack.c.h.b16 %v289
  %v1179 = vunpack.c.l.b16 %v290
  %v1180 = vunpack.c.h.b16 %v290
  %v1181 = vunpack.c.l.b16 %v291
  %v1182 = vunpack.c.h.b16 %v291
  %v1183 = vunpack.c.l.b16 %v292
  %v1184 = vunpack.c.h.b16 %v292
  %v1185 = vunpack.c.l.b16 %v293
  %v1186 = vunpack.c.h.b16 %v293
  %v1187 = vunpack.c.l.b16 %v294
  %v1188 = vunpack.c.h.b16 %v294
  %v1189 = vunpack.c.l.b16 %v295
  %v1190 = vunpack.c.h.b16 %v295
  %v1191 = vunpack.c.l.b16 %v296
  %v1192 = vunpack.c.h.b16 %v296
  %v1193 = vunpack.c.l.b16 %v297
  %v1194 = vunpack.c.h.b16 %v297
  %v1195 = vunpack.c.l.b16 %v298
  %v1196 = vunpack.c.h.b16 %v298
  %v1197 = vunpack.c.l.b16 %v299
  %v1198 = vunpack.c.h.b16 %v299
  %v1199 = vunpack.c.l.b16 %v300
  %v1200 = vunpack.c.h.b16 %v300
  %v1201 = vunpack.c.l.b16 %v301
  %v1202 = vunpack.c.h.b16 %v301
  %v1203 = vunpack.c.l.b16 %v302
  %v1204 = vunpack.c.h.b16 %v302
  %v1205 = vunpack.c.l.b16 %v303
  %v1206 = vunpack.c.h.b16 %v303
  %v1207 = vunpack.c.l.b16 %v304
  %v1208 = vunpack.c.h.b16 %v304
  %v1209 = vunpack.c.l.b16 %v305
  %v1210 = vunpack.c.h.b16 %v305
  %v1211 = vunpack.c.l.b16 %v306
  %v1212 = vunpack.c.h.b16 %v306
  %v1213 = vpack.c.b16 %v641, %v637
  %v1214 = vpack.c.b16 %v642, %v638
  %v1215 = vpack.c.b16 %v643, %v639
  %v1216 = vpack.c.b16 %v644, %v640
  %v1217 = vpack.c.b16 %v649, %v645
  %v1218 = vpack.c.b16 %v650, %v646
  %v1219 = vpack.c.b16 %v651, %v647
  %v1220 = vpack.c.b16 %v652, %v648
  %v1221 = vpack.c.b16 %v657, %v653
  %v1222 = vpack.c.b16 %v658, %v654
  %v1223 = vpack.c.b16 %v659, %v655
  %v1224 = vpack.c.b16 %v660, %v656
  %v1225 = vpack.c.b16 %v665, %v661
  %v1226 = vpack.c.b16 %v666, %v662
  %v1227 = vpack.c.b16 %v667, %v663
  %v1228 = vpack.c.b16 %v668, %v664
  %v1229 = vpack.c.b16 %v673, %v669
  %v1230 = vpack.c.b16 %v674, %v670
  %v1231 = vpack.c.b16 %v675, %v671
  %v1232 = vpack.c.b16 %v676, %v672
  %v1233 = vpack.c.b16 %v681, %v677
  %v1234 = vpack.c.b16 %v682, %v678
  %v1235 = vpack.c.b16 %v683, %v679
  %v1236 = vpack.c.b16 %v684, %v680
  %v1237 = vpack.c.b16 %v689, %v685
  %v1238 = vpack.c.b16 %v690, %v686
  %v1239 = vpack.c.b16 %v691, %v687
  %v1240 = vpack.c.b16 %v692, %v688
  %v1241 = vpack.c.b16 %v697, %v693
  %v1242 = vpack.c.b16 %v698, %v694
  %v1243 = vpack.c.b16 %v699, %v695
  %v1244 = vpack.c.b16 %v700, %v696
  %v1245 = vpack.c.b16 %v705, %v701
  %v1246 = vpack.c.b16 %v706, %v702
  %v1247 = vpack.c.b16 %v707, %v703
  %v1248 = vpack.c.b16 %v708, %v704
  %v1249 = vpack.c.b16 %v713, %v709
  %v1250 = vpack.c.b16 %v714, %v710
  %v1251 = vpack.c.b16 %v715, %v711
  %v1252 = vpack.c.b16 %v716, %v712
  %v1253 = vpack.c.b16 %v721, %v717
  %v1254 = vpack.c.b16 %v722, %v718
  %v1255 = vpack.c.b16 %v723, %v719
  %v1256 = vpack.c.b16 %v724, %v720
  %v1257 = vpack.c.b16 %v729, %v725
  %v1258 = vpack.c.b16 %v730, %v726
  %v1259 = vpack.c.b16 %v731, %v727
  %v1260 = vpack.c.b16 %v732, %v728
  %v1261 = vpack.c.b16 %v737, %v733
  %v1262 = vpack.c.b16 %v738, %v734
  %v1263 = vpack.c.b16 %v739, %v735
  %v1264 = vpack.c.b16 %v740, %v736
  %v1265 = vpack.c.b16 %v745, %v741
  %v1266 = vpack.c.b16 %v746, %v742
  %v1267 = vpack.c.b16 %v747, %v743
  %v1268 = vpack.c.b16 %v748, %v744
  %v1269 = vpack.c.b16 %v753, %v749
  %v1270 = vpack.c.b16 %v754, %v750
  %v1271 = vpack.c.b16 %v755, %v751
  %v1272 = vpack.c.b16 %v756, %v752
  %v1273 = vpack.c.b16 %v761, %v757
  %v1274 = vpack.c.b16 %v762, %v758
  %v1275 = vpack.c.b16 %v763, %v759
  %v1276 = vpack.c.b16 %v764, %v760
  %v1277 = vpack.c.b16 %v769, %v765
  %v1278 = vpack.c.b16 %v770, %v766
  %v1279 = vpack.c.b16 %v771, %v767
  %v1280 = vpack.c.b16 %v772, %v768
  %v1281 = vpack.c.b16 %v777, %v773
  %v1282 = vpack.c.b16 %v778, %v774
  %v1283 = vpack.c.b16 %v779, %v775
  %v1284 = vpack.c.b16 %v780, %v776
  %v1285 = vpack.c.b16 %v785, %v781
  %v1286 = vpack.c.b16 %v786, %v782
  %v1287 = vpack.c.b16 %v787, %v783
  %v1288 = vpack.c.b16 %v788, %v784
  %v1289 = vpack.c.b16 %v793, %v789
  %v1290 = vpack.c.b16 %v794, %v790
  %v1291 = vpack.c.b16 %v795, %v791
  %v1292 = vpack.c.b16 %v796, %v792
  %v1293 = vpack.c.b16 %v801, %v797
  %v1294 = vpack.c.b16 %v802, %v798
  %v1295 = vpack.c.b16 %v803, %v799
  %v1296 = vpack.c.b16 %v804, %v800
  %v1297 = vpack.c.b16 %v809, %v805
  %v1298 = vpack.c.b16 %v810, %v806
  %v1299 = vpack.c.b16 %v811, %v807
  %v1300 = vpack.c.b16 %v812, %v808
  %v1301 = vpack.c.b16 %v817, %v813
  %v1302 = vpack.c.b16 %v818, %v814
  %v1303 = vpack.c.b16 %v819, %v815
  %v1304 = vpack.c.b16 %v820, %v816
  %v1305 = vpack.c.b16 %v825, %v821
  %v1306 = vpack.c.b16 %v826, %v822
  %v1307 = vpack.c.b16 %v827, %v823
  %v1308 = vpack.c.b16 %v828, %v824
  %v1309 = vpack.c.b16 %v833, %v829
  %v1310 = vpack.c.b16 %v834, %v830
  %v1311 = vpack.c.b16 %v835, %v831
  %v1312 = vpack.c.b16 %v836, %v832
  %v1313 = vpack.c.b16 %v841, %v837
  %v1314 = vpack.c.b16 %v842, %v838
  %v1315 = vpack.c.b16 %v843, %v839
  %v1316 = vpack.c.b16 %v844, %v840
  %v1317 = vpack.c.b16 %v849, %v845
  %v1318 = vpack.c.b16 %v850, %v846
  %v1319 = vpack.c.b16 %v851, %v847
  %v1320 = vpack.c.b16 %v852, %v848
  %v1321 = vpack.c.b16 %v857, %v853
  %v1322 = vpack.c.b16 %v858, %v854
  %v1323 = vpack.c.b16 %v859, %v855
  %v1324 = vpack.c.b16 %v860, %v856
  %v1325 = vpack.c.b16 %v865, %v861
  %v1326 = vpack.c.b16 %v866, %v862
  %v1327 = vpack.c.b16 %v867, %v863
  %v1328 = vpack.c.b16 %v868, %v864
  %v1329 = vpack.c.b16 %v873, %v869
  %v1330 = vpack.c.b16 %v874, %v870
  %v1331 = vpack.c.b16 %v875, %v871
  %v1332 = vpack.c.b16 %v876, %v872
  %v1333 = vpack.c.b16 %v881, %v877
  %v1334 = vpack.c.b16 %v882, %v878
  %v1335 = vpack.c.b16 %v883, %v879
  %v1336 = vpack.c.b16 %v884, %v880
  %v1337 = vpack.c.b16 %v889, %v885
  %v1338 = vpack.c.b16 %v890, %v886
  %v1339 = vpack.c.b16 %v891, %v887
  %v1340 = vpack.c.b16 %v892, %v888
  %v1341 = vpack.c.b16 %v897, %v893
  %v1342 = vpack.c.b16 %v898, %v894
  %v1343 = vpack.c.b16 %v899, %v895
  %v1344 = vpack.c.b16 %v900, %v896
  %v1345 = vpack.c.b16 %v905, %v901
  %v1346 = vpack.c.b16 %v906, %v902
  %v1347 = vpack.c.b16 %v907, %v903
  %v1348 = vpack.c.b16 %v908, %v904
  %v1349 = vpack.c.b16 %v913, %v909
  %v1350 = vpack.c.b16 %v914, %v910
  %v1351 = vpack.c.b16 %v915, %v911
  %v1352 = vpack.c.b16 %v916, %v912
  %v1353 = vpack.c.b16 %v921, %v917
  %v1354 = vpack.c.b16 %v922, %v918
  %v1355 = vpack.c.b16 %v923, %v919
  %v1356 = vpack.c.b16 %v924, %v920
  %v1357 = vpack.c.b16 %v929, %v925
  %v1358 = vpack.c.b16 %v930, %v926
  %v1359 = vpack.c.b16 %v931, %v927
  %v1360 = vpack.c.b16 %v932, %v928
  %v1361 = vpack.c.b16 %v937, %v933
  %v1362 = vpack.c.b16 %v938, %v934
  %v1363 = vpack.c.b16 %v939, %v935
  %v1364 = vpack.c.b16 %v940, %v936
  %v1365 = vpack.c.b16 %v945, %v941
  %v1366 = vpack.c.b16 %v946, %v942
  %v1367 = vpack.c.b16 %v947, %v943
  %v1368 = vpack.c.b16 %v948, %v944
  %v1369 = vpack.c.b16 %v953, %v949
  %v1370 = vpack.c.b16 %v954, %v950
  %v1371 = vpack.c.b16 %v955, %v951
  %v1372 = vpack.c.b16 %v956, %v952
  %v1373 = vpack.c.b16 %v961, %v957
  %v1374 = vpack.c.b16 %v962, %v958
  %v1375 = vpack.c.b16 %v963, %v959
  %v1376 = vpack.c.b16 %v964, %v960
  %v1377 = vpack.c.b16 %v969, %v965
  %v1378 = vpack.c.b16 %v970, %v966
  %v1379 = vpack.c.b16 %v971, %v967
  %v1380 = vpack.c.b16 %v972, %v968
  %v1381 = vpack.c.b16 %v977, %v973
  %v1382 = vpack.c.b16 %v978, %v974
  %v1383 = vpack.c.b16 %v979, %v975
  %v1384 = vpack.c.b16 %v980, %v976
  %v1385 = vpack.c.b16 %v985, %v981
  %v1386 = vpack.c.b16 %v986, %v982
  %v1387 = vpack.c.b16 %v987, %v983
  %v1388 = vpack.c.b16 %v988, %v984
  %v1389 = vpack.c.b16 %v993, %v989
  %v1390 = vpack.c.b16 %v994, %v990
  %v1391 = vpack.c.b16 %v995, %v991
  %v1392 = vpack.c.b16 %v996, %v992
  %v1393 = vpack.c.b16 %v1001, %v997
  %v1394 = vpack.c.b16 %v1002, %v998
  %v1395 = vpack.c.b16 %v1003, %v999
  %v1396 = vpack.c.b16 %v1004, %v1000
  %v1397 = vpack.c.b16 %v1009, %v1005
  %v1398 = vpack.c.b16 %v1010, %v1006
  %v1399 = vpack.c.b16 %v1011, %v1007
  %v1400 = vpack.c.b16 %v1012, %v1008
  %v1401 = vpack.c.b16 %v1017, %v1013
  %v1402 = vpack.c.b16 %v1018, %v1014
  %v1403 = vpack.c.b16 %v1019, %v1015
  %v1404 = vpack.c.b16 %v1020, %v1016
  %v1405 = vpack.c.b16 %v1025, %v1021
  %v1406 = vpack.c.b16 %v1026, %v1022
  %v1407 = vpack.c.b16 %v1027, %v1023
  %v1408 = vpack.c.b16 %v1028, %v1024
  %v1409 = vpack.c.b16 %v1033, %v1029
  %v1410 = vpack.c.b16 %v1034, %v1030
  %v1411 = vpack.c.b16 %v1035, %v1031
  %v1412 = vpack.c.b16 %v1036, %v1032
  %v1413 = vpack.c.b16 %v1041, %v1037
  %v1414 = vpack.c.b16 %v1042, %v1038
  %v1415 = vpack.c.b16 %v1043, %v1039
  %v1416 = vpack.c.b16 %v1044, %v1040
  %v1417 = vpack.c.b16 %v1049, %v1045
  %v1418 = vpack.c.b16 %v1050, %v1046
  %v1419 = vpack.c.b16 %v1051, %v1047
  %v1420 = vpack.c.b16 %v1052, %v1048
  %v1421 = vpack.c.b16 %v1057, %v1053
  %v1422 = vpack.c.b16 %v1058, %v1054
  %v1423 = vpack.c.b16 %v1059, %v1055
  %v1424 = vpack.c.b16 %v1060, %v1056
  %v1425 = vpack.c.b16 %v1065, %v1061
  %v1426 = vpack.c.b16 %v1066, %v1062
  %v1427 = vpack.c.b16 %v1067, %v1063
  %v1428 = vpack.c.b16 %v1068, %v1064
  %v1429 = vpack.c.b16 %v1073, %v1069
  %v1430 = vpack.c.b16 %v1074, %v1070
  %v1431 = vpack.c.b16 %v1075, %v1071
  %v1432 = vpack.c.b16 %v1076, %v1072
  %v1433 = vpack.c.b16 %v1081, %v1077
  %v1434 = vpack.c.b16 %v1082, %v1078
  %v1435 = vpack.c.b16 %v1083, %v1079
  %v1436 = vpack.c.b16 %v1084, %v1080
  %v1437 = vpack.c.b16 %v1089, %v1085
  %v1438 = vpack.c.b16 %v1090, %v1086
  %v1439 = vpack.c.b16 %v1091, %v1087
  %v1440 = vpack.c.b16 %v1092, %v1088
  %v1441 = vpack.c.b16 %v1097, %v1093
  %v1442 = vpack.c.b16 %v1098, %v1094
  %v1443 = vpack.c.b16 %v1099, %v1095
  %v1444 = vpack.c.b16 %v1100, %v1096
  %v1445 = vpack.c.b16 %v1105, %v1101
  %v1446 = vpack.c.b16 %v1106, %v1102
  %v1447 = vpack.c.b16 %v1107, %v1103
  %v1448 = vpack.c.b16 %v1108, %v1104
  %v1449 = vpack.c.b16 %v1113, %v1109
  %v1450 = vpack.c.b16 %v1114, %v1110
  %v1451 = vpack.c.b16 %v1115, %v1111
  %v1452 = vpack.c.b16 %v1116, %v1112
  %v1453 = vpack.c.b16 %v1121, %v1117
  %v1454 = vpack.c.b16 %v1122, %v1118
  %v1455 = vpack.c.b16 %v1123, %v1119
  %v1456 = vpack.c.b16 %v1124, %v1120
  %v1457 = vpack.c.b16 %v1129, %v1125
  %v1458 = vpack.c.b16 %v1130, %v1126
  %v1459 = vpack.c.b16 %v1131, %v1127
  %v1460 = vpack.c.b16 %v1132, %v1128
  %v1461 = vpack.c.b16 %v1137, %v1133
  %v1462 = vpack.c.b16 %v1138, %v1134
  %v1463 = vpack.c.b16 %v1139, %v1135
  %v1464 = vpack.c.b16 %v1140, %v1136
  %v1465 = vpack.c.b16 %v1145, %v1141
  %v1466 = vpack.c.b16 %v1146, %v1142
  %v1467 = vpack.c.b16 %v1147, %v1143
  %v1468 = vpack.c.b16 %v1148, %v1144
  %v1469 = vpack.c.b16 %v1153, %v1149
  %v1470 = vpack.c.b16 %v1154, %v1150
  %v1471 = vpack.c.b16 %v1155, %v1151
  %v1472 = vpack.c.b16 %v1156, %v1152
  %v1473 = vpack.c.b16 %v1161, %v1157
  %v1474 = vpack.c.b16 %v1162, %v1158
  %v1475 = vpack.c.b16 %v1163, %v1159
  %v1476 = vpack.c.b16 %v1164, %v1160
  %v1477 = vpack.c.b16 %v1169, %v1165
  %v1478 = vpack.c.b16 %v1170, %v1166
  %v1479 = vpack.c.b16 %v1171, %v1167
  %v1480 = vpack.c.b16 %v1172, %v1168
  %v1481 = vpack.c.b16 %v1177, %v1173
  %v1482 = vpack.c.b16 %v1178, %v1174
  %v1483 = vpack.c.b16 %v1179, %v1175
  %v1484 = vpack.c.b16 %v1180, %v1176
  %v1485 = vpack.c.b16 %v1185, %v1181
  %v1486 = vpack.c.b16 %v1186, %v1182
  %v1487 = vpack.c.b16 %v1187, %v1183
  %v1488 = vpack.c.b16 %v1188, %v1184
  %v1489 = vpack.c.b16 %v1193, %v1189
  %v1490 = vpack.c.b16 %v1194, %v1190
  %v1491 = vpack.c.b16 %v1195, %v1191
  %v1492 = vpack.c.b16 %v1196, %v1192
  %v1493 = vpack.c.b16 %v1201, %v1197
  %v1494 = vpack.c.b16 %v1202, %v1198
  %v1495 = vpack.c.b16 %v1203, %v1199
  %v1496 = vpack.c.b16 %v1204, %v1200
  %v1497 = vpack.c.b16 %v1209, %v1205
  %v1498 = vpack.c.b16 %v1210, %v1206
  %v1499 = vpack.c.b16 %v1211, %v1207
  %v1500 = vpack.c.b16 %v1212, %v1208
  %1789 = vmatpush.bf16.msra.mxu0 %v1241
  %1790 = vmatpush.bf16.msra.mxu0 %v1237
  %1791 = vmatpush.bf16.msra.mxu0 %v1233
  %1792 = vmatpush.bf16.msra.mxu0 %v1229
  %1793 = vmatpush.bf16.msra.mxu0 %v1225
  %1794 = vmatpush.bf16.msra.mxu0 %v1221
  %1795 = vmatpush.bf16.msra.mxu0 %v1217
  %1796 = vmatpush.bf16.msra.mxu0 %v1213
  %1797 = vmatmul.bf16.gmra.mxu0 %v331
  %v1798 = vpop.f32.mrf.mxu0
  %v1799 = vadd.f32 %v309, %v1798
  %v1800 = vpop.f32.mrf.mxu0
  %1801 = vdwg.mxu0
  %1802 = vmatpush.bf16.msra.mxu0 %v1273
  %1803 = vmatpush.bf16.msra.mxu0 %v1269
  %1804 = vmatpush.bf16.msra.mxu0 %v1265
  %1805 = vmatpush.bf16.msra.mxu0 %v1261
  %1806 = vmatpush.bf16.msra.mxu0 %v1257
  %1807 = vmatpush.bf16.msra.mxu0 %v1253
  %1808 = vmatpush.bf16.msra.mxu0 %v1249
  %1809 = vmatpush.bf16.msra.mxu0 %v1245
  %1810 = vmatmul.bf16.gmra.mxu0 %v332
  %v1811 = vpop.f32.mrf.mxu0
  %v1812 = vadd.f32 %v1799, %v1811
  %v1813 = vpop.f32.mrf.mxu0
  %1814 = vdwg.mxu0
  %1815 = vmatpush.bf16.msra.mxu0 %v1305
  %1816 = vmatpush.bf16.msra.mxu0 %v1301
  %1817 = vmatpush.bf16.msra.mxu0 %v1297
  %1818 = vmatpush.bf16.msra.mxu0 %v1293
  %1819 = vmatpush.bf16.msra.mxu0 %v1289
  %1820 = vmatpush.bf16.msra.mxu0 %v1285
  %1821 = vmatpush.bf16.msra.mxu0 %v1281
  %1822 = vmatpush.bf16.msra.mxu0 %v1277
  %1823 = vmatmul.bf16.gmra.mxu0 %v333
  %v1824 = vpop.f32.mrf.mxu0
  %v1825 = vadd.f32 %v1812, %v1824
  %v1826 = vpop.f32.mrf.mxu0
  %1827 = vdwg.mxu0
  %1828 = vmatpush.bf16.msra.mxu0 %v1337
  %1829 = vmatpush.bf16.msra.mxu0 %v1333
  %1830 = vmatpush.bf16.msra.mxu0 %v1329
  %1831 = vmatpush.bf16.msra.mxu0 %v1325
  %1832 = vmatpush.bf16.msra.mxu0 %v1321
  %1833 = vmatpush.bf16.msra.mxu0 %v1317
  %1834 = vmatpush.bf16.msra.mxu0 %v1313
  %1835 = vmatpush.bf16.msra.mxu0 %v1309
  %1836 = vmatmul.bf16.gmra.mxu0 %v334
  %v1837 = vpop.f32.mrf.mxu0
  %v1838 = vadd.f32 %v1825, %v1837
  %v1839 = vpop.f32.mrf.mxu0
  %1840 = vdwg.mxu0
  %1841 = vmatpush.bf16.msra.mxu0 %v1369
  %1842 = vmatpush.bf16.msra.mxu0 %v1365
  %1843 = vmatpush.bf16.msra.mxu0 %v1361
  %1844 = vmatpush.bf16.msra.mxu0 %v1357
  %1845 = vmatpush.bf16.msra.mxu0 %v1353
  %1846 = vmatpush.bf16.msra.mxu0 %v1349
  %1847 = vmatpush.bf16.msra.mxu0 %v1345
  %1848 = vmatpush.bf16.msra.mxu0 %v1341
  %1849 = vmatmul.bf16.gmra.mxu0 %v335
  %v1850 = vpop.f32.mrf.mxu0
  %v1851 = vadd.f32 %v1838, %v1850
  %v1852 = vpop.f32.mrf.mxu0
  %1853 = vdwg.mxu0
  %1854 = vmatpush.bf16.msra.mxu0 %v1401
  %1855 = vmatpush.bf16.msra.mxu0 %v1397
  %1856 = vmatpush.bf16.msra.mxu0 %v1393
  %1857 = vmatpush.bf16.msra.mxu0 %v1389
  %1858 = vmatpush.bf16.msra.mxu0 %v1385
  %1859 = vmatpush.bf16.msra.mxu0 %v1381
  %1860 = vmatpush.bf16.msra.mxu0 %v1377
  %1861 = vmatpush.bf16.msra.mxu0 %v1373
  %1862 = vmatmul.bf16.gmra.mxu0 %v336
  %v1863 = vpop.f32.mrf.mxu0
  %v1864 = vadd.f32 %v1851, %v1863
  %v1865 = vpop.f32.mrf.mxu0
  %1866 = vdwg.mxu0
  %1867 = vmatpush.bf16.msra.mxu0 %v1433
  %1868 = vmatpush.bf16.msra.mxu0 %v1429
  %1869 = vmatpush.bf16.msra.mxu0 %v1425
  %1870 = vmatpush.bf16.msra.mxu0 %v1421
  %1871 = vmatpush.bf16.msra.mxu0 %v1417
  %1872 = vmatpush.bf16.msra.mxu0 %v1413
  %1873 = vmatpush.bf16.msra.mxu0 %v1409
  %1874 = vmatpush.bf16.msra.mxu0 %v1405
  %1875 = vmatmul.bf16.gmra.mxu0 %v337
  %v1876 = vpop.f32.mrf.mxu0
  %v1877 = vadd.f32 %v1864, %v1876
  %v1878 = vpop.f32.mrf.mxu0
  %1879 = vdwg.mxu0
  %1880 = vmatpush.bf16.msra.mxu0 %v1465
  %1881 = vmatpush.bf16.msra.mxu0 %v1461
  %1882 = vmatpush.bf16.msra.mxu0 %v1457
  %1883 = vmatpush.bf16.msra.mxu0 %v1453
  %1884 = vmatpush.bf16.msra.mxu0 %v1449
  %1885 = vmatpush.bf16.msra.mxu0 %v1445
  %1886 = vmatpush.bf16.msra.mxu0 %v1441
  %1887 = vmatpush.bf16.msra.mxu0 %v1437
  %1888 = vmatmul.bf16.gmra.mxu0 %v338
  %v1889 = vpop.f32.mrf.mxu0
  %v1890 = vadd.f32 %v1877, %v1889
  %v1891 = vpop.f32.mrf.mxu0
  %1892 = vdwg.mxu0
  %1893 = vmatpush.bf16.msra.mxu0 %v1497
  %1894 = vmatpush.bf16.msra.mxu0 %v1493
  %1895 = vmatpush.bf16.msra.mxu0 %v1489
  %1896 = vmatpush.bf16.msra.mxu0 %v1485
  %1897 = vmatpush.bf16.msra.mxu0 %v1481
  %1898 = vmatpush.bf16.msra.mxu0 %v1477
  %1899 = vmatpush.bf16.msra.mxu0 %v1473
  %1900 = vmatpush.bf16.msra.mxu0 %v1469
  %1901 = vmatmul.bf16.gmra.mxu0 %v339
  %v1902 = vpop.f32.mrf.mxu0
  %v1903 = vadd.f32 %v1890, %v1902
  %v1904 = vpop.f32.mrf.mxu0
  %1905 = vdwg.mxu0
  %1906 = vmatpush.bf16.msra.mxu0 %v1242
  %1907 = vmatpush.bf16.msra.mxu0 %v1238
  %1908 = vmatpush.bf16.msra.mxu0 %v1234
  %1909 = vmatpush.bf16.msra.mxu0 %v1230
  %1910 = vmatpush.bf16.msra.mxu0 %v1226
  %1911 = vmatpush.bf16.msra.mxu0 %v1222
  %1912 = vmatpush.bf16.msra.mxu0 %v1218
  %1913 = vmatpush.bf16.msra.mxu0 %v1214
  %1914 = vmatmul.bf16.gmra.mxu0 %v331
  %v1915 = vpop.f32.mrf.mxu0
  %v1916 = vadd.f32 %v310, %v1915
  %v1917 = vpop.f32.mrf.mxu0
  %1918 = vdwg.mxu0
  %1919 = vmatpush.bf16.msra.mxu0 %v1274
  %1920 = vmatpush.bf16.msra.mxu0 %v1270
  %1921 = vmatpush.bf16.msra.mxu0 %v1266
  %1922 = vmatpush.bf16.msra.mxu0 %v1262
  %1923 = vmatpush.bf16.msra.mxu0 %v1258
  %1924 = vmatpush.bf16.msra.mxu0 %v1254
  %1925 = vmatpush.bf16.msra.mxu0 %v1250
  %1926 = vmatpush.bf16.msra.mxu0 %v1246
  %1927 = vmatmul.bf16.gmra.mxu0 %v332
  %v1928 = vpop.f32.mrf.mxu0
  %v1929 = vadd.f32 %v1916, %v1928
  %v1930 = vpop.f32.mrf.mxu0
  %1931 = vdwg.mxu0
  %1932 = vmatpush.bf16.msra.mxu0 %v1306
  %1933 = vmatpush.bf16.msra.mxu0 %v1302
  %1934 = vmatpush.bf16.msra.mxu0 %v1298
  %1935 = vmatpush.bf16.msra.mxu0 %v1294
  %1936 = vmatpush.bf16.msra.mxu0 %v1290
  %1937 = vmatpush.bf16.msra.mxu0 %v1286
  %1938 = vmatpush.bf16.msra.mxu0 %v1282
  %1939 = vmatpush.bf16.msra.mxu0 %v1278
  %1940 = vmatmul.bf16.gmra.mxu0 %v333
  %v1941 = vpop.f32.mrf.mxu0
  %v1942 = vadd.f32 %v1929, %v1941
  %v1943 = vpop.f32.mrf.mxu0
  %1944 = vdwg.mxu0
  %1945 = vmatpush.bf16.msra.mxu0 %v1338
  %1946 = vmatpush.bf16.msra.mxu0 %v1334
  %1947 = vmatpush.bf16.msra.mxu0 %v1330
  %1948 = vmatpush.bf16.msra.mxu0 %v1326
  %1949 = vmatpush.bf16.msra.mxu0 %v1322
  %1950 = vmatpush.bf16.msra.mxu0 %v1318
  %1951 = vmatpush.bf16.msra.mxu0 %v1314
  %1952 = vmatpush.bf16.msra.mxu0 %v1310
  %1953 = vmatmul.bf16.gmra.mxu0 %v334
  %v1954 = vpop.f32.mrf.mxu0
  %v1955 = vadd.f32 %v1942, %v1954
  %v1956 = vpop.f32.mrf.mxu0
  %1957 = vdwg.mxu0
  %1958 = vmatpush.bf16.msra.mxu0 %v1370
  %1959 = vmatpush.bf16.msra.mxu0 %v1366
  %1960 = vmatpush.bf16.msra.mxu0 %v1362
  %1961 = vmatpush.bf16.msra.mxu0 %v1358
  %1962 = vmatpush.bf16.msra.mxu0 %v1354
  %1963 = vmatpush.bf16.msra.mxu0 %v1350
  %1964 = vmatpush.bf16.msra.mxu0 %v1346
  %1965 = vmatpush.bf16.msra.mxu0 %v1342
  %1966 = vmatmul.bf16.gmra.mxu0 %v335
  %v1967 = vpop.f32.mrf.mxu0
  %v1968 = vadd.f32 %v1955, %v1967
  %v1969 = vpop.f32.mrf.mxu0
  %1970 = vdwg.mxu0
  %1971 = vmatpush.bf16.msra.mxu0 %v1402
  %1972 = vmatpush.bf16.msra.mxu0 %v1398
  %1973 = vmatpush.bf16.msra.mxu0 %v1394
  %1974 = vmatpush.bf16.msra.mxu0 %v1390
  %1975 = vmatpush.bf16.msra.mxu0 %v1386
  %1976 = vmatpush.bf16.msra.mxu0 %v1382
  %1977 = vmatpush.bf16.msra.mxu0 %v1378
  %1978 = vmatpush.bf16.msra.mxu0 %v1374
  %1979 = vmatmul.bf16.gmra.mxu0 %v336
  %v1980 = vpop.f32.mrf.mxu0
  %v1981 = vadd.f32 %v1968, %v1980
  %v1982 = vpop.f32.mrf.mxu0
  %1983 = vdwg.mxu0
  %1984 = vmatpush.bf16.msra.mxu0 %v1434
  %1985 = vmatpush.bf16.msra.mxu0 %v1430
  %1986 = vmatpush.bf16.msra.mxu0 %v1426
  %1987 = vmatpush.bf16.msra.mxu0 %v1422
  %1988 = vmatpush.bf16.msra.mxu0 %v1418
  %1989 = vmatpush.bf16.msra.mxu0 %v1414
  %1990 = vmatpush.bf16.msra.mxu0 %v1410
  %1991 = vmatpush.bf16.msra.mxu0 %v1406
  %1992 = vmatmul.bf16.gmra.mxu0 %v337
  %v1993 = vpop.f32.mrf.mxu0
  %v1994 = vadd.f32 %v1981, %v1993
  %v1995 = vpop.f32.mrf.mxu0
  %1996 = vdwg.mxu0
  %1997 = vmatpush.bf16.msra.mxu0 %v1466
  %1998 = vmatpush.bf16.msra.mxu0 %v1462
  %1999 = vmatpush.bf16.msra.mxu0 %v1458
  %2000 = vmatpush.bf16.msra.mxu0 %v1454
  %2001 = vmatpush.bf16.msra.mxu0 %v1450
  %2002 = vmatpush.bf16.msra.mxu0 %v1446
  %2003 = vmatpush.bf16.msra.mxu0 %v1442
  %2004 = vmatpush.bf16.msra.mxu0 %v1438
  %2005 = vmatmul.bf16.gmra.mxu0 %v338
  %v2006 = vpop.f32.mrf.mxu0
  %v2007 = vadd.f32 %v1994, %v2006
  %v2008 = vpop.f32.mrf.mxu0
  %2009 = vdwg.mxu0
  %2010 = vmatpush.bf16.msra.mxu0 %v1498
  %2011 = vmatpush.bf16.msra.mxu0 %v1494
  %2012 = vmatpush.bf16.msra.mxu0 %v1490
  %2013 = vmatpush.bf16.msra.mxu0 %v1486
  %2014 = vmatpush.bf16.msra.mxu0 %v1482
  %2015 = vmatpush.bf16.msra.mxu0 %v1478
  %2016 = vmatpush.bf16.msra.mxu0 %v1474
  %2017 = vmatpush.bf16.msra.mxu0 %v1470
  %2018 = vmatmul.bf16.gmra.mxu0 %v339
  %v2019 = vpop.f32.mrf.mxu0
  %v2020 = vadd.f32 %v2007, %v2019
  %v2021 = vpop.f32.mrf.mxu0
  %2022 = vdwg.mxu0
  %2023 = vmatpush.bf16.msra.mxu0 %v1243
  %2024 = vmatpush.bf16.msra.mxu0 %v1239
  %2025 = vmatpush.bf16.msra.mxu0 %v1235
  %2026 = vmatpush.bf16.msra.mxu0 %v1231
  %2027 = vmatpush.bf16.msra.mxu0 %v1227
  %2028 = vmatpush.bf16.msra.mxu0 %v1223
  %2029 = vmatpush.bf16.msra.mxu0 %v1219
  %2030 = vmatpush.bf16.msra.mxu0 %v1215
  %2031 = vmatmul.bf16.gmra.mxu0 %v331
  %v2032 = vpop.f32.mrf.mxu0
  %v2033 = vadd.f32 %v311, %v2032
  %v2034 = vpop.f32.mrf.mxu0
  %2035 = vdwg.mxu0
  %2036 = vmatpush.bf16.msra.mxu0 %v1275
  %2037 = vmatpush.bf16.msra.mxu0 %v1271
  %2038 = vmatpush.bf16.msra.mxu0 %v1267
  %2039 = vmatpush.bf16.msra.mxu0 %v1263
  %2040 = vmatpush.bf16.msra.mxu0 %v1259
  %2041 = vmatpush.bf16.msra.mxu0 %v1255
  %2042 = vmatpush.bf16.msra.mxu0 %v1251
  %2043 = vmatpush.bf16.msra.mxu0 %v1247
  %2044 = vmatmul.bf16.gmra.mxu0 %v332
  %v2045 = vpop.f32.mrf.mxu0
  %v2046 = vadd.f32 %v2033, %v2045
  %v2047 = vpop.f32.mrf.mxu0
  %2048 = vdwg.mxu0
  %2049 = vmatpush.bf16.msra.mxu0 %v1307
  %2050 = vmatpush.bf16.msra.mxu0 %v1303
  %2051 = vmatpush.bf16.msra.mxu0 %v1299
  %2052 = vmatpush.bf16.msra.mxu0 %v1295
  %2053 = vmatpush.bf16.msra.mxu0 %v1291
  %2054 = vmatpush.bf16.msra.mxu0 %v1287
  %2055 = vmatpush.bf16.msra.mxu0 %v1283
  %2056 = vmatpush.bf16.msra.mxu0 %v1279
  %2057 = vmatmul.bf16.gmra.mxu0 %v333
  %v2058 = vpop.f32.mrf.mxu0
  %v2059 = vadd.f32 %v2046, %v2058
  %v2060 = vpop.f32.mrf.mxu0
  %2061 = vdwg.mxu0
  %2062 = vmatpush.bf16.msra.mxu0 %v1339
  %2063 = vmatpush.bf16.msra.mxu0 %v1335
  %2064 = vmatpush.bf16.msra.mxu0 %v1331
  %2065 = vmatpush.bf16.msra.mxu0 %v1327
  %2066 = vmatpush.bf16.msra.mxu0 %v1323
  %2067 = vmatpush.bf16.msra.mxu0 %v1319
  %2068 = vmatpush.bf16.msra.mxu0 %v1315
  %2069 = vmatpush.bf16.msra.mxu0 %v1311
  %2070 = vmatmul.bf16.gmra.mxu0 %v334
  %v2071 = vpop.f32.mrf.mxu0
  %v2072 = vadd.f32 %v2059, %v2071
  %v2073 = vpop.f32.mrf.mxu0
  %2074 = vdwg.mxu0
  %2075 = vmatpush.bf16.msra.mxu0 %v1371
  %2076 = vmatpush.bf16.msra.mxu0 %v1367
  %2077 = vmatpush.bf16.msra.mxu0 %v1363
  %2078 = vmatpush.bf16.msra.mxu0 %v1359
  %2079 = vmatpush.bf16.msra.mxu0 %v1355
  %2080 = vmatpush.bf16.msra.mxu0 %v1351
  %2081 = vmatpush.bf16.msra.mxu0 %v1347
  %2082 = vmatpush.bf16.msra.mxu0 %v1343
  %2083 = vmatmul.bf16.gmra.mxu0 %v335
  %v2084 = vpop.f32.mrf.mxu0
  %v2085 = vadd.f32 %v2072, %v2084
  %v2086 = vpop.f32.mrf.mxu0
  %2087 = vdwg.mxu0
  %2088 = vmatpush.bf16.msra.mxu0 %v1403
  %2089 = vmatpush.bf16.msra.mxu0 %v1399
  %2090 = vmatpush.bf16.msra.mxu0 %v1395
  %2091 = vmatpush.bf16.msra.mxu0 %v1391
  %2092 = vmatpush.bf16.msra.mxu0 %v1387
  %2093 = vmatpush.bf16.msra.mxu0 %v1383
  %2094 = vmatpush.bf16.msra.mxu0 %v1379
  %2095 = vmatpush.bf16.msra.mxu0 %v1375
  %2096 = vmatmul.bf16.gmra.mxu0 %v336
  %v2097 = vpop.f32.mrf.mxu0
  %v2098 = vadd.f32 %v2085, %v2097
  %v2099 = vpop.f32.mrf.mxu0
  %2100 = vdwg.mxu0
  %2101 = vmatpush.bf16.msra.mxu0 %v1435
  %2102 = vmatpush.bf16.msra.mxu0 %v1431
  %2103 = vmatpush.bf16.msra.mxu0 %v1427
  %2104 = vmatpush.bf16.msra.mxu0 %v1423
  %2105 = vmatpush.bf16.msra.mxu0 %v1419
  %2106 = vmatpush.bf16.msra.mxu0 %v1415
  %2107 = vmatpush.bf16.msra.mxu0 %v1411
  %2108 = vmatpush.bf16.msra.mxu0 %v1407
  %2109 = vmatmul.bf16.gmra.mxu0 %v337
  %v2110 = vpop.f32.mrf.mxu0
  %v2111 = vadd.f32 %v2098, %v2110
  %v2112 = vpop.f32.mrf.mxu0
  %2113 = vdwg.mxu0
  %2114 = vmatpush.bf16.msra.mxu0 %v1467
  %2115 = vmatpush.bf16.msra.mxu0 %v1463
  %2116 = vmatpush.bf16.msra.mxu0 %v1459
  %2117 = vmatpush.bf16.msra.mxu0 %v1455
  %2118 = vmatpush.bf16.msra.mxu0 %v1451
  %2119 = vmatpush.bf16.msra.mxu0 %v1447
  %2120 = vmatpush.bf16.msra.mxu0 %v1443
  %2121 = vmatpush.bf16.msra.mxu0 %v1439
  %2122 = vmatmul.bf16.gmra.mxu0 %v338
  %v2123 = vpop.f32.mrf.mxu0
  %v2124 = vadd.f32 %v2111, %v2123
  %v2125 = vpop.f32.mrf.mxu0
  %2126 = vdwg.mxu0
  %2127 = vmatpush.bf16.msra.mxu0 %v1499
  %2128 = vmatpush.bf16.msra.mxu0 %v1495
  %2129 = vmatpush.bf16.msra.mxu0 %v1491
  %2130 = vmatpush.bf16.msra.mxu0 %v1487
  %2131 = vmatpush.bf16.msra.mxu0 %v1483
  %2132 = vmatpush.bf16.msra.mxu0 %v1479
  %2133 = vmatpush.bf16.msra.mxu0 %v1475
  %2134 = vmatpush.bf16.msra.mxu0 %v1471
  %2135 = vmatmul.bf16.gmra.mxu0 %v339
  %v2136 = vpop.f32.mrf.mxu0
  %v2137 = vadd.f32 %v2124, %v2136
  %v2138 = vpop.f32.mrf.mxu0
  %2139 = vdwg.mxu0
  %2140 = vmatpush.bf16.msra.mxu0 %v1244
  %2141 = vmatpush.bf16.msra.mxu0 %v1240
  %2142 = vmatpush.bf16.msra.mxu0 %v1236
  %2143 = vmatpush.bf16.msra.mxu0 %v1232
  %2144 = vmatpush.bf16.msra.mxu0 %v1228
  %2145 = vmatpush.bf16.msra.mxu0 %v1224
  %2146 = vmatpush.bf16.msra.mxu0 %v1220
  %2147 = vmatpush.bf16.msra.mxu0 %v1216
  %2148 = vmatmul.bf16.gmra.mxu0 %v331
  %v2149 = vpop.f32.mrf.mxu0
  %v2150 = vadd.f32 %v312, %v2149
  %v2151 = vpop.f32.mrf.mxu0
  %2152 = vdwg.mxu0
  %2153 = vmatpush.bf16.msra.mxu0 %v1276
  %2154 = vmatpush.bf16.msra.mxu0 %v1272
  %2155 = vmatpush.bf16.msra.mxu0 %v1268
  %2156 = vmatpush.bf16.msra.mxu0 %v1264
  %2157 = vmatpush.bf16.msra.mxu0 %v1260
  %2158 = vmatpush.bf16.msra.mxu0 %v1256
  %2159 = vmatpush.bf16.msra.mxu0 %v1252
  %2160 = vmatpush.bf16.msra.mxu0 %v1248
  %2161 = vmatmul.bf16.gmra.mxu0 %v332
  %v2162 = vpop.f32.mrf.mxu0
  %v2163 = vadd.f32 %v2150, %v2162
  %v2164 = vpop.f32.mrf.mxu0
  %2165 = vdwg.mxu0
  %2166 = vmatpush.bf16.msra.mxu0 %v1308
  %2167 = vmatpush.bf16.msra.mxu0 %v1304
  %2168 = vmatpush.bf16.msra.mxu0 %v1300
  %2169 = vmatpush.bf16.msra.mxu0 %v1296
  %2170 = vmatpush.bf16.msra.mxu0 %v1292
  %2171 = vmatpush.bf16.msra.mxu0 %v1288
  %2172 = vmatpush.bf16.msra.mxu0 %v1284
  %2173 = vmatpush.bf16.msra.mxu0 %v1280
  %2174 = vmatmul.bf16.gmra.mxu0 %v333
  %v2175 = vpop.f32.mrf.mxu0
  %v2176 = vadd.f32 %v2163, %v2175
  %v2177 = vpop.f32.mrf.mxu0
  %2178 = vdwg.mxu0
  %2179 = vmatpush.bf16.msra.mxu0 %v1340
  %2180 = vmatpush.bf16.msra.mxu0 %v1336
  %2181 = vmatpush.bf16.msra.mxu0 %v1332
  %2182 = vmatpush.bf16.msra.mxu0 %v1328
  %2183 = vmatpush.bf16.msra.mxu0 %v1324
  %2184 = vmatpush.bf16.msra.mxu0 %v1320
  %2185 = vmatpush.bf16.msra.mxu0 %v1316
  %2186 = vmatpush.bf16.msra.mxu0 %v1312
  %2187 = vmatmul.bf16.gmra.mxu0 %v334
  %v2188 = vpop.f32.mrf.mxu0
  %v2189 = vadd.f32 %v2176, %v2188
  %v2190 = vpop.f32.mrf.mxu0
  %2191 = vdwg.mxu0
  %2192 = vmatpush.bf16.msra.mxu0 %v1372
  %2193 = vmatpush.bf16.msra.mxu0 %v1368
  %2194 = vmatpush.bf16.msra.mxu0 %v1364
  %2195 = vmatpush.bf16.msra.mxu0 %v1360
  %2196 = vmatpush.bf16.msra.mxu0 %v1356
  %2197 = vmatpush.bf16.msra.mxu0 %v1352
  %2198 = vmatpush.bf16.msra.mxu0 %v1348
  %2199 = vmatpush.bf16.msra.mxu0 %v1344
  %2200 = vmatmul.bf16.gmra.mxu0 %v335
  %v2201 = vpop.f32.mrf.mxu0
  %v2202 = vadd.f32 %v2189, %v2201
  %v2203 = vpop.f32.mrf.mxu0
  %2204 = vdwg.mxu0
  %2205 = vmatpush.bf16.msra.mxu0 %v1404
  %2206 = vmatpush.bf16.msra.mxu0 %v1400
  %2207 = vmatpush.bf16.msra.mxu0 %v1396
  %2208 = vmatpush.bf16.msra.mxu0 %v1392
  %2209 = vmatpush.bf16.msra.mxu0 %v1388
  %2210 = vmatpush.bf16.msra.mxu0 %v1384
  %2211 = vmatpush.bf16.msra.mxu0 %v1380
  %2212 = vmatpush.bf16.msra.mxu0 %v1376
  %2213 = vmatmul.bf16.gmra.mxu0 %v336
  %v2214 = vpop.f32.mrf.mxu0
  %v2215 = vadd.f32 %v2202, %v2214
  %v2216 = vpop.f32.mrf.mxu0
  %2217 = vdwg.mxu0
  %2218 = vmatpush.bf16.msra.mxu0 %v1436
  %2219 = vmatpush.bf16.msra.mxu0 %v1432
  %2220 = vmatpush.bf16.msra.mxu0 %v1428
  %2221 = vmatpush.bf16.msra.mxu0 %v1424
  %2222 = vmatpush.bf16.msra.mxu0 %v1420
  %2223 = vmatpush.bf16.msra.mxu0 %v1416
  %2224 = vmatpush.bf16.msra.mxu0 %v1412
  %2225 = vmatpush.bf16.msra.mxu0 %v1408
  %2226 = vmatmul.bf16.gmra.mxu0 %v337
  %v2227 = vpop.f32.mrf.mxu0
  %v2228 = vadd.f32 %v2215, %v2227
  %v2229 = vpop.f32.mrf.mxu0
  %2230 = vdwg.mxu0
  %2231 = vmatpush.bf16.msra.mxu0 %v1468
  %2232 = vmatpush.bf16.msra.mxu0 %v1464
  %2233 = vmatpush.bf16.msra.mxu0 %v1460
  %2234 = vmatpush.bf16.msra.mxu0 %v1456
  %2235 = vmatpush.bf16.msra.mxu0 %v1452
  %2236 = vmatpush.bf16.msra.mxu0 %v1448
  %2237 = vmatpush.bf16.msra.mxu0 %v1444
  %2238 = vmatpush.bf16.msra.mxu0 %v1440
  %2239 = vmatmul.bf16.gmra.mxu0 %v338
  %v2240 = vpop.f32.mrf.mxu0
  %v2241 = vadd.f32 %v2228, %v2240
  %v2242 = vpop.f32.mrf.mxu0
  %2243 = vdwg.mxu0
  %2244 = vmatpush.bf16.msra.mxu0 %v1500
  %2245 = vmatpush.bf16.msra.mxu0 %v1496
  %2246 = vmatpush.bf16.msra.mxu0 %v1492
  %2247 = vmatpush.bf16.msra.mxu0 %v1488
  %2248 = vmatpush.bf16.msra.mxu0 %v1484
  %2249 = vmatpush.bf16.msra.mxu0 %v1480
  %2250 = vmatpush.bf16.msra.mxu0 %v1476
  %2251 = vmatpush.bf16.msra.mxu0 %v1472
  %2252 = vmatmul.bf16.gmra.mxu0 %v339
  %v2253 = vpop.f32.mrf.mxu0
  %v2254 = vadd.f32 %v2241, %v2253
  %v2255 = vpop.f32.mrf.mxu0
  %2256 = vdwg.mxu0
  %v2257 = vmax.f32 %v1903, 0.0
  %v2258 = vmax.f32 %v2020, 0.0
  %v2259 = vmax.f32 %v2137, 0.0
  %v2260 = vmax.f32 %v2254, 0.0
  %v2261 = vpack.c.bf16 %v2258, %v2257
  %v2262 = vpack.c.bf16 %v2260, %v2259
  %2263 = vst [vmem:[%s3] sm:$0xff] %v2261
  %2264 = vst [vmem:[%s3 + $0x8] sm:$0xff] %v2262
  // Predicated region
  $region14: #{vae_forward.17} parent=0 // pred_check
    _
  $region15: #{vae_forward.17} parent=0 // pred_check_branch
    %2266 = sbr.rel (0) target = $region17
  $region16: #{vae_forward.17} parent=0 // pred_region
    _
  $region17: #{vae_forward.17} parent=0 // pred_fallthru
    _
  // Predicated region
  $region18: #{vae_forward.17} parent=0 // pred_check
    _
  $region19: #{vae_forward.17} parent=0 // pred_check_branch
    %2268 = sbr.rel (0) target = $region21
  $region20: #{vae_forward.17} parent=0 // pred_region
    _
  $region21: #{vae_forward.17} parent=0 // pred_fallthru
    _

// kernel: tile.38
$region0: #{tile.38}
  #allocation0 [shape = 's32[1]{0}', space=sflag, size = 0x4, scoped, tag = 'scoped memory for tile.38']
  %s0 = inlined_call_operand.vmem [shape: f32[64], index: 0, kind: input, shape index: {}]
  %s1 = inlined_call_operand.vmem [shape: f32[4,64], index: 1, kind: output, shape index: {}]
  // Predicated region
  $region2: #{tile.38} parent=0 // pred_check
    _
  $region3: #{tile.38} parent=0 // pred_check_branch
    %3 = sbr.rel (0) target = $region5
  $region4: #{tile.38} parent=0 // pred_region
    _
  $region5: #{tile.38} parent=0 // pred_fallthru
    _
  %v4 = vld [vmem:[%s0] ss:$0 sm:$0xff]
  %5 = vst [vmem:[%s1] sm:$0xf] %v4

// kernel: vae_forward.18
$region0: #{vae_forward.18}
  #allocation0 [shape = 'u32[]', space=smem, size = 0x4, offset = 0x4, fixed_abs, tag = 'smem constant byte address 0x4 - core index']
  #allocation1 [shape = 'u32[72,128]{1,0:T(1,128)}', space=vmem, size = 0x9000, scoped, tag = 'internal scratch']
  %s0 = inlined_call_operand.vmem [shape: bf16[8,1152], index: 0, kind: input, shape index: {}]
  %s1 = inlined_call_operand.vmem [shape: bf16[1152,512], index: 1, kind: input, shape index: {}]
  %s2 = inlined_call_operand.vmem [shape: f32[1,512], index: 2, kind: input, shape index: {}]
  %s3 = inlined_call_operand.vmem [shape: bf16[8,512], index: 3, kind: output, shape index: {}]
  %s4 = sld [smem:[#allocation0]]
  $region22: #{vae_forward.18} parent=0
    _
  %s6 = ssub.s32 1, %s4
  %s7 = scalar_select 0, %s6, %s4
  // Predicated region
  $region2: #{vae_forward.18} parent=0 // pred_check
    _
  $region3: #{vae_forward.18} parent=0 // pred_check_branch
    %9 = sbr.rel (0) target = $region5
  $region4: #{vae_forward.18} parent=0 // pred_region
    _
  $region5: #{vae_forward.18} parent=0 // pred_fallthru
    _
  // Predicated region
  $region6: #{vae_forward.18} parent=0 // pred_check
    _
  $region7: #{vae_forward.18} parent=0 // pred_check_branch
    %11 = sbr.rel (0) target = $region9
  $region8: #{vae_forward.18} parent=0 // pred_region
    _
  $region9: #{vae_forward.18} parent=0 // pred_fallthru
    _
  // Predicated region
  $region10: #{vae_forward.18} parent=0 // pred_check
    _
  $region11: #{vae_forward.18} parent=0 // pred_check_branch
    %13 = sbr.rel (0) target = $region13
  $region12: #{vae_forward.18} parent=0 // pred_region
    _
  $region13: #{vae_forward.18} parent=0 // pred_fallthru
    _
  %v14 = vld [vmem:[%s0] sm:$0xff]
  %v15 = vld [vmem:[%s0 + $0x8] sm:$0xff]
  %v16 = vld [vmem:[%s0 + $0x10] sm:$0xff]
  %v17 = vld [vmem:[%s0 + $0x18] sm:$0xff]
  %v18 = vld [vmem:[%s0 + $0x20] sm:$0xf]
  %v19 = vld [vmem:[%s1] sm:$0xff]
  %v20 = vld [vmem:[%s1 + $0x8] sm:$0xff]
  %v21 = vld [vmem:[%s1 + $0x10] sm:$0xff]
  %v22 = vld [vmem:[%s1 + $0x18] sm:$0xff]
  %v23 = vld [vmem:[%s1 + $0x20] sm:$0xff]
  %v24 = vld [vmem:[%s1 + $0x28] sm:$0xff]
  %v25 = vld [vmem:[%s1 + $0x30] sm:$0xff]
  %v26 = vld [vmem:[%s1 + $0x38] sm:$0xff]
  %v27 = vld [vmem:[%s1 + $0x40] sm:$0xff]
  %v28 = vld [vmem:[%s1 + $0x48] sm:$0xff]
  %v29 = vld [vmem:[%s1 + $0x50] sm:$0xff]
  %v30 = vld [vmem:[%s1 + $0x58] sm:$0xff]
  %v31 = vld [vmem:[%s1 + $0x60] sm:$0xff]
  %v32 = vld [vmem:[%s1 + $0x68] sm:$0xff]
  %v33 = vld [vmem:[%s1 + $0x70] sm:$0xff]
  %v34 = vld [vmem:[%s1 + $0x78] sm:$0xff]
  %v35 = vld [vmem:[%s1 + $0x80] sm:$0xff]
  %v36 = vld [vmem:[%s1 + $0x88] sm:$0xff]
  %v37 = vld [vmem:[%s1 + $0x90] sm:$0xff]
  %v38 = vld [vmem:[%s1 + $0x98] sm:$0xff]
  %v39 = vld [vmem:[%s1 + $0xa0] sm:$0xff]
  %v40 = vld [vmem:[%s1 + $0xa8] sm:$0xff]
  %v41 = vld [vmem:[%s1 + $0xb0] sm:$0xff]
  %v42 = vld [vmem:[%s1 + $0xb8] sm:$0xff]
  %v43 = vld [vmem:[%s1 + $0xc0] sm:$0xff]
  %v44 = vld [vmem:[%s1 + $0xc8] sm:$0xff]
  %v45 = vld [vmem:[%s1 + $0xd0] sm:$0xff]
  %v46 = vld [vmem:[%s1 + $0xd8] sm:$0xff]
  %v47 = vld [vmem:[%s1 + $0xe0] sm:$0xff]
  %v48 = vld [vmem:[%s1 + $0xe8] sm:$0xff]
  %v49 = vld [vmem:[%s1 + $0xf0] sm:$0xff]
  %v50 = vld [vmem:[%s1 + $0xf8] sm:$0xff]
  %v51 = vld [vmem:[%s1 + $0x100] sm:$0xff]
  %v52 = vld [vmem:[%s1 + $0x108] sm:$0xff]
  %v53 = vld [vmem:[%s1 + $0x110] sm:$0xff]
  %v54 = vld [vmem:[%s1 + $0x118] sm:$0xff]
  %v55 = vld [vmem:[%s1 + $0x120] sm:$0xff]
  %v56 = vld [vmem:[%s1 + $0x128] sm:$0xff]
  %v57 = vld [vmem:[%s1 + $0x130] sm:$0xff]
  %v58 = vld [vmem:[%s1 + $0x138] sm:$0xff]
  %v59 = vld [vmem:[%s1 + $0x140] sm:$0xff]
  %v60 = vld [vmem:[%s1 + $0x148] sm:$0xff]
  %v61 = vld [vmem:[%s1 + $0x150] sm:$0xff]
  %v62 = vld [vmem:[%s1 + $0x158] sm:$0xff]
  %v63 = vld [vmem:[%s1 + $0x160] sm:$0xff]
  %v64 = vld [vmem:[%s1 + $0x168] sm:$0xff]
  %v65 = vld [vmem:[%s1 + $0x170] sm:$0xff]
  %v66 = vld [vmem:[%s1 + $0x178] sm:$0xff]
  %v67 = vld [vmem:[%s1 + $0x180] sm:$0xff]
  %v68 = vld [vmem:[%s1 + $0x188] sm:$0xff]
  %v69 = vld [vmem:[%s1 + $0x190] sm:$0xff]
  %v70 = vld [vmem:[%s1 + $0x198] sm:$0xff]
  %v71 = vld [vmem:[%s1 + $0x1a0] sm:$0xff]
  %v72 = vld [vmem:[%s1 + $0x1a8] sm:$0xff]
  %v73 = vld [vmem:[%s1 + $0x1b0] sm:$0xff]
  %v74 = vld [vmem:[%s1 + $0x1b8] sm:$0xff]
  %v75 = vld [vmem:[%s1 + $0x1c0] sm:$0xff]
  %v76 = vld [vmem:[%s1 + $0x1c8] sm:$0xff]
  %v77 = vld [vmem:[%s1 + $0x1d0] sm:$0xff]
  %v78 = vld [vmem:[%s1 + $0x1d8] sm:$0xff]
  %v79 = vld [vmem:[%s1 + $0x1e0] sm:$0xff]
  %v80 = vld [vmem:[%s1 + $0x1e8] sm:$0xff]
  %v81 = vld [vmem:[%s1 + $0x1f0] sm:$0xff]
  %v82 = vld [vmem:[%s1 + $0x1f8] sm:$0xff]
  %v83 = vld [vmem:[%s1 + $0x200] sm:$0xff]
  %v84 = vld [vmem:[%s1 + $0x208] sm:$0xff]
  %v85 = vld [vmem:[%s1 + $0x210] sm:$0xff]
  %v86 = vld [vmem:[%s1 + $0x218] sm:$0xff]
  %v87 = vld [vmem:[%s1 + $0x220] sm:$0xff]
  %v88 = vld [vmem:[%s1 + $0x228] sm:$0xff]
  %v89 = vld [vmem:[%s1 + $0x230] sm:$0xff]
  %v90 = vld [vmem:[%s1 + $0x238] sm:$0xff]
  %v91 = vld [vmem:[%s1 + $0x240] sm:$0xff]
  %v92 = vld [vmem:[%s1 + $0x248] sm:$0xff]
  %v93 = vld [vmem:[%s1 + $0x250] sm:$0xff]
  %v94 = vld [vmem:[%s1 + $0x258] sm:$0xff]
  %v95 = vld [vmem:[%s1 + $0x260] sm:$0xff]
  %v96 = vld [vmem:[%s1 + $0x268] sm:$0xff]
  %v97 = vld [vmem:[%s1 + $0x270] sm:$0xff]
  %v98 = vld [vmem:[%s1 + $0x278] sm:$0xff]
  %v99 = vld [vmem:[%s1 + $0x280] sm:$0xff]
  %v100 = vld [vmem:[%s1 + $0x288] sm:$0xff]
  %v101 = vld [vmem:[%s1 + $0x290] sm:$0xff]
  %v102 = vld [vmem:[%s1 + $0x298] sm:$0xff]
  %v103 = vld [vmem:[%s1 + $0x2a0] sm:$0xff]
  %v104 = vld [vmem:[%s1 + $0x2a8] sm:$0xff]
  %v105 = vld [vmem:[%s1 + $0x2b0] sm:$0xff]
  %v106 = vld [vmem:[%s1 + $0x2b8] sm:$0xff]
  %v107 = vld [vmem:[%s1 + $0x2c0] sm:$0xff]
  %v108 = vld [vmem:[%s1 + $0x2c8] sm:$0xff]
  %v109 = vld [vmem:[%s1 + $0x2d0] sm:$0xff]
  %v110 = vld [vmem:[%s1 + $0x2d8] sm:$0xff]
  %v111 = vld [vmem:[%s1 + $0x2e0] sm:$0xff]
  %v112 = vld [vmem:[%s1 + $0x2e8] sm:$0xff]
  %v113 = vld [vmem:[%s1 + $0x2f0] sm:$0xff]
  %v114 = vld [vmem:[%s1 + $0x2f8] sm:$0xff]
  %v115 = vld [vmem:[%s1 + $0x300] sm:$0xff]
  %v116 = vld [vmem:[%s1 + $0x308] sm:$0xff]
  %v117 = vld [vmem:[%s1 + $0x310] sm:$0xff]
  %v118 = vld [vmem:[%s1 + $0x318] sm:$0xff]
  %v119 = vld [vmem:[%s1 + $0x320] sm:$0xff]
  %v120 = vld [vmem:[%s1 + $0x328] sm:$0xff]
  %v121 = vld [vmem:[%s1 + $0x330] sm:$0xff]
  %v122 = vld [vmem:[%s1 + $0x338] sm:$0xff]
  %v123 = vld [vmem:[%s1 + $0x340] sm:$0xff]
  %v124 = vld [vmem:[%s1 + $0x348] sm:$0xff]
  %v125 = vld [vmem:[%s1 + $0x350] sm:$0xff]
  %v126 = vld [vmem:[%s1 + $0x358] sm:$0xff]
  %v127 = vld [vmem:[%s1 + $0x360] sm:$0xff]
  %v128 = vld [vmem:[%s1 + $0x368] sm:$0xff]
  %v129 = vld [vmem:[%s1 + $0x370] sm:$0xff]
  %v130 = vld [vmem:[%s1 + $0x378] sm:$0xff]
  %v131 = vld [vmem:[%s1 + $0x380] sm:$0xff]
  %v132 = vld [vmem:[%s1 + $0x388] sm:$0xff]
  %v133 = vld [vmem:[%s1 + $0x390] sm:$0xff]
  %v134 = vld [vmem:[%s1 + $0x398] sm:$0xff]
  %v135 = vld [vmem:[%s1 + $0x3a0] sm:$0xff]
  %v136 = vld [vmem:[%s1 + $0x3a8] sm:$0xff]
  %v137 = vld [vmem:[%s1 + $0x3b0] sm:$0xff]
  %v138 = vld [vmem:[%s1 + $0x3b8] sm:$0xff]
  %v139 = vld [vmem:[%s1 + $0x3c0] sm:$0xff]
  %v140 = vld [vmem:[%s1 + $0x3c8] sm:$0xff]
  %v141 = vld [vmem:[%s1 + $0x3d0] sm:$0xff]
  %v142 = vld [vmem:[%s1 + $0x3d8] sm:$0xff]
  %v143 = vld [vmem:[%s1 + $0x3e0] sm:$0xff]
  %v144 = vld [vmem:[%s1 + $0x3e8] sm:$0xff]
  %v145 = vld [vmem:[%s1 + $0x3f0] sm:$0xff]
  %v146 = vld [vmem:[%s1 + $0x3f8] sm:$0xff]
  %v147 = vld [vmem:[%s1 + $0x400] sm:$0xff]
  %v148 = vld [vmem:[%s1 + $0x408] sm:$0xff]
  %v149 = vld [vmem:[%s1 + $0x410] sm:$0xff]
  %v150 = vld [vmem:[%s1 + $0x418] sm:$0xff]
  %v151 = vld [vmem:[%s1 + $0x420] sm:$0xff]
  %v152 = vld [vmem:[%s1 + $0x428] sm:$0xff]
  %v153 = vld [vmem:[%s1 + $0x430] sm:$0xff]
  %v154 = vld [vmem:[%s1 + $0x438] sm:$0xff]
  %v155 = vld [vmem:[%s1 + $0x440] sm:$0xff]
  %v156 = vld [vmem:[%s1 + $0x448] sm:$0xff]
  %v157 = vld [vmem:[%s1 + $0x450] sm:$0xff]
  %v158 = vld [vmem:[%s1 + $0x458] sm:$0xff]
  %v159 = vld [vmem:[%s1 + $0x460] sm:$0xff]
  %v160 = vld [vmem:[%s1 + $0x468] sm:$0xff]
  %v161 = vld [vmem:[%s1 + $0x470] sm:$0xff]
  %v162 = vld [vmem:[%s1 + $0x478] sm:$0xff]
  %v163 = vld [vmem:[%s1 + $0x480] sm:$0xff]
  %v164 = vld [vmem:[%s1 + $0x488] sm:$0xff]
  %v165 = vld [vmem:[%s1 + $0x490] sm:$0xff]
  %v166 = vld [vmem:[%s1 + $0x498] sm:$0xff]
  %v167 = vld [vmem:[%s1 + $0x4a0] sm:$0xff]
  %v168 = vld [vmem:[%s1 + $0x4a8] sm:$0xff]
  %v169 = vld [vmem:[%s1 + $0x4b0] sm:$0xff]
  %v170 = vld [vmem:[%s1 + $0x4b8] sm:$0xff]
  %v171 = vld [vmem:[%s1 + $0x4c0] sm:$0xff]
  %v172 = vld [vmem:[%s1 + $0x4c8] sm:$0xff]
  %v173 = vld [vmem:[%s1 + $0x4d0] sm:$0xff]
  %v174 = vld [vmem:[%s1 + $0x4d8] sm:$0xff]
  %v175 = vld [vmem:[%s1 + $0x4e0] sm:$0xff]
  %v176 = vld [vmem:[%s1 + $0x4e8] sm:$0xff]
  %v177 = vld [vmem:[%s1 + $0x4f0] sm:$0xff]
  %v178 = vld [vmem:[%s1 + $0x4f8] sm:$0xff]
  %v179 = vld [vmem:[%s1 + $0x500] sm:$0xff]
  %v180 = vld [vmem:[%s1 + $0x508] sm:$0xff]
  %v181 = vld [vmem:[%s1 + $0x510] sm:$0xff]
  %v182 = vld [vmem:[%s1 + $0x518] sm:$0xff]
  %v183 = vld [vmem:[%s1 + $0x520] sm:$0xff]
  %v184 = vld [vmem:[%s1 + $0x528] sm:$0xff]
  %v185 = vld [vmem:[%s1 + $0x530] sm:$0xff]
  %v186 = vld [vmem:[%s1 + $0x538] sm:$0xff]
  %v187 = vld [vmem:[%s1 + $0x540] sm:$0xff]
  %v188 = vld [vmem:[%s1 + $0x548] sm:$0xff]
  %v189 = vld [vmem:[%s1 + $0x550] sm:$0xff]
  %v190 = vld [vmem:[%s1 + $0x558] sm:$0xff]
  %v191 = vld [vmem:[%s1 + $0x560] sm:$0xff]
  %v192 = vld [vmem:[%s1 + $0x568] sm:$0xff]
  %v193 = vld [vmem:[%s1 + $0x570] sm:$0xff]
  %v194 = vld [vmem:[%s1 + $0x578] sm:$0xff]
  %v195 = vld [vmem:[%s1 + $0x580] sm:$0xff]
  %v196 = vld [vmem:[%s1 + $0x588] sm:$0xff]
  %v197 = vld [vmem:[%s1 + $0x590] sm:$0xff]
  %v198 = vld [vmem:[%s1 + $0x598] sm:$0xff]
  %v199 = vld [vmem:[%s1 + $0x5a0] sm:$0xff]
  %v200 = vld [vmem:[%s1 + $0x5a8] sm:$0xff]
  %v201 = vld [vmem:[%s1 + $0x5b0] sm:$0xff]
  %v202 = vld [vmem:[%s1 + $0x5b8] sm:$0xff]
  %v203 = vld [vmem:[%s1 + $0x5c0] sm:$0xff]
  %v204 = vld [vmem:[%s1 + $0x5c8] sm:$0xff]
  %v205 = vld [vmem:[%s1 + $0x5d0] sm:$0xff]
  %v206 = vld [vmem:[%s1 + $0x5d8] sm:$0xff]
  %v207 = vld [vmem:[%s1 + $0x5e0] sm:$0xff]
  %v208 = vld [vmem:[%s1 + $0x5e8] sm:$0xff]
  %v209 = vld [vmem:[%s1 + $0x5f0] sm:$0xff]
  %v210 = vld [vmem:[%s1 + $0x5f8] sm:$0xff]
  %v211 = vld [vmem:[%s1 + $0x600] sm:$0xff]
  %v212 = vld [vmem:[%s1 + $0x608] sm:$0xff]
  %v213 = vld [vmem:[%s1 + $0x610] sm:$0xff]
  %v214 = vld [vmem:[%s1 + $0x618] sm:$0xff]
  %v215 = vld [vmem:[%s1 + $0x620] sm:$0xff]
  %v216 = vld [vmem:[%s1 + $0x628] sm:$0xff]
  %v217 = vld [vmem:[%s1 + $0x630] sm:$0xff]
  %v218 = vld [vmem:[%s1 + $0x638] sm:$0xff]
  %v219 = vld [vmem:[%s1 + $0x640] sm:$0xff]
  %v220 = vld [vmem:[%s1 + $0x648] sm:$0xff]
  %v221 = vld [vmem:[%s1 + $0x650] sm:$0xff]
  %v222 = vld [vmem:[%s1 + $0x658] sm:$0xff]
  %v223 = vld [vmem:[%s1 + $0x660] sm:$0xff]
  %v224 = vld [vmem:[%s1 + $0x668] sm:$0xff]
  %v225 = vld [vmem:[%s1 + $0x670] sm:$0xff]
  %v226 = vld [vmem:[%s1 + $0x678] sm:$0xff]
  %v227 = vld [vmem:[%s1 + $0x680] sm:$0xff]
  %v228 = vld [vmem:[%s1 + $0x688] sm:$0xff]
  %v229 = vld [vmem:[%s1 + $0x690] sm:$0xff]
  %v230 = vld [vmem:[%s1 + $0x698] sm:$0xff]
  %v231 = vld [vmem:[%s1 + $0x6a0] sm:$0xff]
  %v232 = vld [vmem:[%s1 + $0x6a8] sm:$0xff]
  %v233 = vld [vmem:[%s1 + $0x6b0] sm:$0xff]
  %v234 = vld [vmem:[%s1 + $0x6b8] sm:$0xff]
  %v235 = vld [vmem:[%s1 + $0x6c0] sm:$0xff]
  %v236 = vld [vmem:[%s1 + $0x6c8] sm:$0xff]
  %v237 = vld [vmem:[%s1 + $0x6d0] sm:$0xff]
  %v238 = vld [vmem:[%s1 + $0x6d8] sm:$0xff]
  %v239 = vld [vmem:[%s1 + $0x6e0] sm:$0xff]
  %v240 = vld [vmem:[%s1 + $0x6e8] sm:$0xff]
  %v241 = vld [vmem:[%s1 + $0x6f0] sm:$0xff]
  %v242 = vld [vmem:[%s1 + $0x6f8] sm:$0xff]
  %v243 = vld [vmem:[%s1 + $0x700] sm:$0xff]
  %v244 = vld [vmem:[%s1 + $0x708] sm:$0xff]
  %v245 = vld [vmem:[%s1 + $0x710] sm:$0xff]
  %v246 = vld [vmem:[%s1 + $0x718] sm:$0xff]
  %v247 = vld [vmem:[%s1 + $0x720] sm:$0xff]
  %v248 = vld [vmem:[%s1 + $0x728] sm:$0xff]
  %v249 = vld [vmem:[%s1 + $0x730] sm:$0xff]
  %v250 = vld [vmem:[%s1 + $0x738] sm:$0xff]
  %v251 = vld [vmem:[%s1 + $0x740] sm:$0xff]
  %v252 = vld [vmem:[%s1 + $0x748] sm:$0xff]
  %v253 = vld [vmem:[%s1 + $0x750] sm:$0xff]
  %v254 = vld [vmem:[%s1 + $0x758] sm:$0xff]
  %v255 = vld [vmem:[%s1 + $0x760] sm:$0xff]
  %v256 = vld [vmem:[%s1 + $0x768] sm:$0xff]
  %v257 = vld [vmem:[%s1 + $0x770] sm:$0xff]
  %v258 = vld [vmem:[%s1 + $0x778] sm:$0xff]
  %v259 = vld [vmem:[%s1 + $0x780] sm:$0xff]
  %v260 = vld [vmem:[%s1 + $0x788] sm:$0xff]
  %v261 = vld [vmem:[%s1 + $0x790] sm:$0xff]
  %v262 = vld [vmem:[%s1 + $0x798] sm:$0xff]
  %v263 = vld [vmem:[%s1 + $0x7a0] sm:$0xff]
  %v264 = vld [vmem:[%s1 + $0x7a8] sm:$0xff]
  %v265 = vld [vmem:[%s1 + $0x7b0] sm:$0xff]
  %v266 = vld [vmem:[%s1 + $0x7b8] sm:$0xff]
  %v267 = vld [vmem:[%s1 + $0x7c0] sm:$0xff]
  %v268 = vld [vmem:[%s1 + $0x7c8] sm:$0xff]
  %v269 = vld [vmem:[%s1 + $0x7d0] sm:$0xff]
  %v270 = vld [vmem:[%s1 + $0x7d8] sm:$0xff]
  %v271 = vld [vmem:[%s1 + $0x7e0] sm:$0xff]
  %v272 = vld [vmem:[%s1 + $0x7e8] sm:$0xff]
  %v273 = vld [vmem:[%s1 + $0x7f0] sm:$0xff]
  %v274 = vld [vmem:[%s1 + $0x7f8] sm:$0xff]
  %v275 = vld [vmem:[%s1 + $0x800] sm:$0xff]
  %v276 = vld [vmem:[%s1 + $0x808] sm:$0xff]
  %v277 = vld [vmem:[%s1 + $0x810] sm:$0xff]
  %v278 = vld [vmem:[%s1 + $0x818] sm:$0xff]
  %v279 = vld [vmem:[%s1 + $0x820] sm:$0xff]
  %v280 = vld [vmem:[%s1 + $0x828] sm:$0xff]
  %v281 = vld [vmem:[%s1 + $0x830] sm:$0xff]
  %v282 = vld [vmem:[%s1 + $0x838] sm:$0xff]
  %v283 = vld [vmem:[%s1 + $0x840] sm:$0xff]
  %v284 = vld [vmem:[%s1 + $0x848] sm:$0xff]
  %v285 = vld [vmem:[%s1 + $0x850] sm:$0xff]
  %v286 = vld [vmem:[%s1 + $0x858] sm:$0xff]
  %v287 = vld [vmem:[%s1 + $0x860] sm:$0xff]
  %v288 = vld [vmem:[%s1 + $0x868] sm:$0xff]
  %v289 = vld [vmem:[%s1 + $0x870] sm:$0xff]
  %v290 = vld [vmem:[%s1 + $0x878] sm:$0xff]
  %v291 = vld [vmem:[%s1 + $0x880] sm:$0xff]
  %v292 = vld [vmem:[%s1 + $0x888] sm:$0xff]
  %v293 = vld [vmem:[%s1 + $0x890] sm:$0xff]
  %v294 = vld [vmem:[%s1 + $0x898] sm:$0xff]
  %v295 = vld [vmem:[%s1 + $0x8a0] sm:$0xff]
  %v296 = vld [vmem:[%s1 + $0x8a8] sm:$0xff]
  %v297 = vld [vmem:[%s1 + $0x8b0] sm:$0xff]
  %v298 = vld [vmem:[%s1 + $0x8b8] sm:$0xff]
  %v299 = vld [vmem:[%s1 + $0x8c0] sm:$0xff]
  %v300 = vld [vmem:[%s1 + $0x8c8] sm:$0xff]
  %v301 = vld [vmem:[%s1 + $0x8d0] sm:$0xff]
  %v302 = vld [vmem:[%s1 + $0x8d8] sm:$0xff]
  %v303 = vld [vmem:[%s1 + $0x8e0] sm:$0xff]
  %v304 = vld [vmem:[%s1 + $0x8e8] sm:$0xff]
  %v305 = vld [vmem:[%s1 + $0x8f0] sm:$0xff]
  %v306 = vld [vmem:[%s1 + $0x8f8] sm:$0xff]
  %v307 = vld [vmem:[%s2] sm:$0xf]
  %v309 = vperm.slane %v307, 0
  %v310 = vperm.slane %v307, 1
  %v311 = vperm.slane %v307, 2
  %v312 = vperm.slane %v307, 3
  %v322 = vunpack.c.l.b16 %v14
  %v323 = vunpack.c.h.b16 %v14
  %v324 = vunpack.c.l.b16 %v15
  %v325 = vunpack.c.h.b16 %v15
  %v326 = vunpack.c.l.b16 %v16
  %v327 = vunpack.c.h.b16 %v16
  %v328 = vunpack.c.l.b16 %v17
  %v329 = vunpack.c.h.b16 %v17
  %v330 = vunpack.c.l.b16 %v18
  %v331 = vpack.c.b16 %v322, %v322
  %v332 = vpack.c.b16 %v323, %v323
  %v333 = vpack.c.b16 %v324, %v324
  %v334 = vpack.c.b16 %v325, %v325
  %v335 = vpack.c.b16 %v326, %v326
  %v336 = vpack.c.b16 %v327, %v327
  %v337 = vpack.c.b16 %v328, %v328
  %v338 = vpack.c.b16 %v329, %v329
  %v339 = vpack.c.b16 %v330, %v330
  %v637 = vunpack.c.l.b16 %v19
  %v638 = vunpack.c.h.b16 %v19
  %v639 = vunpack.c.l.b16 %v20
  %v640 = vunpack.c.h.b16 %v20
  %v641 = vunpack.c.l.b16 %v21
  %v642 = vunpack.c.h.b16 %v21
  %v643 = vunpack.c.l.b16 %v22
  %v644 = vunpack.c.h.b16 %v22
  %v645 = vunpack.c.l.b16 %v23
  %v646 = vunpack.c.h.b16 %v23
  %v647 = vunpack.c.l.b16 %v24
  %v648 = vunpack.c.h.b16 %v24
  %v649 = vunpack.c.l.b16 %v25
  %v650 = vunpack.c.h.b16 %v25
  %v651 = vunpack.c.l.b16 %v26
  %v652 = vunpack.c.h.b16 %v26
  %v653 = vunpack.c.l.b16 %v27
  %v654 = vunpack.c.h.b16 %v27
  %v655 = vunpack.c.l.b16 %v28
  %v656 = vunpack.c.h.b16 %v28
  %v657 = vunpack.c.l.b16 %v29
  %v658 = vunpack.c.h.b16 %v29
  %v659 = vunpack.c.l.b16 %v30
  %v660 = vunpack.c.h.b16 %v30
  %v661 = vunpack.c.l.b16 %v31
  %v662 = vunpack.c.h.b16 %v31
  %v663 = vunpack.c.l.b16 %v32
  %v664 = vunpack.c.h.b16 %v32
  %v665 = vunpack.c.l.b16 %v33
  %v666 = vunpack.c.h.b16 %v33
  %v667 = vunpack.c.l.b16 %v34
  %v668 = vunpack.c.h.b16 %v34
  %v669 = vunpack.c.l.b16 %v35
  %v670 = vunpack.c.h.b16 %v35
  %v671 = vunpack.c.l.b16 %v36
  %v672 = vunpack.c.h.b16 %v36
  %v673 = vunpack.c.l.b16 %v37
  %v674 = vunpack.c.h.b16 %v37
  %v675 = vunpack.c.l.b16 %v38
  %v676 = vunpack.c.h.b16 %v38
  %v677 = vunpack.c.l.b16 %v39
  %v678 = vunpack.c.h.b16 %v39
  %v679 = vunpack.c.l.b16 %v40
  %v680 = vunpack.c.h.b16 %v40
  %v681 = vunpack.c.l.b16 %v41
  %v682 = vunpack.c.h.b16 %v41
  %v683 = vunpack.c.l.b16 %v42
  %v684 = vunpack.c.h.b16 %v42
  %v685 = vunpack.c.l.b16 %v43
  %v686 = vunpack.c.h.b16 %v43
  %v687 = vunpack.c.l.b16 %v44
  %v688 = vunpack.c.h.b16 %v44
  %v689 = vunpack.c.l.b16 %v45
  %v690 = vunpack.c.h.b16 %v45
  %v691 = vunpack.c.l.b16 %v46
  %v692 = vunpack.c.h.b16 %v46
  %v693 = vunpack.c.l.b16 %v47
  %v694 = vunpack.c.h.b16 %v47
  %v695 = vunpack.c.l.b16 %v48
  %v696 = vunpack.c.h.b16 %v48
  %v697 = vunpack.c.l.b16 %v49
  %v698 = vunpack.c.h.b16 %v49
  %v699 = vunpack.c.l.b16 %v50
  %v700 = vunpack.c.h.b16 %v50
  %v701 = vunpack.c.l.b16 %v51
  %v702 = vunpack.c.h.b16 %v51
  %v703 = vunpack.c.l.b16 %v52
  %v704 = vunpack.c.h.b16 %v52
  %v705 = vunpack.c.l.b16 %v53
  %v706 = vunpack.c.h.b16 %v53
  %v707 = vunpack.c.l.b16 %v54
  %v708 = vunpack.c.h.b16 %v54
  %v709 = vunpack.c.l.b16 %v55
  %v710 = vunpack.c.h.b16 %v55
  %v711 = vunpack.c.l.b16 %v56
  %v712 = vunpack.c.h.b16 %v56
  %v713 = vunpack.c.l.b16 %v57
  %v714 = vunpack.c.h.b16 %v57
  %v715 = vunpack.c.l.b16 %v58
  %v716 = vunpack.c.h.b16 %v58
  %v717 = vunpack.c.l.b16 %v59
  %v718 = vunpack.c.h.b16 %v59
  %v719 = vunpack.c.l.b16 %v60
  %v720 = vunpack.c.h.b16 %v60
  %v721 = vunpack.c.l.b16 %v61
  %v722 = vunpack.c.h.b16 %v61
  %v723 = vunpack.c.l.b16 %v62
  %v724 = vunpack.c.h.b16 %v62
  %v725 = vunpack.c.l.b16 %v63
  %v726 = vunpack.c.h.b16 %v63
  %v727 = vunpack.c.l.b16 %v64
  %v728 = vunpack.c.h.b16 %v64
  %v729 = vunpack.c.l.b16 %v65
  %v730 = vunpack.c.h.b16 %v65
  %v731 = vunpack.c.l.b16 %v66
  %v732 = vunpack.c.h.b16 %v66
  %v733 = vunpack.c.l.b16 %v67
  %v734 = vunpack.c.h.b16 %v67
  %v735 = vunpack.c.l.b16 %v68
  %v736 = vunpack.c.h.b16 %v68
  %v737 = vunpack.c.l.b16 %v69
  %v738 = vunpack.c.h.b16 %v69
  %v739 = vunpack.c.l.b16 %v70
  %v740 = vunpack.c.h.b16 %v70
  %v741 = vunpack.c.l.b16 %v71
  %v742 = vunpack.c.h.b16 %v71
  %v743 = vunpack.c.l.b16 %v72
  %v744 = vunpack.c.h.b16 %v72
  %v745 = vunpack.c.l.b16 %v73
  %v746 = vunpack.c.h.b16 %v73
  %v747 = vunpack.c.l.b16 %v74
  %v748 = vunpack.c.h.b16 %v74
  %v749 = vunpack.c.l.b16 %v75
  %v750 = vunpack.c.h.b16 %v75
  %v751 = vunpack.c.l.b16 %v76
  %v752 = vunpack.c.h.b16 %v76
  %v753 = vunpack.c.l.b16 %v77
  %v754 = vunpack.c.h.b16 %v77
  %v755 = vunpack.c.l.b16 %v78
  %v756 = vunpack.c.h.b16 %v78
  %v757 = vunpack.c.l.b16 %v79
  %v758 = vunpack.c.h.b16 %v79
  %v759 = vunpack.c.l.b16 %v80
  %v760 = vunpack.c.h.b16 %v80
  %v761 = vunpack.c.l.b16 %v81
  %v762 = vunpack.c.h.b16 %v81
  %v763 = vunpack.c.l.b16 %v82
  %v764 = vunpack.c.h.b16 %v82
  %v765 = vunpack.c.l.b16 %v83
  %v766 = vunpack.c.h.b16 %v83
  %v767 = vunpack.c.l.b16 %v84
  %v768 = vunpack.c.h.b16 %v84
  %v769 = vunpack.c.l.b16 %v85
  %v770 = vunpack.c.h.b16 %v85
  %v771 = vunpack.c.l.b16 %v86
  %v772 = vunpack.c.h.b16 %v86
  %v773 = vunpack.c.l.b16 %v87
  %v774 = vunpack.c.h.b16 %v87
  %v775 = vunpack.c.l.b16 %v88
  %v776 = vunpack.c.h.b16 %v88
  %v777 = vunpack.c.l.b16 %v89
  %v778 = vunpack.c.h.b16 %v89
  %v779 = vunpack.c.l.b16 %v90
  %v780 = vunpack.c.h.b16 %v90
  %v781 = vunpack.c.l.b16 %v91
  %v782 = vunpack.c.h.b16 %v91
  %v783 = vunpack.c.l.b16 %v92
  %v784 = vunpack.c.h.b16 %v92
  %v785 = vunpack.c.l.b16 %v93
  %v786 = vunpack.c.h.b16 %v93
  %v787 = vunpack.c.l.b16 %v94
  %v788 = vunpack.c.h.b16 %v94
  %v789 = vunpack.c.l.b16 %v95
  %v790 = vunpack.c.h.b16 %v95
  %v791 = vunpack.c.l.b16 %v96
  %v792 = vunpack.c.h.b16 %v96
  %v793 = vunpack.c.l.b16 %v97
  %v794 = vunpack.c.h.b16 %v97
  %v795 = vunpack.c.l.b16 %v98
  %v796 = vunpack.c.h.b16 %v98
  %v797 = vunpack.c.l.b16 %v99
  %v798 = vunpack.c.h.b16 %v99
  %v799 = vunpack.c.l.b16 %v100
  %v800 = vunpack.c.h.b16 %v100
  %v801 = vunpack.c.l.b16 %v101
  %v802 = vunpack.c.h.b16 %v101
  %v803 = vunpack.c.l.b16 %v102
  %v804 = vunpack.c.h.b16 %v102
  %v805 = vunpack.c.l.b16 %v103
  %v806 = vunpack.c.h.b16 %v103
  %v807 = vunpack.c.l.b16 %v104
  %v808 = vunpack.c.h.b16 %v104
  %v809 = vunpack.c.l.b16 %v105
  %v810 = vunpack.c.h.b16 %v105
  %v811 = vunpack.c.l.b16 %v106
  %v812 = vunpack.c.h.b16 %v106
  %v813 = vunpack.c.l.b16 %v107
  %v814 = vunpack.c.h.b16 %v107
  %v815 = vunpack.c.l.b16 %v108
  %v816 = vunpack.c.h.b16 %v108
  %v817 = vunpack.c.l.b16 %v109
  %v818 = vunpack.c.h.b16 %v109
  %v819 = vunpack.c.l.b16 %v110
  %v820 = vunpack.c.h.b16 %v110
  %v821 = vunpack.c.l.b16 %v111
  %v822 = vunpack.c.h.b16 %v111
  %v823 = vunpack.c.l.b16 %v112
  %v824 = vunpack.c.h.b16 %v112
  %v825 = vunpack.c.l.b16 %v113
  %v826 = vunpack.c.h.b16 %v113
  %v827 = vunpack.c.l.b16 %v114
  %v828 = vunpack.c.h.b16 %v114
  %v829 = vunpack.c.l.b16 %v115
  %v830 = vunpack.c.h.b16 %v115
  %v831 = vunpack.c.l.b16 %v116
  %v832 = vunpack.c.h.b16 %v116
  %v833 = vunpack.c.l.b16 %v117
  %v834 = vunpack.c.h.b16 %v117
  %v835 = vunpack.c.l.b16 %v118
  %v836 = vunpack.c.h.b16 %v118
  %v837 = vunpack.c.l.b16 %v119
  %v838 = vunpack.c.h.b16 %v119
  %v839 = vunpack.c.l.b16 %v120
  %v840 = vunpack.c.h.b16 %v120
  %v841 = vunpack.c.l.b16 %v121
  %v842 = vunpack.c.h.b16 %v121
  %v843 = vunpack.c.l.b16 %v122
  %v844 = vunpack.c.h.b16 %v122
  %v845 = vunpack.c.l.b16 %v123
  %v846 = vunpack.c.h.b16 %v123
  %v847 = vunpack.c.l.b16 %v124
  %v848 = vunpack.c.h.b16 %v124
  %v849 = vunpack.c.l.b16 %v125
  %v850 = vunpack.c.h.b16 %v125
  %v851 = vunpack.c.l.b16 %v126
  %v852 = vunpack.c.h.b16 %v126
  %v853 = vunpack.c.l.b16 %v127
  %v854 = vunpack.c.h.b16 %v127
  %v855 = vunpack.c.l.b16 %v128
  %v856 = vunpack.c.h.b16 %v128
  %v857 = vunpack.c.l.b16 %v129
  %v858 = vunpack.c.h.b16 %v129
  %v859 = vunpack.c.l.b16 %v130
  %v860 = vunpack.c.h.b16 %v130
  %v861 = vunpack.c.l.b16 %v131
  %v862 = vunpack.c.h.b16 %v131
  %v863 = vunpack.c.l.b16 %v132
  %v864 = vunpack.c.h.b16 %v132
  %v865 = vunpack.c.l.b16 %v133
  %v866 = vunpack.c.h.b16 %v133
  %v867 = vunpack.c.l.b16 %v134
  %v868 = vunpack.c.h.b16 %v134
  %v869 = vunpack.c.l.b16 %v135
  %v870 = vunpack.c.h.b16 %v135
  %v871 = vunpack.c.l.b16 %v136
  %v872 = vunpack.c.h.b16 %v136
  %v873 = vunpack.c.l.b16 %v137
  %v874 = vunpack.c.h.b16 %v137
  %v875 = vunpack.c.l.b16 %v138
  %v876 = vunpack.c.h.b16 %v138
  %v877 = vunpack.c.l.b16 %v139
  %v878 = vunpack.c.h.b16 %v139
  %v879 = vunpack.c.l.b16 %v140
  %v880 = vunpack.c.h.b16 %v140
  %v881 = vunpack.c.l.b16 %v141
  %v882 = vunpack.c.h.b16 %v141
  %v883 = vunpack.c.l.b16 %v142
  %v884 = vunpack.c.h.b16 %v142
  %v885 = vunpack.c.l.b16 %v143
  %v886 = vunpack.c.h.b16 %v143
  %v887 = vunpack.c.l.b16 %v144
  %v888 = vunpack.c.h.b16 %v144
  %v889 = vunpack.c.l.b16 %v145
  %v890 = vunpack.c.h.b16 %v145
  %v891 = vunpack.c.l.b16 %v146
  %v892 = vunpack.c.h.b16 %v146
  %v893 = vunpack.c.l.b16 %v147
  %v894 = vunpack.c.h.b16 %v147
  %v895 = vunpack.c.l.b16 %v148
  %v896 = vunpack.c.h.b16 %v148
  %v897 = vunpack.c.l.b16 %v149
  %v898 = vunpack.c.h.b16 %v149
  %v899 = vunpack.c.l.b16 %v150
  %v900 = vunpack.c.h.b16 %v150
  %v901 = vunpack.c.l.b16 %v151
  %v902 = vunpack.c.h.b16 %v151
  %v903 = vunpack.c.l.b16 %v152
  %v904 = vunpack.c.h.b16 %v152
  %v905 = vunpack.c.l.b16 %v153
  %v906 = vunpack.c.h.b16 %v153
  %v907 = vunpack.c.l.b16 %v154
  %v908 = vunpack.c.h.b16 %v154
  %v909 = vunpack.c.l.b16 %v155
  %v910 = vunpack.c.h.b16 %v155
  %v911 = vunpack.c.l.b16 %v156
  %v912 = vunpack.c.h.b16 %v156
  %v913 = vunpack.c.l.b16 %v157
  %v914 = vunpack.c.h.b16 %v157
  %v915 = vunpack.c.l.b16 %v158
  %v916 = vunpack.c.h.b16 %v158
  %v917 = vunpack.c.l.b16 %v159
  %v918 = vunpack.c.h.b16 %v159
  %v919 = vunpack.c.l.b16 %v160
  %v920 = vunpack.c.h.b16 %v160
  %v921 = vunpack.c.l.b16 %v161
  %v922 = vunpack.c.h.b16 %v161
  %v923 = vunpack.c.l.b16 %v162
  %v924 = vunpack.c.h.b16 %v162
  %v925 = vunpack.c.l.b16 %v163
  %v926 = vunpack.c.h.b16 %v163
  %v927 = vunpack.c.l.b16 %v164
  %v928 = vunpack.c.h.b16 %v164
  %v929 = vunpack.c.l.b16 %v165
  %v930 = vunpack.c.h.b16 %v165
  %v931 = vunpack.c.l.b16 %v166
  %v932 = vunpack.c.h.b16 %v166
  %v933 = vunpack.c.l.b16 %v167
  %v934 = vunpack.c.h.b16 %v167
  %v935 = vunpack.c.l.b16 %v168
  %v936 = vunpack.c.h.b16 %v168
  %v937 = vunpack.c.l.b16 %v169
  %v938 = vunpack.c.h.b16 %v169
  %v939 = vunpack.c.l.b16 %v170
  %v940 = vunpack.c.h.b16 %v170
  %v941 = vunpack.c.l.b16 %v171
  %v942 = vunpack.c.h.b16 %v171
  %v943 = vunpack.c.l.b16 %v172
  %v944 = vunpack.c.h.b16 %v172
  %v945 = vunpack.c.l.b16 %v173
  %v946 = vunpack.c.h.b16 %v173
  %v947 = vunpack.c.l.b16 %v174
  %v948 = vunpack.c.h.b16 %v174
  %v949 = vunpack.c.l.b16 %v175
  %v950 = vunpack.c.h.b16 %v175
  %v951 = vunpack.c.l.b16 %v176
  %v952 = vunpack.c.h.b16 %v176
  %v953 = vunpack.c.l.b16 %v177
  %v954 = vunpack.c.h.b16 %v177
  %v955 = vunpack.c.l.b16 %v178
  %v956 = vunpack.c.h.b16 %v178
  %v957 = vunpack.c.l.b16 %v179
  %v958 = vunpack.c.h.b16 %v179
  %v959 = vunpack.c.l.b16 %v180
  %v960 = vunpack.c.h.b16 %v180
  %v961 = vunpack.c.l.b16 %v181
  %v962 = vunpack.c.h.b16 %v181
  %v963 = vunpack.c.l.b16 %v182
  %v964 = vunpack.c.h.b16 %v182
  %v965 = vunpack.c.l.b16 %v183
  %v966 = vunpack.c.h.b16 %v183
  %v967 = vunpack.c.l.b16 %v184
  %v968 = vunpack.c.h.b16 %v184
  %v969 = vunpack.c.l.b16 %v185
  %v970 = vunpack.c.h.b16 %v185
  %v971 = vunpack.c.l.b16 %v186
  %v972 = vunpack.c.h.b16 %v186
  %v973 = vunpack.c.l.b16 %v187
  %v974 = vunpack.c.h.b16 %v187
  %v975 = vunpack.c.l.b16 %v188
  %v976 = vunpack.c.h.b16 %v188
  %v977 = vunpack.c.l.b16 %v189
  %v978 = vunpack.c.h.b16 %v189
  %v979 = vunpack.c.l.b16 %v190
  %v980 = vunpack.c.h.b16 %v190
  %v981 = vunpack.c.l.b16 %v191
  %v982 = vunpack.c.h.b16 %v191
  %v983 = vunpack.c.l.b16 %v192
  %v984 = vunpack.c.h.b16 %v192
  %v985 = vunpack.c.l.b16 %v193
  %v986 = vunpack.c.h.b16 %v193
  %v987 = vunpack.c.l.b16 %v194
  %v988 = vunpack.c.h.b16 %v194
  %v989 = vunpack.c.l.b16 %v195
  %v990 = vunpack.c.h.b16 %v195
  %v991 = vunpack.c.l.b16 %v196
  %v992 = vunpack.c.h.b16 %v196
  %v993 = vunpack.c.l.b16 %v197
  %v994 = vunpack.c.h.b16 %v197
  %v995 = vunpack.c.l.b16 %v198
  %v996 = vunpack.c.h.b16 %v198
  %v997 = vunpack.c.l.b16 %v199
  %v998 = vunpack.c.h.b16 %v199
  %v999 = vunpack.c.l.b16 %v200
  %v1000 = vunpack.c.h.b16 %v200
  %v1001 = vunpack.c.l.b16 %v201
  %v1002 = vunpack.c.h.b16 %v201
  %v1003 = vunpack.c.l.b16 %v202
  %v1004 = vunpack.c.h.b16 %v202
  %v1005 = vunpack.c.l.b16 %v203
  %v1006 = vunpack.c.h.b16 %v203
  %v1007 = vunpack.c.l.b16 %v204
  %v1008 = vunpack.c.h.b16 %v204
  %v1009 = vunpack.c.l.b16 %v205
  %v1010 = vunpack.c.h.b16 %v205
  %v1011 = vunpack.c.l.b16 %v206
  %v1012 = vunpack.c.h.b16 %v206
  %v1013 = vunpack.c.l.b16 %v207
  %v1014 = vunpack.c.h.b16 %v207
  %v1015 = vunpack.c.l.b16 %v208
  %v1016 = vunpack.c.h.b16 %v208
  %v1017 = vunpack.c.l.b16 %v209
  %v1018 = vunpack.c.h.b16 %v209
  %v1019 = vunpack.c.l.b16 %v210
  %v1020 = vunpack.c.h.b16 %v210
  %v1021 = vunpack.c.l.b16 %v211
  %v1022 = vunpack.c.h.b16 %v211
  %v1023 = vunpack.c.l.b16 %v212
  %v1024 = vunpack.c.h.b16 %v212
  %v1025 = vunpack.c.l.b16 %v213
  %v1026 = vunpack.c.h.b16 %v213
  %v1027 = vunpack.c.l.b16 %v214
  %v1028 = vunpack.c.h.b16 %v214
  %v1029 = vunpack.c.l.b16 %v215
  %v1030 = vunpack.c.h.b16 %v215
  %v1031 = vunpack.c.l.b16 %v216
  %v1032 = vunpack.c.h.b16 %v216
  %v1033 = vunpack.c.l.b16 %v217
  %v1034 = vunpack.c.h.b16 %v217
  %v1035 = vunpack.c.l.b16 %v218
  %v1036 = vunpack.c.h.b16 %v218
  %v1037 = vunpack.c.l.b16 %v219
  %v1038 = vunpack.c.h.b16 %v219
  %v1039 = vunpack.c.l.b16 %v220
  %v1040 = vunpack.c.h.b16 %v220
  %v1041 = vunpack.c.l.b16 %v221
  %v1042 = vunpack.c.h.b16 %v221
  %v1043 = vunpack.c.l.b16 %v222
  %v1044 = vunpack.c.h.b16 %v222
  %v1045 = vunpack.c.l.b16 %v223
  %v1046 = vunpack.c.h.b16 %v223
  %v1047 = vunpack.c.l.b16 %v224
  %v1048 = vunpack.c.h.b16 %v224
  %v1049 = vunpack.c.l.b16 %v225
  %v1050 = vunpack.c.h.b16 %v225
  %v1051 = vunpack.c.l.b16 %v226
  %v1052 = vunpack.c.h.b16 %v226
  %v1053 = vunpack.c.l.b16 %v227
  %v1054 = vunpack.c.h.b16 %v227
  %v1055 = vunpack.c.l.b16 %v228
  %v1056 = vunpack.c.h.b16 %v228
  %v1057 = vunpack.c.l.b16 %v229
  %v1058 = vunpack.c.h.b16 %v229
  %v1059 = vunpack.c.l.b16 %v230
  %v1060 = vunpack.c.h.b16 %v230
  %v1061 = vunpack.c.l.b16 %v231
  %v1062 = vunpack.c.h.b16 %v231
  %v1063 = vunpack.c.l.b16 %v232
  %v1064 = vunpack.c.h.b16 %v232
  %v1065 = vunpack.c.l.b16 %v233
  %v1066 = vunpack.c.h.b16 %v233
  %v1067 = vunpack.c.l.b16 %v234
  %v1068 = vunpack.c.h.b16 %v234
  %v1069 = vunpack.c.l.b16 %v235
  %v1070 = vunpack.c.h.b16 %v235
  %v1071 = vunpack.c.l.b16 %v236
  %v1072 = vunpack.c.h.b16 %v236
  %v1073 = vunpack.c.l.b16 %v237
  %v1074 = vunpack.c.h.b16 %v237
  %v1075 = vunpack.c.l.b16 %v238
  %v1076 = vunpack.c.h.b16 %v238
  %v1077 = vunpack.c.l.b16 %v239
  %v1078 = vunpack.c.h.b16 %v239
  %v1079 = vunpack.c.l.b16 %v240
  %v1080 = vunpack.c.h.b16 %v240
  %v1081 = vunpack.c.l.b16 %v241
  %v1082 = vunpack.c.h.b16 %v241
  %v1083 = vunpack.c.l.b16 %v242
  %v1084 = vunpack.c.h.b16 %v242
  %v1085 = vunpack.c.l.b16 %v243
  %v1086 = vunpack.c.h.b16 %v243
  %v1087 = vunpack.c.l.b16 %v244
  %v1088 = vunpack.c.h.b16 %v244
  %v1089 = vunpack.c.l.b16 %v245
  %v1090 = vunpack.c.h.b16 %v245
  %v1091 = vunpack.c.l.b16 %v246
  %v1092 = vunpack.c.h.b16 %v246
  %v1093 = vunpack.c.l.b16 %v247
  %v1094 = vunpack.c.h.b16 %v247
  %v1095 = vunpack.c.l.b16 %v248
  %v1096 = vunpack.c.h.b16 %v248
  %v1097 = vunpack.c.l.b16 %v249
  %v1098 = vunpack.c.h.b16 %v249
  %v1099 = vunpack.c.l.b16 %v250
  %v1100 = vunpack.c.h.b16 %v250
  %v1101 = vunpack.c.l.b16 %v251
  %v1102 = vunpack.c.h.b16 %v251
  %v1103 = vunpack.c.l.b16 %v252
  %v1104 = vunpack.c.h.b16 %v252
  %v1105 = vunpack.c.l.b16 %v253
  %v1106 = vunpack.c.h.b16 %v253
  %v1107 = vunpack.c.l.b16 %v254
  %v1108 = vunpack.c.h.b16 %v254
  %v1109 = vunpack.c.l.b16 %v255
  %v1110 = vunpack.c.h.b16 %v255
  %v1111 = vunpack.c.l.b16 %v256
  %v1112 = vunpack.c.h.b16 %v256
  %v1113 = vunpack.c.l.b16 %v257
  %v1114 = vunpack.c.h.b16 %v257
  %v1115 = vunpack.c.l.b16 %v258
  %v1116 = vunpack.c.h.b16 %v258
  %v1117 = vunpack.c.l.b16 %v259
  %v1118 = vunpack.c.h.b16 %v259
  %v1119 = vunpack.c.l.b16 %v260
  %v1120 = vunpack.c.h.b16 %v260
  %v1121 = vunpack.c.l.b16 %v261
  %v1122 = vunpack.c.h.b16 %v261
  %v1123 = vunpack.c.l.b16 %v262
  %v1124 = vunpack.c.h.b16 %v262
  %v1125 = vunpack.c.l.b16 %v263
  %v1126 = vunpack.c.h.b16 %v263
  %v1127 = vunpack.c.l.b16 %v264
  %v1128 = vunpack.c.h.b16 %v264
  %v1129 = vunpack.c.l.b16 %v265
  %v1130 = vunpack.c.h.b16 %v265
  %v1131 = vunpack.c.l.b16 %v266
  %v1132 = vunpack.c.h.b16 %v266
  %v1133 = vunpack.c.l.b16 %v267
  %v1134 = vunpack.c.h.b16 %v267
  %v1135 = vunpack.c.l.b16 %v268
  %v1136 = vunpack.c.h.b16 %v268
  %v1137 = vunpack.c.l.b16 %v269
  %v1138 = vunpack.c.h.b16 %v269
  %v1139 = vunpack.c.l.b16 %v270
  %v1140 = vunpack.c.h.b16 %v270
  %v1141 = vunpack.c.l.b16 %v271
  %v1142 = vunpack.c.h.b16 %v271
  %v1143 = vunpack.c.l.b16 %v272
  %v1144 = vunpack.c.h.b16 %v272
  %v1145 = vunpack.c.l.b16 %v273
  %v1146 = vunpack.c.h.b16 %v273
  %v1147 = vunpack.c.l.b16 %v274
  %v1148 = vunpack.c.h.b16 %v274
  %v1149 = vunpack.c.l.b16 %v275
  %v1150 = vunpack.c.h.b16 %v275
  %v1151 = vunpack.c.l.b16 %v276
  %v1152 = vunpack.c.h.b16 %v276
  %v1153 = vunpack.c.l.b16 %v277
  %v1154 = vunpack.c.h.b16 %v277
  %v1155 = vunpack.c.l.b16 %v278
  %v1156 = vunpack.c.h.b16 %v278
  %v1157 = vunpack.c.l.b16 %v279
  %v1158 = vunpack.c.h.b16 %v279
  %v1159 = vunpack.c.l.b16 %v280
  %v1160 = vunpack.c.h.b16 %v280
  %v1161 = vunpack.c.l.b16 %v281
  %v1162 = vunpack.c.h.b16 %v281
  %v1163 = vunpack.c.l.b16 %v282
  %v1164 = vunpack.c.h.b16 %v282
  %v1165 = vunpack.c.l.b16 %v283
  %v1166 = vunpack.c.h.b16 %v283
  %v1167 = vunpack.c.l.b16 %v284
  %v1168 = vunpack.c.h.b16 %v284
  %v1169 = vunpack.c.l.b16 %v285
  %v1170 = vunpack.c.h.b16 %v285
  %v1171 = vunpack.c.l.b16 %v286
  %v1172 = vunpack.c.h.b16 %v286
  %v1173 = vunpack.c.l.b16 %v287
  %v1174 = vunpack.c.h.b16 %v287
  %v1175 = vunpack.c.l.b16 %v288
  %v1176 = vunpack.c.h.b16 %v288
  %v1177 = vunpack.c.l.b16 %v289
  %v1178 = vunpack.c.h.b16 %v289
  %v1179 = vunpack.c.l.b16 %v290
  %v1180 = vunpack.c.h.b16 %v290
  %v1181 = vunpack.c.l.b16 %v291
  %v1182 = vunpack.c.h.b16 %v291
  %v1183 = vunpack.c.l.b16 %v292
  %v1184 = vunpack.c.h.b16 %v292
  %v1185 = vunpack.c.l.b16 %v293
  %v1186 = vunpack.c.h.b16 %v293
  %v1187 = vunpack.c.l.b16 %v294
  %v1188 = vunpack.c.h.b16 %v294
  %v1189 = vunpack.c.l.b16 %v295
  %v1190 = vunpack.c.h.b16 %v295
  %v1191 = vunpack.c.l.b16 %v296
  %v1192 = vunpack.c.h.b16 %v296
  %v1193 = vunpack.c.l.b16 %v297
  %v1194 = vunpack.c.h.b16 %v297
  %v1195 = vunpack.c.l.b16 %v298
  %v1196 = vunpack.c.h.b16 %v298
  %v1197 = vunpack.c.l.b16 %v299
  %v1198 = vunpack.c.h.b16 %v299
  %v1199 = vunpack.c.l.b16 %v300
  %v1200 = vunpack.c.h.b16 %v300
  %v1201 = vunpack.c.l.b16 %v301
  %v1202 = vunpack.c.h.b16 %v301
  %v1203 = vunpack.c.l.b16 %v302
  %v1204 = vunpack.c.h.b16 %v302
  %v1205 = vunpack.c.l.b16 %v303
  %v1206 = vunpack.c.h.b16 %v303
  %v1207 = vunpack.c.l.b16 %v304
  %v1208 = vunpack.c.h.b16 %v304
  %v1209 = vunpack.c.l.b16 %v305
  %v1210 = vunpack.c.h.b16 %v305
  %v1211 = vunpack.c.l.b16 %v306
  %v1212 = vunpack.c.h.b16 %v306
  %v1213 = vpack.c.b16 %v641, %v637
  %v1214 = vpack.c.b16 %v642, %v638
  %v1215 = vpack.c.b16 %v643, %v639
  %v1216 = vpack.c.b16 %v644, %v640
  %v1217 = vpack.c.b16 %v649, %v645
  %v1218 = vpack.c.b16 %v650, %v646
  %v1219 = vpack.c.b16 %v651, %v647
  %v1220 = vpack.c.b16 %v652, %v648
  %v1221 = vpack.c.b16 %v657, %v653
  %v1222 = vpack.c.b16 %v658, %v654
  %v1223 = vpack.c.b16 %v659, %v655
  %v1224 = vpack.c.b16 %v660, %v656
  %v1225 = vpack.c.b16 %v665, %v661
  %v1226 = vpack.c.b16 %v666, %v662
  %v1227 = vpack.c.b16 %v667, %v663
  %v1228 = vpack.c.b16 %v668, %v664
  %v1229 = vpack.c.b16 %v673, %v669
  %v1230 = vpack.c.b16 %v674, %v670
  %v1231 = vpack.c.b16 %v675, %v671
  %v1232 = vpack.c.b16 %v676, %v672
  %v1233 = vpack.c.b16 %v681, %v677
  %v1234 = vpack.c.b16 %v682, %v678
  %v1235 = vpack.c.b16 %v683, %v679
  %v1236 = vpack.c.b16 %v684, %v680
  %v1237 = vpack.c.b16 %v689, %v685
  %v1238 = vpack.c.b16 %v690, %v686
  %v1239 = vpack.c.b16 %v691, %v687
  %v1240 = vpack.c.b16 %v692, %v688
  %v1241 = vpack.c.b16 %v697, %v693
  %v1242 = vpack.c.b16 %v698, %v694
  %v1243 = vpack.c.b16 %v699, %v695
  %v1244 = vpack.c.b16 %v700, %v696
  %v1245 = vpack.c.b16 %v705, %v701
  %v1246 = vpack.c.b16 %v706, %v702
  %v1247 = vpack.c.b16 %v707, %v703
  %v1248 = vpack.c.b16 %v708, %v704
  %v1249 = vpack.c.b16 %v713, %v709
  %v1250 = vpack.c.b16 %v714, %v710
  %v1251 = vpack.c.b16 %v715, %v711
  %v1252 = vpack.c.b16 %v716, %v712
  %v1253 = vpack.c.b16 %v721, %v717
  %v1254 = vpack.c.b16 %v722, %v718
  %v1255 = vpack.c.b16 %v723, %v719
  %v1256 = vpack.c.b16 %v724, %v720
  %v1257 = vpack.c.b16 %v729, %v725
  %v1258 = vpack.c.b16 %v730, %v726
  %v1259 = vpack.c.b16 %v731, %v727
  %v1260 = vpack.c.b16 %v732, %v728
  %v1261 = vpack.c.b16 %v737, %v733
  %v1262 = vpack.c.b16 %v738, %v734
  %v1263 = vpack.c.b16 %v739, %v735
  %v1264 = vpack.c.b16 %v740, %v736
  %v1265 = vpack.c.b16 %v745, %v741
  %v1266 = vpack.c.b16 %v746, %v742
  %v1267 = vpack.c.b16 %v747, %v743
  %v1268 = vpack.c.b16 %v748, %v744
  %v1269 = vpack.c.b16 %v753, %v749
  %v1270 = vpack.c.b16 %v754, %v750
  %v1271 = vpack.c.b16 %v755, %v751
  %v1272 = vpack.c.b16 %v756, %v752
  %v1273 = vpack.c.b16 %v761, %v757
  %v1274 = vpack.c.b16 %v762, %v758
  %v1275 = vpack.c.b16 %v763, %v759
  %v1276 = vpack.c.b16 %v764, %v760
  %v1277 = vpack.c.b16 %v769, %v765
  %v1278 = vpack.c.b16 %v770, %v766
  %v1279 = vpack.c.b16 %v771, %v767
  %v1280 = vpack.c.b16 %v772, %v768
  %v1281 = vpack.c.b16 %v777, %v773
  %v1282 = vpack.c.b16 %v778, %v774
  %v1283 = vpack.c.b16 %v779, %v775
  %v1284 = vpack.c.b16 %v780, %v776
  %v1285 = vpack.c.b16 %v785, %v781
  %v1286 = vpack.c.b16 %v786, %v782
  %v1287 = vpack.c.b16 %v787, %v783
  %v1288 = vpack.c.b16 %v788, %v784
  %v1289 = vpack.c.b16 %v793, %v789
  %v1290 = vpack.c.b16 %v794, %v790
  %v1291 = vpack.c.b16 %v795, %v791
  %v1292 = vpack.c.b16 %v796, %v792
  %v1293 = vpack.c.b16 %v801, %v797
  %v1294 = vpack.c.b16 %v802, %v798
  %v1295 = vpack.c.b16 %v803, %v799
  %v1296 = vpack.c.b16 %v804, %v800
  %v1297 = vpack.c.b16 %v809, %v805
  %v1298 = vpack.c.b16 %v810, %v806
  %v1299 = vpack.c.b16 %v811, %v807
  %v1300 = vpack.c.b16 %v812, %v808
  %v1301 = vpack.c.b16 %v817, %v813
  %v1302 = vpack.c.b16 %v818, %v814
  %v1303 = vpack.c.b16 %v819, %v815
  %v1304 = vpack.c.b16 %v820, %v816
  %v1305 = vpack.c.b16 %v825, %v821
  %v1306 = vpack.c.b16 %v826, %v822
  %v1307 = vpack.c.b16 %v827, %v823
  %v1308 = vpack.c.b16 %v828, %v824
  %v1309 = vpack.c.b16 %v833, %v829
  %v1310 = vpack.c.b16 %v834, %v830
  %v1311 = vpack.c.b16 %v835, %v831
  %v1312 = vpack.c.b16 %v836, %v832
  %v1313 = vpack.c.b16 %v841, %v837
  %v1314 = vpack.c.b16 %v842, %v838
  %v1315 = vpack.c.b16 %v843, %v839
  %v1316 = vpack.c.b16 %v844, %v840
  %v1317 = vpack.c.b16 %v849, %v845
  %v1318 = vpack.c.b16 %v850, %v846
  %v1319 = vpack.c.b16 %v851, %v847
  %v1320 = vpack.c.b16 %v852, %v848
  %v1321 = vpack.c.b16 %v857, %v853
  %v1322 = vpack.c.b16 %v858, %v854
  %v1323 = vpack.c.b16 %v859, %v855
  %v1324 = vpack.c.b16 %v860, %v856
  %v1325 = vpack.c.b16 %v865, %v861
  %v1326 = vpack.c.b16 %v866, %v862
  %v1327 = vpack.c.b16 %v867, %v863
  %v1328 = vpack.c.b16 %v868, %v864
  %v1329 = vpack.c.b16 %v873, %v869
  %v1330 = vpack.c.b16 %v874, %v870
  %v1331 = vpack.c.b16 %v875, %v871
  %v1332 = vpack.c.b16 %v876, %v872
  %v1333 = vpack.c.b16 %v881, %v877
  %v1334 = vpack.c.b16 %v882, %v878
  %v1335 = vpack.c.b16 %v883, %v879
  %v1336 = vpack.c.b16 %v884, %v880
  %v1337 = vpack.c.b16 %v889, %v885
  %v1338 = vpack.c.b16 %v890, %v886
  %v1339 = vpack.c.b16 %v891, %v887
  %v1340 = vpack.c.b16 %v892, %v888
  %v1341 = vpack.c.b16 %v897, %v893
  %v1342 = vpack.c.b16 %v898, %v894
  %v1343 = vpack.c.b16 %v899, %v895
  %v1344 = vpack.c.b16 %v900, %v896
  %v1345 = vpack.c.b16 %v905, %v901
  %v1346 = vpack.c.b16 %v906, %v902
  %v1347 = vpack.c.b16 %v907, %v903
  %v1348 = vpack.c.b16 %v908, %v904
  %v1349 = vpack.c.b16 %v913, %v909
  %v1350 = vpack.c.b16 %v914, %v910
  %v1351 = vpack.c.b16 %v915, %v911
  %v1352 = vpack.c.b16 %v916, %v912
  %v1353 = vpack.c.b16 %v921, %v917
  %v1354 = vpack.c.b16 %v922, %v918
  %v1355 = vpack.c.b16 %v923, %v919
  %v1356 = vpack.c.b16 %v924, %v920
  %v1357 = vpack.c.b16 %v929, %v925
  %v1358 = vpack.c.b16 %v930, %v926
  %v1359 = vpack.c.b16 %v931, %v927
  %v1360 = vpack.c.b16 %v932, %v928
  %v1361 = vpack.c.b16 %v937, %v933
  %v1362 = vpack.c.b16 %v938, %v934
  %v1363 = vpack.c.b16 %v939, %v935
  %v1364 = vpack.c.b16 %v940, %v936
  %v1365 = vpack.c.b16 %v945, %v941
  %v1366 = vpack.c.b16 %v946, %v942
  %v1367 = vpack.c.b16 %v947, %v943
  %v1368 = vpack.c.b16 %v948, %v944
  %v1369 = vpack.c.b16 %v953, %v949
  %v1370 = vpack.c.b16 %v954, %v950
  %v1371 = vpack.c.b16 %v955, %v951
  %v1372 = vpack.c.b16 %v956, %v952
  %v1373 = vpack.c.b16 %v961, %v957
  %v1374 = vpack.c.b16 %v962, %v958
  %v1375 = vpack.c.b16 %v963, %v959
  %v1376 = vpack.c.b16 %v964, %v960
  %v1377 = vpack.c.b16 %v969, %v965
  %v1378 = vpack.c.b16 %v970, %v966
  %v1379 = vpack.c.b16 %v971, %v967
  %v1380 = vpack.c.b16 %v972, %v968
  %v1381 = vpack.c.b16 %v977, %v973
  %v1382 = vpack.c.b16 %v978, %v974
  %v1383 = vpack.c.b16 %v979, %v975
  %v1384 = vpack.c.b16 %v980, %v976
  %v1385 = vpack.c.b16 %v985, %v981
  %v1386 = vpack.c.b16 %v986, %v982
  %v1387 = vpack.c.b16 %v987, %v983
  %v1388 = vpack.c.b16 %v988, %v984
  %v1389 = vpack.c.b16 %v993, %v989
  %v1390 = vpack.c.b16 %v994, %v990
  %v1391 = vpack.c.b16 %v995, %v991
  %v1392 = vpack.c.b16 %v996, %v992
  %v1393 = vpack.c.b16 %v1001, %v997
  %v1394 = vpack.c.b16 %v1002, %v998
  %v1395 = vpack.c.b16 %v1003, %v999
  %v1396 = vpack.c.b16 %v1004, %v1000
  %v1397 = vpack.c.b16 %v1009, %v1005
  %v1398 = vpack.c.b16 %v1010, %v1006
  %v1399 = vpack.c.b16 %v1011, %v1007
  %v1400 = vpack.c.b16 %v1012, %v1008
  %v1401 = vpack.c.b16 %v1017, %v1013
  %v1402 = vpack.c.b16 %v1018, %v1014
  %v1403 = vpack.c.b16 %v1019, %v1015
  %v1404 = vpack.c.b16 %v1020, %v1016
  %v1405 = vpack.c.b16 %v1025, %v1021
  %v1406 = vpack.c.b16 %v1026, %v1022
  %v1407 = vpack.c.b16 %v1027, %v1023
  %v1408 = vpack.c.b16 %v1028, %v1024
  %v1409 = vpack.c.b16 %v1033, %v1029
  %v1410 = vpack.c.b16 %v1034, %v1030
  %v1411 = vpack.c.b16 %v1035, %v1031
  %v1412 = vpack.c.b16 %v1036, %v1032
  %v1413 = vpack.c.b16 %v1041, %v1037
  %v1414 = vpack.c.b16 %v1042, %v1038
  %v1415 = vpack.c.b16 %v1043, %v1039
  %v1416 = vpack.c.b16 %v1044, %v1040
  %v1417 = vpack.c.b16 %v1049, %v1045
  %v1418 = vpack.c.b16 %v1050, %v1046
  %v1419 = vpack.c.b16 %v1051, %v1047
  %v1420 = vpack.c.b16 %v1052, %v1048
  %v1421 = vpack.c.b16 %v1057, %v1053
  %v1422 = vpack.c.b16 %v1058, %v1054
  %v1423 = vpack.c.b16 %v1059, %v1055
  %v1424 = vpack.c.b16 %v1060, %v1056
  %v1425 = vpack.c.b16 %v1065, %v1061
  %v1426 = vpack.c.b16 %v1066, %v1062
  %v1427 = vpack.c.b16 %v1067, %v1063
  %v1428 = vpack.c.b16 %v1068, %v1064
  %v1429 = vpack.c.b16 %v1073, %v1069
  %v1430 = vpack.c.b16 %v1074, %v1070
  %v1431 = vpack.c.b16 %v1075, %v1071
  %v1432 = vpack.c.b16 %v1076, %v1072
  %v1433 = vpack.c.b16 %v1081, %v1077
  %v1434 = vpack.c.b16 %v1082, %v1078
  %v1435 = vpack.c.b16 %v1083, %v1079
  %v1436 = vpack.c.b16 %v1084, %v1080
  %v1437 = vpack.c.b16 %v1089, %v1085
  %v1438 = vpack.c.b16 %v1090, %v1086
  %v1439 = vpack.c.b16 %v1091, %v1087
  %v1440 = vpack.c.b16 %v1092, %v1088
  %v1441 = vpack.c.b16 %v1097, %v1093
  %v1442 = vpack.c.b16 %v1098, %v1094
  %v1443 = vpack.c.b16 %v1099, %v1095
  %v1444 = vpack.c.b16 %v1100, %v1096
  %v1445 = vpack.c.b16 %v1105, %v1101
  %v1446 = vpack.c.b16 %v1106, %v1102
  %v1447 = vpack.c.b16 %v1107, %v1103
  %v1448 = vpack.c.b16 %v1108, %v1104
  %v1449 = vpack.c.b16 %v1113, %v1109
  %v1450 = vpack.c.b16 %v1114, %v1110
  %v1451 = vpack.c.b16 %v1115, %v1111
  %v1452 = vpack.c.b16 %v1116, %v1112
  %v1453 = vpack.c.b16 %v1121, %v1117
  %v1454 = vpack.c.b16 %v1122, %v1118
  %v1455 = vpack.c.b16 %v1123, %v1119
  %v1456 = vpack.c.b16 %v1124, %v1120
  %v1457 = vpack.c.b16 %v1129, %v1125
  %v1458 = vpack.c.b16 %v1130, %v1126
  %v1459 = vpack.c.b16 %v1131, %v1127
  %v1460 = vpack.c.b16 %v1132, %v1128
  %v1461 = vpack.c.b16 %v1137, %v1133
  %v1462 = vpack.c.b16 %v1138, %v1134
  %v1463 = vpack.c.b16 %v1139, %v1135
  %v1464 = vpack.c.b16 %v1140, %v1136
  %v1465 = vpack.c.b16 %v1145, %v1141
  %v1466 = vpack.c.b16 %v1146, %v1142
  %v1467 = vpack.c.b16 %v1147, %v1143
  %v1468 = vpack.c.b16 %v1148, %v1144
  %v1469 = vpack.c.b16 %v1153, %v1149
  %v1470 = vpack.c.b16 %v1154, %v1150
  %v1471 = vpack.c.b16 %v1155, %v1151
  %v1472 = vpack.c.b16 %v1156, %v1152
  %v1473 = vpack.c.b16 %v1161, %v1157
  %v1474 = vpack.c.b16 %v1162, %v1158
  %v1475 = vpack.c.b16 %v1163, %v1159
  %v1476 = vpack.c.b16 %v1164, %v1160
  %v1477 = vpack.c.b16 %v1169, %v1165
  %v1478 = vpack.c.b16 %v1170, %v1166
  %v1479 = vpack.c.b16 %v1171, %v1167
  %v1480 = vpack.c.b16 %v1172, %v1168
  %v1481 = vpack.c.b16 %v1177, %v1173
  %v1482 = vpack.c.b16 %v1178, %v1174
  %v1483 = vpack.c.b16 %v1179, %v1175
  %v1484 = vpack.c.b16 %v1180, %v1176
  %v1485 = vpack.c.b16 %v1185, %v1181
  %v1486 = vpack.c.b16 %v1186, %v1182
  %v1487 = vpack.c.b16 %v1187, %v1183
  %v1488 = vpack.c.b16 %v1188, %v1184
  %v1489 = vpack.c.b16 %v1193, %v1189
  %v1490 = vpack.c.b16 %v1194, %v1190
  %v1491 = vpack.c.b16 %v1195, %v1191
  %v1492 = vpack.c.b16 %v1196, %v1192
  %v1493 = vpack.c.b16 %v1201, %v1197
  %v1494 = vpack.c.b16 %v1202, %v1198
  %v1495 = vpack.c.b16 %v1203, %v1199
  %v1496 = vpack.c.b16 %v1204, %v1200
  %v1497 = vpack.c.b16 %v1209, %v1205
  %v1498 = vpack.c.b16 %v1210, %v1206
  %v1499 = vpack.c.b16 %v1211, %v1207
  %v1500 = vpack.c.b16 %v1212, %v1208
  %1789 = vmatpush.bf16.msra.mxu0 %v1241
  %1790 = vmatpush.bf16.msra.mxu0 %v1237
  %1791 = vmatpush.bf16.msra.mxu0 %v1233
  %1792 = vmatpush.bf16.msra.mxu0 %v1229
  %1793 = vmatpush.bf16.msra.mxu0 %v1225
  %1794 = vmatpush.bf16.msra.mxu0 %v1221
  %1795 = vmatpush.bf16.msra.mxu0 %v1217
  %1796 = vmatpush.bf16.msra.mxu0 %v1213
  %1797 = vmatmul.bf16.gmra.mxu0 %v331
  %v1798 = vpop.f32.mrf.mxu0
  %v1799 = vadd.f32 %v309, %v1798
  %v1800 = vpop.f32.mrf.mxu0
  %1801 = vdwg.mxu0
  %1802 = vmatpush.bf16.msra.mxu0 %v1273
  %1803 = vmatpush.bf16.msra.mxu0 %v1269
  %1804 = vmatpush.bf16.msra.mxu0 %v1265
  %1805 = vmatpush.bf16.msra.mxu0 %v1261
  %1806 = vmatpush.bf16.msra.mxu0 %v1257
  %1807 = vmatpush.bf16.msra.mxu0 %v1253
  %1808 = vmatpush.bf16.msra.mxu0 %v1249
  %1809 = vmatpush.bf16.msra.mxu0 %v1245
  %1810 = vmatmul.bf16.gmra.mxu0 %v332
  %v1811 = vpop.f32.mrf.mxu0
  %v1812 = vadd.f32 %v1799, %v1811
  %v1813 = vpop.f32.mrf.mxu0
  %1814 = vdwg.mxu0
  %1815 = vmatpush.bf16.msra.mxu0 %v1305
  %1816 = vmatpush.bf16.msra.mxu0 %v1301
  %1817 = vmatpush.bf16.msra.mxu0 %v1297
  %1818 = vmatpush.bf16.msra.mxu0 %v1293
  %1819 = vmatpush.bf16.msra.mxu0 %v1289
  %1820 = vmatpush.bf16.msra.mxu0 %v1285
  %1821 = vmatpush.bf16.msra.mxu0 %v1281
  %1822 = vmatpush.bf16.msra.mxu0 %v1277
  %1823 = vmatmul.bf16.gmra.mxu0 %v333
  %v1824 = vpop.f32.mrf.mxu0
  %v1825 = vadd.f32 %v1812, %v1824
  %v1826 = vpop.f32.mrf.mxu0
  %1827 = vdwg.mxu0
  %1828 = vmatpush.bf16.msra.mxu0 %v1337
  %1829 = vmatpush.bf16.msra.mxu0 %v1333
  %1830 = vmatpush.bf16.msra.mxu0 %v1329
  %1831 = vmatpush.bf16.msra.mxu0 %v1325
  %1832 = vmatpush.bf16.msra.mxu0 %v1321
  %1833 = vmatpush.bf16.msra.mxu0 %v1317
  %1834 = vmatpush.bf16.msra.mxu0 %v1313
  %1835 = vmatpush.bf16.msra.mxu0 %v1309
  %1836 = vmatmul.bf16.gmra.mxu0 %v334
  %v1837 = vpop.f32.mrf.mxu0
  %v1838 = vadd.f32 %v1825, %v1837
  %v1839 = vpop.f32.mrf.mxu0
  %1840 = vdwg.mxu0
  %1841 = vmatpush.bf16.msra.mxu0 %v1369
  %1842 = vmatpush.bf16.msra.mxu0 %v1365
  %1843 = vmatpush.bf16.msra.mxu0 %v1361
  %1844 = vmatpush.bf16.msra.mxu0 %v1357
  %1845 = vmatpush.bf16.msra.mxu0 %v1353
  %1846 = vmatpush.bf16.msra.mxu0 %v1349
  %1847 = vmatpush.bf16.msra.mxu0 %v1345
  %1848 = vmatpush.bf16.msra.mxu0 %v1341
  %1849 = vmatmul.bf16.gmra.mxu0 %v335
  %v1850 = vpop.f32.mrf.mxu0
  %v1851 = vadd.f32 %v1838, %v1850
  %v1852 = vpop.f32.mrf.mxu0
  %1853 = vdwg.mxu0
  %1854 = vmatpush.bf16.msra.mxu0 %v1401
  %1855 = vmatpush.bf16.msra.mxu0 %v1397
  %1856 = vmatpush.bf16.msra.mxu0 %v1393
  %1857 = vmatpush.bf16.msra.mxu0 %v1389
  %1858 = vmatpush.bf16.msra.mxu0 %v1385
  %1859 = vmatpush.bf16.msra.mxu0 %v1381
  %1860 = vmatpush.bf16.msra.mxu0 %v1377
  %1861 = vmatpush.bf16.msra.mxu0 %v1373
  %1862 = vmatmul.bf16.gmra.mxu0 %v336
  %v1863 = vpop.f32.mrf.mxu0
  %v1864 = vadd.f32 %v1851, %v1863
  %v1865 = vpop.f32.mrf.mxu0
  %1866 = vdwg.mxu0
  %1867 = vmatpush.bf16.msra.mxu0 %v1433
  %1868 = vmatpush.bf16.msra.mxu0 %v1429
  %1869 = vmatpush.bf16.msra.mxu0 %v1425
  %1870 = vmatpush.bf16.msra.mxu0 %v1421
  %1871 = vmatpush.bf16.msra.mxu0 %v1417
  %1872 = vmatpush.bf16.msra.mxu0 %v1413
  %1873 = vmatpush.bf16.msra.mxu0 %v1409
  %1874 = vmatpush.bf16.msra.mxu0 %v1405
  %1875 = vmatmul.bf16.gmra.mxu0 %v337
  %v1876 = vpop.f32.mrf.mxu0
  %v1877 = vadd.f32 %v1864, %v1876
  %v1878 = vpop.f32.mrf.mxu0
  %1879 = vdwg.mxu0
  %1880 = vmatpush.bf16.msra.mxu0 %v1465
  %1881 = vmatpush.bf16.msra.mxu0 %v1461
  %1882 = vmatpush.bf16.msra.mxu0 %v1457
  %1883 = vmatpush.bf16.msra.mxu0 %v1453
  %1884 = vmatpush.bf16.msra.mxu0 %v1449
  %1885 = vmatpush.bf16.msra.mxu0 %v1445
  %1886 = vmatpush.bf16.msra.mxu0 %v1441
  %1887 = vmatpush.bf16.msra.mxu0 %v1437
  %1888 = vmatmul.bf16.gmra.mxu0 %v338
  %v1889 = vpop.f32.mrf.mxu0
  %v1890 = vadd.f32 %v1877, %v1889
  %v1891 = vpop.f32.mrf.mxu0
  %1892 = vdwg.mxu0
  %1893 = vmatpush.bf16.msra.mxu0 %v1497
  %1894 = vmatpush.bf16.msra.mxu0 %v1493
  %1895 = vmatpush.bf16.msra.mxu0 %v1489
  %1896 = vmatpush.bf16.msra.mxu0 %v1485
  %1897 = vmatpush.bf16.msra.mxu0 %v1481
  %1898 = vmatpush.bf16.msra.mxu0 %v1477
  %1899 = vmatpush.bf16.msra.mxu0 %v1473
  %1900 = vmatpush.bf16.msra.mxu0 %v1469
  %1901 = vmatmul.bf16.gmra.mxu0 %v339
  %v1902 = vpop.f32.mrf.mxu0
  %v1903 = vadd.f32 %v1890, %v1902
  %v1904 = vpop.f32.mrf.mxu0
  %1905 = vdwg.mxu0
  %1906 = vmatpush.bf16.msra.mxu0 %v1242
  %1907 = vmatpush.bf16.msra.mxu0 %v1238
  %1908 = vmatpush.bf16.msra.mxu0 %v1234
  %1909 = vmatpush.bf16.msra.mxu0 %v1230
  %1910 = vmatpush.bf16.msra.mxu0 %v1226
  %1911 = vmatpush.bf16.msra.mxu0 %v1222
  %1912 = vmatpush.bf16.msra.mxu0 %v1218
  %1913 = vmatpush.bf16.msra.mxu0 %v1214
  %1914 = vmatmul.bf16.gmra.mxu0 %v331
  %v1915 = vpop.f32.mrf.mxu0
  %v1916 = vadd.f32 %v310, %v1915
  %v1917 = vpop.f32.mrf.mxu0
  %1918 = vdwg.mxu0
  %1919 = vmatpush.bf16.msra.mxu0 %v1274
  %1920 = vmatpush.bf16.msra.mxu0 %v1270
  %1921 = vmatpush.bf16.msra.mxu0 %v1266
  %1922 = vmatpush.bf16.msra.mxu0 %v1262
  %1923 = vmatpush.bf16.msra.mxu0 %v1258
  %1924 = vmatpush.bf16.msra.mxu0 %v1254
  %1925 = vmatpush.bf16.msra.mxu0 %v1250
  %1926 = vmatpush.bf16.msra.mxu0 %v1246
  %1927 = vmatmul.bf16.gmra.mxu0 %v332
  %v1928 = vpop.f32.mrf.mxu0
  %v1929 = vadd.f32 %v1916, %v1928
  %v1930 = vpop.f32.mrf.mxu0
  %1931 = vdwg.mxu0
  %1932 = vmatpush.bf16.msra.mxu0 %v1306
  %1933 = vmatpush.bf16.msra.mxu0 %v1302
  %1934 = vmatpush.bf16.msra.mxu0 %v1298
  %1935 = vmatpush.bf16.msra.mxu0 %v1294
  %1936 = vmatpush.bf16.msra.mxu0 %v1290
  %1937 = vmatpush.bf16.msra.mxu0 %v1286
  %1938 = vmatpush.bf16.msra.mxu0 %v1282
  %1939 = vmatpush.bf16.msra.mxu0 %v1278
  %1940 = vmatmul.bf16.gmra.mxu0 %v333
  %v1941 = vpop.f32.mrf.mxu0
  %v1942 = vadd.f32 %v1929, %v1941
  %v1943 = vpop.f32.mrf.mxu0
  %1944 = vdwg.mxu0
  %1945 = vmatpush.bf16.msra.mxu0 %v1338
  %1946 = vmatpush.bf16.msra.mxu0 %v1334
  %1947 = vmatpush.bf16.msra.mxu0 %v1330
  %1948 = vmatpush.bf16.msra.mxu0 %v1326
  %1949 = vmatpush.bf16.msra.mxu0 %v1322
  %1950 = vmatpush.bf16.msra.mxu0 %v1318
  %1951 = vmatpush.bf16.msra.mxu0 %v1314
  %1952 = vmatpush.bf16.msra.mxu0 %v1310
  %1953 = vmatmul.bf16.gmra.mxu0 %v334
  %v1954 = vpop.f32.mrf.mxu0
  %v1955 = vadd.f32 %v1942, %v1954
  %v1956 = vpop.f32.mrf.mxu0
  %1957 = vdwg.mxu0
  %1958 = vmatpush.bf16.msra.mxu0 %v1370
  %1959 = vmatpush.bf16.msra.mxu0 %v1366
  %1960 = vmatpush.bf16.msra.mxu0 %v1362
  %1961 = vmatpush.bf16.msra.mxu0 %v1358
  %1962 = vmatpush.bf16.msra.mxu0 %v1354
  %1963 = vmatpush.bf16.msra.mxu0 %v1350
  %1964 = vmatpush.bf16.msra.mxu0 %v1346
  %1965 = vmatpush.bf16.msra.mxu0 %v1342
  %1966 = vmatmul.bf16.gmra.mxu0 %v335
  %v1967 = vpop.f32.mrf.mxu0
  %v1968 = vadd.f32 %v1955, %v1967
  %v1969 = vpop.f32.mrf.mxu0
  %1970 = vdwg.mxu0
  %1971 = vmatpush.bf16.msra.mxu0 %v1402
  %1972 = vmatpush.bf16.msra.mxu0 %v1398
  %1973 = vmatpush.bf16.msra.mxu0 %v1394
  %1974 = vmatpush.bf16.msra.mxu0 %v1390
  %1975 = vmatpush.bf16.msra.mxu0 %v1386
  %1976 = vmatpush.bf16.msra.mxu0 %v1382
  %1977 = vmatpush.bf16.msra.mxu0 %v1378
  %1978 = vmatpush.bf16.msra.mxu0 %v1374
  %1979 = vmatmul.bf16.gmra.mxu0 %v336
  %v1980 = vpop.f32.mrf.mxu0
  %v1981 = vadd.f32 %v1968, %v1980
  %v1982 = vpop.f32.mrf.mxu0
  %1983 = vdwg.mxu0
  %1984 = vmatpush.bf16.msra.mxu0 %v1434
  %1985 = vmatpush.bf16.msra.mxu0 %v1430
  %1986 = vmatpush.bf16.msra.mxu0 %v1426
  %1987 = vmatpush.bf16.msra.mxu0 %v1422
  %1988 = vmatpush.bf16.msra.mxu0 %v1418
  %1989 = vmatpush.bf16.msra.mxu0 %v1414
  %1990 = vmatpush.bf16.msra.mxu0 %v1410
  %1991 = vmatpush.bf16.msra.mxu0 %v1406
  %1992 = vmatmul.bf16.gmra.mxu0 %v337
  %v1993 = vpop.f32.mrf.mxu0
  %v1994 = vadd.f32 %v1981, %v1993
  %v1995 = vpop.f32.mrf.mxu0
  %1996 = vdwg.mxu0
  %1997 = vmatpush.bf16.msra.mxu0 %v1466
  %1998 = vmatpush.bf16.msra.mxu0 %v1462
  %1999 = vmatpush.bf16.msra.mxu0 %v1458
  %2000 = vmatpush.bf16.msra.mxu0 %v1454
  %2001 = vmatpush.bf16.msra.mxu0 %v1450
  %2002 = vmatpush.bf16.msra.mxu0 %v1446
  %2003 = vmatpush.bf16.msra.mxu0 %v1442
  %2004 = vmatpush.bf16.msra.mxu0 %v1438
  %2005 = vmatmul.bf16.gmra.mxu0 %v338
  %v2006 = vpop.f32.mrf.mxu0
  %v2007 = vadd.f32 %v1994, %v2006
  %v2008 = vpop.f32.mrf.mxu0
  %2009 = vdwg.mxu0
  %2010 = vmatpush.bf16.msra.mxu0 %v1498
  %2011 = vmatpush.bf16.msra.mxu0 %v1494
  %2012 = vmatpush.bf16.msra.mxu0 %v1490
  %2013 = vmatpush.bf16.msra.mxu0 %v1486
  %2014 = vmatpush.bf16.msra.mxu0 %v1482
  %2015 = vmatpush.bf16.msra.mxu0 %v1478
  %2016 = vmatpush.bf16.msra.mxu0 %v1474
  %2017 = vmatpush.bf16.msra.mxu0 %v1470
  %2018 = vmatmul.bf16.gmra.mxu0 %v339
  %v2019 = vpop.f32.mrf.mxu0
  %v2020 = vadd.f32 %v2007, %v2019
  %v2021 = vpop.f32.mrf.mxu0
  %2022 = vdwg.mxu0
  %2023 = vmatpush.bf16.msra.mxu0 %v1243
  %2024 = vmatpush.bf16.msra.mxu0 %v1239
  %2025 = vmatpush.bf16.msra.mxu0 %v1235
  %2026 = vmatpush.bf16.msra.mxu0 %v1231
  %2027 = vmatpush.bf16.msra.mxu0 %v1227
  %2028 = vmatpush.bf16.msra.mxu0 %v1223
  %2029 = vmatpush.bf16.msra.mxu0 %v1219
  %2030 = vmatpush.bf16.msra.mxu0 %v1215
  %2031 = vmatmul.bf16.gmra.mxu0 %v331
  %v2032 = vpop.f32.mrf.mxu0
  %v2033 = vadd.f32 %v311, %v2032
  %v2034 = vpop.f32.mrf.mxu0
  %2035 = vdwg.mxu0
  %2036 = vmatpush.bf16.msra.mxu0 %v1275
  %2037 = vmatpush.bf16.msra.mxu0 %v1271
  %2038 = vmatpush.bf16.msra.mxu0 %v1267
  %2039 = vmatpush.bf16.msra.mxu0 %v1263
  %2040 = vmatpush.bf16.msra.mxu0 %v1259
  %2041 = vmatpush.bf16.msra.mxu0 %v1255
  %2042 = vmatpush.bf16.msra.mxu0 %v1251
  %2043 = vmatpush.bf16.msra.mxu0 %v1247
  %2044 = vmatmul.bf16.gmra.mxu0 %v332
  %v2045 = vpop.f32.mrf.mxu0
  %v2046 = vadd.f32 %v2033, %v2045
  %v2047 = vpop.f32.mrf.mxu0
  %2048 = vdwg.mxu0
  %2049 = vmatpush.bf16.msra.mxu0 %v1307
  %2050 = vmatpush.bf16.msra.mxu0 %v1303
  %2051 = vmatpush.bf16.msra.mxu0 %v1299
  %2052 = vmatpush.bf16.msra.mxu0 %v1295
  %2053 = vmatpush.bf16.msra.mxu0 %v1291
  %2054 = vmatpush.bf16.msra.mxu0 %v1287
  %2055 = vmatpush.bf16.msra.mxu0 %v1283
  %2056 = vmatpush.bf16.msra.mxu0 %v1279
  %2057 = vmatmul.bf16.gmra.mxu0 %v333
  %v2058 = vpop.f32.mrf.mxu0
  %v2059 = vadd.f32 %v2046, %v2058
  %v2060 = vpop.f32.mrf.mxu0
  %2061 = vdwg.mxu0
  %2062 = vmatpush.bf16.msra.mxu0 %v1339
  %2063 = vmatpush.bf16.msra.mxu0 %v1335
  %2064 = vmatpush.bf16.msra.mxu0 %v1331
  %2065 = vmatpush.bf16.msra.mxu0 %v1327
  %2066 = vmatpush.bf16.msra.mxu0 %v1323
  %2067 = vmatpush.bf16.msra.mxu0 %v1319
  %2068 = vmatpush.bf16.msra.mxu0 %v1315
  %2069 = vmatpush.bf16.msra.mxu0 %v1311
  %2070 = vmatmul.bf16.gmra.mxu0 %v334
  %v2071 = vpop.f32.mrf.mxu0
  %v2072 = vadd.f32 %v2059, %v2071
  %v2073 = vpop.f32.mrf.mxu0
  %2074 = vdwg.mxu0
  %2075 = vmatpush.bf16.msra.mxu0 %v1371
  %2076 = vmatpush.bf16.msra.mxu0 %v1367
  %2077 = vmatpush.bf16.msra.mxu0 %v1363
  %2078 = vmatpush.bf16.msra.mxu0 %v1359
  %2079 = vmatpush.bf16.msra.mxu0 %v1355
  %2080 = vmatpush.bf16.msra.mxu0 %v1351
  %2081 = vmatpush.bf16.msra.mxu0 %v1347
  %2082 = vmatpush.bf16.msra.mxu0 %v1343
  %2083 = vmatmul.bf16.gmra.mxu0 %v335
  %v2084 = vpop.f32.mrf.mxu0
  %v2085 = vadd.f32 %v2072, %v2084
  %v2086 = vpop.f32.mrf.mxu0
  %2087 = vdwg.mxu0
  %2088 = vmatpush.bf16.msra.mxu0 %v1403
  %2089 = vmatpush.bf16.msra.mxu0 %v1399
  %2090 = vmatpush.bf16.msra.mxu0 %v1395
  %2091 = vmatpush.bf16.msra.mxu0 %v1391
  %2092 = vmatpush.bf16.msra.mxu0 %v1387
  %2093 = vmatpush.bf16.msra.mxu0 %v1383
  %2094 = vmatpush.bf16.msra.mxu0 %v1379
  %2095 = vmatpush.bf16.msra.mxu0 %v1375
  %2096 = vmatmul.bf16.gmra.mxu0 %v336
  %v2097 = vpop.f32.mrf.mxu0
  %v2098 = vadd.f32 %v2085, %v2097
  %v2099 = vpop.f32.mrf.mxu0
  %2100 = vdwg.mxu0
  %2101 = vmatpush.bf16.msra.mxu0 %v1435
  %2102 = vmatpush.bf16.msra.mxu0 %v1431
  %2103 = vmatpush.bf16.msra.mxu0 %v1427
  %2104 = vmatpush.bf16.msra.mxu0 %v1423
  %2105 = vmatpush.bf16.msra.mxu0 %v1419
  %2106 = vmatpush.bf16.msra.mxu0 %v1415
  %2107 = vmatpush.bf16.msra.mxu0 %v1411
  %2108 = vmatpush.bf16.msra.mxu0 %v1407
  %2109 = vmatmul.bf16.gmra.mxu0 %v337
  %v2110 = vpop.f32.mrf.mxu0
  %v2111 = vadd.f32 %v2098, %v2110
  %v2112 = vpop.f32.mrf.mxu0
  %2113 = vdwg.mxu0
  %2114 = vmatpush.bf16.msra.mxu0 %v1467
  %2115 = vmatpush.bf16.msra.mxu0 %v1463
  %2116 = vmatpush.bf16.msra.mxu0 %v1459
  %2117 = vmatpush.bf16.msra.mxu0 %v1455
  %2118 = vmatpush.bf16.msra.mxu0 %v1451
  %2119 = vmatpush.bf16.msra.mxu0 %v1447
  %2120 = vmatpush.bf16.msra.mxu0 %v1443
  %2121 = vmatpush.bf16.msra.mxu0 %v1439
  %2122 = vmatmul.bf16.gmra.mxu0 %v338
  %v2123 = vpop.f32.mrf.mxu0
  %v2124 = vadd.f32 %v2111, %v2123
  %v2125 = vpop.f32.mrf.mxu0
  %2126 = vdwg.mxu0
  %2127 = vmatpush.bf16.msra.mxu0 %v1499
  %2128 = vmatpush.bf16.msra.mxu0 %v1495
  %2129 = vmatpush.bf16.msra.mxu0 %v1491
  %2130 = vmatpush.bf16.msra.mxu0 %v1487
  %2131 = vmatpush.bf16.msra.mxu0 %v1483
  %2132 = vmatpush.bf16.msra.mxu0 %v1479
  %2133 = vmatpush.bf16.msra.mxu0 %v1475
  %2134 = vmatpush.bf16.msra.mxu0 %v1471
  %2135 = vmatmul.bf16.gmra.mxu0 %v339
  %v2136 = vpop.f32.mrf.mxu0
  %v2137 = vadd.f32 %v2124, %v2136
  %v2138 = vpop.f32.mrf.mxu0
  %2139 = vdwg.mxu0
  %2140 = vmatpush.bf16.msra.mxu0 %v1244
  %2141 = vmatpush.bf16.msra.mxu0 %v1240
  %2142 = vmatpush.bf16.msra.mxu0 %v1236
  %2143 = vmatpush.bf16.msra.mxu0 %v1232
  %2144 = vmatpush.bf16.msra.mxu0 %v1228
  %2145 = vmatpush.bf16.msra.mxu0 %v1224
  %2146 = vmatpush.bf16.msra.mxu0 %v1220
  %2147 = vmatpush.bf16.msra.mxu0 %v1216
  %2148 = vmatmul.bf16.gmra.mxu0 %v331
  %v2149 = vpop.f32.mrf.mxu0
  %v2150 = vadd.f32 %v312, %v2149
  %v2151 = vpop.f32.mrf.mxu0
  %2152 = vdwg.mxu0
  %2153 = vmatpush.bf16.msra.mxu0 %v1276
  %2154 = vmatpush.bf16.msra.mxu0 %v1272
  %2155 = vmatpush.bf16.msra.mxu0 %v1268
  %2156 = vmatpush.bf16.msra.mxu0 %v1264
  %2157 = vmatpush.bf16.msra.mxu0 %v1260
  %2158 = vmatpush.bf16.msra.mxu0 %v1256
  %2159 = vmatpush.bf16.msra.mxu0 %v1252
  %2160 = vmatpush.bf16.msra.mxu0 %v1248
  %2161 = vmatmul.bf16.gmra.mxu0 %v332
  %v2162 = vpop.f32.mrf.mxu0
  %v2163 = vadd.f32 %v2150, %v2162
  %v2164 = vpop.f32.mrf.mxu0
  %2165 = vdwg.mxu0
  %2166 = vmatpush.bf16.msra.mxu0 %v1308
  %2167 = vmatpush.bf16.msra.mxu0 %v1304
  %2168 = vmatpush.bf16.msra.mxu0 %v1300
  %2169 = vmatpush.bf16.msra.mxu0 %v1296
  %2170 = vmatpush.bf16.msra.mxu0 %v1292
  %2171 = vmatpush.bf16.msra.mxu0 %v1288
  %2172 = vmatpush.bf16.msra.mxu0 %v1284
  %2173 = vmatpush.bf16.msra.mxu0 %v1280
  %2174 = vmatmul.bf16.gmra.mxu0 %v333
  %v2175 = vpop.f32.mrf.mxu0
  %v2176 = vadd.f32 %v2163, %v2175
  %v2177 = vpop.f32.mrf.mxu0
  %2178 = vdwg.mxu0
  %2179 = vmatpush.bf16.msra.mxu0 %v1340
  %2180 = vmatpush.bf16.msra.mxu0 %v1336
  %2181 = vmatpush.bf16.msra.mxu0 %v1332
  %2182 = vmatpush.bf16.msra.mxu0 %v1328
  %2183 = vmatpush.bf16.msra.mxu0 %v1324
  %2184 = vmatpush.bf16.msra.mxu0 %v1320
  %2185 = vmatpush.bf16.msra.mxu0 %v1316
  %2186 = vmatpush.bf16.msra.mxu0 %v1312
  %2187 = vmatmul.bf16.gmra.mxu0 %v334
  %v2188 = vpop.f32.mrf.mxu0
  %v2189 = vadd.f32 %v2176, %v2188
  %v2190 = vpop.f32.mrf.mxu0
  %2191 = vdwg.mxu0
  %2192 = vmatpush.bf16.msra.mxu0 %v1372
  %2193 = vmatpush.bf16.msra.mxu0 %v1368
  %2194 = vmatpush.bf16.msra.mxu0 %v1364
  %2195 = vmatpush.bf16.msra.mxu0 %v1360
  %2196 = vmatpush.bf16.msra.mxu0 %v1356
  %2197 = vmatpush.bf16.msra.mxu0 %v1352
  %2198 = vmatpush.bf16.msra.mxu0 %v1348
  %2199 = vmatpush.bf16.msra.mxu0 %v1344
  %2200 = vmatmul.bf16.gmra.mxu0 %v335
  %v2201 = vpop.f32.mrf.mxu0
  %v2202 = vadd.f32 %v2189, %v2201
  %v2203 = vpop.f32.mrf.mxu0
  %2204 = vdwg.mxu0
  %2205 = vmatpush.bf16.msra.mxu0 %v1404
  %2206 = vmatpush.bf16.msra.mxu0 %v1400
  %2207 = vmatpush.bf16.msra.mxu0 %v1396
  %2208 = vmatpush.bf16.msra.mxu0 %v1392
  %2209 = vmatpush.bf16.msra.mxu0 %v1388
  %2210 = vmatpush.bf16.msra.mxu0 %v1384
  %2211 = vmatpush.bf16.msra.mxu0 %v1380
  %2212 = vmatpush.bf16.msra.mxu0 %v1376
  %2213 = vmatmul.bf16.gmra.mxu0 %v336
  %v2214 = vpop.f32.mrf.mxu0
  %v2215 = vadd.f32 %v2202, %v2214
  %v2216 = vpop.f32.mrf.mxu0
  %2217 = vdwg.mxu0
  %2218 = vmatpush.bf16.msra.mxu0 %v1436
  %2219 = vmatpush.bf16.msra.mxu0 %v1432
  %2220 = vmatpush.bf16.msra.mxu0 %v1428
  %2221 = vmatpush.bf16.msra.mxu0 %v1424
  %2222 = vmatpush.bf16.msra.mxu0 %v1420
  %2223 = vmatpush.bf16.msra.mxu0 %v1416
  %2224 = vmatpush.bf16.msra.mxu0 %v1412
  %2225 = vmatpush.bf16.msra.mxu0 %v1408
  %2226 = vmatmul.bf16.gmra.mxu0 %v337
  %v2227 = vpop.f32.mrf.mxu0
  %v2228 = vadd.f32 %v2215, %v2227
  %v2229 = vpop.f32.mrf.mxu0
  %2230 = vdwg.mxu0
  %2231 = vmatpush.bf16.msra.mxu0 %v1468
  %2232 = vmatpush.bf16.msra.mxu0 %v1464
  %2233 = vmatpush.bf16.msra.mxu0 %v1460
  %2234 = vmatpush.bf16.msra.mxu0 %v1456
  %2235 = vmatpush.bf16.msra.mxu0 %v1452
  %2236 = vmatpush.bf16.msra.mxu0 %v1448
  %2237 = vmatpush.bf16.msra.mxu0 %v1444
  %2238 = vmatpush.bf16.msra.mxu0 %v1440
  %2239 = vmatmul.bf16.gmra.mxu0 %v338
  %v2240 = vpop.f32.mrf.mxu0
  %v2241 = vadd.f32 %v2228, %v2240
  %v2242 = vpop.f32.mrf.mxu0
  %2243 = vdwg.mxu0
  %2244 = vmatpush.bf16.msra.mxu0 %v1500
  %2245 = vmatpush.bf16.msra.mxu0 %v1496
  %2246 = vmatpush.bf16.msra.mxu0 %v1492
  %2247 = vmatpush.bf16.msra.mxu0 %v1488
  %2248 = vmatpush.bf16.msra.mxu0 %v1484
  %2249 = vmatpush.bf16.msra.mxu0 %v1480
  %2250 = vmatpush.bf16.msra.mxu0 %v1476
  %2251 = vmatpush.bf16.msra.mxu0 %v1472
  %2252 = vmatmul.bf16.gmra.mxu0 %v339
  %v2253 = vpop.f32.mrf.mxu0
  %v2254 = vadd.f32 %v2241, %v2253
  %v2255 = vpop.f32.mrf.mxu0
  %2256 = vdwg.mxu0
  %v2257 = vmax.f32 %v1903, 0.0
  %v2258 = vmax.f32 %v2020, 0.0
  %v2259 = vmax.f32 %v2137, 0.0
  %v2260 = vmax.f32 %v2254, 0.0
  %v2261 = vpack.c.bf16 %v2258, %v2257
  %v2262 = vpack.c.bf16 %v2260, %v2259
  %2263 = vst [vmem:[%s3] sm:$0xff] %v2261
  %2264 = vst [vmem:[%s3 + $0x8] sm:$0xff] %v2262
  // Predicated region
  $region14: #{vae_forward.18} parent=0 // pred_check
    _
  $region15: #{vae_forward.18} parent=0 // pred_check_branch
    %2266 = sbr.rel (0) target = $region17
  $region16: #{vae_forward.18} parent=0 // pred_region
    _
  $region17: #{vae_forward.18} parent=0 // pred_fallthru
    _
  // Predicated region
  $region18: #{vae_forward.18} parent=0 // pred_check
    _
  $region19: #{vae_forward.18} parent=0 // pred_check_branch
    %2268 = sbr.rel (0) target = $region21
  $region20: #{vae_forward.18} parent=0 // pred_region
    _
  $region21: #{vae_forward.18} parent=0 // pred_fallthru
    _

// kernel: vae_forward.19
$region0: #{vae_forward.19}
  #allocation0 [shape = 'u32[]', space=smem, size = 0x4, offset = 0x4, fixed_abs, tag = 'smem constant byte address 0x4 - core index']
  #allocation1 [shape = 'u32[72,128]{1,0:T(1,128)}', space=vmem, size = 0x9000, scoped, tag = 'internal scratch']
  %s0 = inlined_call_operand.vmem [shape: bf16[32,1152], index: 0, kind: input, shape index: {}]
  %s1 = inlined_call_operand.vmem [shape: bf16[1152,256], index: 1, kind: input, shape index: {}]
  %s2 = inlined_call_operand.vmem [shape: f32[1,256], index: 2, kind: input, shape index: {}]
  %s3 = inlined_call_operand.vmem [shape: bf16[32,256], index: 3, kind: output, shape index: {}]
  %s4 = sld [smem:[#allocation0]]
  $region22: #{vae_forward.19} parent=0
    _
  %s6 = ssub.s32 1, %s4
  %s7 = scalar_select 0, %s6, %s4
  // Predicated region
  $region2: #{vae_forward.19} parent=0 // pred_check
    _
  $region3: #{vae_forward.19} parent=0 // pred_check_branch
    %9 = sbr.rel (0) target = $region5
  $region4: #{vae_forward.19} parent=0 // pred_region
    _
  $region5: #{vae_forward.19} parent=0 // pred_fallthru
    _
  // Predicated region
  $region6: #{vae_forward.19} parent=0 // pred_check
    _
  $region7: #{vae_forward.19} parent=0 // pred_check_branch
    %11 = sbr.rel (0) target = $region9
  $region8: #{vae_forward.19} parent=0 // pred_region
    _
  $region9: #{vae_forward.19} parent=0 // pred_fallthru
    _
  // Predicated region
  $region10: #{vae_forward.19} parent=0 // pred_check
    _
  $region11: #{vae_forward.19} parent=0 // pred_check_branch
    %13 = sbr.rel (0) target = $region13
  $region12: #{vae_forward.19} parent=0 // pred_region
    _
  $region13: #{vae_forward.19} parent=0 // pred_fallthru
    _
  %v14 = vld [vmem:[%s0] sm:$0xff]
  %v15 = vld [vmem:[%s0 + $0x8] sm:$0xff]
  %v16 = vld [vmem:[%s0 + $0x10] sm:$0xff]
  %v17 = vld [vmem:[%s0 + $0x18] sm:$0xff]
  %v18 = vld [vmem:[%s0 + $0x20] sm:$0xf]
  %v19 = vld [vmem:[%s0 + $0x24] sm:$0xff]
  %v20 = vld [vmem:[%s0 + $0x2c] sm:$0xff]
  %v21 = vld [vmem:[%s0 + $0x34] sm:$0xff]
  %v22 = vld [vmem:[%s0 + $0x3c] sm:$0xff]
  %v23 = vld [vmem:[%s0 + $0x44] sm:$0xf]
  %v24 = vld [vmem:[%s0 + $0x48] sm:$0xff]
  %v25 = vld [vmem:[%s0 + $0x50] sm:$0xff]
  %v26 = vld [vmem:[%s0 + $0x58] sm:$0xff]
  %v27 = vld [vmem:[%s0 + $0x60] sm:$0xff]
  %v28 = vld [vmem:[%s0 + $0x68] sm:$0xf]
  %v29 = vld [vmem:[%s0 + $0x6c] sm:$0xff]
  %v30 = vld [vmem:[%s0 + $0x74] sm:$0xff]
  %v31 = vld [vmem:[%s0 + $0x7c] sm:$0xff]
  %v32 = vld [vmem:[%s0 + $0x84] sm:$0xff]
  %v33 = vld [vmem:[%s0 + $0x8c] sm:$0xf]
  %v34 = vld [vmem:[%s1] sm:$0xff]
  %v35 = vld [vmem:[%s1 + $0x8] sm:$0xff]
  %v36 = vld [vmem:[%s1 + $0x10] sm:$0xff]
  %v37 = vld [vmem:[%s1 + $0x18] sm:$0xff]
  %v38 = vld [vmem:[%s1 + $0x20] sm:$0xff]
  %v39 = vld [vmem:[%s1 + $0x28] sm:$0xff]
  %v40 = vld [vmem:[%s1 + $0x30] sm:$0xff]
  %v41 = vld [vmem:[%s1 + $0x38] sm:$0xff]
  %v42 = vld [vmem:[%s1 + $0x40] sm:$0xff]
  %v43 = vld [vmem:[%s1 + $0x48] sm:$0xff]
  %v44 = vld [vmem:[%s1 + $0x50] sm:$0xff]
  %v45 = vld [vmem:[%s1 + $0x58] sm:$0xff]
  %v46 = vld [vmem:[%s1 + $0x60] sm:$0xff]
  %v47 = vld [vmem:[%s1 + $0x68] sm:$0xff]
  %v48 = vld [vmem:[%s1 + $0x70] sm:$0xff]
  %v49 = vld [vmem:[%s1 + $0x78] sm:$0xff]
  %v50 = vld [vmem:[%s1 + $0x80] sm:$0xff]
  %v51 = vld [vmem:[%s1 + $0x88] sm:$0xff]
  %v52 = vld [vmem:[%s1 + $0x90] sm:$0xff]
  %v53 = vld [vmem:[%s1 + $0x98] sm:$0xff]
  %v54 = vld [vmem:[%s1 + $0xa0] sm:$0xff]
  %v55 = vld [vmem:[%s1 + $0xa8] sm:$0xff]
  %v56 = vld [vmem:[%s1 + $0xb0] sm:$0xff]
  %v57 = vld [vmem:[%s1 + $0xb8] sm:$0xff]
  %v58 = vld [vmem:[%s1 + $0xc0] sm:$0xff]
  %v59 = vld [vmem:[%s1 + $0xc8] sm:$0xff]
  %v60 = vld [vmem:[%s1 + $0xd0] sm:$0xff]
  %v61 = vld [vmem:[%s1 + $0xd8] sm:$0xff]
  %v62 = vld [vmem:[%s1 + $0xe0] sm:$0xff]
  %v63 = vld [vmem:[%s1 + $0xe8] sm:$0xff]
  %v64 = vld [vmem:[%s1 + $0xf0] sm:$0xff]
  %v65 = vld [vmem:[%s1 + $0xf8] sm:$0xff]
  %v66 = vld [vmem:[%s1 + $0x100] sm:$0xff]
  %v67 = vld [vmem:[%s1 + $0x108] sm:$0xff]
  %v68 = vld [vmem:[%s1 + $0x110] sm:$0xff]
  %v69 = vld [vmem:[%s1 + $0x118] sm:$0xff]
  %v70 = vld [vmem:[%s1 + $0x120] sm:$0xff]
  %v71 = vld [vmem:[%s1 + $0x128] sm:$0xff]
  %v72 = vld [vmem:[%s1 + $0x130] sm:$0xff]
  %v73 = vld [vmem:[%s1 + $0x138] sm:$0xff]
  %v74 = vld [vmem:[%s1 + $0x140] sm:$0xff]
  %v75 = vld [vmem:[%s1 + $0x148] sm:$0xff]
  %v76 = vld [vmem:[%s1 + $0x150] sm:$0xff]
  %v77 = vld [vmem:[%s1 + $0x158] sm:$0xff]
  %v78 = vld [vmem:[%s1 + $0x160] sm:$0xff]
  %v79 = vld [vmem:[%s1 + $0x168] sm:$0xff]
  %v80 = vld [vmem:[%s1 + $0x170] sm:$0xff]
  %v81 = vld [vmem:[%s1 + $0x178] sm:$0xff]
  %v82 = vld [vmem:[%s1 + $0x180] sm:$0xff]
  %v83 = vld [vmem:[%s1 + $0x188] sm:$0xff]
  %v84 = vld [vmem:[%s1 + $0x190] sm:$0xff]
  %v85 = vld [vmem:[%s1 + $0x198] sm:$0xff]
  %v86 = vld [vmem:[%s1 + $0x1a0] sm:$0xff]
  %v87 = vld [vmem:[%s1 + $0x1a8] sm:$0xff]
  %v88 = vld [vmem:[%s1 + $0x1b0] sm:$0xff]
  %v89 = vld [vmem:[%s1 + $0x1b8] sm:$0xff]
  %v90 = vld [vmem:[%s1 + $0x1c0] sm:$0xff]
  %v91 = vld [vmem:[%s1 + $0x1c8] sm:$0xff]
  %v92 = vld [vmem:[%s1 + $0x1d0] sm:$0xff]
  %v93 = vld [vmem:[%s1 + $0x1d8] sm:$0xff]
  %v94 = vld [vmem:[%s1 + $0x1e0] sm:$0xff]
  %v95 = vld [vmem:[%s1 + $0x1e8] sm:$0xff]
  %v96 = vld [vmem:[%s1 + $0x1f0] sm:$0xff]
  %v97 = vld [vmem:[%s1 + $0x1f8] sm:$0xff]
  %v98 = vld [vmem:[%s1 + $0x200] sm:$0xff]
  %v99 = vld [vmem:[%s1 + $0x208] sm:$0xff]
  %v100 = vld [vmem:[%s1 + $0x210] sm:$0xff]
  %v101 = vld [vmem:[%s1 + $0x218] sm:$0xff]
  %v102 = vld [vmem:[%s1 + $0x220] sm:$0xff]
  %v103 = vld [vmem:[%s1 + $0x228] sm:$0xff]
  %v104 = vld [vmem:[%s1 + $0x230] sm:$0xff]
  %v105 = vld [vmem:[%s1 + $0x238] sm:$0xff]
  %v106 = vld [vmem:[%s1 + $0x240] sm:$0xff]
  %v107 = vld [vmem:[%s1 + $0x248] sm:$0xff]
  %v108 = vld [vmem:[%s1 + $0x250] sm:$0xff]
  %v109 = vld [vmem:[%s1 + $0x258] sm:$0xff]
  %v110 = vld [vmem:[%s1 + $0x260] sm:$0xff]
  %v111 = vld [vmem:[%s1 + $0x268] sm:$0xff]
  %v112 = vld [vmem:[%s1 + $0x270] sm:$0xff]
  %v113 = vld [vmem:[%s1 + $0x278] sm:$0xff]
  %v114 = vld [vmem:[%s1 + $0x280] sm:$0xff]
  %v115 = vld [vmem:[%s1 + $0x288] sm:$0xff]
  %v116 = vld [vmem:[%s1 + $0x290] sm:$0xff]
  %v117 = vld [vmem:[%s1 + $0x298] sm:$0xff]
  %v118 = vld [vmem:[%s1 + $0x2a0] sm:$0xff]
  %v119 = vld [vmem:[%s1 + $0x2a8] sm:$0xff]
  %v120 = vld [vmem:[%s1 + $0x2b0] sm:$0xff]
  %v121 = vld [vmem:[%s1 + $0x2b8] sm:$0xff]
  %v122 = vld [vmem:[%s1 + $0x2c0] sm:$0xff]
  %v123 = vld [vmem:[%s1 + $0x2c8] sm:$0xff]
  %v124 = vld [vmem:[%s1 + $0x2d0] sm:$0xff]
  %v125 = vld [vmem:[%s1 + $0x2d8] sm:$0xff]
  %v126 = vld [vmem:[%s1 + $0x2e0] sm:$0xff]
  %v127 = vld [vmem:[%s1 + $0x2e8] sm:$0xff]
  %v128 = vld [vmem:[%s1 + $0x2f0] sm:$0xff]
  %v129 = vld [vmem:[%s1 + $0x2f8] sm:$0xff]
  %v130 = vld [vmem:[%s1 + $0x300] sm:$0xff]
  %v131 = vld [vmem:[%s1 + $0x308] sm:$0xff]
  %v132 = vld [vmem:[%s1 + $0x310] sm:$0xff]
  %v133 = vld [vmem:[%s1 + $0x318] sm:$0xff]
  %v134 = vld [vmem:[%s1 + $0x320] sm:$0xff]
  %v135 = vld [vmem:[%s1 + $0x328] sm:$0xff]
  %v136 = vld [vmem:[%s1 + $0x330] sm:$0xff]
  %v137 = vld [vmem:[%s1 + $0x338] sm:$0xff]
  %v138 = vld [vmem:[%s1 + $0x340] sm:$0xff]
  %v139 = vld [vmem:[%s1 + $0x348] sm:$0xff]
  %v140 = vld [vmem:[%s1 + $0x350] sm:$0xff]
  %v141 = vld [vmem:[%s1 + $0x358] sm:$0xff]
  %v142 = vld [vmem:[%s1 + $0x360] sm:$0xff]
  %v143 = vld [vmem:[%s1 + $0x368] sm:$0xff]
  %v144 = vld [vmem:[%s1 + $0x370] sm:$0xff]
  %v145 = vld [vmem:[%s1 + $0x378] sm:$0xff]
  %v146 = vld [vmem:[%s1 + $0x380] sm:$0xff]
  %v147 = vld [vmem:[%s1 + $0x388] sm:$0xff]
  %v148 = vld [vmem:[%s1 + $0x390] sm:$0xff]
  %v149 = vld [vmem:[%s1 + $0x398] sm:$0xff]
  %v150 = vld [vmem:[%s1 + $0x3a0] sm:$0xff]
  %v151 = vld [vmem:[%s1 + $0x3a8] sm:$0xff]
  %v152 = vld [vmem:[%s1 + $0x3b0] sm:$0xff]
  %v153 = vld [vmem:[%s1 + $0x3b8] sm:$0xff]
  %v154 = vld [vmem:[%s1 + $0x3c0] sm:$0xff]
  %v155 = vld [vmem:[%s1 + $0x3c8] sm:$0xff]
  %v156 = vld [vmem:[%s1 + $0x3d0] sm:$0xff]
  %v157 = vld [vmem:[%s1 + $0x3d8] sm:$0xff]
  %v158 = vld [vmem:[%s1 + $0x3e0] sm:$0xff]
  %v159 = vld [vmem:[%s1 + $0x3e8] sm:$0xff]
  %v160 = vld [vmem:[%s1 + $0x3f0] sm:$0xff]
  %v161 = vld [vmem:[%s1 + $0x3f8] sm:$0xff]
  %v162 = vld [vmem:[%s1 + $0x400] sm:$0xff]
  %v163 = vld [vmem:[%s1 + $0x408] sm:$0xff]
  %v164 = vld [vmem:[%s1 + $0x410] sm:$0xff]
  %v165 = vld [vmem:[%s1 + $0x418] sm:$0xff]
  %v166 = vld [vmem:[%s1 + $0x420] sm:$0xff]
  %v167 = vld [vmem:[%s1 + $0x428] sm:$0xff]
  %v168 = vld [vmem:[%s1 + $0x430] sm:$0xff]
  %v169 = vld [vmem:[%s1 + $0x438] sm:$0xff]
  %v170 = vld [vmem:[%s1 + $0x440] sm:$0xff]
  %v171 = vld [vmem:[%s1 + $0x448] sm:$0xff]
  %v172 = vld [vmem:[%s1 + $0x450] sm:$0xff]
  %v173 = vld [vmem:[%s1 + $0x458] sm:$0xff]
  %v174 = vld [vmem:[%s1 + $0x460] sm:$0xff]
  %v175 = vld [vmem:[%s1 + $0x468] sm:$0xff]
  %v176 = vld [vmem:[%s1 + $0x470] sm:$0xff]
  %v177 = vld [vmem:[%s1 + $0x478] sm:$0xff]
  %v178 = vld [vmem:[%s2] sm:$0x3]
  %v180 = vperm.slane %v178, 0
  %v181 = vperm.slane %v178, 1
  %v204 = vunpack.c.l.b16 %v14
  %v205 = vunpack.c.h.b16 %v14
  %v206 = vunpack.c.l.b16 %v15
  %v207 = vunpack.c.h.b16 %v15
  %v208 = vunpack.c.l.b16 %v16
  %v209 = vunpack.c.h.b16 %v16
  %v210 = vunpack.c.l.b16 %v17
  %v211 = vunpack.c.h.b16 %v17
  %v212 = vunpack.c.l.b16 %v18
  %v213 = vunpack.c.l.b16 %v19
  %v214 = vunpack.c.h.b16 %v19
  %v215 = vunpack.c.l.b16 %v20
  %v216 = vunpack.c.h.b16 %v20
  %v217 = vunpack.c.l.b16 %v21
  %v218 = vunpack.c.h.b16 %v21
  %v219 = vunpack.c.l.b16 %v22
  %v220 = vunpack.c.h.b16 %v22
  %v221 = vunpack.c.l.b16 %v23
  %v222 = vunpack.c.l.b16 %v24
  %v223 = vunpack.c.h.b16 %v24
  %v224 = vunpack.c.l.b16 %v25
  %v225 = vunpack.c.h.b16 %v25
  %v226 = vunpack.c.l.b16 %v26
  %v227 = vunpack.c.h.b16 %v26
  %v228 = vunpack.c.l.b16 %v27
  %v229 = vunpack.c.h.b16 %v27
  %v230 = vunpack.c.l.b16 %v28
  %v231 = vunpack.c.l.b16 %v29
  %v232 = vunpack.c.h.b16 %v29
  %v233 = vunpack.c.l.b16 %v30
  %v234 = vunpack.c.h.b16 %v30
  %v235 = vunpack.c.l.b16 %v31
  %v236 = vunpack.c.h.b16 %v31
  %v237 = vunpack.c.l.b16 %v32
  %v238 = vunpack.c.h.b16 %v32
  %v239 = vunpack.c.l.b16 %v33
  %v240 = vpack.c.b16 %v213, %v204
  %v241 = vpack.c.b16 %v214, %v205
  %v242 = vpack.c.b16 %v215, %v206
  %v243 = vpack.c.b16 %v216, %v207
  %v244 = vpack.c.b16 %v217, %v208
  %v245 = vpack.c.b16 %v218, %v209
  %v246 = vpack.c.b16 %v219, %v210
  %v247 = vpack.c.b16 %v220, %v211
  %v248 = vpack.c.b16 %v221, %v212
  %v249 = vpack.c.b16 %v231, %v222
  %v250 = vpack.c.b16 %v232, %v223
  %v251 = vpack.c.b16 %v233, %v224
  %v252 = vpack.c.b16 %v234, %v225
  %v253 = vpack.c.b16 %v235, %v226
  %v254 = vpack.c.b16 %v236, %v227
  %v255 = vpack.c.b16 %v237, %v228
  %v256 = vpack.c.b16 %v238, %v229
  %v257 = vpack.c.b16 %v239, %v230
  %v420 = vunpack.c.l.b16 %v34
  %v421 = vunpack.c.h.b16 %v34
  %v422 = vunpack.c.l.b16 %v35
  %v423 = vunpack.c.h.b16 %v35
  %v424 = vunpack.c.l.b16 %v36
  %v425 = vunpack.c.h.b16 %v36
  %v426 = vunpack.c.l.b16 %v37
  %v427 = vunpack.c.h.b16 %v37
  %v428 = vunpack.c.l.b16 %v38
  %v429 = vunpack.c.h.b16 %v38
  %v430 = vunpack.c.l.b16 %v39
  %v431 = vunpack.c.h.b16 %v39
  %v432 = vunpack.c.l.b16 %v40
  %v433 = vunpack.c.h.b16 %v40
  %v434 = vunpack.c.l.b16 %v41
  %v435 = vunpack.c.h.b16 %v41
  %v436 = vunpack.c.l.b16 %v42
  %v437 = vunpack.c.h.b16 %v42
  %v438 = vunpack.c.l.b16 %v43
  %v439 = vunpack.c.h.b16 %v43
  %v440 = vunpack.c.l.b16 %v44
  %v441 = vunpack.c.h.b16 %v44
  %v442 = vunpack.c.l.b16 %v45
  %v443 = vunpack.c.h.b16 %v45
  %v444 = vunpack.c.l.b16 %v46
  %v445 = vunpack.c.h.b16 %v46
  %v446 = vunpack.c.l.b16 %v47
  %v447 = vunpack.c.h.b16 %v47
  %v448 = vunpack.c.l.b16 %v48
  %v449 = vunpack.c.h.b16 %v48
  %v450 = vunpack.c.l.b16 %v49
  %v451 = vunpack.c.h.b16 %v49
  %v452 = vunpack.c.l.b16 %v50
  %v453 = vunpack.c.h.b16 %v50
  %v454 = vunpack.c.l.b16 %v51
  %v455 = vunpack.c.h.b16 %v51
  %v456 = vunpack.c.l.b16 %v52
  %v457 = vunpack.c.h.b16 %v52
  %v458 = vunpack.c.l.b16 %v53
  %v459 = vunpack.c.h.b16 %v53
  %v460 = vunpack.c.l.b16 %v54
  %v461 = vunpack.c.h.b16 %v54
  %v462 = vunpack.c.l.b16 %v55
  %v463 = vunpack.c.h.b16 %v55
  %v464 = vunpack.c.l.b16 %v56
  %v465 = vunpack.c.h.b16 %v56
  %v466 = vunpack.c.l.b16 %v57
  %v467 = vunpack.c.h.b16 %v57
  %v468 = vunpack.c.l.b16 %v58
  %v469 = vunpack.c.h.b16 %v58
  %v470 = vunpack.c.l.b16 %v59
  %v471 = vunpack.c.h.b16 %v59
  %v472 = vunpack.c.l.b16 %v60
  %v473 = vunpack.c.h.b16 %v60
  %v474 = vunpack.c.l.b16 %v61
  %v475 = vunpack.c.h.b16 %v61
  %v476 = vunpack.c.l.b16 %v62
  %v477 = vunpack.c.h.b16 %v62
  %v478 = vunpack.c.l.b16 %v63
  %v479 = vunpack.c.h.b16 %v63
  %v480 = vunpack.c.l.b16 %v64
  %v481 = vunpack.c.h.b16 %v64
  %v482 = vunpack.c.l.b16 %v65
  %v483 = vunpack.c.h.b16 %v65
  %v484 = vunpack.c.l.b16 %v66
  %v485 = vunpack.c.h.b16 %v66
  %v486 = vunpack.c.l.b16 %v67
  %v487 = vunpack.c.h.b16 %v67
  %v488 = vunpack.c.l.b16 %v68
  %v489 = vunpack.c.h.b16 %v68
  %v490 = vunpack.c.l.b16 %v69
  %v491 = vunpack.c.h.b16 %v69
  %v492 = vunpack.c.l.b16 %v70
  %v493 = vunpack.c.h.b16 %v70
  %v494 = vunpack.c.l.b16 %v71
  %v495 = vunpack.c.h.b16 %v71
  %v496 = vunpack.c.l.b16 %v72
  %v497 = vunpack.c.h.b16 %v72
  %v498 = vunpack.c.l.b16 %v73
  %v499 = vunpack.c.h.b16 %v73
  %v500 = vunpack.c.l.b16 %v74
  %v501 = vunpack.c.h.b16 %v74
  %v502 = vunpack.c.l.b16 %v75
  %v503 = vunpack.c.h.b16 %v75
  %v504 = vunpack.c.l.b16 %v76
  %v505 = vunpack.c.h.b16 %v76
  %v506 = vunpack.c.l.b16 %v77
  %v507 = vunpack.c.h.b16 %v77
  %v508 = vunpack.c.l.b16 %v78
  %v509 = vunpack.c.h.b16 %v78
  %v510 = vunpack.c.l.b16 %v79
  %v511 = vunpack.c.h.b16 %v79
  %v512 = vunpack.c.l.b16 %v80
  %v513 = vunpack.c.h.b16 %v80
  %v514 = vunpack.c.l.b16 %v81
  %v515 = vunpack.c.h.b16 %v81
  %v516 = vunpack.c.l.b16 %v82
  %v517 = vunpack.c.h.b16 %v82
  %v518 = vunpack.c.l.b16 %v83
  %v519 = vunpack.c.h.b16 %v83
  %v520 = vunpack.c.l.b16 %v84
  %v521 = vunpack.c.h.b16 %v84
  %v522 = vunpack.c.l.b16 %v85
  %v523 = vunpack.c.h.b16 %v85
  %v524 = vunpack.c.l.b16 %v86
  %v525 = vunpack.c.h.b16 %v86
  %v526 = vunpack.c.l.b16 %v87
  %v527 = vunpack.c.h.b16 %v87
  %v528 = vunpack.c.l.b16 %v88
  %v529 = vunpack.c.h.b16 %v88
  %v530 = vunpack.c.l.b16 %v89
  %v531 = vunpack.c.h.b16 %v89
  %v532 = vunpack.c.l.b16 %v90
  %v533 = vunpack.c.h.b16 %v90
  %v534 = vunpack.c.l.b16 %v91
  %v535 = vunpack.c.h.b16 %v91
  %v536 = vunpack.c.l.b16 %v92
  %v537 = vunpack.c.h.b16 %v92
  %v538 = vunpack.c.l.b16 %v93
  %v539 = vunpack.c.h.b16 %v93
  %v540 = vunpack.c.l.b16 %v94
  %v541 = vunpack.c.h.b16 %v94
  %v542 = vunpack.c.l.b16 %v95
  %v543 = vunpack.c.h.b16 %v95
  %v544 = vunpack.c.l.b16 %v96
  %v545 = vunpack.c.h.b16 %v96
  %v546 = vunpack.c.l.b16 %v97
  %v547 = vunpack.c.h.b16 %v97
  %v548 = vunpack.c.l.b16 %v98
  %v549 = vunpack.c.h.b16 %v98
  %v550 = vunpack.c.l.b16 %v99
  %v551 = vunpack.c.h.b16 %v99
  %v552 = vunpack.c.l.b16 %v100
  %v553 = vunpack.c.h.b16 %v100
  %v554 = vunpack.c.l.b16 %v101
  %v555 = vunpack.c.h.b16 %v101
  %v556 = vunpack.c.l.b16 %v102
  %v557 = vunpack.c.h.b16 %v102
  %v558 = vunpack.c.l.b16 %v103
  %v559 = vunpack.c.h.b16 %v103
  %v560 = vunpack.c.l.b16 %v104
  %v561 = vunpack.c.h.b16 %v104
  %v562 = vunpack.c.l.b16 %v105
  %v563 = vunpack.c.h.b16 %v105
  %v564 = vunpack.c.l.b16 %v106
  %v565 = vunpack.c.h.b16 %v106
  %v566 = vunpack.c.l.b16 %v107
  %v567 = vunpack.c.h.b16 %v107
  %v568 = vunpack.c.l.b16 %v108
  %v569 = vunpack.c.h.b16 %v108
  %v570 = vunpack.c.l.b16 %v109
  %v571 = vunpack.c.h.b16 %v109
  %v572 = vunpack.c.l.b16 %v110
  %v573 = vunpack.c.h.b16 %v110
  %v574 = vunpack.c.l.b16 %v111
  %v575 = vunpack.c.h.b16 %v111
  %v576 = vunpack.c.l.b16 %v112
  %v577 = vunpack.c.h.b16 %v112
  %v578 = vunpack.c.l.b16 %v113
  %v579 = vunpack.c.h.b16 %v113
  %v580 = vunpack.c.l.b16 %v114
  %v581 = vunpack.c.h.b16 %v114
  %v582 = vunpack.c.l.b16 %v115
  %v583 = vunpack.c.h.b16 %v115
  %v584 = vunpack.c.l.b16 %v116
  %v585 = vunpack.c.h.b16 %v116
  %v586 = vunpack.c.l.b16 %v117
  %v587 = vunpack.c.h.b16 %v117
  %v588 = vunpack.c.l.b16 %v118
  %v589 = vunpack.c.h.b16 %v118
  %v590 = vunpack.c.l.b16 %v119
  %v591 = vunpack.c.h.b16 %v119
  %v592 = vunpack.c.l.b16 %v120
  %v593 = vunpack.c.h.b16 %v120
  %v594 = vunpack.c.l.b16 %v121
  %v595 = vunpack.c.h.b16 %v121
  %v596 = vunpack.c.l.b16 %v122
  %v597 = vunpack.c.h.b16 %v122
  %v598 = vunpack.c.l.b16 %v123
  %v599 = vunpack.c.h.b16 %v123
  %v600 = vunpack.c.l.b16 %v124
  %v601 = vunpack.c.h.b16 %v124
  %v602 = vunpack.c.l.b16 %v125
  %v603 = vunpack.c.h.b16 %v125
  %v604 = vunpack.c.l.b16 %v126
  %v605 = vunpack.c.h.b16 %v126
  %v606 = vunpack.c.l.b16 %v127
  %v607 = vunpack.c.h.b16 %v127
  %v608 = vunpack.c.l.b16 %v128
  %v609 = vunpack.c.h.b16 %v128
  %v610 = vunpack.c.l.b16 %v129
  %v611 = vunpack.c.h.b16 %v129
  %v612 = vunpack.c.l.b16 %v130
  %v613 = vunpack.c.h.b16 %v130
  %v614 = vunpack.c.l.b16 %v131
  %v615 = vunpack.c.h.b16 %v131
  %v616 = vunpack.c.l.b16 %v132
  %v617 = vunpack.c.h.b16 %v132
  %v618 = vunpack.c.l.b16 %v133
  %v619 = vunpack.c.h.b16 %v133
  %v620 = vunpack.c.l.b16 %v134
  %v621 = vunpack.c.h.b16 %v134
  %v622 = vunpack.c.l.b16 %v135
  %v623 = vunpack.c.h.b16 %v135
  %v624 = vunpack.c.l.b16 %v136
  %v625 = vunpack.c.h.b16 %v136
  %v626 = vunpack.c.l.b16 %v137
  %v627 = vunpack.c.h.b16 %v137
  %v628 = vunpack.c.l.b16 %v138
  %v629 = vunpack.c.h.b16 %v138
  %v630 = vunpack.c.l.b16 %v139
  %v631 = vunpack.c.h.b16 %v139
  %v632 = vunpack.c.l.b16 %v140
  %v633 = vunpack.c.h.b16 %v140
  %v634 = vunpack.c.l.b16 %v141
  %v635 = vunpack.c.h.b16 %v141
  %v636 = vunpack.c.l.b16 %v142
  %v637 = vunpack.c.h.b16 %v142
  %v638 = vunpack.c.l.b16 %v143
  %v639 = vunpack.c.h.b16 %v143
  %v640 = vunpack.c.l.b16 %v144
  %v641 = vunpack.c.h.b16 %v144
  %v642 = vunpack.c.l.b16 %v145
  %v643 = vunpack.c.h.b16 %v145
  %v644 = vunpack.c.l.b16 %v146
  %v645 = vunpack.c.h.b16 %v146
  %v646 = vunpack.c.l.b16 %v147
  %v647 = vunpack.c.h.b16 %v147
  %v648 = vunpack.c.l.b16 %v148
  %v649 = vunpack.c.h.b16 %v148
  %v650 = vunpack.c.l.b16 %v149
  %v651 = vunpack.c.h.b16 %v149
  %v652 = vunpack.c.l.b16 %v150
  %v653 = vunpack.c.h.b16 %v150
  %v654 = vunpack.c.l.b16 %v151
  %v655 = vunpack.c.h.b16 %v151
  %v656 = vunpack.c.l.b16 %v152
  %v657 = vunpack.c.h.b16 %v152
  %v658 = vunpack.c.l.b16 %v153
  %v659 = vunpack.c.h.b16 %v153
  %v660 = vunpack.c.l.b16 %v154
  %v661 = vunpack.c.h.b16 %v154
  %v662 = vunpack.c.l.b16 %v155
  %v663 = vunpack.c.h.b16 %v155
  %v664 = vunpack.c.l.b16 %v156
  %v665 = vunpack.c.h.b16 %v156
  %v666 = vunpack.c.l.b16 %v157
  %v667 = vunpack.c.h.b16 %v157
  %v668 = vunpack.c.l.b16 %v158
  %v669 = vunpack.c.h.b16 %v158
  %v670 = vunpack.c.l.b16 %v159
  %v671 = vunpack.c.h.b16 %v159
  %v672 = vunpack.c.l.b16 %v160
  %v673 = vunpack.c.h.b16 %v160
  %v674 = vunpack.c.l.b16 %v161
  %v675 = vunpack.c.h.b16 %v161
  %v676 = vunpack.c.l.b16 %v162
  %v677 = vunpack.c.h.b16 %v162
  %v678 = vunpack.c.l.b16 %v163
  %v679 = vunpack.c.h.b16 %v163
  %v680 = vunpack.c.l.b16 %v164
  %v681 = vunpack.c.h.b16 %v164
  %v682 = vunpack.c.l.b16 %v165
  %v683 = vunpack.c.h.b16 %v165
  %v684 = vunpack.c.l.b16 %v166
  %v685 = vunpack.c.h.b16 %v166
  %v686 = vunpack.c.l.b16 %v167
  %v687 = vunpack.c.h.b16 %v167
  %v688 = vunpack.c.l.b16 %v168
  %v689 = vunpack.c.h.b16 %v168
  %v690 = vunpack.c.l.b16 %v169
  %v691 = vunpack.c.h.b16 %v169
  %v692 = vunpack.c.l.b16 %v170
  %v693 = vunpack.c.h.b16 %v170
  %v694 = vunpack.c.l.b16 %v171
  %v695 = vunpack.c.h.b16 %v171
  %v696 = vunpack.c.l.b16 %v172
  %v697 = vunpack.c.h.b16 %v172
  %v698 = vunpack.c.l.b16 %v173
  %v699 = vunpack.c.h.b16 %v173
  %v700 = vunpack.c.l.b16 %v174
  %v701 = vunpack.c.h.b16 %v174
  %v702 = vunpack.c.l.b16 %v175
  %v703 = vunpack.c.h.b16 %v175
  %v704 = vunpack.c.l.b16 %v176
  %v705 = vunpack.c.h.b16 %v176
  %v706 = vunpack.c.l.b16 %v177
  %v707 = vunpack.c.h.b16 %v177
  %v708 = vpack.c.b16 %v422, %v420
  %v709 = vpack.c.b16 %v423, %v421
  %v710 = vpack.c.b16 %v426, %v424
  %v711 = vpack.c.b16 %v427, %v425
  %v712 = vpack.c.b16 %v430, %v428
  %v713 = vpack.c.b16 %v431, %v429
  %v714 = vpack.c.b16 %v434, %v432
  %v715 = vpack.c.b16 %v435, %v433
  %v716 = vpack.c.b16 %v438, %v436
  %v717 = vpack.c.b16 %v439, %v437
  %v718 = vpack.c.b16 %v442, %v440
  %v719 = vpack.c.b16 %v443, %v441
  %v720 = vpack.c.b16 %v446, %v444
  %v721 = vpack.c.b16 %v447, %v445
  %v722 = vpack.c.b16 %v450, %v448
  %v723 = vpack.c.b16 %v451, %v449
  %v724 = vpack.c.b16 %v454, %v452
  %v725 = vpack.c.b16 %v455, %v453
  %v726 = vpack.c.b16 %v458, %v456
  %v727 = vpack.c.b16 %v459, %v457
  %v728 = vpack.c.b16 %v462, %v460
  %v729 = vpack.c.b16 %v463, %v461
  %v730 = vpack.c.b16 %v466, %v464
  %v731 = vpack.c.b16 %v467, %v465
  %v732 = vpack.c.b16 %v470, %v468
  %v733 = vpack.c.b16 %v471, %v469
  %v734 = vpack.c.b16 %v474, %v472
  %v735 = vpack.c.b16 %v475, %v473
  %v736 = vpack.c.b16 %v478, %v476
  %v737 = vpack.c.b16 %v479, %v477
  %v738 = vpack.c.b16 %v482, %v480
  %v739 = vpack.c.b16 %v483, %v481
  %v740 = vpack.c.b16 %v486, %v484
  %v741 = vpack.c.b16 %v487, %v485
  %v742 = vpack.c.b16 %v490, %v488
  %v743 = vpack.c.b16 %v491, %v489
  %v744 = vpack.c.b16 %v494, %v492
  %v745 = vpack.c.b16 %v495, %v493
  %v746 = vpack.c.b16 %v498, %v496
  %v747 = vpack.c.b16 %v499, %v497
  %v748 = vpack.c.b16 %v502, %v500
  %v749 = vpack.c.b16 %v503, %v501
  %v750 = vpack.c.b16 %v506, %v504
  %v751 = vpack.c.b16 %v507, %v505
  %v752 = vpack.c.b16 %v510, %v508
  %v753 = vpack.c.b16 %v511, %v509
  %v754 = vpack.c.b16 %v514, %v512
  %v755 = vpack.c.b16 %v515, %v513
  %v756 = vpack.c.b16 %v518, %v516
  %v757 = vpack.c.b16 %v519, %v517
  %v758 = vpack.c.b16 %v522, %v520
  %v759 = vpack.c.b16 %v523, %v521
  %v760 = vpack.c.b16 %v526, %v524
  %v761 = vpack.c.b16 %v527, %v525
  %v762 = vpack.c.b16 %v530, %v528
  %v763 = vpack.c.b16 %v531, %v529
  %v764 = vpack.c.b16 %v534, %v532
  %v765 = vpack.c.b16 %v535, %v533
  %v766 = vpack.c.b16 %v538, %v536
  %v767 = vpack.c.b16 %v539, %v537
  %v768 = vpack.c.b16 %v542, %v540
  %v769 = vpack.c.b16 %v543, %v541
  %v770 = vpack.c.b16 %v546, %v544
  %v771 = vpack.c.b16 %v547, %v545
  %v772 = vpack.c.b16 %v550, %v548
  %v773 = vpack.c.b16 %v551, %v549
  %v774 = vpack.c.b16 %v554, %v552
  %v775 = vpack.c.b16 %v555, %v553
  %v776 = vpack.c.b16 %v558, %v556
  %v777 = vpack.c.b16 %v559, %v557
  %v778 = vpack.c.b16 %v562, %v560
  %v779 = vpack.c.b16 %v563, %v561
  %v780 = vpack.c.b16 %v566, %v564
  %v781 = vpack.c.b16 %v567, %v565
  %v782 = vpack.c.b16 %v570, %v568
  %v783 = vpack.c.b16 %v571, %v569
  %v784 = vpack.c.b16 %v574, %v572
  %v785 = vpack.c.b16 %v575, %v573
  %v786 = vpack.c.b16 %v578, %v576
  %v787 = vpack.c.b16 %v579, %v577
  %v788 = vpack.c.b16 %v582, %v580
  %v789 = vpack.c.b16 %v583, %v581
  %v790 = vpack.c.b16 %v586, %v584
  %v791 = vpack.c.b16 %v587, %v585
  %v792 = vpack.c.b16 %v590, %v588
  %v793 = vpack.c.b16 %v591, %v589
  %v794 = vpack.c.b16 %v594, %v592
  %v795 = vpack.c.b16 %v595, %v593
  %v796 = vpack.c.b16 %v598, %v596
  %v797 = vpack.c.b16 %v599, %v597
  %v798 = vpack.c.b16 %v602, %v600
  %v799 = vpack.c.b16 %v603, %v601
  %v800 = vpack.c.b16 %v606, %v604
  %v801 = vpack.c.b16 %v607, %v605
  %v802 = vpack.c.b16 %v610, %v608
  %v803 = vpack.c.b16 %v611, %v609
  %v804 = vpack.c.b16 %v614, %v612
  %v805 = vpack.c.b16 %v615, %v613
  %v806 = vpack.c.b16 %v618, %v616
  %v807 = vpack.c.b16 %v619, %v617
  %v808 = vpack.c.b16 %v622, %v620
  %v809 = vpack.c.b16 %v623, %v621
  %v810 = vpack.c.b16 %v626, %v624
  %v811 = vpack.c.b16 %v627, %v625
  %v812 = vpack.c.b16 %v630, %v628
  %v813 = vpack.c.b16 %v631, %v629
  %v814 = vpack.c.b16 %v634, %v632
  %v815 = vpack.c.b16 %v635, %v633
  %v816 = vpack.c.b16 %v638, %v636
  %v817 = vpack.c.b16 %v639, %v637
  %v818 = vpack.c.b16 %v642, %v640
  %v819 = vpack.c.b16 %v643, %v641
  %v820 = vpack.c.b16 %v646, %v644
  %v821 = vpack.c.b16 %v647, %v645
  %v822 = vpack.c.b16 %v650, %v648
  %v823 = vpack.c.b16 %v651, %v649
  %v824 = vpack.c.b16 %v654, %v652
  %v825 = vpack.c.b16 %v655, %v653
  %v826 = vpack.c.b16 %v658, %v656
  %v827 = vpack.c.b16 %v659, %v657
  %v828 = vpack.c.b16 %v662, %v660
  %v829 = vpack.c.b16 %v663, %v661
  %v830 = vpack.c.b16 %v666, %v664
  %v831 = vpack.c.b16 %v667, %v665
  %v832 = vpack.c.b16 %v670, %v668
  %v833 = vpack.c.b16 %v671, %v669
  %v834 = vpack.c.b16 %v674, %v672
  %v835 = vpack.c.b16 %v675, %v673
  %v836 = vpack.c.b16 %v678, %v676
  %v837 = vpack.c.b16 %v679, %v677
  %v838 = vpack.c.b16 %v682, %v680
  %v839 = vpack.c.b16 %v683, %v681
  %v840 = vpack.c.b16 %v686, %v684
  %v841 = vpack.c.b16 %v687, %v685
  %v842 = vpack.c.b16 %v690, %v688
  %v843 = vpack.c.b16 %v691, %v689
  %v844 = vpack.c.b16 %v694, %v692
  %v845 = vpack.c.b16 %v695, %v693
  %v846 = vpack.c.b16 %v698, %v696
  %v847 = vpack.c.b16 %v699, %v697
  %v848 = vpack.c.b16 %v702, %v700
  %v849 = vpack.c.b16 %v703, %v701
  %v850 = vpack.c.b16 %v706, %v704
  %v851 = vpack.c.b16 %v707, %v705
  %996 = vmatpush.bf16.msra.mxu0 %v722
  %997 = vmatpush.bf16.msra.mxu0 %v720
  %998 = vmatpush.bf16.msra.mxu0 %v718
  %999 = vmatpush.bf16.msra.mxu0 %v716
  %1000 = vmatpush.bf16.msra.mxu0 %v714
  %1001 = vmatpush.bf16.msra.mxu0 %v712
  %1002 = vmatpush.bf16.msra.mxu0 %v710
  %1003 = vmatpush.bf16.msra.mxu0 %v708
  %1004 = vmatmul.bf16.gmra.mxu0 %v240
  %v1005 = vpop.f32.mrf.mxu0
  %v1006 = vadd.f32 %v180, %v1005
  %v1007 = vpop.f32.mrf.mxu0
  %v1008 = vadd.f32 %v180, %v1007
  %1009 = vmatmul.bf16.gmra.mxu0 %v249
  %v1010 = vpop.f32.mrf.mxu0
  %v1011 = vadd.f32 %v180, %v1010
  %v1012 = vpop.f32.mrf.mxu0
  %v1013 = vadd.f32 %v180, %v1012
  %1014 = vdwg.mxu0
  %1015 = vmatpush.bf16.msra.mxu0 %v738
  %1016 = vmatpush.bf16.msra.mxu0 %v736
  %1017 = vmatpush.bf16.msra.mxu0 %v734
  %1018 = vmatpush.bf16.msra.mxu0 %v732
  %1019 = vmatpush.bf16.msra.mxu0 %v730
  %1020 = vmatpush.bf16.msra.mxu0 %v728
  %1021 = vmatpush.bf16.msra.mxu0 %v726
  %1022 = vmatpush.bf16.msra.mxu0 %v724
  %1023 = vmatmul.bf16.gmra.mxu0 %v241
  %v1024 = vpop.f32.mrf.mxu0
  %v1025 = vadd.f32 %v1006, %v1024
  %v1026 = vpop.f32.mrf.mxu0
  %v1027 = vadd.f32 %v1008, %v1026
  %1028 = vmatmul.bf16.gmra.mxu0 %v250
  %v1029 = vpop.f32.mrf.mxu0
  %v1030 = vadd.f32 %v1011, %v1029
  %v1031 = vpop.f32.mrf.mxu0
  %v1032 = vadd.f32 %v1013, %v1031
  %1033 = vdwg.mxu0
  %1034 = vmatpush.bf16.msra.mxu0 %v754
  %1035 = vmatpush.bf16.msra.mxu0 %v752
  %1036 = vmatpush.bf16.msra.mxu0 %v750
  %1037 = vmatpush.bf16.msra.mxu0 %v748
  %1038 = vmatpush.bf16.msra.mxu0 %v746
  %1039 = vmatpush.bf16.msra.mxu0 %v744
  %1040 = vmatpush.bf16.msra.mxu0 %v742
  %1041 = vmatpush.bf16.msra.mxu0 %v740
  %1042 = vmatmul.bf16.gmra.mxu0 %v242
  %v1043 = vpop.f32.mrf.mxu0
  %v1044 = vadd.f32 %v1025, %v1043
  %v1045 = vpop.f32.mrf.mxu0
  %v1046 = vadd.f32 %v1027, %v1045
  %1047 = vmatmul.bf16.gmra.mxu0 %v251
  %v1048 = vpop.f32.mrf.mxu0
  %v1049 = vadd.f32 %v1030, %v1048
  %v1050 = vpop.f32.mrf.mxu0
  %v1051 = vadd.f32 %v1032, %v1050
  %1052 = vdwg.mxu0
  %1053 = vmatpush.bf16.msra.mxu0 %v770
  %1054 = vmatpush.bf16.msra.mxu0 %v768
  %1055 = vmatpush.bf16.msra.mxu0 %v766
  %1056 = vmatpush.bf16.msra.mxu0 %v764
  %1057 = vmatpush.bf16.msra.mxu0 %v762
  %1058 = vmatpush.bf16.msra.mxu0 %v760
  %1059 = vmatpush.bf16.msra.mxu0 %v758
  %1060 = vmatpush.bf16.msra.mxu0 %v756
  %1061 = vmatmul.bf16.gmra.mxu0 %v243
  %v1062 = vpop.f32.mrf.mxu0
  %v1063 = vadd.f32 %v1044, %v1062
  %v1064 = vpop.f32.mrf.mxu0
  %v1065 = vadd.f32 %v1046, %v1064
  %1066 = vmatmul.bf16.gmra.mxu0 %v252
  %v1067 = vpop.f32.mrf.mxu0
  %v1068 = vadd.f32 %v1049, %v1067
  %v1069 = vpop.f32.mrf.mxu0
  %v1070 = vadd.f32 %v1051, %v1069
  %1071 = vdwg.mxu0
  %1072 = vmatpush.bf16.msra.mxu0 %v786
  %1073 = vmatpush.bf16.msra.mxu0 %v784
  %1074 = vmatpush.bf16.msra.mxu0 %v782
  %1075 = vmatpush.bf16.msra.mxu0 %v780
  %1076 = vmatpush.bf16.msra.mxu0 %v778
  %1077 = vmatpush.bf16.msra.mxu0 %v776
  %1078 = vmatpush.bf16.msra.mxu0 %v774
  %1079 = vmatpush.bf16.msra.mxu0 %v772
  %1080 = vmatmul.bf16.gmra.mxu0 %v244
  %v1081 = vpop.f32.mrf.mxu0
  %v1082 = vadd.f32 %v1063, %v1081
  %v1083 = vpop.f32.mrf.mxu0
  %v1084 = vadd.f32 %v1065, %v1083
  %1085 = vmatmul.bf16.gmra.mxu0 %v253
  %v1086 = vpop.f32.mrf.mxu0
  %v1087 = vadd.f32 %v1068, %v1086
  %v1088 = vpop.f32.mrf.mxu0
  %v1089 = vadd.f32 %v1070, %v1088
  %1090 = vdwg.mxu0
  %1091 = vmatpush.bf16.msra.mxu0 %v802
  %1092 = vmatpush.bf16.msra.mxu0 %v800
  %1093 = vmatpush.bf16.msra.mxu0 %v798
  %1094 = vmatpush.bf16.msra.mxu0 %v796
  %1095 = vmatpush.bf16.msra.mxu0 %v794
  %1096 = vmatpush.bf16.msra.mxu0 %v792
  %1097 = vmatpush.bf16.msra.mxu0 %v790
  %1098 = vmatpush.bf16.msra.mxu0 %v788
  %1099 = vmatmul.bf16.gmra.mxu0 %v245
  %v1100 = vpop.f32.mrf.mxu0
  %v1101 = vadd.f32 %v1082, %v1100
  %v1102 = vpop.f32.mrf.mxu0
  %v1103 = vadd.f32 %v1084, %v1102
  %1104 = vmatmul.bf16.gmra.mxu0 %v254
  %v1105 = vpop.f32.mrf.mxu0
  %v1106 = vadd.f32 %v1087, %v1105
  %v1107 = vpop.f32.mrf.mxu0
  %v1108 = vadd.f32 %v1089, %v1107
  %1109 = vdwg.mxu0
  %1110 = vmatpush.bf16.msra.mxu0 %v818
  %1111 = vmatpush.bf16.msra.mxu0 %v816
  %1112 = vmatpush.bf16.msra.mxu0 %v814
  %1113 = vmatpush.bf16.msra.mxu0 %v812
  %1114 = vmatpush.bf16.msra.mxu0 %v810
  %1115 = vmatpush.bf16.msra.mxu0 %v808
  %1116 = vmatpush.bf16.msra.mxu0 %v806
  %1117 = vmatpush.bf16.msra.mxu0 %v804
  %1118 = vmatmul.bf16.gmra.mxu0 %v246
  %v1119 = vpop.f32.mrf.mxu0
  %v1120 = vadd.f32 %v1101, %v1119
  %v1121 = vpop.f32.mrf.mxu0
  %v1122 = vadd.f32 %v1103, %v1121
  %1123 = vmatmul.bf16.gmra.mxu0 %v255
  %v1124 = vpop.f32.mrf.mxu0
  %v1125 = vadd.f32 %v1106, %v1124
  %v1126 = vpop.f32.mrf.mxu0
  %v1127 = vadd.f32 %v1108, %v1126
  %1128 = vdwg.mxu0
  %1129 = vmatpush.bf16.msra.mxu0 %v834
  %1130 = vmatpush.bf16.msra.mxu0 %v832
  %1131 = vmatpush.bf16.msra.mxu0 %v830
  %1132 = vmatpush.bf16.msra.mxu0 %v828
  %1133 = vmatpush.bf16.msra.mxu0 %v826
  %1134 = vmatpush.bf16.msra.mxu0 %v824
  %1135 = vmatpush.bf16.msra.mxu0 %v822
  %1136 = vmatpush.bf16.msra.mxu0 %v820
  %1137 = vmatmul.bf16.gmra.mxu0 %v247
  %v1138 = vpop.f32.mrf.mxu0
  %v1139 = vadd.f32 %v1120, %v1138
  %v1140 = vpop.f32.mrf.mxu0
  %v1141 = vadd.f32 %v1122, %v1140
  %1142 = vmatmul.bf16.gmra.mxu0 %v256
  %v1143 = vpop.f32.mrf.mxu0
  %v1144 = vadd.f32 %v1125, %v1143
  %v1145 = vpop.f32.mrf.mxu0
  %v1146 = vadd.f32 %v1127, %v1145
  %1147 = vdwg.mxu0
  %1148 = vmatpush.bf16.msra.mxu0 %v850
  %1149 = vmatpush.bf16.msra.mxu0 %v848
  %1150 = vmatpush.bf16.msra.mxu0 %v846
  %1151 = vmatpush.bf16.msra.mxu0 %v844
  %1152 = vmatpush.bf16.msra.mxu0 %v842
  %1153 = vmatpush.bf16.msra.mxu0 %v840
  %1154 = vmatpush.bf16.msra.mxu0 %v838
  %1155 = vmatpush.bf16.msra.mxu0 %v836
  %1156 = vmatmul.bf16.gmra.mxu0 %v248
  %v1157 = vpop.f32.mrf.mxu0
  %v1158 = vadd.f32 %v1139, %v1157
  %v1159 = vpop.f32.mrf.mxu0
  %v1160 = vadd.f32 %v1141, %v1159
  %1161 = vmatmul.bf16.gmra.mxu0 %v257
  %v1162 = vpop.f32.mrf.mxu0
  %v1163 = vadd.f32 %v1144, %v1162
  %v1164 = vpop.f32.mrf.mxu0
  %v1165 = vadd.f32 %v1146, %v1164
  %1166 = vdwg.mxu0
  %1167 = vmatpush.bf16.msra.mxu0 %v723
  %1168 = vmatpush.bf16.msra.mxu0 %v721
  %1169 = vmatpush.bf16.msra.mxu0 %v719
  %1170 = vmatpush.bf16.msra.mxu0 %v717
  %1171 = vmatpush.bf16.msra.mxu0 %v715
  %1172 = vmatpush.bf16.msra.mxu0 %v713
  %1173 = vmatpush.bf16.msra.mxu0 %v711
  %1174 = vmatpush.bf16.msra.mxu0 %v709
  %1175 = vmatmul.bf16.gmra.mxu0 %v240
  %v1176 = vpop.f32.mrf.mxu0
  %v1177 = vadd.f32 %v181, %v1176
  %v1178 = vpop.f32.mrf.mxu0
  %v1179 = vadd.f32 %v181, %v1178
  %1180 = vmatmul.bf16.gmra.mxu0 %v249
  %v1181 = vpop.f32.mrf.mxu0
  %v1182 = vadd.f32 %v181, %v1181
  %v1183 = vpop.f32.mrf.mxu0
  %v1184 = vadd.f32 %v181, %v1183
  %1185 = vdwg.mxu0
  %1186 = vmatpush.bf16.msra.mxu0 %v739
  %1187 = vmatpush.bf16.msra.mxu0 %v737
  %1188 = vmatpush.bf16.msra.mxu0 %v735
  %1189 = vmatpush.bf16.msra.mxu0 %v733
  %1190 = vmatpush.bf16.msra.mxu0 %v731
  %1191 = vmatpush.bf16.msra.mxu0 %v729
  %1192 = vmatpush.bf16.msra.mxu0 %v727
  %1193 = vmatpush.bf16.msra.mxu0 %v725
  %1194 = vmatmul.bf16.gmra.mxu0 %v241
  %v1195 = vpop.f32.mrf.mxu0
  %v1196 = vadd.f32 %v1177, %v1195
  %v1197 = vpop.f32.mrf.mxu0
  %v1198 = vadd.f32 %v1179, %v1197
  %1199 = vmatmul.bf16.gmra.mxu0 %v250
  %v1200 = vpop.f32.mrf.mxu0
  %v1201 = vadd.f32 %v1182, %v1200
  %v1202 = vpop.f32.mrf.mxu0
  %v1203 = vadd.f32 %v1184, %v1202
  %1204 = vdwg.mxu0
  %1205 = vmatpush.bf16.msra.mxu0 %v755
  %1206 = vmatpush.bf16.msra.mxu0 %v753
  %1207 = vmatpush.bf16.msra.mxu0 %v751
  %1208 = vmatpush.bf16.msra.mxu0 %v749
  %1209 = vmatpush.bf16.msra.mxu0 %v747
  %1210 = vmatpush.bf16.msra.mxu0 %v745
  %1211 = vmatpush.bf16.msra.mxu0 %v743
  %1212 = vmatpush.bf16.msra.mxu0 %v741
  %1213 = vmatmul.bf16.gmra.mxu0 %v242
  %v1214 = vpop.f32.mrf.mxu0
  %v1215 = vadd.f32 %v1196, %v1214
  %v1216 = vpop.f32.mrf.mxu0
  %v1217 = vadd.f32 %v1198, %v1216
  %1218 = vmatmul.bf16.gmra.mxu0 %v251
  %v1219 = vpop.f32.mrf.mxu0
  %v1220 = vadd.f32 %v1201, %v1219
  %v1221 = vpop.f32.mrf.mxu0
  %v1222 = vadd.f32 %v1203, %v1221
  %1223 = vdwg.mxu0
  %1224 = vmatpush.bf16.msra.mxu0 %v771
  %1225 = vmatpush.bf16.msra.mxu0 %v769
  %1226 = vmatpush.bf16.msra.mxu0 %v767
  %1227 = vmatpush.bf16.msra.mxu0 %v765
  %1228 = vmatpush.bf16.msra.mxu0 %v763
  %1229 = vmatpush.bf16.msra.mxu0 %v761
  %1230 = vmatpush.bf16.msra.mxu0 %v759
  %1231 = vmatpush.bf16.msra.mxu0 %v757
  %1232 = vmatmul.bf16.gmra.mxu0 %v243
  %v1233 = vpop.f32.mrf.mxu0
  %v1234 = vadd.f32 %v1215, %v1233
  %v1235 = vpop.f32.mrf.mxu0
  %v1236 = vadd.f32 %v1217, %v1235
  %1237 = vmatmul.bf16.gmra.mxu0 %v252
  %v1238 = vpop.f32.mrf.mxu0
  %v1239 = vadd.f32 %v1220, %v1238
  %v1240 = vpop.f32.mrf.mxu0
  %v1241 = vadd.f32 %v1222, %v1240
  %1242 = vdwg.mxu0
  %1243 = vmatpush.bf16.msra.mxu0 %v787
  %1244 = vmatpush.bf16.msra.mxu0 %v785
  %1245 = vmatpush.bf16.msra.mxu0 %v783
  %1246 = vmatpush.bf16.msra.mxu0 %v781
  %1247 = vmatpush.bf16.msra.mxu0 %v779
  %1248 = vmatpush.bf16.msra.mxu0 %v777
  %1249 = vmatpush.bf16.msra.mxu0 %v775
  %1250 = vmatpush.bf16.msra.mxu0 %v773
  %1251 = vmatmul.bf16.gmra.mxu0 %v244
  %v1252 = vpop.f32.mrf.mxu0
  %v1253 = vadd.f32 %v1234, %v1252
  %v1254 = vpop.f32.mrf.mxu0
  %v1255 = vadd.f32 %v1236, %v1254
  %1256 = vmatmul.bf16.gmra.mxu0 %v253
  %v1257 = vpop.f32.mrf.mxu0
  %v1258 = vadd.f32 %v1239, %v1257
  %v1259 = vpop.f32.mrf.mxu0
  %v1260 = vadd.f32 %v1241, %v1259
  %1261 = vdwg.mxu0
  %1262 = vmatpush.bf16.msra.mxu0 %v803
  %1263 = vmatpush.bf16.msra.mxu0 %v801
  %1264 = vmatpush.bf16.msra.mxu0 %v799
  %1265 = vmatpush.bf16.msra.mxu0 %v797
  %1266 = vmatpush.bf16.msra.mxu0 %v795
  %1267 = vmatpush.bf16.msra.mxu0 %v793
  %1268 = vmatpush.bf16.msra.mxu0 %v791
  %1269 = vmatpush.bf16.msra.mxu0 %v789
  %1270 = vmatmul.bf16.gmra.mxu0 %v245
  %v1271 = vpop.f32.mrf.mxu0
  %v1272 = vadd.f32 %v1253, %v1271
  %v1273 = vpop.f32.mrf.mxu0
  %v1274 = vadd.f32 %v1255, %v1273
  %1275 = vmatmul.bf16.gmra.mxu0 %v254
  %v1276 = vpop.f32.mrf.mxu0
  %v1277 = vadd.f32 %v1258, %v1276
  %v1278 = vpop.f32.mrf.mxu0
  %v1279 = vadd.f32 %v1260, %v1278
  %1280 = vdwg.mxu0
  %1281 = vmatpush.bf16.msra.mxu0 %v819
  %1282 = vmatpush.bf16.msra.mxu0 %v817
  %1283 = vmatpush.bf16.msra.mxu0 %v815
  %1284 = vmatpush.bf16.msra.mxu0 %v813
  %1285 = vmatpush.bf16.msra.mxu0 %v811
  %1286 = vmatpush.bf16.msra.mxu0 %v809
  %1287 = vmatpush.bf16.msra.mxu0 %v807
  %1288 = vmatpush.bf16.msra.mxu0 %v805
  %1289 = vmatmul.bf16.gmra.mxu0 %v246
  %v1290 = vpop.f32.mrf.mxu0
  %v1291 = vadd.f32 %v1272, %v1290
  %v1292 = vpop.f32.mrf.mxu0
  %v1293 = vadd.f32 %v1274, %v1292
  %1294 = vmatmul.bf16.gmra.mxu0 %v255
  %v1295 = vpop.f32.mrf.mxu0
  %v1296 = vadd.f32 %v1277, %v1295
  %v1297 = vpop.f32.mrf.mxu0
  %v1298 = vadd.f32 %v1279, %v1297
  %1299 = vdwg.mxu0
  %1300 = vmatpush.bf16.msra.mxu0 %v835
  %1301 = vmatpush.bf16.msra.mxu0 %v833
  %1302 = vmatpush.bf16.msra.mxu0 %v831
  %1303 = vmatpush.bf16.msra.mxu0 %v829
  %1304 = vmatpush.bf16.msra.mxu0 %v827
  %1305 = vmatpush.bf16.msra.mxu0 %v825
  %1306 = vmatpush.bf16.msra.mxu0 %v823
  %1307 = vmatpush.bf16.msra.mxu0 %v821
  %1308 = vmatmul.bf16.gmra.mxu0 %v247
  %v1309 = vpop.f32.mrf.mxu0
  %v1310 = vadd.f32 %v1291, %v1309
  %v1311 = vpop.f32.mrf.mxu0
  %v1312 = vadd.f32 %v1293, %v1311
  %1313 = vmatmul.bf16.gmra.mxu0 %v256
  %v1314 = vpop.f32.mrf.mxu0
  %v1315 = vadd.f32 %v1296, %v1314
  %v1316 = vpop.f32.mrf.mxu0
  %v1317 = vadd.f32 %v1298, %v1316
  %1318 = vdwg.mxu0
  %1319 = vmatpush.bf16.msra.mxu0 %v851
  %1320 = vmatpush.bf16.msra.mxu0 %v849
  %1321 = vmatpush.bf16.msra.mxu0 %v847
  %1322 = vmatpush.bf16.msra.mxu0 %v845
  %1323 = vmatpush.bf16.msra.mxu0 %v843
  %1324 = vmatpush.bf16.msra.mxu0 %v841
  %1325 = vmatpush.bf16.msra.mxu0 %v839
  %1326 = vmatpush.bf16.msra.mxu0 %v837
  %1327 = vmatmul.bf16.gmra.mxu0 %v248
  %v1328 = vpop.f32.mrf.mxu0
  %v1329 = vadd.f32 %v1310, %v1328
  %v1330 = vpop.f32.mrf.mxu0
  %v1331 = vadd.f32 %v1312, %v1330
  %1332 = vmatmul.bf16.gmra.mxu0 %v257
  %v1333 = vpop.f32.mrf.mxu0
  %v1334 = vadd.f32 %v1315, %v1333
  %v1335 = vpop.f32.mrf.mxu0
  %v1336 = vadd.f32 %v1317, %v1335
  %1337 = vdwg.mxu0
  %v1338 = vmax.f32 %v1158, 0.0
  %v1339 = vmax.f32 %v1329, 0.0
  %v1340 = vmax.f32 %v1160, 0.0
  %v1341 = vmax.f32 %v1331, 0.0
  %v1342 = vmax.f32 %v1163, 0.0
  %v1343 = vmax.f32 %v1334, 0.0
  %v1344 = vmax.f32 %v1165, 0.0
  %v1345 = vmax.f32 %v1336, 0.0
  %v1346 = vpack.c.bf16 %v1339, %v1338
  %v1347 = vpack.c.bf16 %v1341, %v1340
  %v1348 = vpack.c.bf16 %v1343, %v1342
  %v1349 = vpack.c.bf16 %v1345, %v1344
  %1350 = vst [vmem:[%s3] sm:$0xff] %v1346
  %1351 = vst [vmem:[%s3 + $0x8] sm:$0xff] %v1347
  %1352 = vst [vmem:[%s3 + $0x10] sm:$0xff] %v1348
  %1353 = vst [vmem:[%s3 + $0x18] sm:$0xff] %v1349
  // Predicated region
  $region14: #{vae_forward.19} parent=0 // pred_check
    _
  $region15: #{vae_forward.19} parent=0 // pred_check_branch
    %1355 = sbr.rel (0) target = $region17
  $region16: #{vae_forward.19} parent=0 // pred_region
    _
  $region17: #{vae_forward.19} parent=0 // pred_fallthru
    _
  // Predicated region
  $region18: #{vae_forward.19} parent=0 // pred_check
    _
  $region19: #{vae_forward.19} parent=0 // pred_check_branch
    %1357 = sbr.rel (0) target = $region21
  $region20: #{vae_forward.19} parent=0 // pred_region
    _
  $region21: #{vae_forward.19} parent=0 // pred_fallthru
    _

// kernel: tile.43
$region0: #{tile.43}
  #allocation0 [shape = 's32[1]{0}', space=sflag, size = 0x4, scoped, tag = 'scoped memory for tile.43']
  %s0 = inlined_call_operand.vmem [shape: f32[32], index: 0, kind: input, shape index: {}]
  %s1 = inlined_call_operand.vmem [shape: f32[4,32], index: 1, kind: output, shape index: {}]
  // Predicated region
  $region2: #{tile.43} parent=0 // pred_check
    _
  $region3: #{tile.43} parent=0 // pred_check_branch
    %3 = sbr.rel (0) target = $region5
  $region4: #{tile.43} parent=0 // pred_region
    _
  $region5: #{tile.43} parent=0 // pred_fallthru
    _
  %v4 = vld [vmem:[%s0] ss:$0 sm:$0xff]
  %5 = vst [vmem:[%s1] sm:$0xf] %v4

// kernel: vae_forward.20
$region0: #{vae_forward.20}
  #allocation0 [shape = 'u32[]', space=smem, size = 0x4, offset = 0x4, fixed_abs, tag = 'smem constant byte address 0x4 - core index']
  #allocation1 [shape = 'u32[72,128]{1,0:T(1,128)}', space=vmem, size = 0x9000, scoped, tag = 'internal scratch']
  %s0 = inlined_call_operand.vmem [shape: bf16[128,640], index: 0, kind: input, shape index: {}]
  %s1 = inlined_call_operand.vmem [shape: bf16[640,128], index: 1, kind: input, shape index: {}]
  %s2 = inlined_call_operand.vmem [shape: f32[1,128], index: 2, kind: input, shape index: {}]
  %s3 = inlined_call_operand.vmem [shape: bf16[128,128], index: 3, kind: output, shape index: {}]
  %s4 = sld [smem:[#allocation0]]
  $region22: #{vae_forward.20} parent=0
    _
  %s6 = ssub.s32 1, %s4
  %s7 = scalar_select 0, %s6, %s4
  // Predicated region
  $region2: #{vae_forward.20} parent=0 // pred_check
    _
  $region3: #{vae_forward.20} parent=0 // pred_check_branch
    %9 = sbr.rel (0) target = $region5
  $region4: #{vae_forward.20} parent=0 // pred_region
    _
  $region5: #{vae_forward.20} parent=0 // pred_fallthru
    _
  // Predicated region
  $region6: #{vae_forward.20} parent=0 // pred_check
    _
  $region7: #{vae_forward.20} parent=0 // pred_check_branch
    %11 = sbr.rel (0) target = $region9
  $region8: #{vae_forward.20} parent=0 // pred_region
    _
  $region9: #{vae_forward.20} parent=0 // pred_fallthru
    _
  // Predicated region
  $region10: #{vae_forward.20} parent=0 // pred_check
    _
  $region11: #{vae_forward.20} parent=0 // pred_check_branch
    %13 = sbr.rel (0) target = $region13
  $region12: #{vae_forward.20} parent=0 // pred_region
    _
  $region13: #{vae_forward.20} parent=0 // pred_fallthru
    _
  %v14 = vld [vmem:[%s0] sm:$0xff]
  %v15 = vld [vmem:[%s0 + $0x8] sm:$0xff]
  %v16 = vld [vmem:[%s0 + $0x10] sm:$0xf]
  %v17 = vld [vmem:[%s0 + $0x14] sm:$0xff]
  %v18 = vld [vmem:[%s0 + $0x1c] sm:$0xff]
  %v19 = vld [vmem:[%s0 + $0x24] sm:$0xf]
  %v20 = vld [vmem:[%s0 + $0x28] sm:$0xff]
  %v21 = vld [vmem:[%s0 + $0x30] sm:$0xff]
  %v22 = vld [vmem:[%s0 + $0x38] sm:$0xf]
  %v23 = vld [vmem:[%s0 + $0x3c] sm:$0xff]
  %v24 = vld [vmem:[%s0 + $0x44] sm:$0xff]
  %v25 = vld [vmem:[%s0 + $0x4c] sm:$0xf]
  %v26 = vld [vmem:[%s0 + $0x50] sm:$0xff]
  %v27 = vld [vmem:[%s0 + $0x58] sm:$0xff]
  %v28 = vld [vmem:[%s0 + $0x60] sm:$0xf]
  %v29 = vld [vmem:[%s0 + $0x64] sm:$0xff]
  %v30 = vld [vmem:[%s0 + $0x6c] sm:$0xff]
  %v31 = vld [vmem:[%s0 + $0x74] sm:$0xf]
  %v32 = vld [vmem:[%s0 + $0x78] sm:$0xff]
  %v33 = vld [vmem:[%s0 + $0x80] sm:$0xff]
  %v34 = vld [vmem:[%s0 + $0x88] sm:$0xf]
  %v35 = vld [vmem:[%s0 + $0x8c] sm:$0xff]
  %v36 = vld [vmem:[%s0 + $0x94] sm:$0xff]
  %v37 = vld [vmem:[%s0 + $0x9c] sm:$0xf]
  %v38 = vld [vmem:[%s0 + $0xa0] sm:$0xff]
  %v39 = vld [vmem:[%s0 + $0xa8] sm:$0xff]
  %v40 = vld [vmem:[%s0 + $0xb0] sm:$0xf]
  %v41 = vld [vmem:[%s0 + $0xb4] sm:$0xff]
  %v42 = vld [vmem:[%s0 + $0xbc] sm:$0xff]
  %v43 = vld [vmem:[%s0 + $0xc4] sm:$0xf]
  %v44 = vld [vmem:[%s0 + $0xc8] sm:$0xff]
  %v45 = vld [vmem:[%s0 + $0xd0] sm:$0xff]
  %v46 = vld [vmem:[%s0 + $0xd8] sm:$0xf]
  %v47 = vld [vmem:[%s0 + $0xdc] sm:$0xff]
  %v48 = vld [vmem:[%s0 + $0xe4] sm:$0xff]
  %v49 = vld [vmem:[%s0 + $0xec] sm:$0xf]
  %v50 = vld [vmem:[%s0 + $0xf0] sm:$0xff]
  %v51 = vld [vmem:[%s0 + $0xf8] sm:$0xff]
  %v52 = vld [vmem:[%s0 + $0x100] sm:$0xf]
  %v53 = vld [vmem:[%s0 + $0x104] sm:$0xff]
  %v54 = vld [vmem:[%s0 + $0x10c] sm:$0xff]
  %v55 = vld [vmem:[%s0 + $0x114] sm:$0xf]
  %v56 = vld [vmem:[%s0 + $0x118] sm:$0xff]
  %v57 = vld [vmem:[%s0 + $0x120] sm:$0xff]
  %v58 = vld [vmem:[%s0 + $0x128] sm:$0xf]
  %v59 = vld [vmem:[%s0 + $0x12c] sm:$0xff]
  %v60 = vld [vmem:[%s0 + $0x134] sm:$0xff]
  %v61 = vld [vmem:[%s0 + $0x13c] sm:$0xf]
  %v62 = vld [vmem:[%s1] sm:$0xf]
  %v63 = vld [vmem:[%s1 + $0x4] sm:$0xf]
  %v64 = vld [vmem:[%s1 + $0x8] sm:$0xf]
  %v65 = vld [vmem:[%s1 + $0xc] sm:$0xf]
  %v66 = vld [vmem:[%s1 + $0x10] sm:$0xf]
  %v67 = vld [vmem:[%s1 + $0x14] sm:$0xf]
  %v68 = vld [vmem:[%s1 + $0x18] sm:$0xf]
  %v69 = vld [vmem:[%s1 + $0x1c] sm:$0xf]
  %v70 = vld [vmem:[%s1 + $0x20] sm:$0xf]
  %v71 = vld [vmem:[%s1 + $0x24] sm:$0xf]
  %v72 = vld [vmem:[%s1 + $0x28] sm:$0xf]
  %v73 = vld [vmem:[%s1 + $0x2c] sm:$0xf]
  %v74 = vld [vmem:[%s1 + $0x30] sm:$0xf]
  %v75 = vld [vmem:[%s1 + $0x34] sm:$0xf]
  %v76 = vld [vmem:[%s1 + $0x38] sm:$0xf]
  %v77 = vld [vmem:[%s1 + $0x3c] sm:$0xf]
  %v78 = vld [vmem:[%s1 + $0x40] sm:$0xf]
  %v79 = vld [vmem:[%s1 + $0x44] sm:$0xf]
  %v80 = vld [vmem:[%s1 + $0x48] sm:$0xf]
  %v81 = vld [vmem:[%s1 + $0x4c] sm:$0xf]
  %v82 = vld [vmem:[%s1 + $0x50] sm:$0xf]
  %v83 = vld [vmem:[%s1 + $0x54] sm:$0xf]
  %v84 = vld [vmem:[%s1 + $0x58] sm:$0xf]
  %v85 = vld [vmem:[%s1 + $0x5c] sm:$0xf]
  %v86 = vld [vmem:[%s1 + $0x60] sm:$0xf]
  %v87 = vld [vmem:[%s1 + $0x64] sm:$0xf]
  %v88 = vld [vmem:[%s1 + $0x68] sm:$0xf]
  %v89 = vld [vmem:[%s1 + $0x6c] sm:$0xf]
  %v90 = vld [vmem:[%s1 + $0x70] sm:$0xf]
  %v91 = vld [vmem:[%s1 + $0x74] sm:$0xf]
  %v92 = vld [vmem:[%s1 + $0x78] sm:$0xf]
  %v93 = vld [vmem:[%s1 + $0x7c] sm:$0xf]
  %v94 = vld [vmem:[%s1 + $0x80] sm:$0xf]
  %v95 = vld [vmem:[%s1 + $0x84] sm:$0xf]
  %v96 = vld [vmem:[%s1 + $0x88] sm:$0xf]
  %v97 = vld [vmem:[%s1 + $0x8c] sm:$0xf]
  %v98 = vld [vmem:[%s1 + $0x90] sm:$0xf]
  %v99 = vld [vmem:[%s1 + $0x94] sm:$0xf]
  %v100 = vld [vmem:[%s1 + $0x98] sm:$0xf]
  %v101 = vld [vmem:[%s1 + $0x9c] sm:$0xf]
  %v102 = vld [vmem:[%s1 + $0xa0] sm:$0xf]
  %v103 = vld [vmem:[%s1 + $0xa4] sm:$0xf]
  %v104 = vld [vmem:[%s1 + $0xa8] sm:$0xf]
  %v105 = vld [vmem:[%s1 + $0xac] sm:$0xf]
  %v106 = vld [vmem:[%s1 + $0xb0] sm:$0xf]
  %v107 = vld [vmem:[%s1 + $0xb4] sm:$0xf]
  %v108 = vld [vmem:[%s1 + $0xb8] sm:$0xf]
  %v109 = vld [vmem:[%s1 + $0xbc] sm:$0xf]
  %v110 = vld [vmem:[%s1 + $0xc0] sm:$0xf]
  %v111 = vld [vmem:[%s1 + $0xc4] sm:$0xf]
  %v112 = vld [vmem:[%s1 + $0xc8] sm:$0xf]
  %v113 = vld [vmem:[%s1 + $0xcc] sm:$0xf]
  %v114 = vld [vmem:[%s1 + $0xd0] sm:$0xf]
  %v115 = vld [vmem:[%s1 + $0xd4] sm:$0xf]
  %v116 = vld [vmem:[%s1 + $0xd8] sm:$0xf]
  %v117 = vld [vmem:[%s1 + $0xdc] sm:$0xf]
  %v118 = vld [vmem:[%s1 + $0xe0] sm:$0xf]
  %v119 = vld [vmem:[%s1 + $0xe4] sm:$0xf]
  %v120 = vld [vmem:[%s1 + $0xe8] sm:$0xf]
  %v121 = vld [vmem:[%s1 + $0xec] sm:$0xf]
  %v122 = vld [vmem:[%s1 + $0xf0] sm:$0xf]
  %v123 = vld [vmem:[%s1 + $0xf4] sm:$0xf]
  %v124 = vld [vmem:[%s1 + $0xf8] sm:$0xf]
  %v125 = vld [vmem:[%s1 + $0xfc] sm:$0xf]
  %v126 = vld [vmem:[%s1 + $0x100] sm:$0xf]
  %v127 = vld [vmem:[%s1 + $0x104] sm:$0xf]
  %v128 = vld [vmem:[%s1 + $0x108] sm:$0xf]
  %v129 = vld [vmem:[%s1 + $0x10c] sm:$0xf]
  %v130 = vld [vmem:[%s1 + $0x110] sm:$0xf]
  %v131 = vld [vmem:[%s1 + $0x114] sm:$0xf]
  %v132 = vld [vmem:[%s1 + $0x118] sm:$0xf]
  %v133 = vld [vmem:[%s1 + $0x11c] sm:$0xf]
  %v134 = vld [vmem:[%s1 + $0x120] sm:$0xf]
  %v135 = vld [vmem:[%s1 + $0x124] sm:$0xf]
  %v136 = vld [vmem:[%s1 + $0x128] sm:$0xf]
  %v137 = vld [vmem:[%s1 + $0x12c] sm:$0xf]
  %v138 = vld [vmem:[%s1 + $0x130] sm:$0xf]
  %v139 = vld [vmem:[%s1 + $0x134] sm:$0xf]
  %v140 = vld [vmem:[%s1 + $0x138] sm:$0xf]
  %v141 = vld [vmem:[%s1 + $0x13c] sm:$0xf]
  %v142 = vld [vmem:[%s2] sm:$0x1]
  %v144 = vperm.slane %v142, 0
  %v194 = vunpack.c.l.b16 %v14
  %v195 = vunpack.c.h.b16 %v14
  %v196 = vunpack.c.l.b16 %v15
  %v197 = vunpack.c.h.b16 %v15
  %v198 = vunpack.c.l.b16 %v16
  %v199 = vunpack.c.l.b16 %v17
  %v200 = vunpack.c.h.b16 %v17
  %v201 = vunpack.c.l.b16 %v18
  %v202 = vunpack.c.h.b16 %v18
  %v203 = vunpack.c.l.b16 %v19
  %v204 = vunpack.c.l.b16 %v20
  %v205 = vunpack.c.h.b16 %v20
  %v206 = vunpack.c.l.b16 %v21
  %v207 = vunpack.c.h.b16 %v21
  %v208 = vunpack.c.l.b16 %v22
  %v209 = vunpack.c.l.b16 %v23
  %v210 = vunpack.c.h.b16 %v23
  %v211 = vunpack.c.l.b16 %v24
  %v212 = vunpack.c.h.b16 %v24
  %v213 = vunpack.c.l.b16 %v25
  %v214 = vunpack.c.l.b16 %v26
  %v215 = vunpack.c.h.b16 %v26
  %v216 = vunpack.c.l.b16 %v27
  %v217 = vunpack.c.h.b16 %v27
  %v218 = vunpack.c.l.b16 %v28
  %v219 = vunpack.c.l.b16 %v29
  %v220 = vunpack.c.h.b16 %v29
  %v221 = vunpack.c.l.b16 %v30
  %v222 = vunpack.c.h.b16 %v30
  %v223 = vunpack.c.l.b16 %v31
  %v224 = vunpack.c.l.b16 %v32
  %v225 = vunpack.c.h.b16 %v32
  %v226 = vunpack.c.l.b16 %v33
  %v227 = vunpack.c.h.b16 %v33
  %v228 = vunpack.c.l.b16 %v34
  %v229 = vunpack.c.l.b16 %v35
  %v230 = vunpack.c.h.b16 %v35
  %v231 = vunpack.c.l.b16 %v36
  %v232 = vunpack.c.h.b16 %v36
  %v233 = vunpack.c.l.b16 %v37
  %v234 = vunpack.c.l.b16 %v38
  %v235 = vunpack.c.h.b16 %v38
  %v236 = vunpack.c.l.b16 %v39
  %v237 = vunpack.c.h.b16 %v39
  %v238 = vunpack.c.l.b16 %v40
  %v239 = vunpack.c.l.b16 %v41
  %v240 = vunpack.c.h.b16 %v41
  %v241 = vunpack.c.l.b16 %v42
  %v242 = vunpack.c.h.b16 %v42
  %v243 = vunpack.c.l.b16 %v43
  %v244 = vunpack.c.l.b16 %v44
  %v245 = vunpack.c.h.b16 %v44
  %v246 = vunpack.c.l.b16 %v45
  %v247 = vunpack.c.h.b16 %v45
  %v248 = vunpack.c.l.b16 %v46
  %v249 = vunpack.c.l.b16 %v47
  %v250 = vunpack.c.h.b16 %v47
  %v251 = vunpack.c.l.b16 %v48
  %v252 = vunpack.c.h.b16 %v48
  %v253 = vunpack.c.l.b16 %v49
  %v254 = vunpack.c.l.b16 %v50
  %v255 = vunpack.c.h.b16 %v50
  %v256 = vunpack.c.l.b16 %v51
  %v257 = vunpack.c.h.b16 %v51
  %v258 = vunpack.c.l.b16 %v52
  %v259 = vunpack.c.l.b16 %v53
  %v260 = vunpack.c.h.b16 %v53
  %v261 = vunpack.c.l.b16 %v54
  %v262 = vunpack.c.h.b16 %v54
  %v263 = vunpack.c.l.b16 %v55
  %v264 = vunpack.c.l.b16 %v56
  %v265 = vunpack.c.h.b16 %v56
  %v266 = vunpack.c.l.b16 %v57
  %v267 = vunpack.c.h.b16 %v57
  %v268 = vunpack.c.l.b16 %v58
  %v269 = vunpack.c.l.b16 %v59
  %v270 = vunpack.c.h.b16 %v59
  %v271 = vunpack.c.l.b16 %v60
  %v272 = vunpack.c.h.b16 %v60
  %v273 = vunpack.c.l.b16 %v61
  %v274 = vpack.c.b16 %v199, %v194
  %v275 = vpack.c.b16 %v200, %v195
  %v276 = vpack.c.b16 %v201, %v196
  %v277 = vpack.c.b16 %v202, %v197
  %v278 = vpack.c.b16 %v203, %v198
  %v279 = vpack.c.b16 %v209, %v204
  %v280 = vpack.c.b16 %v210, %v205
  %v281 = vpack.c.b16 %v211, %v206
  %v282 = vpack.c.b16 %v212, %v207
  %v283 = vpack.c.b16 %v213, %v208
  %v284 = vpack.c.b16 %v219, %v214
  %v285 = vpack.c.b16 %v220, %v215
  %v286 = vpack.c.b16 %v221, %v216
  %v287 = vpack.c.b16 %v222, %v217
  %v288 = vpack.c.b16 %v223, %v218
  %v289 = vpack.c.b16 %v229, %v224
  %v290 = vpack.c.b16 %v230, %v225
  %v291 = vpack.c.b16 %v231, %v226
  %v292 = vpack.c.b16 %v232, %v227
  %v293 = vpack.c.b16 %v233, %v228
  %v294 = vpack.c.b16 %v239, %v234
  %v295 = vpack.c.b16 %v240, %v235
  %v296 = vpack.c.b16 %v241, %v236
  %v297 = vpack.c.b16 %v242, %v237
  %v298 = vpack.c.b16 %v243, %v238
  %v299 = vpack.c.b16 %v249, %v244
  %v300 = vpack.c.b16 %v250, %v245
  %v301 = vpack.c.b16 %v251, %v246
  %v302 = vpack.c.b16 %v252, %v247
  %v303 = vpack.c.b16 %v253, %v248
  %v304 = vpack.c.b16 %v259, %v254
  %v305 = vpack.c.b16 %v260, %v255
  %v306 = vpack.c.b16 %v261, %v256
  %v307 = vpack.c.b16 %v262, %v257
  %v308 = vpack.c.b16 %v263, %v258
  %v309 = vpack.c.b16 %v269, %v264
  %v310 = vpack.c.b16 %v270, %v265
  %v311 = vpack.c.b16 %v271, %v266
  %v312 = vpack.c.b16 %v272, %v267
  %v313 = vpack.c.b16 %v273, %v268
  %v434 = vunpack.c.l.b16 %v62
  %v435 = vunpack.c.l.b16 %v63
  %v436 = vunpack.c.l.b16 %v64
  %v437 = vunpack.c.l.b16 %v65
  %v438 = vunpack.c.l.b16 %v66
  %v439 = vunpack.c.l.b16 %v67
  %v440 = vunpack.c.l.b16 %v68
  %v441 = vunpack.c.l.b16 %v69
  %v442 = vunpack.c.l.b16 %v70
  %v443 = vunpack.c.l.b16 %v71
  %v444 = vunpack.c.l.b16 %v72
  %v445 = vunpack.c.l.b16 %v73
  %v446 = vunpack.c.l.b16 %v74
  %v447 = vunpack.c.l.b16 %v75
  %v448 = vunpack.c.l.b16 %v76
  %v449 = vunpack.c.l.b16 %v77
  %v450 = vunpack.c.l.b16 %v78
  %v451 = vunpack.c.l.b16 %v79
  %v452 = vunpack.c.l.b16 %v80
  %v453 = vunpack.c.l.b16 %v81
  %v454 = vunpack.c.l.b16 %v82
  %v455 = vunpack.c.l.b16 %v83
  %v456 = vunpack.c.l.b16 %v84
  %v457 = vunpack.c.l.b16 %v85
  %v458 = vunpack.c.l.b16 %v86
  %v459 = vunpack.c.l.b16 %v87
  %v460 = vunpack.c.l.b16 %v88
  %v461 = vunpack.c.l.b16 %v89
  %v462 = vunpack.c.l.b16 %v90
  %v463 = vunpack.c.l.b16 %v91
  %v464 = vunpack.c.l.b16 %v92
  %v465 = vunpack.c.l.b16 %v93
  %v466 = vunpack.c.l.b16 %v94
  %v467 = vunpack.c.l.b16 %v95
  %v468 = vunpack.c.l.b16 %v96
  %v469 = vunpack.c.l.b16 %v97
  %v470 = vunpack.c.l.b16 %v98
  %v471 = vunpack.c.l.b16 %v99
  %v472 = vunpack.c.l.b16 %v100
  %v473 = vunpack.c.l.b16 %v101
  %v474 = vunpack.c.l.b16 %v102
  %v475 = vunpack.c.l.b16 %v103
  %v476 = vunpack.c.l.b16 %v104
  %v477 = vunpack.c.l.b16 %v105
  %v478 = vunpack.c.l.b16 %v106
  %v479 = vunpack.c.l.b16 %v107
  %v480 = vunpack.c.l.b16 %v108
  %v481 = vunpack.c.l.b16 %v109
  %v482 = vunpack.c.l.b16 %v110
  %v483 = vunpack.c.l.b16 %v111
  %v484 = vunpack.c.l.b16 %v112
  %v485 = vunpack.c.l.b16 %v113
  %v486 = vunpack.c.l.b16 %v114
  %v487 = vunpack.c.l.b16 %v115
  %v488 = vunpack.c.l.b16 %v116
  %v489 = vunpack.c.l.b16 %v117
  %v490 = vunpack.c.l.b16 %v118
  %v491 = vunpack.c.l.b16 %v119
  %v492 = vunpack.c.l.b16 %v120
  %v493 = vunpack.c.l.b16 %v121
  %v494 = vunpack.c.l.b16 %v122
  %v495 = vunpack.c.l.b16 %v123
  %v496 = vunpack.c.l.b16 %v124
  %v497 = vunpack.c.l.b16 %v125
  %v498 = vunpack.c.l.b16 %v126
  %v499 = vunpack.c.l.b16 %v127
  %v500 = vunpack.c.l.b16 %v128
  %v501 = vunpack.c.l.b16 %v129
  %v502 = vunpack.c.l.b16 %v130
  %v503 = vunpack.c.l.b16 %v131
  %v504 = vunpack.c.l.b16 %v132
  %v505 = vunpack.c.l.b16 %v133
  %v506 = vunpack.c.l.b16 %v134
  %v507 = vunpack.c.l.b16 %v135
  %v508 = vunpack.c.l.b16 %v136
  %v509 = vunpack.c.l.b16 %v137
  %v510 = vunpack.c.l.b16 %v138
  %v511 = vunpack.c.l.b16 %v139
  %v512 = vunpack.c.l.b16 %v140
  %v513 = vunpack.c.l.b16 %v141
  %v514 = vpack.c.b16 %v435, %v434
  %v515 = vpack.c.b16 %v437, %v436
  %v516 = vpack.c.b16 %v439, %v438
  %v517 = vpack.c.b16 %v441, %v440
  %v518 = vpack.c.b16 %v443, %v442
  %v519 = vpack.c.b16 %v445, %v444
  %v520 = vpack.c.b16 %v447, %v446
  %v521 = vpack.c.b16 %v449, %v448
  %v522 = vpack.c.b16 %v451, %v450
  %v523 = vpack.c.b16 %v453, %v452
  %v524 = vpack.c.b16 %v455, %v454
  %v525 = vpack.c.b16 %v457, %v456
  %v526 = vpack.c.b16 %v459, %v458
  %v527 = vpack.c.b16 %v461, %v460
  %v528 = vpack.c.b16 %v463, %v462
  %v529 = vpack.c.b16 %v465, %v464
  %v530 = vpack.c.b16 %v467, %v466
  %v531 = vpack.c.b16 %v469, %v468
  %v532 = vpack.c.b16 %v471, %v470
  %v533 = vpack.c.b16 %v473, %v472
  %v534 = vpack.c.b16 %v475, %v474
  %v535 = vpack.c.b16 %v477, %v476
  %v536 = vpack.c.b16 %v479, %v478
  %v537 = vpack.c.b16 %v481, %v480
  %v538 = vpack.c.b16 %v483, %v482
  %v539 = vpack.c.b16 %v485, %v484
  %v540 = vpack.c.b16 %v487, %v486
  %v541 = vpack.c.b16 %v489, %v488
  %v542 = vpack.c.b16 %v491, %v490
  %v543 = vpack.c.b16 %v493, %v492
  %v544 = vpack.c.b16 %v495, %v494
  %v545 = vpack.c.b16 %v497, %v496
  %v546 = vpack.c.b16 %v499, %v498
  %v547 = vpack.c.b16 %v501, %v500
  %v548 = vpack.c.b16 %v503, %v502
  %v549 = vpack.c.b16 %v505, %v504
  %v550 = vpack.c.b16 %v507, %v506
  %v551 = vpack.c.b16 %v509, %v508
  %v552 = vpack.c.b16 %v511, %v510
  %v553 = vpack.c.b16 %v513, %v512
  %594 = vmatpush.bf16.msra.mxu0 %v521
  %595 = vmatpush.bf16.msra.mxu0 %v520
  %596 = vmatpush.bf16.msra.mxu0 %v519
  %597 = vmatpush.bf16.msra.mxu0 %v518
  %598 = vmatpush.bf16.msra.mxu0 %v517
  %599 = vmatpush.bf16.msra.mxu0 %v516
  %600 = vmatpush.bf16.msra.mxu0 %v515
  %601 = vmatpush.bf16.msra.mxu0 %v514
  %602 = vmatmul.bf16.gmra.mxu0 %v274
  %v603 = vpop.f32.mrf.mxu0
  %v604 = vadd.f32 %v144, %v603
  %v605 = vpop.f32.mrf.mxu0
  %v606 = vadd.f32 %v144, %v605
  %607 = vmatmul.bf16.gmra.mxu0 %v279
  %v608 = vpop.f32.mrf.mxu0
  %v609 = vadd.f32 %v144, %v608
  %v610 = vpop.f32.mrf.mxu0
  %v611 = vadd.f32 %v144, %v610
  %612 = vmatmul.bf16.gmra.mxu0 %v284
  %v613 = vpop.f32.mrf.mxu0
  %v614 = vadd.f32 %v144, %v613
  %v615 = vpop.f32.mrf.mxu0
  %v616 = vadd.f32 %v144, %v615
  %617 = vmatmul.bf16.gmra.mxu0 %v289
  %v618 = vpop.f32.mrf.mxu0
  %v619 = vadd.f32 %v144, %v618
  %v620 = vpop.f32.mrf.mxu0
  %v621 = vadd.f32 %v144, %v620
  %622 = vmatmul.bf16.gmra.mxu0 %v294
  %v623 = vpop.f32.mrf.mxu0
  %v624 = vadd.f32 %v144, %v623
  %v625 = vpop.f32.mrf.mxu0
  %v626 = vadd.f32 %v144, %v625
  %627 = vmatmul.bf16.gmra.mxu0 %v299
  %v628 = vpop.f32.mrf.mxu0
  %v629 = vadd.f32 %v144, %v628
  %v630 = vpop.f32.mrf.mxu0
  %v631 = vadd.f32 %v144, %v630
  %632 = vmatmul.bf16.gmra.mxu0 %v304
  %v633 = vpop.f32.mrf.mxu0
  %v634 = vadd.f32 %v144, %v633
  %v635 = vpop.f32.mrf.mxu0
  %v636 = vadd.f32 %v144, %v635
  %637 = vmatmul.bf16.gmra.mxu0 %v309
  %v638 = vpop.f32.mrf.mxu0
  %v639 = vadd.f32 %v144, %v638
  %v640 = vpop.f32.mrf.mxu0
  %v641 = vadd.f32 %v144, %v640
  %642 = vdwg.mxu0
  %643 = vmatpush.bf16.msra.mxu0 %v529
  %644 = vmatpush.bf16.msra.mxu0 %v528
  %645 = vmatpush.bf16.msra.mxu0 %v527
  %646 = vmatpush.bf16.msra.mxu0 %v526
  %647 = vmatpush.bf16.msra.mxu0 %v525
  %648 = vmatpush.bf16.msra.mxu0 %v524
  %649 = vmatpush.bf16.msra.mxu0 %v523
  %650 = vmatpush.bf16.msra.mxu0 %v522
  %651 = vmatmul.bf16.gmra.mxu0 %v275
  %v652 = vpop.f32.mrf.mxu0
  %v653 = vadd.f32 %v604, %v652
  %v654 = vpop.f32.mrf.mxu0
  %v655 = vadd.f32 %v606, %v654
  %656 = vmatmul.bf16.gmra.mxu0 %v280
  %v657 = vpop.f32.mrf.mxu0
  %v658 = vadd.f32 %v609, %v657
  %v659 = vpop.f32.mrf.mxu0
  %v660 = vadd.f32 %v611, %v659
  %661 = vmatmul.bf16.gmra.mxu0 %v285
  %v662 = vpop.f32.mrf.mxu0
  %v663 = vadd.f32 %v614, %v662
  %v664 = vpop.f32.mrf.mxu0
  %v665 = vadd.f32 %v616, %v664
  %666 = vmatmul.bf16.gmra.mxu0 %v290
  %v667 = vpop.f32.mrf.mxu0
  %v668 = vadd.f32 %v619, %v667
  %v669 = vpop.f32.mrf.mxu0
  %v670 = vadd.f32 %v621, %v669
  %671 = vmatmul.bf16.gmra.mxu0 %v295
  %v672 = vpop.f32.mrf.mxu0
  %v673 = vadd.f32 %v624, %v672
  %v674 = vpop.f32.mrf.mxu0
  %v675 = vadd.f32 %v626, %v674
  %676 = vmatmul.bf16.gmra.mxu0 %v300
  %v677 = vpop.f32.mrf.mxu0
  %v678 = vadd.f32 %v629, %v677
  %v679 = vpop.f32.mrf.mxu0
  %v680 = vadd.f32 %v631, %v679
  %681 = vmatmul.bf16.gmra.mxu0 %v305
  %v682 = vpop.f32.mrf.mxu0
  %v683 = vadd.f32 %v634, %v682
  %v684 = vpop.f32.mrf.mxu0
  %v685 = vadd.f32 %v636, %v684
  %686 = vmatmul.bf16.gmra.mxu0 %v310
  %v687 = vpop.f32.mrf.mxu0
  %v688 = vadd.f32 %v639, %v687
  %v689 = vpop.f32.mrf.mxu0
  %v690 = vadd.f32 %v641, %v689
  %691 = vdwg.mxu0
  %692 = vmatpush.bf16.msra.mxu0 %v537
  %693 = vmatpush.bf16.msra.mxu0 %v536
  %694 = vmatpush.bf16.msra.mxu0 %v535
  %695 = vmatpush.bf16.msra.mxu0 %v534
  %696 = vmatpush.bf16.msra.mxu0 %v533
  %697 = vmatpush.bf16.msra.mxu0 %v532
  %698 = vmatpush.bf16.msra.mxu0 %v531
  %699 = vmatpush.bf16.msra.mxu0 %v530
  %700 = vmatmul.bf16.gmra.mxu0 %v276
  %v701 = vpop.f32.mrf.mxu0
  %v702 = vadd.f32 %v653, %v701
  %v703 = vpop.f32.mrf.mxu0
  %v704 = vadd.f32 %v655, %v703
  %705 = vmatmul.bf16.gmra.mxu0 %v281
  %v706 = vpop.f32.mrf.mxu0
  %v707 = vadd.f32 %v658, %v706
  %v708 = vpop.f32.mrf.mxu0
  %v709 = vadd.f32 %v660, %v708
  %710 = vmatmul.bf16.gmra.mxu0 %v286
  %v711 = vpop.f32.mrf.mxu0
  %v712 = vadd.f32 %v663, %v711
  %v713 = vpop.f32.mrf.mxu0
  %v714 = vadd.f32 %v665, %v713
  %715 = vmatmul.bf16.gmra.mxu0 %v291
  %v716 = vpop.f32.mrf.mxu0
  %v717 = vadd.f32 %v668, %v716
  %v718 = vpop.f32.mrf.mxu0
  %v719 = vadd.f32 %v670, %v718
  %720 = vmatmul.bf16.gmra.mxu0 %v296
  %v721 = vpop.f32.mrf.mxu0
  %v722 = vadd.f32 %v673, %v721
  %v723 = vpop.f32.mrf.mxu0
  %v724 = vadd.f32 %v675, %v723
  %725 = vmatmul.bf16.gmra.mxu0 %v301
  %v726 = vpop.f32.mrf.mxu0
  %v727 = vadd.f32 %v678, %v726
  %v728 = vpop.f32.mrf.mxu0
  %v729 = vadd.f32 %v680, %v728
  %730 = vmatmul.bf16.gmra.mxu0 %v306
  %v731 = vpop.f32.mrf.mxu0
  %v732 = vadd.f32 %v683, %v731
  %v733 = vpop.f32.mrf.mxu0
  %v734 = vadd.f32 %v685, %v733
  %735 = vmatmul.bf16.gmra.mxu0 %v311
  %v736 = vpop.f32.mrf.mxu0
  %v737 = vadd.f32 %v688, %v736
  %v738 = vpop.f32.mrf.mxu0
  %v739 = vadd.f32 %v690, %v738
  %740 = vdwg.mxu0
  %741 = vmatpush.bf16.msra.mxu0 %v545
  %742 = vmatpush.bf16.msra.mxu0 %v544
  %743 = vmatpush.bf16.msra.mxu0 %v543
  %744 = vmatpush.bf16.msra.mxu0 %v542
  %745 = vmatpush.bf16.msra.mxu0 %v541
  %746 = vmatpush.bf16.msra.mxu0 %v540
  %747 = vmatpush.bf16.msra.mxu0 %v539
  %748 = vmatpush.bf16.msra.mxu0 %v538
  %749 = vmatmul.bf16.gmra.mxu0 %v277
  %v750 = vpop.f32.mrf.mxu0
  %v751 = vadd.f32 %v702, %v750
  %v752 = vpop.f32.mrf.mxu0
  %v753 = vadd.f32 %v704, %v752
  %754 = vmatmul.bf16.gmra.mxu0 %v282
  %v755 = vpop.f32.mrf.mxu0
  %v756 = vadd.f32 %v707, %v755
  %v757 = vpop.f32.mrf.mxu0
  %v758 = vadd.f32 %v709, %v757
  %759 = vmatmul.bf16.gmra.mxu0 %v287
  %v760 = vpop.f32.mrf.mxu0
  %v761 = vadd.f32 %v712, %v760
  %v762 = vpop.f32.mrf.mxu0
  %v763 = vadd.f32 %v714, %v762
  %764 = vmatmul.bf16.gmra.mxu0 %v292
  %v765 = vpop.f32.mrf.mxu0
  %v766 = vadd.f32 %v717, %v765
  %v767 = vpop.f32.mrf.mxu0
  %v768 = vadd.f32 %v719, %v767
  %769 = vmatmul.bf16.gmra.mxu0 %v297
  %v770 = vpop.f32.mrf.mxu0
  %v771 = vadd.f32 %v722, %v770
  %v772 = vpop.f32.mrf.mxu0
  %v773 = vadd.f32 %v724, %v772
  %774 = vmatmul.bf16.gmra.mxu0 %v302
  %v775 = vpop.f32.mrf.mxu0
  %v776 = vadd.f32 %v727, %v775
  %v777 = vpop.f32.mrf.mxu0
  %v778 = vadd.f32 %v729, %v777
  %779 = vmatmul.bf16.gmra.mxu0 %v307
  %v780 = vpop.f32.mrf.mxu0
  %v781 = vadd.f32 %v732, %v780
  %v782 = vpop.f32.mrf.mxu0
  %v783 = vadd.f32 %v734, %v782
  %784 = vmatmul.bf16.gmra.mxu0 %v312
  %v785 = vpop.f32.mrf.mxu0
  %v786 = vadd.f32 %v737, %v785
  %v787 = vpop.f32.mrf.mxu0
  %v788 = vadd.f32 %v739, %v787
  %789 = vdwg.mxu0
  %790 = vmatpush.bf16.msra.mxu0 %v553
  %791 = vmatpush.bf16.msra.mxu0 %v552
  %792 = vmatpush.bf16.msra.mxu0 %v551
  %793 = vmatpush.bf16.msra.mxu0 %v550
  %794 = vmatpush.bf16.msra.mxu0 %v549
  %795 = vmatpush.bf16.msra.mxu0 %v548
  %796 = vmatpush.bf16.msra.mxu0 %v547
  %797 = vmatpush.bf16.msra.mxu0 %v546
  %798 = vmatmul.bf16.gmra.mxu0 %v278
  %v799 = vpop.f32.mrf.mxu0
  %v800 = vadd.f32 %v751, %v799
  %v801 = vpop.f32.mrf.mxu0
  %v802 = vadd.f32 %v753, %v801
  %803 = vmatmul.bf16.gmra.mxu0 %v283
  %v804 = vpop.f32.mrf.mxu0
  %v805 = vadd.f32 %v756, %v804
  %v806 = vpop.f32.mrf.mxu0
  %v807 = vadd.f32 %v758, %v806
  %808 = vmatmul.bf16.gmra.mxu0 %v288
  %v809 = vpop.f32.mrf.mxu0
  %v810 = vadd.f32 %v761, %v809
  %v811 = vpop.f32.mrf.mxu0
  %v812 = vadd.f32 %v763, %v811
  %813 = vmatmul.bf16.gmra.mxu0 %v293
  %v814 = vpop.f32.mrf.mxu0
  %v815 = vadd.f32 %v766, %v814
  %v816 = vpop.f32.mrf.mxu0
  %v817 = vadd.f32 %v768, %v816
  %818 = vmatmul.bf16.gmra.mxu0 %v298
  %v819 = vpop.f32.mrf.mxu0
  %v820 = vadd.f32 %v771, %v819
  %v821 = vpop.f32.mrf.mxu0
  %v822 = vadd.f32 %v773, %v821
  %823 = vmatmul.bf16.gmra.mxu0 %v303
  %v824 = vpop.f32.mrf.mxu0
  %v825 = vadd.f32 %v776, %v824
  %v826 = vpop.f32.mrf.mxu0
  %v827 = vadd.f32 %v778, %v826
  %828 = vmatmul.bf16.gmra.mxu0 %v308
  %v829 = vpop.f32.mrf.mxu0
  %v830 = vadd.f32 %v781, %v829
  %v831 = vpop.f32.mrf.mxu0
  %v832 = vadd.f32 %v783, %v831
  %833 = vmatmul.bf16.gmra.mxu0 %v313
  %v834 = vpop.f32.mrf.mxu0
  %v835 = vadd.f32 %v786, %v834
  %v836 = vpop.f32.mrf.mxu0
  %v837 = vadd.f32 %v788, %v836
  %838 = vdwg.mxu0
  %v839 = vmax.f32 %v800, 0.0
  %v840 = vmax.f32 %v802, 0.0
  %v841 = vmax.f32 %v805, 0.0
  %v842 = vmax.f32 %v807, 0.0
  %v843 = vmax.f32 %v810, 0.0
  %v844 = vmax.f32 %v812, 0.0
  %v845 = vmax.f32 %v815, 0.0
  %v846 = vmax.f32 %v817, 0.0
  %v847 = vmax.f32 %v820, 0.0
  %v848 = vmax.f32 %v822, 0.0
  %v849 = vmax.f32 %v825, 0.0
  %v850 = vmax.f32 %v827, 0.0
  %v851 = vmax.f32 %v830, 0.0
  %v852 = vmax.f32 %v832, 0.0
  %v853 = vmax.f32 %v835, 0.0
  %v854 = vmax.f32 %v837, 0.0
  %v855 = vpack.c.bf16 %v839, %v839
  %v856 = vpack.c.bf16 %v840, %v840
  %v857 = vpack.c.bf16 %v841, %v841
  %v858 = vpack.c.bf16 %v842, %v842
  %v859 = vpack.c.bf16 %v843, %v843
  %v860 = vpack.c.bf16 %v844, %v844
  %v861 = vpack.c.bf16 %v845, %v845
  %v862 = vpack.c.bf16 %v846, %v846
  %v863 = vpack.c.bf16 %v847, %v847
  %v864 = vpack.c.bf16 %v848, %v848
  %v865 = vpack.c.bf16 %v849, %v849
  %v866 = vpack.c.bf16 %v850, %v850
  %v867 = vpack.c.bf16 %v851, %v851
  %v868 = vpack.c.bf16 %v852, %v852
  %v869 = vpack.c.bf16 %v853, %v853
  %v870 = vpack.c.bf16 %v854, %v854
  %871 = vst [vmem:[%s3] sm:$0xf] %v855
  %872 = vst [vmem:[%s3 + $0x4] sm:$0xf] %v856
  %873 = vst [vmem:[%s3 + $0x8] sm:$0xf] %v857
  %874 = vst [vmem:[%s3 + $0xc] sm:$0xf] %v858
  %875 = vst [vmem:[%s3 + $0x10] sm:$0xf] %v859
  %876 = vst [vmem:[%s3 + $0x14] sm:$0xf] %v860
  %877 = vst [vmem:[%s3 + $0x18] sm:$0xf] %v861
  %878 = vst [vmem:[%s3 + $0x1c] sm:$0xf] %v862
  %879 = vst [vmem:[%s3 + $0x20] sm:$0xf] %v863
  %880 = vst [vmem:[%s3 + $0x24] sm:$0xf] %v864
  %881 = vst [vmem:[%s3 + $0x28] sm:$0xf] %v865
  %882 = vst [vmem:[%s3 + $0x2c] sm:$0xf] %v866
  %883 = vst [vmem:[%s3 + $0x30] sm:$0xf] %v867
  %884 = vst [vmem:[%s3 + $0x34] sm:$0xf] %v868
  %885 = vst [vmem:[%s3 + $0x38] sm:$0xf] %v869
  %886 = vst [vmem:[%s3 + $0x3c] sm:$0xf] %v870
  // Predicated region
  $region14: #{vae_forward.20} parent=0 // pred_check
    _
  $region15: #{vae_forward.20} parent=0 // pred_check_branch
    %888 = sbr.rel (0) target = $region17
  $region16: #{vae_forward.20} parent=0 // pred_region
    _
  $region17: #{vae_forward.20} parent=0 // pred_fallthru
    _
  // Predicated region
  $region18: #{vae_forward.20} parent=0 // pred_check
    _
  $region19: #{vae_forward.20} parent=0 // pred_check_branch
    %890 = sbr.rel (0) target = $region21
  $region20: #{vae_forward.20} parent=0 // pred_region
    _
  $region21: #{vae_forward.20} parent=0 // pred_fallthru
    _

// kernel: tile.48
$region0: #{tile.48}
  #allocation0 [shape = 's32[1]{0}', space=sflag, size = 0x4, scoped, tag = 'scoped memory for tile.48']
  %s0 = inlined_call_operand.vmem [shape: f32[3], index: 0, kind: input, shape index: {}]
  %s1 = inlined_call_operand.vmem [shape: f32[4,3], index: 1, kind: output, shape index: {}]
  // Predicated region
  $region2: #{tile.48} parent=0 // pred_check
    _
  $region3: #{tile.48} parent=0 // pred_check_branch
    %3 = sbr.rel (0) target = $region5
  $region4: #{tile.48} parent=0 // pred_region
    _
  $region5: #{tile.48} parent=0 // pred_fallthru
    _
  %v4 = vld [vmem:[%s0] ss:$0 sm:$0xff]
  %5 = vst [vmem:[%s1] sm:$0xf] %v4

// kernel: tile.49
$region0: #{tile.49}
  %s0 = inlined_call_operand.vmem [shape: f32[4,3], index: 0, kind: input, shape index: {}]
  %s1 = inlined_call_operand.vmem [shape: f32[12], index: 1, kind: output, shape index: {}]
  $region1: #{tile.49} parent=0
    #allocation0 [shape = 'u8[4096]{0}', space=vmem, size = 0x1000, scoped, tag = 'scoped mem for output reshape']
    #allocation1 [shape = 'u8[4096]{0}', space=vmem, size = 0x1000, scoped, tag = 'scoped mem for input reshape']
    %s3 = ssub.s32 16, 1
    %v4 = vld [vmem:[%s0] sm:%s3]
    %5 = vst [vmem:[#allocation1] sm:%s3] %v4
    %v6 = vld [vmem:[#allocation1] sm:$0x1]
    %vm7 = vcmask 23552
    %8 = vst.msk [vmem:[#allocation0] sm:$0x1] %vm7, %v6
    %s9 = scalar_lea.vmem [#allocation1], 3
    %v10 = vld [vmem:[%s9] sm:$0x1]
    %11 = vrot.lane.b32.xlu0 %v10, 9
    %v12 = vpop.permute.xlu0 %11
    %vm13 = vcmask 97352
    %14 = vst.msk [vmem:[#allocation0] sm:$0x1] %vm13, %v12
    %s15 = scalar_lea.vmem [#allocation1], 2
    %v16 = vld [vmem:[%s15] sm:$0x1]
    %17 = vrot.lane.b32.xlu0 %v16, 6
    %v18 = vpop.permute.xlu0 %17
    %vm19 = vcmask 72752
    %20 = vst.msk [vmem:[#allocation0] sm:$0x1] %vm19, %v18
    %s21 = scalar_lea.vmem [#allocation1], 1
    %v22 = vld [vmem:[%s21] sm:$0x1]
    %23 = vrot.lane.b32.xlu0 %v22, 3
    %v24 = vpop.permute.xlu0 %23
    %vm25 = vcmask 48152
    %26 = vst.msk [vmem:[#allocation0] sm:$0x1] %vm25, %v24
    %s28 = ssub.s32 2, 1
    %v29 = vld [vmem:[#allocation0] sm:%s28]
    %s31 = ssub.s32 2, 1
    %32 = vst [vmem:[%s1] sm:%s31] %v29

// kernel: vae_forward.21
$region0: #{vae_forward.21}
  #allocation0 [shape = 'u32[]', space=smem, size = 0x4, offset = 0x4, fixed_abs, tag = 'smem constant byte address 0x4 - core index']
  #allocation1 [shape = 'u32[72,128]{1,0:T(1,128)}', space=vmem, size = 0x9000, scoped, tag = 'internal scratch']
  %s0 = inlined_call_operand.vmem [shape: bf16[512,384], index: 0, kind: input, shape index: {}]
  %s1 = inlined_call_operand.vmem [shape: bf16[384,128], index: 1, kind: input, shape index: {}]
  %s2 = inlined_call_operand.vmem [shape: f32[1,128], index: 2, kind: input, shape index: {}]
  %s3 = inlined_call_operand.vmem [shape: f32[512,128], index: 3, kind: output, shape index: {}]
  %s4 = sld [smem:[#allocation0]]
  $region45: #{vae_forward.21} parent=0
    _
  %s6 = ssub.s32 1, %s4
  %s7 = scalar_select 0, %s6, %s4
  loop: start=0, step=1, limit=4
  $region2: #{vae_forward.21} parent=0 // loop_pre_header
    _
  $region3: #{vae_forward.21} parent=0 // loop_header
    %s9 = sphi 0, %s13
    %p10 = scmp.ge.s32.totalorder %s9, 4
    %s19 = sphi 0, %s21
    %s22 = sphi 0, %s19
    %s23 = sphi 0, %s22
    %s39 = sphi 0, %s23
    %s43 = sphi 0, %s43
    %s45 = sphi 0, %s43
    %s46 = sphi 0, %s45
    %s60 = sphi 0, %s46
    %s64 = sphi 0, %s64
    %s66 = sphi 0, %s64
    %s67 = sphi 0, %s66
    %s81 = sphi 0, %s67
    %s87 = sphi 0, %s89
    %s90 = sphi 0, %s87
    %s91 = sphi 0, %s90
    %s107 = sphi 0, %s91
  $region4: #{vae_forward.21} parent=0 // loop_header_branch
    %12 = sbr.rel (%p10) target = $region8
  $region5: #{vae_forward.21} parent=0 // loop_body
    %s14 = ssub.s32 %s9, 1
    %s15 = ssub.s32 %s9, 2
    %s16 = sadd.s32 %s9, 1
    %s17 = ssub.s32 %s9, %s16
    %p18 = scmp.eq.s32.totalorder %s17, 0
    %s20 = sadd.s32 %s19, 1
    %s21 = scalar_select %p18, %s19, %s20
    %p24 = pneg %p18
    %p25 = scmp.eq.s32.totalorder %s9, 1
    %p26 = por %p24, %p25
    %p27 = scmp.ne.s32.totalorder %s19, %s22
    %p28 = scmp.eq.s32.totalorder %s9, 0
    %p29 = por %p27, %p28
    %p30 = scmp.ne.s32.totalorder %s19, %s22
    %p31 = scmp.eq.s32.totalorder %s14, 1
    %p32 = por %p30, %p31
    %p33 = scmp.ne.s32.totalorder %s22, %s23
    %p34 = scmp.eq.s32.totalorder %s14, 0
    %p35 = por %p33, %p34
    %p36 = scmp.ne.s32.totalorder %s22, %s23
    %p37 = scmp.eq.s32.totalorder %s15, 1
    %p38 = por %p36, %p37
    %p40 = scmp.ne.s32.totalorder %s23, %s39
    %p41 = scmp.eq.s32.totalorder %s15, 0
    %p42 = por %p40, %p41
    %s44 = sadd.s32 %s43, 1
    %p47 = scmp.eq.s32.totalorder %s9, 1
    %p48 = scmp.ne.s32.totalorder %s43, %s45
    %p49 = scmp.eq.s32.totalorder %s9, 0
    %p50 = por %p48, %p49
    %p51 = scmp.ne.s32.totalorder %s43, %s45
    %p52 = scmp.eq.s32.totalorder %s14, 1
    %p53 = por %p51, %p52
    %p54 = scmp.ne.s32.totalorder %s45, %s46
    %p55 = scmp.eq.s32.totalorder %s14, 0
    %p56 = por %p54, %p55
    %p57 = scmp.ne.s32.totalorder %s45, %s46
    %p58 = scmp.eq.s32.totalorder %s15, 1
    %p59 = por %p57, %p58
    %p61 = scmp.ne.s32.totalorder %s46, %s60
    %p62 = scmp.eq.s32.totalorder %s15, 0
    %p63 = por %p61, %p62
    %s65 = sadd.s32 %s64, 1
    %p68 = scmp.eq.s32.totalorder %s9, 1
    %p69 = scmp.ne.s32.totalorder %s64, %s66
    %p70 = scmp.eq.s32.totalorder %s9, 0
    %p71 = por %p69, %p70
    %p72 = scmp.ne.s32.totalorder %s64, %s66
    %p73 = scmp.eq.s32.totalorder %s14, 1
    %p74 = por %p72, %p73
    %p75 = scmp.ne.s32.totalorder %s66, %s67
    %p76 = scmp.eq.s32.totalorder %s14, 0
    %p77 = por %p75, %p76
    %p78 = scmp.ne.s32.totalorder %s66, %s67
    %p79 = scmp.eq.s32.totalorder %s15, 1
    %p80 = por %p78, %p79
    %p82 = scmp.ne.s32.totalorder %s67, %s81
    %p83 = scmp.eq.s32.totalorder %s15, 0
    %p84 = por %p82, %p83
    %s85 = ssub.s32 %s9, %s16
    %p86 = scmp.eq.s32.totalorder %s85, 0
    %s88 = sadd.s32 %s87, 1
    %s89 = scalar_select %p86, %s87, %s88
    %p92 = pneg %p86
    %p93 = scmp.eq.s32.totalorder %s9, 1
    %p94 = por %p92, %p93
    %p95 = scmp.ne.s32.totalorder %s87, %s90
    %p96 = scmp.eq.s32.totalorder %s9, 0
    %p97 = por %p95, %p96
    %p98 = scmp.ne.s32.totalorder %s87, %s90
    %p99 = scmp.eq.s32.totalorder %s14, 1
    %p100 = por %p98, %p99
    %p101 = scmp.ne.s32.totalorder %s90, %s91
    %p102 = scmp.eq.s32.totalorder %s14, 0
    %p103 = por %p101, %p102
    %p104 = scmp.ne.s32.totalorder %s90, %s91
    %p105 = scmp.eq.s32.totalorder %s15, 1
    %p106 = por %p104, %p105
    %p108 = scmp.ne.s32.totalorder %s91, %s107
    %p109 = scmp.eq.s32.totalorder %s15, 0
    %p110 = por %p108, %p109
    %p111 = scmp.le.s32.totalorder 1, %s9
    %p112 = scmp.lt.s32.totalorder %s9, 3
    %p113 = pnand %p111, %p112
    %p114 = pneg %p113
    // Predicated region
    $region9: #{vae_forward.21} parent=5 // pred_check
      _
    $region10: #{vae_forward.21} parent=5 // pred_check_branch
      %116 = sbr.rel (%p113) target = $region12
    $region11: #{vae_forward.21} parent=5 // pred_region
      %s117 = ssub.s32 %s9, 1
      // Predicated region
      $region13: #{vae_forward.21} parent=11 // pred_check
        %p118 = pneg %p56
      $region14: #{vae_forward.21} parent=11 // pred_check_branch
        %120 = sbr.rel (%p118) target = $region16
      $region15: #{vae_forward.21} parent=11 // pred_region
        _
      $region16: #{vae_forward.21} parent=11 // pred_fallthru
        _
      // Predicated region
      $region17: #{vae_forward.21} parent=11 // pred_check
        %p121 = pneg %p77
      $region18: #{vae_forward.21} parent=11 // pred_check_branch
        %123 = sbr.rel (%p121) target = $region20
      $region19: #{vae_forward.21} parent=11 // pred_region
        _
      $region20: #{vae_forward.21} parent=11 // pred_fallthru
        _
    $region12: #{vae_forward.21} parent=5 // pred_fallthru
      _
    %p124 = scmp.lt.s32.totalorder %s9, 2
    // Predicated region
    $region21: #{vae_forward.21} parent=5 // pred_check
      %p125 = pneg %p124
    $region22: #{vae_forward.21} parent=5 // pred_check_branch
      %127 = sbr.rel (%p125) target = $region24
    $region23: #{vae_forward.21} parent=5 // pred_region
      // Predicated region
      $region25: #{vae_forward.21} parent=23 // pred_check
        %p128 = pneg %p29
      $region26: #{vae_forward.21} parent=23 // pred_check_branch
        %130 = sbr.rel (%p128) target = $region28
      $region27: #{vae_forward.21} parent=23 // pred_region
        %s131 = smul.u32 32, %s9
        %p132 = scmp.lt.s32.totalorder %s131, 63
        %s133 = scalar_select %p132, %s131, 63
        %s134 = smul.addr %s133, 3
        %s135 = smul.addr %s134, 4
        %s136 = scalar_lea.vmem %s0, %s135
        %s137 = smul.u32 32, %s9
      $region28: #{vae_forward.21} parent=23 // pred_fallthru
        _
    $region24: #{vae_forward.21} parent=5 // pred_fallthru
      _
    %p138 = scmp.le.s32.totalorder 1, %s9
    %p139 = scmp.lt.s32.totalorder %s9, 3
    %p140 = pnand %p138, %p139
    %p141 = pneg %p140
    // Predicated region
    $region29: #{vae_forward.21} parent=5 // pred_check
      _
    $region30: #{vae_forward.21} parent=5 // pred_check_branch
      %143 = sbr.rel (%p140) target = $region32
    $region31: #{vae_forward.21} parent=5 // pred_region
      %s144 = ssub.s32 %s9, 1
      %s145 = smul.u32 32, %s14
      %p146 = scmp.lt.s32.totalorder %s145, 63
      %s147 = scalar_select %p146, %s145, 63
      %s148 = smul.addr %s147, 3
      %s149 = smul.addr %s148, 4
      %s150 = scalar_lea.vmem %s0, %s149
      %p151 = pneg %p35
      %p152 = pneg %p32
      %p153 = pneg %p56
      %p154 = pneg %p53
      %p155 = pneg %p77
      %p156 = pneg %p74
      %p157 = pneg %p103
      %p158 = pneg %p100
      %s159 = smul.u32 32, %s14
      %p160 = scmp.lt.s32.totalorder %s159, 63
      %s161 = scalar_select %p160, %s159, 63
      %s162 = smul.addr %s161, 8
      %s163 = scalar_lea.vmem %s3, %s162
      %s164 = smul.u32 32, %s14
      %p165 = scmp.lt.s32.totalorder %s164, 63
      %s166 = scalar_select %p165, %s164, 63
      %s167 = smul.addr %s166, 3
      %s168 = smul.addr %s167, 4
      %s169 = scalar_lea.vmem %s0, %s168
      %s170 = smul.u32 32, %s14
      %s171 = smul.u32 32, %s14
      %p172 = scmp.lt.s32.totalorder %s171, 63
      %s173 = scalar_select %p172, %s171, 63
      %s174 = smul.addr %s173, 8
      %s175 = scalar_lea.vmem %s3, %s174
      %s176 = smul.u32 32, %s14
      %v177 = vld [vmem:[%s169] sm:$0xff]
      %v178 = vld [vmem:[%s169 + $0x8] sm:$0xf]
      %v179 = vld [vmem:[%s169 + $0xc] sm:$0xff]
      %v180 = vld [vmem:[%s169 + $0x14] sm:$0xf]
      %v181 = vld [vmem:[%s169 + $0x18] sm:$0xff]
      %v182 = vld [vmem:[%s169 + $0x20] sm:$0xf]
      %v183 = vld [vmem:[%s169 + $0x24] sm:$0xff]
      %v184 = vld [vmem:[%s169 + $0x2c] sm:$0xf]
      %v185 = vld [vmem:[%s169 + $0x30] sm:$0xff]
      %v186 = vld [vmem:[%s169 + $0x38] sm:$0xf]
      %v187 = vld [vmem:[%s169 + $0x3c] sm:$0xff]
      %v188 = vld [vmem:[%s169 + $0x44] sm:$0xf]
      %v189 = vld [vmem:[%s169 + $0x48] sm:$0xff]
      %v190 = vld [vmem:[%s169 + $0x50] sm:$0xf]
      %v191 = vld [vmem:[%s169 + $0x54] sm:$0xff]
      %v192 = vld [vmem:[%s169 + $0x5c] sm:$0xf]
      %v193 = vld [vmem:[%s169 + $0x60] sm:$0xff]
      %v194 = vld [vmem:[%s169 + $0x68] sm:$0xf]
      %v195 = vld [vmem:[%s169 + $0x6c] sm:$0xff]
      %v196 = vld [vmem:[%s169 + $0x74] sm:$0xf]
      %v197 = vld [vmem:[%s169 + $0x78] sm:$0xff]
      %v198 = vld [vmem:[%s169 + $0x80] sm:$0xf]
      %v199 = vld [vmem:[%s169 + $0x84] sm:$0xff]
      %v200 = vld [vmem:[%s169 + $0x8c] sm:$0xf]
      %v201 = vld [vmem:[%s169 + $0x90] sm:$0xff]
      %v202 = vld [vmem:[%s169 + $0x98] sm:$0xf]
      %v203 = vld [vmem:[%s169 + $0x9c] sm:$0xff]
      %v204 = vld [vmem:[%s169 + $0xa4] sm:$0xf]
      %v205 = vld [vmem:[%s169 + $0xa8] sm:$0xff]
      %v206 = vld [vmem:[%s169 + $0xb0] sm:$0xf]
      %v207 = vld [vmem:[%s169 + $0xb4] sm:$0xff]
      %v208 = vld [vmem:[%s169 + $0xbc] sm:$0xf]
      %v209 = vld [vmem:[%s169 + $0xc0] sm:$0xff]
      %v210 = vld [vmem:[%s169 + $0xc8] sm:$0xf]
      %v211 = vld [vmem:[%s169 + $0xcc] sm:$0xff]
      %v212 = vld [vmem:[%s169 + $0xd4] sm:$0xf]
      %v213 = vld [vmem:[%s169 + $0xd8] sm:$0xff]
      %v214 = vld [vmem:[%s169 + $0xe0] sm:$0xf]
      %v215 = vld [vmem:[%s169 + $0xe4] sm:$0xff]
      %v216 = vld [vmem:[%s169 + $0xec] sm:$0xf]
      %v217 = vld [vmem:[%s169 + $0xf0] sm:$0xff]
      %v218 = vld [vmem:[%s169 + $0xf8] sm:$0xf]
      %v219 = vld [vmem:[%s169 + $0xfc] sm:$0xff]
      %v220 = vld [vmem:[%s169 + $0x104] sm:$0xf]
      %v221 = vld [vmem:[%s169 + $0x108] sm:$0xff]
      %v222 = vld [vmem:[%s169 + $0x110] sm:$0xf]
      %v223 = vld [vmem:[%s169 + $0x114] sm:$0xff]
      %v224 = vld [vmem:[%s169 + $0x11c] sm:$0xf]
      %v225 = vld [vmem:[%s169 + $0x120] sm:$0xff]
      %v226 = vld [vmem:[%s169 + $0x128] sm:$0xf]
      %v227 = vld [vmem:[%s169 + $0x12c] sm:$0xff]
      %v228 = vld [vmem:[%s169 + $0x134] sm:$0xf]
      %v229 = vld [vmem:[%s169 + $0x138] sm:$0xff]
      %v230 = vld [vmem:[%s169 + $0x140] sm:$0xf]
      %v231 = vld [vmem:[%s169 + $0x144] sm:$0xff]
      %v232 = vld [vmem:[%s169 + $0x14c] sm:$0xf]
      %v233 = vld [vmem:[%s169 + $0x150] sm:$0xff]
      %v234 = vld [vmem:[%s169 + $0x158] sm:$0xf]
      %v235 = vld [vmem:[%s169 + $0x15c] sm:$0xff]
      %v236 = vld [vmem:[%s169 + $0x164] sm:$0xf]
      %v237 = vld [vmem:[%s169 + $0x168] sm:$0xff]
      %v238 = vld [vmem:[%s169 + $0x170] sm:$0xf]
      %v239 = vld [vmem:[%s169 + $0x174] sm:$0xff]
      %v240 = vld [vmem:[%s169 + $0x17c] sm:$0xf]
      %v241 = vld [vmem:[%s1] sm:$0xf]
      %v242 = vld [vmem:[%s1 + $0x4] sm:$0xf]
      %v243 = vld [vmem:[%s1 + $0x8] sm:$0xf]
      %v244 = vld [vmem:[%s1 + $0xc] sm:$0xf]
      %v245 = vld [vmem:[%s1 + $0x10] sm:$0xf]
      %v246 = vld [vmem:[%s1 + $0x14] sm:$0xf]
      %v247 = vld [vmem:[%s1 + $0x18] sm:$0xf]
      %v248 = vld [vmem:[%s1 + $0x1c] sm:$0xf]
      %v249 = vld [vmem:[%s1 + $0x20] sm:$0xf]
      %v250 = vld [vmem:[%s1 + $0x24] sm:$0xf]
      %v251 = vld [vmem:[%s1 + $0x28] sm:$0xf]
      %v252 = vld [vmem:[%s1 + $0x2c] sm:$0xf]
      %v253 = vld [vmem:[%s1 + $0x30] sm:$0xf]
      %v254 = vld [vmem:[%s1 + $0x34] sm:$0xf]
      %v255 = vld [vmem:[%s1 + $0x38] sm:$0xf]
      %v256 = vld [vmem:[%s1 + $0x3c] sm:$0xf]
      %v257 = vld [vmem:[%s1 + $0x40] sm:$0xf]
      %v258 = vld [vmem:[%s1 + $0x44] sm:$0xf]
      %v259 = vld [vmem:[%s1 + $0x48] sm:$0xf]
      %v260 = vld [vmem:[%s1 + $0x4c] sm:$0xf]
      %v261 = vld [vmem:[%s1 + $0x50] sm:$0xf]
      %v262 = vld [vmem:[%s1 + $0x54] sm:$0xf]
      %v263 = vld [vmem:[%s1 + $0x58] sm:$0xf]
      %v264 = vld [vmem:[%s1 + $0x5c] sm:$0xf]
      %v265 = vld [vmem:[%s1 + $0x60] sm:$0xf]
      %v266 = vld [vmem:[%s1 + $0x64] sm:$0xf]
      %v267 = vld [vmem:[%s1 + $0x68] sm:$0xf]
      %v268 = vld [vmem:[%s1 + $0x6c] sm:$0xf]
      %v269 = vld [vmem:[%s1 + $0x70] sm:$0xf]
      %v270 = vld [vmem:[%s1 + $0x74] sm:$0xf]
      %v271 = vld [vmem:[%s1 + $0x78] sm:$0xf]
      %v272 = vld [vmem:[%s1 + $0x7c] sm:$0xf]
      %v273 = vld [vmem:[%s1 + $0x80] sm:$0xf]
      %v274 = vld [vmem:[%s1 + $0x84] sm:$0xf]
      %v275 = vld [vmem:[%s1 + $0x88] sm:$0xf]
      %v276 = vld [vmem:[%s1 + $0x8c] sm:$0xf]
      %v277 = vld [vmem:[%s1 + $0x90] sm:$0xf]
      %v278 = vld [vmem:[%s1 + $0x94] sm:$0xf]
      %v279 = vld [vmem:[%s1 + $0x98] sm:$0xf]
      %v280 = vld [vmem:[%s1 + $0x9c] sm:$0xf]
      %v281 = vld [vmem:[%s1 + $0xa0] sm:$0xf]
      %v282 = vld [vmem:[%s1 + $0xa4] sm:$0xf]
      %v283 = vld [vmem:[%s1 + $0xa8] sm:$0xf]
      %v284 = vld [vmem:[%s1 + $0xac] sm:$0xf]
      %v285 = vld [vmem:[%s1 + $0xb0] sm:$0xf]
      %v286 = vld [vmem:[%s1 + $0xb4] sm:$0xf]
      %v287 = vld [vmem:[%s1 + $0xb8] sm:$0xf]
      %v288 = vld [vmem:[%s1 + $0xbc] sm:$0xf]
      %v289 = vld [vmem:[%s2] sm:$0x1]
      %v291 = vperm.slane %v289, 0
      %v357 = vunpack.c.l.b16 %v177
      %v358 = vunpack.c.h.b16 %v177
      %v359 = vunpack.c.l.b16 %v178
      %v360 = vunpack.c.l.b16 %v179
      %v361 = vunpack.c.h.b16 %v179
      %v362 = vunpack.c.l.b16 %v180
      %v363 = vunpack.c.l.b16 %v181
      %v364 = vunpack.c.h.b16 %v181
      %v365 = vunpack.c.l.b16 %v182
      %v366 = vunpack.c.l.b16 %v183
      %v367 = vunpack.c.h.b16 %v183
      %v368 = vunpack.c.l.b16 %v184
      %v369 = vunpack.c.l.b16 %v185
      %v370 = vunpack.c.h.b16 %v185
      %v371 = vunpack.c.l.b16 %v186
      %v372 = vunpack.c.l.b16 %v187
      %v373 = vunpack.c.h.b16 %v187
      %v374 = vunpack.c.l.b16 %v188
      %v375 = vunpack.c.l.b16 %v189
      %v376 = vunpack.c.h.b16 %v189
      %v377 = vunpack.c.l.b16 %v190
      %v378 = vunpack.c.l.b16 %v191
      %v379 = vunpack.c.h.b16 %v191
      %v380 = vunpack.c.l.b16 %v192
      %v381 = vunpack.c.l.b16 %v193
      %v382 = vunpack.c.h.b16 %v193
      %v383 = vunpack.c.l.b16 %v194
      %v384 = vunpack.c.l.b16 %v195
      %v385 = vunpack.c.h.b16 %v195
      %v386 = vunpack.c.l.b16 %v196
      %v387 = vunpack.c.l.b16 %v197
      %v388 = vunpack.c.h.b16 %v197
      %v389 = vunpack.c.l.b16 %v198
      %v390 = vunpack.c.l.b16 %v199
      %v391 = vunpack.c.h.b16 %v199
      %v392 = vunpack.c.l.b16 %v200
      %v393 = vunpack.c.l.b16 %v201
      %v394 = vunpack.c.h.b16 %v201
      %v395 = vunpack.c.l.b16 %v202
      %v396 = vunpack.c.l.b16 %v203
      %v397 = vunpack.c.h.b16 %v203
      %v398 = vunpack.c.l.b16 %v204
      %v399 = vunpack.c.l.b16 %v205
      %v400 = vunpack.c.h.b16 %v205
      %v401 = vunpack.c.l.b16 %v206
      %v402 = vunpack.c.l.b16 %v207
      %v403 = vunpack.c.h.b16 %v207
      %v404 = vunpack.c.l.b16 %v208
      %v405 = vunpack.c.l.b16 %v209
      %v406 = vunpack.c.h.b16 %v209
      %v407 = vunpack.c.l.b16 %v210
      %v408 = vunpack.c.l.b16 %v211
      %v409 = vunpack.c.h.b16 %v211
      %v410 = vunpack.c.l.b16 %v212
      %v411 = vunpack.c.l.b16 %v213
      %v412 = vunpack.c.h.b16 %v213
      %v413 = vunpack.c.l.b16 %v214
      %v414 = vunpack.c.l.b16 %v215
      %v415 = vunpack.c.h.b16 %v215
      %v416 = vunpack.c.l.b16 %v216
      %v417 = vunpack.c.l.b16 %v217
      %v418 = vunpack.c.h.b16 %v217
      %v419 = vunpack.c.l.b16 %v218
      %v420 = vunpack.c.l.b16 %v219
      %v421 = vunpack.c.h.b16 %v219
      %v422 = vunpack.c.l.b16 %v220
      %v423 = vunpack.c.l.b16 %v221
      %v424 = vunpack.c.h.b16 %v221
      %v425 = vunpack.c.l.b16 %v222
      %v426 = vunpack.c.l.b16 %v223
      %v427 = vunpack.c.h.b16 %v223
      %v428 = vunpack.c.l.b16 %v224
      %v429 = vunpack.c.l.b16 %v225
      %v430 = vunpack.c.h.b16 %v225
      %v431 = vunpack.c.l.b16 %v226
      %v432 = vunpack.c.l.b16 %v227
      %v433 = vunpack.c.h.b16 %v227
      %v434 = vunpack.c.l.b16 %v228
      %v435 = vunpack.c.l.b16 %v229
      %v436 = vunpack.c.h.b16 %v229
      %v437 = vunpack.c.l.b16 %v230
      %v438 = vunpack.c.l.b16 %v231
      %v439 = vunpack.c.h.b16 %v231
      %v440 = vunpack.c.l.b16 %v232
      %v441 = vunpack.c.l.b16 %v233
      %v442 = vunpack.c.h.b16 %v233
      %v443 = vunpack.c.l.b16 %v234
      %v444 = vunpack.c.l.b16 %v235
      %v445 = vunpack.c.h.b16 %v235
      %v446 = vunpack.c.l.b16 %v236
      %v447 = vunpack.c.l.b16 %v237
      %v448 = vunpack.c.h.b16 %v237
      %v449 = vunpack.c.l.b16 %v238
      %v450 = vunpack.c.l.b16 %v239
      %v451 = vunpack.c.h.b16 %v239
      %v452 = vunpack.c.l.b16 %v240
      %v453 = vpack.c.b16 %v360, %v357
      %v454 = vpack.c.b16 %v361, %v358
      %v455 = vpack.c.b16 %v362, %v359
      %v456 = vpack.c.b16 %v366, %v363
      %v457 = vpack.c.b16 %v367, %v364
      %v458 = vpack.c.b16 %v368, %v365
      %v459 = vpack.c.b16 %v372, %v369
      %v460 = vpack.c.b16 %v373, %v370
      %v461 = vpack.c.b16 %v374, %v371
      %v462 = vpack.c.b16 %v378, %v375
      %v463 = vpack.c.b16 %v379, %v376
      %v464 = vpack.c.b16 %v380, %v377
      %v465 = vpack.c.b16 %v384, %v381
      %v466 = vpack.c.b16 %v385, %v382
      %v467 = vpack.c.b16 %v386, %v383
      %v468 = vpack.c.b16 %v390, %v387
      %v469 = vpack.c.b16 %v391, %v388
      %v470 = vpack.c.b16 %v392, %v389
      %v471 = vpack.c.b16 %v396, %v393
      %v472 = vpack.c.b16 %v397, %v394
      %v473 = vpack.c.b16 %v398, %v395
      %v474 = vpack.c.b16 %v402, %v399
      %v475 = vpack.c.b16 %v403, %v400
      %v476 = vpack.c.b16 %v404, %v401
      %v477 = vpack.c.b16 %v408, %v405
      %v478 = vpack.c.b16 %v409, %v406
      %v479 = vpack.c.b16 %v410, %v407
      %v480 = vpack.c.b16 %v414, %v411
      %v481 = vpack.c.b16 %v415, %v412
      %v482 = vpack.c.b16 %v416, %v413
      %v483 = vpack.c.b16 %v420, %v417
      %v484 = vpack.c.b16 %v421, %v418
      %v485 = vpack.c.b16 %v422, %v419
      %v486 = vpack.c.b16 %v426, %v423
      %v487 = vpack.c.b16 %v427, %v424
      %v488 = vpack.c.b16 %v428, %v425
      %v489 = vpack.c.b16 %v432, %v429
      %v490 = vpack.c.b16 %v433, %v430
      %v491 = vpack.c.b16 %v434, %v431
      %v492 = vpack.c.b16 %v438, %v435
      %v493 = vpack.c.b16 %v439, %v436
      %v494 = vpack.c.b16 %v440, %v437
      %v495 = vpack.c.b16 %v444, %v441
      %v496 = vpack.c.b16 %v445, %v442
      %v497 = vpack.c.b16 %v446, %v443
      %v498 = vpack.c.b16 %v450, %v447
      %v499 = vpack.c.b16 %v451, %v448
      %v500 = vpack.c.b16 %v452, %v449
      %v597 = vunpack.c.l.b16 %v241
      %v598 = vunpack.c.l.b16 %v242
      %v599 = vunpack.c.l.b16 %v243
      %v600 = vunpack.c.l.b16 %v244
      %v601 = vunpack.c.l.b16 %v245
      %v602 = vunpack.c.l.b16 %v246
      %v603 = vunpack.c.l.b16 %v247
      %v604 = vunpack.c.l.b16 %v248
      %v605 = vunpack.c.l.b16 %v249
      %v606 = vunpack.c.l.b16 %v250
      %v607 = vunpack.c.l.b16 %v251
      %v608 = vunpack.c.l.b16 %v252
      %v609 = vunpack.c.l.b16 %v253
      %v610 = vunpack.c.l.b16 %v254
      %v611 = vunpack.c.l.b16 %v255
      %v612 = vunpack.c.l.b16 %v256
      %v613 = vunpack.c.l.b16 %v257
      %v614 = vunpack.c.l.b16 %v258
      %v615 = vunpack.c.l.b16 %v259
      %v616 = vunpack.c.l.b16 %v260
      %v617 = vunpack.c.l.b16 %v261
      %v618 = vunpack.c.l.b16 %v262
      %v619 = vunpack.c.l.b16 %v263
      %v620 = vunpack.c.l.b16 %v264
      %v621 = vunpack.c.l.b16 %v265
      %v622 = vunpack.c.l.b16 %v266
      %v623 = vunpack.c.l.b16 %v267
      %v624 = vunpack.c.l.b16 %v268
      %v625 = vunpack.c.l.b16 %v269
      %v626 = vunpack.c.l.b16 %v270
      %v627 = vunpack.c.l.b16 %v271
      %v628 = vunpack.c.l.b16 %v272
      %v629 = vunpack.c.l.b16 %v273
      %v630 = vunpack.c.l.b16 %v274
      %v631 = vunpack.c.l.b16 %v275
      %v632 = vunpack.c.l.b16 %v276
      %v633 = vunpack.c.l.b16 %v277
      %v634 = vunpack.c.l.b16 %v278
      %v635 = vunpack.c.l.b16 %v279
      %v636 = vunpack.c.l.b16 %v280
      %v637 = vunpack.c.l.b16 %v281
      %v638 = vunpack.c.l.b16 %v282
      %v639 = vunpack.c.l.b16 %v283
      %v640 = vunpack.c.l.b16 %v284
      %v641 = vunpack.c.l.b16 %v285
      %v642 = vunpack.c.l.b16 %v286
      %v643 = vunpack.c.l.b16 %v287
      %v644 = vunpack.c.l.b16 %v288
      %v645 = vpack.c.b16 %v598, %v597
      %v646 = vpack.c.b16 %v600, %v599
      %v647 = vpack.c.b16 %v602, %v601
      %v648 = vpack.c.b16 %v604, %v603
      %v649 = vpack.c.b16 %v606, %v605
      %v650 = vpack.c.b16 %v608, %v607
      %v651 = vpack.c.b16 %v610, %v609
      %v652 = vpack.c.b16 %v612, %v611
      %v653 = vpack.c.b16 %v614, %v613
      %v654 = vpack.c.b16 %v616, %v615
      %v655 = vpack.c.b16 %v618, %v617
      %v656 = vpack.c.b16 %v620, %v619
      %v657 = vpack.c.b16 %v622, %v621
      %v658 = vpack.c.b16 %v624, %v623
      %v659 = vpack.c.b16 %v626, %v625
      %v660 = vpack.c.b16 %v628, %v627
      %v661 = vpack.c.b16 %v630, %v629
      %v662 = vpack.c.b16 %v632, %v631
      %v663 = vpack.c.b16 %v634, %v633
      %v664 = vpack.c.b16 %v636, %v635
      %v665 = vpack.c.b16 %v638, %v637
      %v666 = vpack.c.b16 %v640, %v639
      %v667 = vpack.c.b16 %v642, %v641
      %v668 = vpack.c.b16 %v644, %v643
      %693 = vmatpush.bf16.msra.mxu0 %v652
      %694 = vmatpush.bf16.msra.mxu0 %v651
      %695 = vmatpush.bf16.msra.mxu0 %v650
      %696 = vmatpush.bf16.msra.mxu0 %v649
      %697 = vmatpush.bf16.msra.mxu0 %v648
      %698 = vmatpush.bf16.msra.mxu0 %v647
      %699 = vmatpush.bf16.msra.mxu0 %v646
      %700 = vmatpush.bf16.msra.mxu0 %v645
      %701 = vmatmul.bf16.gmra.mxu0 %v453
      %v702 = vpop.f32.mrf.mxu0
      %v703 = vadd.f32 %v291, %v702
      %v704 = vpop.f32.mrf.mxu0
      %v705 = vadd.f32 %v291, %v704
      %706 = vmatmul.bf16.gmra.mxu0 %v456
      %v707 = vpop.f32.mrf.mxu0
      %v708 = vadd.f32 %v291, %v707
      %v709 = vpop.f32.mrf.mxu0
      %v710 = vadd.f32 %v291, %v709
      %711 = vmatmul.bf16.gmra.mxu0 %v459
      %v712 = vpop.f32.mrf.mxu0
      %v713 = vadd.f32 %v291, %v712
      %v714 = vpop.f32.mrf.mxu0
      %v715 = vadd.f32 %v291, %v714
      %716 = vmatmul.bf16.gmra.mxu0 %v462
      %v717 = vpop.f32.mrf.mxu0
      %v718 = vadd.f32 %v291, %v717
      %v719 = vpop.f32.mrf.mxu0
      %v720 = vadd.f32 %v291, %v719
      %721 = vmatmul.bf16.gmra.mxu0 %v465
      %v722 = vpop.f32.mrf.mxu0
      %v723 = vadd.f32 %v291, %v722
      %v724 = vpop.f32.mrf.mxu0
      %v725 = vadd.f32 %v291, %v724
      %726 = vmatmul.bf16.gmra.mxu0 %v468
      %v727 = vpop.f32.mrf.mxu0
      %v728 = vadd.f32 %v291, %v727
      %v729 = vpop.f32.mrf.mxu0
      %v730 = vadd.f32 %v291, %v729
      %731 = vmatmul.bf16.gmra.mxu0 %v471
      %v732 = vpop.f32.mrf.mxu0
      %v733 = vadd.f32 %v291, %v732
      %v734 = vpop.f32.mrf.mxu0
      %v735 = vadd.f32 %v291, %v734
      %736 = vmatmul.bf16.gmra.mxu0 %v474
      %v737 = vpop.f32.mrf.mxu0
      %v738 = vadd.f32 %v291, %v737
      %v739 = vpop.f32.mrf.mxu0
      %v740 = vadd.f32 %v291, %v739
      %741 = vmatmul.bf16.gmra.mxu0 %v477
      %v742 = vpop.f32.mrf.mxu0
      %v743 = vadd.f32 %v291, %v742
      %v744 = vpop.f32.mrf.mxu0
      %v745 = vadd.f32 %v291, %v744
      %746 = vmatmul.bf16.gmra.mxu0 %v480
      %v747 = vpop.f32.mrf.mxu0
      %v748 = vadd.f32 %v291, %v747
      %v749 = vpop.f32.mrf.mxu0
      %v750 = vadd.f32 %v291, %v749
      %751 = vmatmul.bf16.gmra.mxu0 %v483
      %v752 = vpop.f32.mrf.mxu0
      %v753 = vadd.f32 %v291, %v752
      %v754 = vpop.f32.mrf.mxu0
      %v755 = vadd.f32 %v291, %v754
      %756 = vmatmul.bf16.gmra.mxu0 %v486
      %v757 = vpop.f32.mrf.mxu0
      %v758 = vadd.f32 %v291, %v757
      %v759 = vpop.f32.mrf.mxu0
      %v760 = vadd.f32 %v291, %v759
      %761 = vmatmul.bf16.gmra.mxu0 %v489
      %v762 = vpop.f32.mrf.mxu0
      %v763 = vadd.f32 %v291, %v762
      %v764 = vpop.f32.mrf.mxu0
      %v765 = vadd.f32 %v291, %v764
      %766 = vmatmul.bf16.gmra.mxu0 %v492
      %v767 = vpop.f32.mrf.mxu0
      %v768 = vadd.f32 %v291, %v767
      %v769 = vpop.f32.mrf.mxu0
      %v770 = vadd.f32 %v291, %v769
      %771 = vmatmul.bf16.gmra.mxu0 %v495
      %v772 = vpop.f32.mrf.mxu0
      %v773 = vadd.f32 %v291, %v772
      %v774 = vpop.f32.mrf.mxu0
      %v775 = vadd.f32 %v291, %v774
      %776 = vmatmul.bf16.gmra.mxu0 %v498
      %v777 = vpop.f32.mrf.mxu0
      %v778 = vadd.f32 %v291, %v777
      %v779 = vpop.f32.mrf.mxu0
      %v780 = vadd.f32 %v291, %v779
      %781 = vdwg.mxu0
      %782 = vmatpush.bf16.msra.mxu0 %v660
      %783 = vmatpush.bf16.msra.mxu0 %v659
      %784 = vmatpush.bf16.msra.mxu0 %v658
      %785 = vmatpush.bf16.msra.mxu0 %v657
      %786 = vmatpush.bf16.msra.mxu0 %v656
      %787 = vmatpush.bf16.msra.mxu0 %v655
      %788 = vmatpush.bf16.msra.mxu0 %v654
      %789 = vmatpush.bf16.msra.mxu0 %v653
      %790 = vmatmul.bf16.gmra.mxu0 %v454
      %v791 = vpop.f32.mrf.mxu0
      %v792 = vadd.f32 %v703, %v791
      %v793 = vpop.f32.mrf.mxu0
      %v794 = vadd.f32 %v705, %v793
      %795 = vmatmul.bf16.gmra.mxu0 %v457
      %v796 = vpop.f32.mrf.mxu0
      %v797 = vadd.f32 %v708, %v796
      %v798 = vpop.f32.mrf.mxu0
      %v799 = vadd.f32 %v710, %v798
      %800 = vmatmul.bf16.gmra.mxu0 %v460
      %v801 = vpop.f32.mrf.mxu0
      %v802 = vadd.f32 %v713, %v801
      %v803 = vpop.f32.mrf.mxu0
      %v804 = vadd.f32 %v715, %v803
      %805 = vmatmul.bf16.gmra.mxu0 %v463
      %v806 = vpop.f32.mrf.mxu0
      %v807 = vadd.f32 %v718, %v806
      %v808 = vpop.f32.mrf.mxu0
      %v809 = vadd.f32 %v720, %v808
      %810 = vmatmul.bf16.gmra.mxu0 %v466
      %v811 = vpop.f32.mrf.mxu0
      %v812 = vadd.f32 %v723, %v811
      %v813 = vpop.f32.mrf.mxu0
      %v814 = vadd.f32 %v725, %v813
      %815 = vmatmul.bf16.gmra.mxu0 %v469
      %v816 = vpop.f32.mrf.mxu0
      %v817 = vadd.f32 %v728, %v816
      %v818 = vpop.f32.mrf.mxu0
      %v819 = vadd.f32 %v730, %v818
      %820 = vmatmul.bf16.gmra.mxu0 %v472
      %v821 = vpop.f32.mrf.mxu0
      %v822 = vadd.f32 %v733, %v821
      %v823 = vpop.f32.mrf.mxu0
      %v824 = vadd.f32 %v735, %v823
      %825 = vmatmul.bf16.gmra.mxu0 %v475
      %v826 = vpop.f32.mrf.mxu0
      %v827 = vadd.f32 %v738, %v826
      %v828 = vpop.f32.mrf.mxu0
      %v829 = vadd.f32 %v740, %v828
      %830 = vmatmul.bf16.gmra.mxu0 %v478
      %v831 = vpop.f32.mrf.mxu0
      %v832 = vadd.f32 %v743, %v831
      %v833 = vpop.f32.mrf.mxu0
      %v834 = vadd.f32 %v745, %v833
      %835 = vmatmul.bf16.gmra.mxu0 %v481
      %v836 = vpop.f32.mrf.mxu0
      %v837 = vadd.f32 %v748, %v836
      %v838 = vpop.f32.mrf.mxu0
      %v839 = vadd.f32 %v750, %v838
      %840 = vmatmul.bf16.gmra.mxu0 %v484
      %v841 = vpop.f32.mrf.mxu0
      %v842 = vadd.f32 %v753, %v841
      %v843 = vpop.f32.mrf.mxu0
      %v844 = vadd.f32 %v755, %v843
      %845 = vmatmul.bf16.gmra.mxu0 %v487
      %v846 = vpop.f32.mrf.mxu0
      %v847 = vadd.f32 %v758, %v846
      %v848 = vpop.f32.mrf.mxu0
      %v849 = vadd.f32 %v760, %v848
      %850 = vmatmul.bf16.gmra.mxu0 %v490
      %v851 = vpop.f32.mrf.mxu0
      %v852 = vadd.f32 %v763, %v851
      %v853 = vpop.f32.mrf.mxu0
      %v854 = vadd.f32 %v765, %v853
      %855 = vmatmul.bf16.gmra.mxu0 %v493
      %v856 = vpop.f32.mrf.mxu0
      %v857 = vadd.f32 %v768, %v856
      %v858 = vpop.f32.mrf.mxu0
      %v859 = vadd.f32 %v770, %v858
      %860 = vmatmul.bf16.gmra.mxu0 %v496
      %v861 = vpop.f32.mrf.mxu0
      %v862 = vadd.f32 %v773, %v861
      %v863 = vpop.f32.mrf.mxu0
      %v864 = vadd.f32 %v775, %v863
      %865 = vmatmul.bf16.gmra.mxu0 %v499
      %v866 = vpop.f32.mrf.mxu0
      %v867 = vadd.f32 %v778, %v866
      %v868 = vpop.f32.mrf.mxu0
      %v869 = vadd.f32 %v780, %v868
      %870 = vdwg.mxu0
      %871 = vmatpush.bf16.msra.mxu0 %v668
      %872 = vmatpush.bf16.msra.mxu0 %v667
      %873 = vmatpush.bf16.msra.mxu0 %v666
      %874 = vmatpush.bf16.msra.mxu0 %v665
      %875 = vmatpush.bf16.msra.mxu0 %v664
      %876 = vmatpush.bf16.msra.mxu0 %v663
      %877 = vmatpush.bf16.msra.mxu0 %v662
      %878 = vmatpush.bf16.msra.mxu0 %v661
      %879 = vmatmul.bf16.gmra.mxu0 %v455
      %v880 = vpop.f32.mrf.mxu0
      %v881 = vadd.f32 %v792, %v880
      %v882 = vpop.f32.mrf.mxu0
      %v883 = vadd.f32 %v794, %v882
      %884 = vmatmul.bf16.gmra.mxu0 %v458
      %v885 = vpop.f32.mrf.mxu0
      %v886 = vadd.f32 %v797, %v885
      %v887 = vpop.f32.mrf.mxu0
      %v888 = vadd.f32 %v799, %v887
      %889 = vmatmul.bf16.gmra.mxu0 %v461
      %v890 = vpop.f32.mrf.mxu0
      %v891 = vadd.f32 %v802, %v890
      %v892 = vpop.f32.mrf.mxu0
      %v893 = vadd.f32 %v804, %v892
      %894 = vmatmul.bf16.gmra.mxu0 %v464
      %v895 = vpop.f32.mrf.mxu0
      %v896 = vadd.f32 %v807, %v895
      %v897 = vpop.f32.mrf.mxu0
      %v898 = vadd.f32 %v809, %v897
      %899 = vmatmul.bf16.gmra.mxu0 %v467
      %v900 = vpop.f32.mrf.mxu0
      %v901 = vadd.f32 %v812, %v900
      %v902 = vpop.f32.mrf.mxu0
      %v903 = vadd.f32 %v814, %v902
      %904 = vmatmul.bf16.gmra.mxu0 %v470
      %v905 = vpop.f32.mrf.mxu0
      %v906 = vadd.f32 %v817, %v905
      %v907 = vpop.f32.mrf.mxu0
      %v908 = vadd.f32 %v819, %v907
      %909 = vmatmul.bf16.gmra.mxu0 %v473
      %v910 = vpop.f32.mrf.mxu0
      %v911 = vadd.f32 %v822, %v910
      %v912 = vpop.f32.mrf.mxu0
      %v913 = vadd.f32 %v824, %v912
      %914 = vmatmul.bf16.gmra.mxu0 %v476
      %v915 = vpop.f32.mrf.mxu0
      %v916 = vadd.f32 %v827, %v915
      %v917 = vpop.f32.mrf.mxu0
      %v918 = vadd.f32 %v829, %v917
      %919 = vmatmul.bf16.gmra.mxu0 %v479
      %v920 = vpop.f32.mrf.mxu0
      %v921 = vadd.f32 %v832, %v920
      %v922 = vpop.f32.mrf.mxu0
      %v923 = vadd.f32 %v834, %v922
      %924 = vmatmul.bf16.gmra.mxu0 %v482
      %v925 = vpop.f32.mrf.mxu0
      %v926 = vadd.f32 %v837, %v925
      %v927 = vpop.f32.mrf.mxu0
      %v928 = vadd.f32 %v839, %v927
      %929 = vmatmul.bf16.gmra.mxu0 %v485
      %v930 = vpop.f32.mrf.mxu0
      %v931 = vadd.f32 %v842, %v930
      %v932 = vpop.f32.mrf.mxu0
      %v933 = vadd.f32 %v844, %v932
      %934 = vmatmul.bf16.gmra.mxu0 %v488
      %v935 = vpop.f32.mrf.mxu0
      %v936 = vadd.f32 %v847, %v935
      %v937 = vpop.f32.mrf.mxu0
      %v938 = vadd.f32 %v849, %v937
      %939 = vmatmul.bf16.gmra.mxu0 %v491
      %v940 = vpop.f32.mrf.mxu0
      %v941 = vadd.f32 %v852, %v940
      %v942 = vpop.f32.mrf.mxu0
      %v943 = vadd.f32 %v854, %v942
      %944 = vmatmul.bf16.gmra.mxu0 %v494
      %v945 = vpop.f32.mrf.mxu0
      %v946 = vadd.f32 %v857, %v945
      %v947 = vpop.f32.mrf.mxu0
      %v948 = vadd.f32 %v859, %v947
      %949 = vmatmul.bf16.gmra.mxu0 %v497
      %v950 = vpop.f32.mrf.mxu0
      %v951 = vadd.f32 %v862, %v950
      %v952 = vpop.f32.mrf.mxu0
      %v953 = vadd.f32 %v864, %v952
      %954 = vmatmul.bf16.gmra.mxu0 %v500
      %v955 = vpop.f32.mrf.mxu0
      %v956 = vadd.f32 %v867, %v955
      %v957 = vpop.f32.mrf.mxu0
      %v958 = vadd.f32 %v869, %v957
      %959 = vdwg.mxu0
      %960 = vst [vmem:[%s175] sm:$0xff] %v881
      %961 = vst [vmem:[%s175 + $0x8] sm:$0xff] %v883
      %962 = vst [vmem:[%s175 + $0x10] sm:$0xff] %v886
      %963 = vst [vmem:[%s175 + $0x18] sm:$0xff] %v888
      %964 = vst [vmem:[%s175 + $0x20] sm:$0xff] %v891
      %965 = vst [vmem:[%s175 + $0x28] sm:$0xff] %v893
      %966 = vst [vmem:[%s175 + $0x30] sm:$0xff] %v896
      %967 = vst [vmem:[%s175 + $0x38] sm:$0xff] %v898
      %968 = vst [vmem:[%s175 + $0x40] sm:$0xff] %v901
      %969 = vst [vmem:[%s175 + $0x48] sm:$0xff] %v903
      %970 = vst [vmem:[%s175 + $0x50] sm:$0xff] %v906
      %971 = vst [vmem:[%s175 + $0x58] sm:$0xff] %v908
      %972 = vst [vmem:[%s175 + $0x60] sm:$0xff] %v911
      %973 = vst [vmem:[%s175 + $0x68] sm:$0xff] %v913
      %974 = vst [vmem:[%s175 + $0x70] sm:$0xff] %v916
      %975 = vst [vmem:[%s175 + $0x78] sm:$0xff] %v918
      %976 = vst [vmem:[%s175 + $0x80] sm:$0xff] %v921
      %977 = vst [vmem:[%s175 + $0x88] sm:$0xff] %v923
      %978 = vst [vmem:[%s175 + $0x90] sm:$0xff] %v926
      %979 = vst [vmem:[%s175 + $0x98] sm:$0xff] %v928
      %980 = vst [vmem:[%s175 + $0xa0] sm:$0xff] %v931
      %981 = vst [vmem:[%s175 + $0xa8] sm:$0xff] %v933
      %982 = vst [vmem:[%s175 + $0xb0] sm:$0xff] %v936
      %983 = vst [vmem:[%s175 + $0xb8] sm:$0xff] %v938
      %984 = vst [vmem:[%s175 + $0xc0] sm:$0xff] %v941
      %985 = vst [vmem:[%s175 + $0xc8] sm:$0xff] %v943
      %986 = vst [vmem:[%s175 + $0xd0] sm:$0xff] %v946
      %987 = vst [vmem:[%s175 + $0xd8] sm:$0xff] %v948
      %988 = vst [vmem:[%s175 + $0xe0] sm:$0xff] %v951
      %989 = vst [vmem:[%s175 + $0xe8] sm:$0xff] %v953
      %990 = vst [vmem:[%s175 + $0xf0] sm:$0xff] %v956
      %991 = vst [vmem:[%s175 + $0xf8] sm:$0xff] %v958
      %s992 = smul.u32 32, %s14
      %p993 = scmp.lt.s32.totalorder %s992, 63
      %s994 = scalar_select %p993, %s992, 63
      %s995 = smul.addr %s994, 8
      %s996 = scalar_lea.vmem %s3, %s995
      // Predicated region
      $region33: #{vae_forward.21} parent=31 // pred_check
        %p997 = pneg %p100
      $region34: #{vae_forward.21} parent=31 // pred_check_branch
        %999 = sbr.rel (%p997) target = $region36
      $region35: #{vae_forward.21} parent=31 // pred_region
        %s1000 = smul.u32 32, %s14
      $region36: #{vae_forward.21} parent=31 // pred_fallthru
        _
    $region32: #{vae_forward.21} parent=5 // pred_fallthru
      _
    %p1001 = scmp.le.s32.totalorder 2, %s9
    // Predicated region
    $region37: #{vae_forward.21} parent=5 // pred_check
      %p1002 = pneg %p1001
    $region38: #{vae_forward.21} parent=5 // pred_check_branch
      %1004 = sbr.rel (%p1002) target = $region40
    $region39: #{vae_forward.21} parent=5 // pred_region
      %s1005 = ssub.s32 %s9, 2
      // Predicated region
      $region41: #{vae_forward.21} parent=39 // pred_check
        %p1006 = pneg %p106
      $region42: #{vae_forward.21} parent=39 // pred_check_branch
        %1008 = sbr.rel (%p1006) target = $region44
      $region43: #{vae_forward.21} parent=39 // pred_region
        %s1009 = smul.u32 32, %s15
        %p1010 = scmp.lt.s32.totalorder %s1009, 63
        %s1011 = scalar_select %p1010, %s1009, 63
        %s1012 = smul.addr %s1011, 8
        %s1013 = scalar_lea.vmem %s3, %s1012
      $region44: #{vae_forward.21} parent=39 // pred_fallthru
        _
    $region40: #{vae_forward.21} parent=5 // pred_fallthru
      _
  $region6: #{vae_forward.21} parent=0 // loop_footer
    %s13 = sadd.s32 1, %s9
  $region7: #{vae_forward.21} parent=0 // loop_footer_branch
    %8 = sbr.rel target = $region3
  $region8: #{vae_forward.21} parent=0 // loop_exit
    _

</llo_original>
